<compile_context>
chip_gen: v7x
topology: tpu7x:2x2x1
jax: 0.10.0
libtpu: 0.0.40
codegen_flags: <defaults>
</compile_context>

<pallas_src>
import jax
import jax.numpy as jnp
from jax.experimental import pallas as pl
from jax.experimental.pallas import tpu as pltpu


def _round_up(x, m):
    return ((x + m - 1) // m) * m


# ----------------------------- fused extractor + head kernel -----------------

def make_dernet_extractor(num_steps, B, H, W, K1p, C1, C2, NH):
    """Per-step: conv1(+BN+ReLU) -> block-diag conv2(+BN+ReLU) -> GAP -> head."""
    Hp, Wp = H + 2, W + 2
    P = Hp * Wp                      # conv outputs on the 1-px padded grid
    P8 = _round_up(P, 8)             # per-image row pitch (sublane aligned)
    G = _round_up(Wp + 1, 8)         # zero-guard rows (>= max |tap shift|)
    SEG = P8 + 2 * G                 # guarded per-image segment in h1 scratch
    BP = B * P8
    inv_hw = 1.0 / float(H * W)

    def kernel(cols_ref, mask_ref, w1_ref, b1_ref, w2_ref, b2_ref,
               hw_ref, hb_ref, feat_ref, head_ref, h1_ref, cols2_ref):
        # ---- layer 1: both convnets fused along C, one GEMM over the tile ---
        acc1 = jnp.dot(cols_ref[...], w1_ref[...],
                       preferred_element_type=jnp.float32)        # (B*P8, C1)
        # mask zeroes the 1-px halo (and dummy pad rows) -> true SAME padding
        h1 = (jnp.maximum(acc1 + b1_ref[...], 0.0)
              * mask_ref[...]).astype(jnp.bfloat16)

        # ---- zero-guarded flat layout: a 3x3 tap becomes a row shift --------
        zg = jnp.zeros((G, C1), h1_ref.dtype)
        for bi in range(B):
            base = bi * SEG
            h1_ref[base:base + G, :] = zg
            h1_ref[base + G + P8:base + SEG, :] = zg
            h1_ref[base + G:base + G + P8, :] = h1[bi * P8:(bi + 1) * P8, :]

        # ---- layer 2: build (B*P8, 9*C1) im2col in VMEM, single K=576 GEMM --
        for bi in range(B):
            src = bi * SEG + G
            dst = bi * P8
            for t in range(9):
                di, dj = t // 3, t % 3
                off = (di - 1) * Wp + (dj - 1)
                cols2_ref[dst:dst + P8, t * C1:(t + 1) * C1] = \
                    h1_ref[src + off:src + off + P8, :]

        acc2 = jnp.dot(cols2_ref[...], w2_ref[...],
                       preferred_element_type=jnp.float32)        # (B*P8, C2)
        y2 = jnp.maximum(acc2 + b2_ref[...], 0.0) * mask_ref[...]

        # ---- fused GAP (XLU cross-sublane reduce) + head epilogue -----------
        rows = [jnp.sum(y2[bi * P8:(bi + 1) * P8, :], axis=0, keepdims=True)
                for bi in range(B)]
        feats = jnp.concatenate(rows, axis=0) * inv_hw            # (B, C2) f32
        feat_ref[...] = feats.astype(feat_ref.dtype)
        head = jnp.dot(feats, hw_ref[...],
                       preferred_element_type=jnp.float32) + hb_ref[...]
        head_ref[...] = head.astype(head_ref.dtype)

    def call(cols, mask, w1, b1, w2, b2, head_w, head_b):
        return pl.pallas_call(
            kernel,
            out_shape=(jax.ShapeDtypeStruct((num_steps, B, C2), jnp.float32),
                       jax.ShapeDtypeStruct((num_steps, B, NH), jnp.float32)),
            grid=(num_steps,),
            in_specs=[
                pl.BlockSpec((None, BP, K1p), lambda b: (b, 0, 0)),  # cols tile
                pl.BlockSpec((BP, 1), lambda b: (0, 0)),             # mask
                pl.BlockSpec((K1p, C1), lambda b: (0, 0)),           # conv1 W
                pl.BlockSpec((1, C1), lambda b: (0, 0)),             # conv1 b
                pl.BlockSpec((9 * C1, C2), lambda b: (0, 0)),        # conv2 W
                pl.BlockSpec((1, C2), lambda b: (0, 0)),             # conv2 b
                pl.BlockSpec((C2, NH), lambda b: (0, 0)),            # head W
                pl.BlockSpec((1, NH), lambda b: (0, 0)),             # head b
            ],
            out_specs=(pl.BlockSpec((None, B, C2), lambda b: (b, 0, 0)),
                       pl.BlockSpec((None, B, NH), lambda b: (b, 0, 0))),
            scratch_shapes=[
                pltpu.VMEM((B * SEG, C1), jnp.bfloat16),   # guarded layer-1 out
                pltpu.VMEM((BP, 9 * C1), jnp.bfloat16),    # layer-2 im2col
            ],
            compiler_params=pltpu.CompilerParams(
                dimension_semantics=("parallel",)),
        )(cols, mask, w1, b1, w2, b2, head_w, head_b)

    return call


# ----------------------------- params / forward ------------------------------

def fold_bn(gamma, beta, running_mean, running_var, eps=1e-5):
    scale = gamma / jnp.sqrt(running_var + eps)
    bias = beta - running_mean * scale
    return scale, bias


def init_params(key, cin=3, c1_per=32, out_dim=64, n_convnets=2,
                nb_classes=10, aux_classes=6):
    C1 = c1_per * n_convnets          # fused layer-1 width (64)
    C2 = out_dim * n_convnets         # fused layer-2 width / feature_dim (128)
    K1 = 9 * cin                      # 27
    K1p = max(32, _round_up(K1, 8))   # K padded for lane/MXU alignment
    ks = jax.random.split(key, 4 * n_convnets + 4)

    w1 = jnp.zeros((K1p, C1), jnp.float32)
    b1 = jnp.zeros((1, C1), jnp.float32)
    w2 = jnp.zeros((9 * C1, C2), jnp.float32)
    b2 = jnp.zeros((1, C2), jnp.float32)
    raw_convnets = []

    for e in range(n_convnets):
        k0, k1_, k2, k3 = ks[4 * e], ks[4 * e + 1], ks[4 * e + 2], ks[4 * e + 3]
        w1_e = jax.random.normal(k0, (c1_per, cin, 3, 3), jnp.float32) * 0.1
        w2_e = jax.random.normal(k1_, (out_dim, c1_per, 3, 3), jnp.float32) * 0.05
        rm1 = jax.random.normal(k2, (c1_per,), jnp.float32) * 0.01
        rm2 = jax.random.normal(k3, (out_dim,), jnp.float32) * 0.01
        s1, bb1 = fold_bn(jnp.ones((c1_per,)), jnp.zeros((c1_per,)), rm1,
                          jnp.ones((c1_per,)))
        s2, bb2 = fold_bn(jnp.ones((out_dim,)), jnp.zeros((out_dim,)), rm2,
                          jnp.ones((out_dim,)))
        raw_convnets.append({'w1': w1_e, 'scale1': s1, 'bias1': bb1,
                             'w2': w2_e, 'scale2': s2, 'bias2': bb2})

        # fold BN scale into the GEMM weights (exact: x@(W*s)+b == (x@W)*s+b)
        w1_mat = jnp.transpose(w1_e, (2, 3, 1, 0)).reshape(K1, c1_per) * s1[None, :]
        w1 = w1.at[:K1, e * c1_per:(e + 1) * c1_per].set(w1_mat)
        b1 = b1.at[0, e * c1_per:(e + 1) * c1_per].set(bb1)
        for t in range(9):
            di, dj = t // 3, t % 3
            tap = w2_e[:, :, di, dj].T * s2[None, :]          # (c1_per, out_dim)
            w2 = w2.at[t * C1 + e * c1_per:t * C1 + (e + 1) * c1_per,
                       e * out_dim:(e + 1) * out_dim].set(tap)
        b2 = b2.at[0, e * out_dim:(e + 1) * out_dim].set(bb2)

    fc_w = jax.random.normal(ks[-4], (nb_classes, C2), jnp.float32) * 0.05
    fc_b = jax.random.normal(ks[-3], (nb_classes,), jnp.float32) * 0.01
    aux_w = jax.random.normal(ks[-2], (aux_classes, out_dim), jnp.float32) * 0.05
    aux_b = jax.random.normal(ks[-1], (aux_classes,), jnp.float32) * 0.01
    head_w = jnp.zeros((C2, nb_classes + aux_classes), jnp.float32)
    head_w = head_w.at[:, :nb_classes].set(fc_w.T)
    head_w = head_w.at[C2 - out_dim:, nb_classes:].set(aux_w.T)  # aux on last out_dim
    head_b = jnp.concatenate([fc_b, aux_b]).reshape(1, -1)

    return {
        'w1': w1.astype(jnp.bfloat16), 'b1': b1,
        'w2': w2.astype(jnp.bfloat16), 'b2': b2,
        'head_w': head_w, 'head_b': head_b,
        'K1p': K1p, 'C1': C1, 'C2': C2,
        'nb_classes': nb_classes, 'aux_classes': aux_classes, 'out_dim': out_dim,
        'raw': {'convnets': raw_convnets, 'fc_w': fc_w, 'fc_b': fc_b,
                'aux_w': aux_w, 'aux_b': aux_b},
    }


def dernet_forward(x_nchw, params, b_tile=None):
    N, Cin, H, W = x_nchw.shape
    Hp, Wp = H + 2, W + 2
    P = Hp * Wp
    P8 = _round_up(P, 8)
    K1, K1p = 9 * Cin, params['K1p']
    C1, C2 = params['C1'], params['C2']
    nb, na = params['nb_classes'], params['aux_classes']
    NH = nb + na

    if b_tile is None:
        # keep >= 2 grid steps so both v7x TensorCores get work; cap the tile.
        b_tile = max(1, min(8, N // 2))
    num_steps = -(-N // b_tile)
    Npad = num_steps * b_tile

    x = jnp.transpose(x_nchw, (0, 2, 3, 1))                       # NCHW -> NHWC
    # Layer-1 im2col, built over the PADDED output grid so the in-kernel
    # layer-1 output lands directly in the flat padded layout used by the
    # layer-2 shift trick; the 576-wide layer-2 im2col stays VMEM-resident.
    xp2 = jnp.pad(x, ((0, 0), (2, 2), (2, 2), (0, 0)))
    patches = jnp.stack([xp2[:, i:i + Hp, j:j + Wp, :]
                         for i in range(3) for j in range(3)], axis=3)
    cols = patches.reshape(N, P, K1)
    cols = jnp.pad(cols, ((0, 0), (0, P8 - P), (0, K1p - K1)))    # row + K pad
    if Npad != N:
        cols = jnp.pad(cols, ((0, Npad - N), (0, 0), (0, 0)))
    cols = cols.reshape(num_steps, b_tile * P8, K1p).astype(jnp.bfloat16)

    # interior mask: 1 inside the H x W image, 0 on the halo / dummy pad rows
    mask = jnp.pad(jnp.ones((H, W), jnp.float32), ((1, 1), (1, 1))).reshape(P, 1)
    mask = jnp.pad(mask, ((0, P8 - P), (0, 0)))
    mask = jnp.tile(mask, (b_tile, 1))

    extractor = make_dernet_extractor(num_steps, b_tile, H, W, K1p, C1, C2, NH)
    feat3, head3 = extractor(cols, mask, params['w1'], params['b1'],
                             params['w2'], params['b2'],
                             params['head_w'], params['head_b'])
    features = feat3.reshape(Npad, C2)[:N]
    head = head3.reshape(Npad, NH)[:N]
    return {
        'logits': head[:, :nb],
        'aux_logits': head[:, nb:nb + na],
        'features': features,
    }


# ----------------------------- pure-JAX reference ----------------------------

def reference_forward(x_nchw, params):
    raw, out_dim = params['raw'], params['out_dim']
    x = jnp.transpose(x_nchw, (0, 2, 3, 1))
    feats = []
    for cv in raw['convnets']:
        h = jax.lax.conv_general_dilated(
            x, jnp.transpose(cv['w1'], (2, 3, 1, 0)), (1, 1), 'SAME',
            dimension_numbers=('NHWC', 'HWIO', 'NHWC'))
        h = jnp.maximum(h * cv['scale1'] + cv['bias1'], 0.0)
        h = jax.lax.conv_general_dilated(
            h, jnp.transpose(cv['w2'], (2, 3, 1, 0)), (1, 1), 'SAME',
            dimension_numbers=('NHWC', 'HWIO', 'NHWC'))
        h = jnp.maximum(h * cv['scale2'] + cv['bias2'], 0.0)
        feats.append(jnp.mean(h, axis=(1, 2)))
    features = jnp.concatenate(feats, axis=1)
    logits = features @ raw['fc_w'].T + raw['fc_b']
    aux = features[:, -out_dim:] @ raw['aux_w'].T + raw['aux_b']
    return {'logits': logits, 'aux_logits': aux, 'features': features}


if __name__ == "__main__":
    key = jax.random.PRNGKey(0)
    kx, kx2, kp = jax.random.split(key, 3)
    params = init_params(kp)

    # case 1: batch=2 -> B_TILE=1, 2 parallel grid steps
    x = jax.random.normal(kx, (2, 3, 16, 16), jnp.float32)        # NCHW, CIFAR-like
    out = dernet_forward(x, params)
    jax.block_until_ready(out)
    assert out['logits'].shape == (2, 10)
    assert out['aux_logits'].shape == (2, 6)
    assert out['features'].shape == (2, 128)
    ref = reference_forward(x, params)
    for name in ('features', 'logits', 'aux_logits'):
        assert jnp.allclose(out[name], ref[name], rtol=5e-2, atol=5e-2), name

    # case 2: batch=8 -> exercises the batch-tiled path (B_TILE=4, 2 steps)
    x2 = jax.random.normal(kx2, (8, 3, 16, 16), jnp.float32)
    out2 = dernet_forward(x2, params)
    jax.block_until_ready(out2)
    ref2 = reference_forward(x2, params)
    for name in ('features', 'logits', 'aux_logits'):
        assert jnp.allclose(out2[name], ref2[name], rtol=5e-2, atol=5e-2), name

    print("KERNEL_OK")
</pallas_src>

<mosaic_0001>
module attributes {stable_mosaic.version = 11 : i64} {
  func.func @kernel(%arg0: i32, %arg1: memref<1x328x32xbf16, #tpu.memory_space<vmem>>, %arg2: memref<328x1xf32, #tpu.memory_space<vmem>>, %arg3: memref<32x64xbf16, #tpu.memory_space<vmem>>, %arg4: memref<1x64xf32, #tpu.memory_space<vmem>>, %arg5: memref<576x128xbf16, #tpu.memory_space<vmem>>, %arg6: memref<1x128xf32, #tpu.memory_space<vmem>>, %arg7: memref<128x16xf32, #tpu.memory_space<vmem>>, %arg8: memref<1x16xf32, #tpu.memory_space<vmem>>, %arg9: memref<1x1x128xf32, #tpu.memory_space<vmem>>, %arg10: memref<1x1x16xf32, #tpu.memory_space<vmem>>, %arg11: memref<376x64xbf16, #tpu.memory_space<vmem>>, %arg12: memref<328x576xbf16, #tpu.memory_space<vmem>>) attributes {dimension_semantics = [#tpu.dimension_semantics<parallel>], iteration_bounds = array<i64: 2>, scalar_prefetch = 0 : i64, scratch_operands = 2 : i64, tpu.core_type = #tpu.core_type<tc>, window_params = [{transform_indices = @transform_0, window_bounds = array<i64: 1, 328, 32>}, {pipeline_mode = #tpu.pipeline_mode<synchronous>, transform_indices = @transform_1, window_bounds = array<i64: 328, 1>}, {pipeline_mode = #tpu.pipeline_mode<synchronous>, transform_indices = @transform_2, window_bounds = array<i64: 32, 64>}, {pipeline_mode = #tpu.pipeline_mode<synchronous>, transform_indices = @transform_3, window_bounds = array<i64: 1, 64>}, {pipeline_mode = #tpu.pipeline_mode<synchronous>, transform_indices = @transform_4, window_bounds = array<i64: 576, 128>}, {pipeline_mode = #tpu.pipeline_mode<synchronous>, transform_indices = @transform_5, window_bounds = array<i64: 1, 128>}, {pipeline_mode = #tpu.pipeline_mode<synchronous>, transform_indices = @transform_6, window_bounds = array<i64: 128, 16>}, {pipeline_mode = #tpu.pipeline_mode<synchronous>, transform_indices = @transform_7, window_bounds = array<i64: 1, 16>}, {transform_indices = @transform_8, window_bounds = array<i64: 1, 1, 128>}, {transform_indices = @transform_9, window_bounds = array<i64: 1, 1, 16>}]} {
    %c0 = arith.constant 0 : index
    %c0_0 = arith.constant 0 : index
    %c0_1 = arith.constant 0 : index
    %0 = vector.load %arg1[%c0, %c0_0, %c0_1] : memref<1x328x32xbf16, #tpu.memory_space<vmem>>, vector<1x328x32xbf16>
    %1 = vector.shape_cast %0 : vector<1x328x32xbf16> to vector<328x32xbf16>
    %c0_2 = arith.constant 0 : index
    %c0_3 = arith.constant 0 : index
    %2 = vector.load %arg3[%c0_2, %c0_3] : memref<32x64xbf16, #tpu.memory_space<vmem>>, vector<32x64xbf16>
    %cst = arith.constant dense<0.000000e+00> : vector<328x64xf32>
    %3 = tpu.matmul %1, %2, %cst {dimension_numbers = #tpu.dot_dimension_numbers<[1], [0], [0], [1], [0, 0, 1, 1], [], []>} : vector<328x32xbf16>, vector<32x64xbf16>, vector<328x64xf32> -> vector<328x64xf32>
    %c0_4 = arith.constant 0 : index
    %c0_5 = arith.constant 0 : index
    %4 = vector.load %arg4[%c0_4, %c0_5] : memref<1x64xf32, #tpu.memory_space<vmem>>, vector<1x64xf32>
    %5 = vector.broadcast %4 : vector<1x64xf32> to vector<328x64xf32>
    %6 = arith.addf %3, %5 : vector<328x64xf32>
    %cst_6 = arith.constant 0.000000e+00 : f32
    %7 = vector.broadcast %cst_6 : f32 to vector<328x64xf32>
    %8 = arith.maximumf %6, %7 : vector<328x64xf32>
    %c0_7 = arith.constant 0 : index
    %c0_8 = arith.constant 0 : index
    %9 = vector.load %arg2[%c0_7, %c0_8] : memref<328x1xf32, #tpu.memory_space<vmem>>, vector<328x1xf32>
    %10 = vector.broadcast %9 : vector<328x1xf32> to vector<328x64xf32>
    %11 = arith.mulf %8, %10 : vector<328x64xf32>
    %12 = arith.truncf %11 : vector<328x64xf32> to vector<328x64xbf16>
    %cst_9 = arith.constant 0.000000e+00 : bf16
    %13 = vector.broadcast %cst_9 : bf16 to vector<24x64xbf16>
    %c0_10 = arith.constant 0 : index
    %c0_11 = arith.constant 0 : index
    %14 = vector.load %arg11[%c0_10, %c0_11] : memref<376x64xbf16, #tpu.memory_space<vmem>>, vector<24x64xbf16>
    tpu.vector_store %arg11[%c0_10, %c0_11], %13 {strides = array<i32>} : memref<376x64xbf16, #tpu.memory_space<vmem>>, vector<24x64xbf16>,
    %c352 = arith.constant 352 : index
    %c0_12 = arith.constant 0 : index
    %15 = vector.load %arg11[%c352, %c0_12] : memref<376x64xbf16, #tpu.memory_space<vmem>>, vector<24x64xbf16>
    tpu.vector_store %arg11[%c352, %c0_12], %13 {strides = array<i32>} : memref<376x64xbf16, #tpu.memory_space<vmem>>, vector<24x64xbf16>,
    %c24 = arith.constant 24 : index
    %c0_13 = arith.constant 0 : index
    %16 = vector.load %arg11[%c24, %c0_13] : memref<376x64xbf16, #tpu.memory_space<vmem>>, vector<328x64xbf16>
    tpu.vector_store %arg11[%c24, %c0_13], %12 {strides = array<i32>} : memref<376x64xbf16, #tpu.memory_space<vmem>>, vector<328x64xbf16>,
    %c5 = arith.constant 5 : index
    %c0_14 = arith.constant 0 : index
    %17 = vector.load %arg11[%c5, %c0_14] : memref<376x64xbf16, #tpu.memory_space<vmem>>, vector<328x64xbf16>
    %c0_15 = arith.constant 0 : index
    %c0_16 = arith.constant 0 : index
    %18 = vector.load %arg12[%c0_15, %c0_16] : memref<328x576xbf16, #tpu.memory_space<vmem>>, vector<328x64xbf16>
    tpu.vector_store %arg12[%c0_15, %c0_16], %17 {strides = array<i32>} : memref<328x576xbf16, #tpu.memory_space<vmem>>, vector<328x64xbf16>,
    %c6 = arith.constant 6 : index
    %c0_17 = arith.constant 0 : index
    %19 = vector.load %arg11[%c6, %c0_17] : memref<376x64xbf16, #tpu.memory_space<vmem>>, vector<328x64xbf16>
    %c0_18 = arith.constant 0 : index
    %c64 = arith.constant 64 : index
    %20 = vector.load %arg12[%c0_18, %c64] : memref<328x576xbf16, #tpu.memory_space<vmem>>, vector<328x64xbf16>
    tpu.vector_store %arg12[%c0_18, %c64], %19 {strides = array<i32>} : memref<328x576xbf16, #tpu.memory_space<vmem>>, vector<328x64xbf16>,
    %c7 = arith.constant 7 : index
    %c0_19 = arith.constant 0 : index
    %21 = vector.load %arg11[%c7, %c0_19] : memref<376x64xbf16, #tpu.memory_space<vmem>>, vector<328x64xbf16>
    %c0_20 = arith.constant 0 : index
    %c128 = arith.constant 128 : index
    %22 = vector.load %arg12[%c0_20, %c128] : memref<328x576xbf16, #tpu.memory_space<vmem>>, vector<328x64xbf16>
    tpu.vector_store %arg12[%c0_20, %c128], %21 {strides = array<i32>} : memref<328x576xbf16, #tpu.memory_space<vmem>>, vector<328x64xbf16>,
    %c23 = arith.constant 23 : index
    %c0_21 = arith.constant 0 : index
    %23 = vector.load %arg11[%c23, %c0_21] : memref<376x64xbf16, #tpu.memory_space<vmem>>, vector<328x64xbf16>
    %c0_22 = arith.constant 0 : index
    %c192 = arith.constant 192 : index
    %24 = vector.load %arg12[%c0_22, %c192] : memref<328x576xbf16, #tpu.memory_space<vmem>>, vector<328x64xbf16>
    tpu.vector_store %arg12[%c0_22, %c192], %23 {strides = array<i32>} : memref<328x576xbf16, #tpu.memory_space<vmem>>, vector<328x64xbf16>,
    %c24_23 = arith.constant 24 : index
    %c0_24 = arith.constant 0 : index
    %25 = vector.load %arg11[%c24_23, %c0_24] : memref<376x64xbf16, #tpu.memory_space<vmem>>, vector<328x64xbf16>
    %c0_25 = arith.constant 0 : index
    %c256 = arith.constant 256 : index
    %26 = vector.load %arg12[%c0_25, %c256] : memref<328x576xbf16, #tpu.memory_space<vmem>>, vector<328x64xbf16>
    tpu.vector_store %arg12[%c0_25, %c256], %25 {strides = array<i32>} : memref<328x576xbf16, #tpu.memory_space<vmem>>, vector<328x64xbf16>,
    %c25 = arith.constant 25 : index
    %c0_26 = arith.constant 0 : index
    %27 = vector.load %arg11[%c25, %c0_26] : memref<376x64xbf16, #tpu.memory_space<vmem>>, vector<328x64xbf16>
    %c0_27 = arith.constant 0 : index
    %c320 = arith.constant 320 : index
    %28 = vector.load %arg12[%c0_27, %c320] : memref<328x576xbf16, #tpu.memory_space<vmem>>, vector<328x64xbf16>
    tpu.vector_store %arg12[%c0_27, %c320], %27 {strides = array<i32>} : memref<328x576xbf16, #tpu.memory_space<vmem>>, vector<328x64xbf16>,
    %c41 = arith.constant 41 : index
    %c0_28 = arith.constant 0 : index
    %29 = vector.load %arg11[%c41, %c0_28] : memref<376x64xbf16, #tpu.memory_space<vmem>>, vector<328x64xbf16>
    %c0_29 = arith.constant 0 : index
    %c384 = arith.constant 384 : index
    %30 = vector.load %arg12[%c0_29, %c384] : memref<328x576xbf16, #tpu.memory_space<vmem>>, vector<328x64xbf16>
    tpu.vector_store %arg12[%c0_29, %c384], %29 {strides = array<i32>} : memref<328x576xbf16, #tpu.memory_space<vmem>>, vector<328x64xbf16>,
    %c42 = arith.constant 42 : index
    %c0_30 = arith.constant 0 : index
    %31 = vector.load %arg11[%c42, %c0_30] : memref<376x64xbf16, #tpu.memory_space<vmem>>, vector<328x64xbf16>
    %c0_31 = arith.constant 0 : index
    %c448 = arith.constant 448 : index
    %32 = vector.load %arg12[%c0_31, %c448] : memref<328x576xbf16, #tpu.memory_space<vmem>>, vector<328x64xbf16>
    tpu.vector_store %arg12[%c0_31, %c448], %31 {strides = array<i32>} : memref<328x576xbf16, #tpu.memory_space<vmem>>, vector<328x64xbf16>,
    %c43 = arith.constant 43 : index
    %c0_32 = arith.constant 0 : index
    %33 = vector.load %arg11[%c43, %c0_32] : memref<376x64xbf16, #tpu.memory_space<vmem>>, vector<328x64xbf16>
    %c0_33 = arith.constant 0 : index
    %c512 = arith.constant 512 : index
    %34 = vector.load %arg12[%c0_33, %c512] : memref<328x576xbf16, #tpu.memory_space<vmem>>, vector<328x64xbf16>
    tpu.vector_store %arg12[%c0_33, %c512], %33 {strides = array<i32>} : memref<328x576xbf16, #tpu.memory_space<vmem>>, vector<328x64xbf16>,
    %c0_34 = arith.constant 0 : index
    %c0_35 = arith.constant 0 : index
    %35 = vector.load %arg12[%c0_34, %c0_35] : memref<328x576xbf16, #tpu.memory_space<vmem>>, vector<328x576xbf16>
    %c0_36 = arith.constant 0 : index
    %c0_37 = arith.constant 0 : index
    %36 = vector.load %arg5[%c0_36, %c0_37] : memref<576x128xbf16, #tpu.memory_space<vmem>>, vector<576x128xbf16>
    %cst_38 = arith.constant dense<0.000000e+00> : vector<328x128xf32>
    %37 = tpu.matmul %35, %36, %cst_38 {dimension_numbers = #tpu.dot_dimension_numbers<[1], [0], [0], [1], [0, 0, 1, 1], [], []>} : vector<328x576xbf16>, vector<576x128xbf16>, vector<328x128xf32> -> vector<328x128xf32>
    %c0_39 = arith.constant 0 : index
    %c0_40 = arith.constant 0 : index
    %38 = vector.load %arg6[%c0_39, %c0_40] : memref<1x128xf32, #tpu.memory_space<vmem>>, vector<1x128xf32>
    %39 = vector.broadcast %38 : vector<1x128xf32> to vector<328x128xf32>
    %40 = arith.addf %37, %39 : vector<328x128xf32>
    %cst_41 = arith.constant 0.000000e+00 : f32
    %41 = vector.broadcast %cst_41 : f32 to vector<328x128xf32>
    %42 = arith.maximumf %40, %41 : vector<328x128xf32>
    %c0_42 = arith.constant 0 : index
    %c0_43 = arith.constant 0 : index
    %43 = vector.load %arg2[%c0_42, %c0_43] : memref<328x1xf32, #tpu.memory_space<vmem>>, vector<328x1xf32>
    %44 = vector.broadcast %43 : vector<328x1xf32> to vector<328x128xf32>
    %45 = arith.mulf %42, %44 : vector<328x128xf32>
    %cst_44 = arith.constant dense<0.000000e+00> : vector<128xf32>
    %46 = vector.multi_reduction <add>, %45, %cst_44 [0] : vector<328x128xf32> to vector<128xf32>
    %47 = vector.shape_cast %46 : vector<128xf32> to vector<1x128xf32>
    %cst_45 = arith.constant 3.906250e-03 : f32
    %48 = vector.broadcast %cst_45 : f32 to vector<1x128xf32>
    %49 = arith.mulf %47, %48 : vector<1x128xf32>
    %c0_46 = arith.constant 0 : index
    %c0_47 = arith.constant 0 : index
    %c0_48 = arith.constant 0 : index
    %50 = vector.load %arg9[%c0_46, %c0_47, %c0_48] : memref<1x1x128xf32, #tpu.memory_space<vmem>>, vector<1x1x128xf32>
    %51 = vector.shape_cast %50 : vector<1x1x128xf32> to vector<1x128xf32>
    %52 = vector.shape_cast %49 : vector<1x128xf32> to vector<1x1x128xf32>
    tpu.vector_store %arg9[%c0_46, %c0_47, %c0_48], %52 {strides = array<i32>} : memref<1x1x128xf32, #tpu.memory_space<vmem>>, vector<1x1x128xf32>,
    %c0_49 = arith.constant 0 : index
    %c0_50 = arith.constant 0 : index
    %53 = vector.load %arg7[%c0_49, %c0_50] : memref<128x16xf32, #tpu.memory_space<vmem>>, vector<128x16xf32>
    %cst_51 = arith.constant dense<0.000000e+00> : vector<1x16xf32>
    %54 = tpu.matmul %49, %53, %cst_51 {dimension_numbers = #tpu.dot_dimension_numbers<[1], [0], [0], [1], [0, 0, 1, 1], [], []>} : vector<1x128xf32>, vector<128x16xf32>, vector<1x16xf32> -> vector<1x16xf32>
    %c0_52 = arith.constant 0 : index
    %c0_53 = arith.constant 0 : index
    %55 = vector.load %arg8[%c0_52, %c0_53] : memref<1x16xf32, #tpu.memory_space<vmem>>, vector<1x16xf32>
    %56 = arith.addf %54, %55 : vector<1x16xf32>
    %c0_54 = arith.constant 0 : index
    %c0_55 = arith.constant 0 : index
    %c0_56 = arith.constant 0 : index
    %57 = vector.load %arg10[%c0_54, %c0_55, %c0_56] : memref<1x1x16xf32, #tpu.memory_space<vmem>>, vector<1x1x16xf32>
    %58 = vector.shape_cast %57 : vector<1x1x16xf32> to vector<1x16xf32>
    %59 = vector.shape_cast %56 : vector<1x16xf32> to vector<1x1x16xf32>
    tpu.vector_store %arg10[%c0_54, %c0_55, %c0_56], %59 {strides = array<i32>} : memref<1x1x16xf32, #tpu.memory_space<vmem>>, vector<1x1x16xf32>,
    return
  }
  func.func @transform_0(%arg0: i32) -> (i32, i32, i32) {
    %c0_i32 = arith.constant 0 : i32
    %c0_i32_0 = arith.constant 0 : i32
    %c0_i32_1 = arith.constant 0 : i32
    return %arg0, %c0_i32, %c0_i32_0 : i32, i32, i32
  }
  func.func @transform_1(%arg0: i32) -> (i32, i32) {
    %c0_i32 = arith.constant 0 : i32
    %c0_i32_0 = arith.constant 0 : i32
    %c0_i32_1 = arith.constant 0 : i32
    return %c0_i32, %c0_i32_0 : i32, i32
  }
  func.func @transform_2(%arg0: i32) -> (i32, i32) {
    %c0_i32 = arith.constant 0 : i32
    %c0_i32_0 = arith.constant 0 : i32
    %c0_i32_1 = arith.constant 0 : i32
    return %c0_i32, %c0_i32_0 : i32, i32
  }
  func.func @transform_3(%arg0: i32) -> (i32, i32) {
    %c0_i32 = arith.constant 0 : i32
    %c0_i32_0 = arith.constant 0 : i32
    %c0_i32_1 = arith.constant 0 : i32
    return %c0_i32, %c0_i32_0 : i32, i32
  }
  func.func @transform_4(%arg0: i32) -> (i32, i32) {
    %c0_i32 = arith.constant 0 : i32
    %c0_i32_0 = arith.constant 0 : i32
    %c0_i32_1 = arith.constant 0 : i32
    return %c0_i32, %c0_i32_0 : i32, i32
  }
  func.func @transform_5(%arg0: i32) -> (i32, i32) {
    %c0_i32 = arith.constant 0 : i32
    %c0_i32_0 = arith.constant 0 : i32
    %c0_i32_1 = arith.constant 0 : i32
    return %c0_i32, %c0_i32_0 : i32, i32
  }
  func.func @transform_6(%arg0: i32) -> (i32, i32) {
    %c0_i32 = arith.constant 0 : i32
    %c0_i32_0 = arith.constant 0 : i32
    %c0_i32_1 = arith.constant 0 : i32
    return %c0_i32, %c0_i32_0 : i32, i32
  }
  func.func @transform_7(%arg0: i32) -> (i32, i32) {
    %c0_i32 = arith.constant 0 : i32
    %c0_i32_0 = arith.constant 0 : i32
    %c0_i32_1 = arith.constant 0 : i32
    return %c0_i32, %c0_i32_0 : i32, i32
  }
  func.func @transform_8(%arg0: i32) -> (i32, i32, i32) {
    %c0_i32 = arith.constant 0 : i32
    %c0_i32_0 = arith.constant 0 : i32
    %c0_i32_1 = arith.constant 0 : i32
    return %arg0, %c0_i32, %c0_i32_0 : i32, i32, i32
  }
  func.func @transform_9(%arg0: i32) -> (i32, i32, i32) {
    %c0_i32 = arith.constant 0 : i32
    %c0_i32_0 = arith.constant 0 : i32
    %c0_i32_1 = arith.constant 0 : i32
    return %arg0, %c0_i32, %c0_i32_0 : i32, i32, i32
  }
}

</mosaic_0001>

<llo_original>
// kernel: tpu_custom_call.1
$region0: #{tpu_custom_call.1}
  #allocation0 [shape = 'u32[]', space=smem, size = 0x4, offset = 0x4, fixed_abs, tag = 'smem constant byte address 0x4 - core index']
  #allocation1 [shape = 'u32[144,128]{1,0:T(1,128)}', space=vmem, size = 0x12000, scoped, tag = 'internal scratch']
  #allocation2 [shape = 'bf16[376,64]{1,0:T(8,128)(2,1)}', space=vmem, size = 0x17800, scoped, tag = 'scratch operand']
  #allocation3 [shape = 'bf16[328,576]{1,0:T(8,128)(2,1)}', space=vmem, size = 0x66800, scoped, tag = 'scratch operand']
  %s0 = inlined_call_operand.vmem [shape: bf16[2,328,32], index: 0, kind: input, shape index: {}]
  %s1 = inlined_call_operand.vmem [shape: f32[328,1], index: 1, kind: input, shape index: {}]
  %s2 = inlined_call_operand.vmem [shape: bf16[32,64], index: 2, kind: input, shape index: {}]
  %s3 = inlined_call_operand.vmem [shape: f32[1,64], index: 3, kind: input, shape index: {}]
  %s4 = inlined_call_operand.vmem [shape: bf16[576,128], index: 4, kind: input, shape index: {}]
  %s5 = inlined_call_operand.vmem [shape: f32[1,128], index: 5, kind: input, shape index: {}]
  %s6 = inlined_call_operand.vmem [shape: f32[128,16], index: 6, kind: input, shape index: {}]
  %s7 = inlined_call_operand.vmem [shape: f32[1,16], index: 7, kind: input, shape index: {}]
  %s8 = inlined_call_operand.hbm [shape: f32[2,1,128], index: 8, kind: output, shape index: {0}]
  %s9 = inlined_call_operand.hbm [shape: f32[2,1,16], index: 9, kind: output, shape index: {1}]
  %10 = xla_tuple %s8, %s9
  %s11 = sld [smem:[#allocation0]]
  $region73: #{tpu_custom_call.1} parent=0
    _
  %s13 = ssub.s32 1, %s11
  %s14 = scalar_select 0, %s13, %s11
  $region1: #{tpu_custom_call.1} parent=0
    #allocation4 [shape = 'u8[1024]{0}', space=vmem, size = 0x400, scoped, tag = 'output window, operand 0']
    #allocation5 [shape = 's32[2]{0}', space=sflag, size = 0x8, scoped, tag = 'scoped memory for tpu_custom_call.1']
    #allocation6 [shape = 'u8[1024]{0}', space=vmem, size = 0x400, scoped, tag = 'output window, operand 1']
    #allocation7 [shape = 's32[2]{0}', space=sflag, size = 0x8, scoped, tag = 'scoped memory for tpu_custom_call.1']
    %15 = vsyncpa [#allocation5], 0
    %s16 = scalar_lea.sflag [#allocation5], 1
    %17 = vsyncpa %s16, 0
    %18 = vsyncpa [#allocation7], 0
    %s19 = scalar_lea.sflag [#allocation7], 1
    %20 = vsyncpa %s19, 0
    loop: start=0, step=1, limit=4
    $region2: #{tpu_custom_call.1} parent=1 // loop_pre_header
      _
    $region3: #{tpu_custom_call.1} parent=1 // loop_header
      %s22 = sphi 0, %s26
      %p23 = scmp.ge.s32.totalorder %s22, 4
      %s32 = sphi 0, %s34
      %s35 = sphi 0, %s32
      %s36 = sphi 0, %s35
      %s52 = sphi 0, %s36
      %s56 = sphi 0, %s56
      %s58 = sphi 0, %s56
      %s59 = sphi 0, %s58
      %s73 = sphi 0, %s59
      %s77 = sphi 0, %s77
      %s79 = sphi 0, %s77
      %s80 = sphi 0, %s79
      %s94 = sphi 0, %s80
      %s98 = sphi 0, %s98
      %s100 = sphi 0, %s98
      %s101 = sphi 0, %s100
      %s115 = sphi 0, %s101
      %s119 = sphi 0, %s119
      %s121 = sphi 0, %s119
      %s122 = sphi 0, %s121
      %s136 = sphi 0, %s122
      %s140 = sphi 0, %s140
      %s142 = sphi 0, %s140
      %s143 = sphi 0, %s142
      %s157 = sphi 0, %s143
      %s161 = sphi 0, %s161
      %s163 = sphi 0, %s161
      %s164 = sphi 0, %s163
      %s178 = sphi 0, %s164
      %s182 = sphi 0, %s182
      %s184 = sphi 0, %s182
      %s185 = sphi 0, %s184
      %s199 = sphi 0, %s185
      %s205 = sphi 0, %s207
      %s208 = sphi 0, %s205
      %s209 = sphi 0, %s208
      %s225 = sphi 0, %s209
      %s231 = sphi 0, %s233
      %s234 = sphi 0, %s231
      %s235 = sphi 0, %s234
      %s251 = sphi 0, %s235
    $region4: #{tpu_custom_call.1} parent=1 // loop_header_branch
      %25 = sbr.rel (%p23) target = $region8
    $region5: #{tpu_custom_call.1} parent=1 // loop_body
      %s27 = ssub.s32 %s22, 1
      %s28 = ssub.s32 %s22, 2
      %s29 = sadd.s32 %s22, 1
      %s30 = ssub.s32 %s22, %s29
      %p31 = scmp.eq.s32.totalorder %s30, 0
      %s33 = sadd.s32 %s32, 1
      %s34 = scalar_select %p31, %s32, %s33
      %p37 = pneg %p31
      %p38 = scmp.eq.s32.totalorder %s22, 1
      %p39 = por %p37, %p38
      %p40 = scmp.ne.s32.totalorder %s32, %s35
      %p41 = scmp.eq.s32.totalorder %s22, 0
      %p42 = por %p40, %p41
      %p43 = scmp.ne.s32.totalorder %s32, %s35
      %p44 = scmp.eq.s32.totalorder %s27, 1
      %p45 = por %p43, %p44
      %p46 = scmp.ne.s32.totalorder %s35, %s36
      %p47 = scmp.eq.s32.totalorder %s27, 0
      %p48 = por %p46, %p47
      %p49 = scmp.ne.s32.totalorder %s35, %s36
      %p50 = scmp.eq.s32.totalorder %s28, 1
      %p51 = por %p49, %p50
      %p53 = scmp.ne.s32.totalorder %s36, %s52
      %p54 = scmp.eq.s32.totalorder %s28, 0
      %p55 = por %p53, %p54
      %s57 = sadd.s32 %s56, 1
      %p60 = scmp.eq.s32.totalorder %s22, 1
      %p61 = scmp.ne.s32.totalorder %s56, %s58
      %p62 = scmp.eq.s32.totalorder %s22, 0
      %p63 = por %p61, %p62
      %p64 = scmp.ne.s32.totalorder %s56, %s58
      %p65 = scmp.eq.s32.totalorder %s27, 1
      %p66 = por %p64, %p65
      %p67 = scmp.ne.s32.totalorder %s58, %s59
      %p68 = scmp.eq.s32.totalorder %s27, 0
      %p69 = por %p67, %p68
      %p70 = scmp.ne.s32.totalorder %s58, %s59
      %p71 = scmp.eq.s32.totalorder %s28, 1
      %p72 = por %p70, %p71
      %p74 = scmp.ne.s32.totalorder %s59, %s73
      %p75 = scmp.eq.s32.totalorder %s28, 0
      %p76 = por %p74, %p75
      %s78 = sadd.s32 %s77, 1
      %p81 = scmp.eq.s32.totalorder %s22, 1
      %p82 = scmp.ne.s32.totalorder %s77, %s79
      %p83 = scmp.eq.s32.totalorder %s22, 0
      %p84 = por %p82, %p83
      %p85 = scmp.ne.s32.totalorder %s77, %s79
      %p86 = scmp.eq.s32.totalorder %s27, 1
      %p87 = por %p85, %p86
      %p88 = scmp.ne.s32.totalorder %s79, %s80
      %p89 = scmp.eq.s32.totalorder %s27, 0
      %p90 = por %p88, %p89
      %p91 = scmp.ne.s32.totalorder %s79, %s80
      %p92 = scmp.eq.s32.totalorder %s28, 1
      %p93 = por %p91, %p92
      %p95 = scmp.ne.s32.totalorder %s80, %s94
      %p96 = scmp.eq.s32.totalorder %s28, 0
      %p97 = por %p95, %p96
      %s99 = sadd.s32 %s98, 1
      %p102 = scmp.eq.s32.totalorder %s22, 1
      %p103 = scmp.ne.s32.totalorder %s98, %s100
      %p104 = scmp.eq.s32.totalorder %s22, 0
      %p105 = por %p103, %p104
      %p106 = scmp.ne.s32.totalorder %s98, %s100
      %p107 = scmp.eq.s32.totalorder %s27, 1
      %p108 = por %p106, %p107
      %p109 = scmp.ne.s32.totalorder %s100, %s101
      %p110 = scmp.eq.s32.totalorder %s27, 0
      %p111 = por %p109, %p110
      %p112 = scmp.ne.s32.totalorder %s100, %s101
      %p113 = scmp.eq.s32.totalorder %s28, 1
      %p114 = por %p112, %p113
      %p116 = scmp.ne.s32.totalorder %s101, %s115
      %p117 = scmp.eq.s32.totalorder %s28, 0
      %p118 = por %p116, %p117
      %s120 = sadd.s32 %s119, 1
      %p123 = scmp.eq.s32.totalorder %s22, 1
      %p124 = scmp.ne.s32.totalorder %s119, %s121
      %p125 = scmp.eq.s32.totalorder %s22, 0
      %p126 = por %p124, %p125
      %p127 = scmp.ne.s32.totalorder %s119, %s121
      %p128 = scmp.eq.s32.totalorder %s27, 1
      %p129 = por %p127, %p128
      %p130 = scmp.ne.s32.totalorder %s121, %s122
      %p131 = scmp.eq.s32.totalorder %s27, 0
      %p132 = por %p130, %p131
      %p133 = scmp.ne.s32.totalorder %s121, %s122
      %p134 = scmp.eq.s32.totalorder %s28, 1
      %p135 = por %p133, %p134
      %p137 = scmp.ne.s32.totalorder %s122, %s136
      %p138 = scmp.eq.s32.totalorder %s28, 0
      %p139 = por %p137, %p138
      %s141 = sadd.s32 %s140, 1
      %p144 = scmp.eq.s32.totalorder %s22, 1
      %p145 = scmp.ne.s32.totalorder %s140, %s142
      %p146 = scmp.eq.s32.totalorder %s22, 0
      %p147 = por %p145, %p146
      %p148 = scmp.ne.s32.totalorder %s140, %s142
      %p149 = scmp.eq.s32.totalorder %s27, 1
      %p150 = por %p148, %p149
      %p151 = scmp.ne.s32.totalorder %s142, %s143
      %p152 = scmp.eq.s32.totalorder %s27, 0
      %p153 = por %p151, %p152
      %p154 = scmp.ne.s32.totalorder %s142, %s143
      %p155 = scmp.eq.s32.totalorder %s28, 1
      %p156 = por %p154, %p155
      %p158 = scmp.ne.s32.totalorder %s143, %s157
      %p159 = scmp.eq.s32.totalorder %s28, 0
      %p160 = por %p158, %p159
      %s162 = sadd.s32 %s161, 1
      %p165 = scmp.eq.s32.totalorder %s22, 1
      %p166 = scmp.ne.s32.totalorder %s161, %s163
      %p167 = scmp.eq.s32.totalorder %s22, 0
      %p168 = por %p166, %p167
      %p169 = scmp.ne.s32.totalorder %s161, %s163
      %p170 = scmp.eq.s32.totalorder %s27, 1
      %p171 = por %p169, %p170
      %p172 = scmp.ne.s32.totalorder %s163, %s164
      %p173 = scmp.eq.s32.totalorder %s27, 0
      %p174 = por %p172, %p173
      %p175 = scmp.ne.s32.totalorder %s163, %s164
      %p176 = scmp.eq.s32.totalorder %s28, 1
      %p177 = por %p175, %p176
      %p179 = scmp.ne.s32.totalorder %s164, %s178
      %p180 = scmp.eq.s32.totalorder %s28, 0
      %p181 = por %p179, %p180
      %s183 = sadd.s32 %s182, 1
      %p186 = scmp.eq.s32.totalorder %s22, 1
      %p187 = scmp.ne.s32.totalorder %s182, %s184
      %p188 = scmp.eq.s32.totalorder %s22, 0
      %p189 = por %p187, %p188
      %p190 = scmp.ne.s32.totalorder %s182, %s184
      %p191 = scmp.eq.s32.totalorder %s27, 1
      %p192 = por %p190, %p191
      %p193 = scmp.ne.s32.totalorder %s184, %s185
      %p194 = scmp.eq.s32.totalorder %s27, 0
      %p195 = por %p193, %p194
      %p196 = scmp.ne.s32.totalorder %s184, %s185
      %p197 = scmp.eq.s32.totalorder %s28, 1
      %p198 = por %p196, %p197
      %p200 = scmp.ne.s32.totalorder %s185, %s199
      %p201 = scmp.eq.s32.totalorder %s28, 0
      %p202 = por %p200, %p201
      %s203 = ssub.s32 %s22, %s29
      %p204 = scmp.eq.s32.totalorder %s203, 0
      %s206 = sadd.s32 %s205, 1
      %s207 = scalar_select %p204, %s205, %s206
      %p210 = pneg %p204
      %p211 = scmp.eq.s32.totalorder %s22, 1
      %p212 = por %p210, %p211
      %p213 = scmp.ne.s32.totalorder %s205, %s208
      %p214 = scmp.eq.s32.totalorder %s22, 0
      %p215 = por %p213, %p214
      %p216 = scmp.ne.s32.totalorder %s205, %s208
      %p217 = scmp.eq.s32.totalorder %s27, 1
      %p218 = por %p216, %p217
      %p219 = scmp.ne.s32.totalorder %s208, %s209
      %p220 = scmp.eq.s32.totalorder %s27, 0
      %p221 = por %p219, %p220
      %p222 = scmp.ne.s32.totalorder %s208, %s209
      %p223 = scmp.eq.s32.totalorder %s28, 1
      %p224 = por %p222, %p223
      %p226 = scmp.ne.s32.totalorder %s209, %s225
      %p227 = scmp.eq.s32.totalorder %s28, 0
      %p228 = por %p226, %p227
      %s229 = ssub.s32 %s22, %s29
      %p230 = scmp.eq.s32.totalorder %s229, 0
      %s232 = sadd.s32 %s231, 1
      %s233 = scalar_select %p230, %s231, %s232
      %p236 = pneg %p230
      %p237 = scmp.eq.s32.totalorder %s22, 1
      %p238 = por %p236, %p237
      %p239 = scmp.ne.s32.totalorder %s231, %s234
      %p240 = scmp.eq.s32.totalorder %s22, 0
      %p241 = por %p239, %p240
      %p242 = scmp.ne.s32.totalorder %s231, %s234
      %p243 = scmp.eq.s32.totalorder %s27, 1
      %p244 = por %p242, %p243
      %p245 = scmp.ne.s32.totalorder %s234, %s235
      %p246 = scmp.eq.s32.totalorder %s27, 0
      %p247 = por %p245, %p246
      %p248 = scmp.ne.s32.totalorder %s234, %s235
      %p249 = scmp.eq.s32.totalorder %s28, 1
      %p250 = por %p248, %p249
      %p252 = scmp.ne.s32.totalorder %s235, %s251
      %p253 = scmp.eq.s32.totalorder %s28, 0
      %p254 = por %p252, %p253
      %p255 = scmp.le.s32.totalorder 1, %s22
      %p256 = scmp.lt.s32.totalorder %s22, 3
      %p257 = pnand %p255, %p256
      %p258 = pneg %p257
      // Predicated region
      $region9: #{tpu_custom_call.1} parent=5 // pred_check
        _
      $region10: #{tpu_custom_call.1} parent=5 // pred_check_branch
        %260 = sbr.rel (%p257) target = $region12
      $region11: #{tpu_custom_call.1} parent=5 // pred_region
        %s261 = ssub.s32 %s22, 1
        // Predicated region
        $region13: #{tpu_custom_call.1} parent=11 // pred_check
          %p262 = pneg %p69
        $region14: #{tpu_custom_call.1} parent=11 // pred_check_branch
          %264 = sbr.rel (%p262) target = $region16
        $region15: #{tpu_custom_call.1} parent=11 // pred_region
          _
        $region16: #{tpu_custom_call.1} parent=11 // pred_fallthru
          _
        // Predicated region
        $region17: #{tpu_custom_call.1} parent=11 // pred_check
          %p265 = pneg %p90
        $region18: #{tpu_custom_call.1} parent=11 // pred_check_branch
          %267 = sbr.rel (%p265) target = $region20
        $region19: #{tpu_custom_call.1} parent=11 // pred_region
          _
        $region20: #{tpu_custom_call.1} parent=11 // pred_fallthru
          _
        // Predicated region
        $region21: #{tpu_custom_call.1} parent=11 // pred_check
          %p268 = pneg %p111
        $region22: #{tpu_custom_call.1} parent=11 // pred_check_branch
          %270 = sbr.rel (%p268) target = $region24
        $region23: #{tpu_custom_call.1} parent=11 // pred_region
          _
        $region24: #{tpu_custom_call.1} parent=11 // pred_fallthru
          _
        // Predicated region
        $region25: #{tpu_custom_call.1} parent=11 // pred_check
          %p271 = pneg %p132
        $region26: #{tpu_custom_call.1} parent=11 // pred_check_branch
          %273 = sbr.rel (%p271) target = $region28
        $region27: #{tpu_custom_call.1} parent=11 // pred_region
          _
        $region28: #{tpu_custom_call.1} parent=11 // pred_fallthru
          _
        // Predicated region
        $region29: #{tpu_custom_call.1} parent=11 // pred_check
          %p274 = pneg %p153
        $region30: #{tpu_custom_call.1} parent=11 // pred_check_branch
          %276 = sbr.rel (%p274) target = $region32
        $region31: #{tpu_custom_call.1} parent=11 // pred_region
          _
        $region32: #{tpu_custom_call.1} parent=11 // pred_fallthru
          _
        // Predicated region
        $region33: #{tpu_custom_call.1} parent=11 // pred_check
          %p277 = pneg %p174
        $region34: #{tpu_custom_call.1} parent=11 // pred_check_branch
          %279 = sbr.rel (%p277) target = $region36
        $region35: #{tpu_custom_call.1} parent=11 // pred_region
          _
        $region36: #{tpu_custom_call.1} parent=11 // pred_fallthru
          _
        // Predicated region
        $region37: #{tpu_custom_call.1} parent=11 // pred_check
          %p280 = pneg %p195
        $region38: #{tpu_custom_call.1} parent=11 // pred_check_branch
          %282 = sbr.rel (%p280) target = $region40
        $region39: #{tpu_custom_call.1} parent=11 // pred_region
          _
        $region40: #{tpu_custom_call.1} parent=11 // pred_fallthru
          _
      $region12: #{tpu_custom_call.1} parent=5 // pred_fallthru
        _
      %p283 = scmp.lt.s32.totalorder %s22, 2
      // Predicated region
      $region41: #{tpu_custom_call.1} parent=5 // pred_check
        %p284 = pneg %p283
      $region42: #{tpu_custom_call.1} parent=5 // pred_check_branch
        %286 = sbr.rel (%p284) target = $region44
      $region43: #{tpu_custom_call.1} parent=5 // pred_region
        // Predicated region
        $region45: #{tpu_custom_call.1} parent=43 // pred_check
          %p287 = pneg %p42
        $region46: #{tpu_custom_call.1} parent=43 // pred_check_branch
          %289 = sbr.rel (%p287) target = $region48
        $region47: #{tpu_custom_call.1} parent=43 // pred_region
          %p290 = scmp.lt.s32.totalorder %s22, 1
          %s291 = scalar_select %p290, %s22, 1
          %s292 = smul.addr %s291, 41
          %s293 = smul.addr %s292, 4
          %s294 = scalar_lea.vmem %s0, %s293
        $region48: #{tpu_custom_call.1} parent=43 // pred_fallthru
          _
      $region44: #{tpu_custom_call.1} parent=5 // pred_fallthru
        _
      %p295 = scmp.le.s32.totalorder 1, %s22
      %p296 = scmp.lt.s32.totalorder %s22, 3
      %p297 = pnand %p295, %p296
      %p298 = pneg %p297
      // Predicated region
      $region49: #{tpu_custom_call.1} parent=5 // pred_check
        _
      $region50: #{tpu_custom_call.1} parent=5 // pred_check_branch
        %300 = sbr.rel (%p297) target = $region52
      $region51: #{tpu_custom_call.1} parent=5 // pred_region
        %s301 = ssub.s32 %s22, 1
        %p302 = scmp.lt.s32.totalorder %s27, 1
        %s303 = scalar_select %p302, %s27, 1
        %s304 = smul.addr %s303, 41
        %s305 = smul.addr %s304, 4
        %s306 = scalar_lea.vmem %s0, %s305
        %p307 = pneg %p48
        %p308 = pneg %p45
        %p309 = pneg %p69
        %p310 = pneg %p66
        %p311 = pneg %p90
        %p312 = pneg %p87
        %p313 = pneg %p111
        %p314 = pneg %p108
        %p315 = pneg %p132
        %p316 = pneg %p129
        %p317 = pneg %p153
        %p318 = pneg %p150
        %p319 = pneg %p174
        %p320 = pneg %p171
        %p321 = pneg %p195
        %p322 = pneg %p192
        %p323 = pneg %p221
        %p324 = pneg %p218
        %s325 = sand.u32 %s208, 1
        %s326 = scalar_lea.sflag [#allocation5], %s325
        %s327 = sand.u32 %s208, 1
        %s328 = scalar_lea.vmem [#allocation4], %s327
        %p329 = pneg %p247
        %p330 = pneg %p244
        %s331 = sand.u32 %s234, 1
        %s332 = scalar_lea.sflag [#allocation7], %s331
        %s333 = sand.u32 %s234, 1
        %s334 = scalar_lea.vmem [#allocation6], %s333
        %p335 = scmp.lt.s32.totalorder %s27, 1
        %s336 = scalar_select %p335, %s27, 1
        %s337 = smul.addr %s336, 41
        %s338 = smul.addr %s337, 4
        %s339 = scalar_lea.vmem %s0, %s338
        %v341 = vld [vmem:[%s339] sm:$0xf]
        %v342 = vld [vmem:[%s339 + $0x4] sm:$0xf]
        %v343 = vld [vmem:[%s339 + $0x8] sm:$0xf]
        %v344 = vld [vmem:[%s339 + $0xc] sm:$0xf]
        %v345 = vld [vmem:[%s339 + $0x10] sm:$0xf]
        %v346 = vld [vmem:[%s339 + $0x14] sm:$0xf]
        %v347 = vld [vmem:[%s339 + $0x18] sm:$0xf]
        %v348 = vld [vmem:[%s339 + $0x1c] sm:$0xf]
        %v349 = vld [vmem:[%s339 + $0x20] sm:$0xf]
        %v350 = vld [vmem:[%s339 + $0x24] sm:$0xf]
        %v351 = vld [vmem:[%s339 + $0x28] sm:$0xf]
        %v352 = vld [vmem:[%s339 + $0x2c] sm:$0xf]
        %v353 = vld [vmem:[%s339 + $0x30] sm:$0xf]
        %v354 = vld [vmem:[%s339 + $0x34] sm:$0xf]
        %v355 = vld [vmem:[%s339 + $0x38] sm:$0xf]
        %v356 = vld [vmem:[%s339 + $0x3c] sm:$0xf]
        %v357 = vld [vmem:[%s339 + $0x40] sm:$0xf]
        %v358 = vld [vmem:[%s339 + $0x44] sm:$0xf]
        %v359 = vld [vmem:[%s339 + $0x48] sm:$0xf]
        %v360 = vld [vmem:[%s339 + $0x4c] sm:$0xf]
        %v361 = vld [vmem:[%s339 + $0x50] sm:$0xf]
        %v362 = vld [vmem:[%s339 + $0x54] sm:$0xf]
        %v363 = vld [vmem:[%s339 + $0x58] sm:$0xf]
        %v364 = vld [vmem:[%s339 + $0x5c] sm:$0xf]
        %v365 = vld [vmem:[%s339 + $0x60] sm:$0xf]
        %v366 = vld [vmem:[%s339 + $0x64] sm:$0xf]
        %v367 = vld [vmem:[%s339 + $0x68] sm:$0xf]
        %v368 = vld [vmem:[%s339 + $0x6c] sm:$0xf]
        %v369 = vld [vmem:[%s339 + $0x70] sm:$0xf]
        %v370 = vld [vmem:[%s339 + $0x74] sm:$0xf]
        %v371 = vld [vmem:[%s339 + $0x78] sm:$0xf]
        %v372 = vld [vmem:[%s339 + $0x7c] sm:$0xf]
        %v373 = vld [vmem:[%s339 + $0x80] sm:$0xf]
        %v374 = vld [vmem:[%s339 + $0x84] sm:$0xf]
        %v375 = vld [vmem:[%s339 + $0x88] sm:$0xf]
        %v376 = vld [vmem:[%s339 + $0x8c] sm:$0xf]
        %v377 = vld [vmem:[%s339 + $0x90] sm:$0xf]
        %v378 = vld [vmem:[%s339 + $0x94] sm:$0xf]
        %v379 = vld [vmem:[%s339 + $0x98] sm:$0xf]
        %v380 = vld [vmem:[%s339 + $0x9c] sm:$0xf]
        %v381 = vld [vmem:[%s339 + $0xa0] sm:$0xf]
        %v382 = vld [vmem:[%s2] sm:$0xf]
        %v383 = vld [vmem:[%s2 + $0x4] sm:$0xf]
        %v384 = vld [vmem:[%s2 + $0x8] sm:$0xf]
        %v385 = vld [vmem:[%s2 + $0xc] sm:$0xf]
        %v386 = vld [vmem:[%s3] sm:$0x1]
        %v388 = vlaneseq
        %v389 = vshrl.u32 %v388, 7
        %v390 = vsub.s32 0, %v389
        %v391 = vrot.slane %v386, %v390
        %v434 = vunpack.c.l.b16 %v341
        %v435 = vunpack.c.l.b16 %v342
        %v436 = vunpack.c.l.b16 %v343
        %v437 = vunpack.c.l.b16 %v344
        %v438 = vunpack.c.l.b16 %v345
        %v439 = vunpack.c.l.b16 %v346
        %v440 = vunpack.c.l.b16 %v347
        %v441 = vunpack.c.l.b16 %v348
        %v442 = vunpack.c.l.b16 %v349
        %v443 = vunpack.c.l.b16 %v350
        %v444 = vunpack.c.l.b16 %v351
        %v445 = vunpack.c.l.b16 %v352
        %v446 = vunpack.c.l.b16 %v353
        %v447 = vunpack.c.l.b16 %v354
        %v448 = vunpack.c.l.b16 %v355
        %v449 = vunpack.c.l.b16 %v356
        %v450 = vunpack.c.l.b16 %v357
        %v451 = vunpack.c.l.b16 %v358
        %v452 = vunpack.c.l.b16 %v359
        %v453 = vunpack.c.l.b16 %v360
        %v454 = vunpack.c.l.b16 %v361
        %v455 = vunpack.c.l.b16 %v362
        %v456 = vunpack.c.l.b16 %v363
        %v457 = vunpack.c.l.b16 %v364
        %v458 = vunpack.c.l.b16 %v365
        %v459 = vunpack.c.l.b16 %v366
        %v460 = vunpack.c.l.b16 %v367
        %v461 = vunpack.c.l.b16 %v368
        %v462 = vunpack.c.l.b16 %v369
        %v463 = vunpack.c.l.b16 %v370
        %v464 = vunpack.c.l.b16 %v371
        %v465 = vunpack.c.l.b16 %v372
        %v466 = vunpack.c.l.b16 %v373
        %v467 = vunpack.c.l.b16 %v374
        %v468 = vunpack.c.l.b16 %v375
        %v469 = vunpack.c.l.b16 %v376
        %v470 = vunpack.c.l.b16 %v377
        %v471 = vunpack.c.l.b16 %v378
        %v472 = vunpack.c.l.b16 %v379
        %v473 = vunpack.c.l.b16 %v380
        %v474 = vunpack.c.l.b16 %v381
        %v475 = vpack.c.b16 %v435, %v434
        %v476 = vpack.c.b16 %v437, %v436
        %v477 = vpack.c.b16 %v439, %v438
        %v478 = vpack.c.b16 %v441, %v440
        %v479 = vpack.c.b16 %v443, %v442
        %v480 = vpack.c.b16 %v445, %v444
        %v481 = vpack.c.b16 %v447, %v446
        %v482 = vpack.c.b16 %v449, %v448
        %v483 = vpack.c.b16 %v451, %v450
        %v484 = vpack.c.b16 %v453, %v452
        %v485 = vpack.c.b16 %v455, %v454
        %v486 = vpack.c.b16 %v457, %v456
        %v487 = vpack.c.b16 %v459, %v458
        %v488 = vpack.c.b16 %v461, %v460
        %v489 = vpack.c.b16 %v463, %v462
        %v490 = vpack.c.b16 %v465, %v464
        %v491 = vpack.c.b16 %v467, %v466
        %v492 = vpack.c.b16 %v469, %v468
        %v493 = vpack.c.b16 %v471, %v470
        %v494 = vpack.c.b16 %v473, %v472
        %v495 = vpack.c.b16 %v474, %v474
        %v500 = vunpack.c.l.b16 %v382
        %v501 = vunpack.c.l.b16 %v383
        %v502 = vunpack.c.l.b16 %v384
        %v503 = vunpack.c.l.b16 %v385
        %v504 = vpack.c.b16 %v501, %v500
        %v505 = vpack.c.b16 %v503, %v502
        %vm508 = vcmask 261120
        %v510 = vsel %vm508, %v475, 0
        %v513 = vsel %vm508, %v476, 0
        %v516 = vsel %vm508, %v477, 0
        %v519 = vsel %vm508, %v478, 0
        %v522 = vsel %vm508, %v479, 0
        %v525 = vsel %vm508, %v480, 0
        %v528 = vsel %vm508, %v481, 0
        %v531 = vsel %vm508, %v482, 0
        %v534 = vsel %vm508, %v483, 0
        %v537 = vsel %vm508, %v484, 0
        %v540 = vsel %vm508, %v485, 0
        %v543 = vsel %vm508, %v486, 0
        %v546 = vsel %vm508, %v487, 0
        %v549 = vsel %vm508, %v488, 0
        %v552 = vsel %vm508, %v489, 0
        %v555 = vsel %vm508, %v490, 0
        %v558 = vsel %vm508, %v491, 0
        %v561 = vsel %vm508, %v492, 0
        %v564 = vsel %vm508, %v493, 0
        %v567 = vsel %vm508, %v494, 0
        %v570 = vsel %vm508, %v495, 0
        %572 = vmatprep.subr.bf16.mxu0 0
        %573 = vmatpush1.bf16.msra.mxu0 %v504
        %574 = vmatprep.subr.bf16.mxu0 0
        %575 = vmatpush1.bf16.msra.mxu0 %v505
        %576 = vmatprep.subr.bf16.mxu0 0
        %577 = vmatpush1.bf16.msra.mxu0 0
        %578 = vmatprep.subr.bf16.mxu0 0
        %579 = vmatpush1.bf16.msra.mxu0 0
        %580 = vmatprep.subr.bf16.mxu0 0
        %581 = vmatpush1.bf16.msra.mxu0 0
        %582 = vmatprep.subr.bf16.mxu0 0
        %583 = vmatpush1.bf16.msra.mxu0 0
        %584 = vmatprep.subr.bf16.mxu0 0
        %585 = vmatpush1.bf16.msra.mxu0 0
        %586 = vmatprep.subr.bf16.mxu0 0
        %587 = vmatpush1.bf16.msra.mxu0 0
        %588 = vmatprep.subr.bf16.mxu0 0
        %589 = vmatpush1.bf16.msra.mxu0 0
        %590 = vmatprep.subr.bf16.mxu0 0
        %591 = vmatpush1.bf16.msra.mxu0 0
        %592 = vmatprep.subr.bf16.mxu0 0
        %593 = vmatpush1.bf16.msra.mxu0 0
        %594 = vmatprep.subr.bf16.mxu0 0
        %595 = vmatpush1.bf16.msra.mxu0 0
        %596 = vmatprep.subr.bf16.mxu0 0
        %597 = vmatpush1.bf16.msra.mxu0 0
        %598 = vmatprep.subr.bf16.mxu0 0
        %599 = vmatpush1.bf16.msra.mxu0 0
        %600 = vmatprep.subr.bf16.mxu0 0
        %601 = vmatpush1.bf16.msra.mxu0 0
        %602 = vmatprep.subr.bf16.mxu0 0
        %603 = vmatpush1.bf16.msra.mxu0 0
        %604 = vmatprep.mubr.bf16.mxu0 0
        %605 = vmatmul.mubr.bf16.gmra.mrb[0].mxu0 %v510
        %v606 = vpop.f32.mrb[0].mxu0
        %v607 = vadd.f32 %v391, %v606
        %v608 = vpop.f32.mrb[0].mxu0
        %v609 = vpop.f32.mrb[0].mxu0
        %v610 = vadd.f32 %v391, %v609
        %v611 = vpop.f32.mrb[0].mxu0
        %612 = vmatprep.mubr.bf16.mxu0 0
        %613 = vmatmul.mubr.bf16.gmra.mrb[0].mxu0 %v513
        %v614 = vpop.f32.mrb[0].mxu0
        %v615 = vadd.f32 %v391, %v614
        %v616 = vpop.f32.mrb[0].mxu0
        %v617 = vpop.f32.mrb[0].mxu0
        %v618 = vadd.f32 %v391, %v617
        %v619 = vpop.f32.mrb[0].mxu0
        %620 = vmatprep.mubr.bf16.mxu0 0
        %621 = vmatmul.mubr.bf16.gmra.mrb[0].mxu0 %v516
        %v622 = vpop.f32.mrb[0].mxu0
        %v623 = vadd.f32 %v391, %v622
        %v624 = vpop.f32.mrb[0].mxu0
        %v625 = vpop.f32.mrb[0].mxu0
        %v626 = vadd.f32 %v391, %v625
        %v627 = vpop.f32.mrb[0].mxu0
        %628 = vmatprep.mubr.bf16.mxu0 0
        %629 = vmatmul.mubr.bf16.gmra.mrb[0].mxu0 %v519
        %v630 = vpop.f32.mrb[0].mxu0
        %v631 = vadd.f32 %v391, %v630
        %v632 = vpop.f32.mrb[0].mxu0
        %v633 = vpop.f32.mrb[0].mxu0
        %v634 = vadd.f32 %v391, %v633
        %v635 = vpop.f32.mrb[0].mxu0
        %636 = vmatprep.mubr.bf16.mxu0 0
        %637 = vmatmul.mubr.bf16.gmra.mrb[0].mxu0 %v522
        %v638 = vpop.f32.mrb[0].mxu0
        %v639 = vadd.f32 %v391, %v638
        %v640 = vpop.f32.mrb[0].mxu0
        %v641 = vpop.f32.mrb[0].mxu0
        %v642 = vadd.f32 %v391, %v641
        %v643 = vpop.f32.mrb[0].mxu0
        %644 = vmatprep.mubr.bf16.mxu0 0
        %645 = vmatmul.mubr.bf16.gmra.mrb[0].mxu0 %v525
        %v646 = vpop.f32.mrb[0].mxu0
        %v647 = vadd.f32 %v391, %v646
        %v648 = vpop.f32.mrb[0].mxu0
        %v649 = vpop.f32.mrb[0].mxu0
        %v650 = vadd.f32 %v391, %v649
        %v651 = vpop.f32.mrb[0].mxu0
        %652 = vmatprep.mubr.bf16.mxu0 0
        %653 = vmatmul.mubr.bf16.gmra.mrb[0].mxu0 %v528
        %v654 = vpop.f32.mrb[0].mxu0
        %v655 = vadd.f32 %v391, %v654
        %v656 = vpop.f32.mrb[0].mxu0
        %v657 = vpop.f32.mrb[0].mxu0
        %v658 = vadd.f32 %v391, %v657
        %v659 = vpop.f32.mrb[0].mxu0
        %660 = vmatprep.mubr.bf16.mxu0 0
        %661 = vmatmul.mubr.bf16.gmra.mrb[0].mxu0 %v531
        %v662 = vpop.f32.mrb[0].mxu0
        %v663 = vadd.f32 %v391, %v662
        %v664 = vpop.f32.mrb[0].mxu0
        %v665 = vpop.f32.mrb[0].mxu0
        %v666 = vadd.f32 %v391, %v665
        %v667 = vpop.f32.mrb[0].mxu0
        %668 = vmatprep.mubr.bf16.mxu0 0
        %669 = vmatmul.mubr.bf16.gmra.mrb[0].mxu0 %v534
        %v670 = vpop.f32.mrb[0].mxu0
        %v671 = vadd.f32 %v391, %v670
        %v672 = vpop.f32.mrb[0].mxu0
        %v673 = vpop.f32.mrb[0].mxu0
        %v674 = vadd.f32 %v391, %v673
        %v675 = vpop.f32.mrb[0].mxu0
        %676 = vmatprep.mubr.bf16.mxu0 0
        %677 = vmatmul.mubr.bf16.gmra.mrb[0].mxu0 %v537
        %v678 = vpop.f32.mrb[0].mxu0
        %v679 = vadd.f32 %v391, %v678
        %v680 = vpop.f32.mrb[0].mxu0
        %v681 = vpop.f32.mrb[0].mxu0
        %v682 = vadd.f32 %v391, %v681
        %v683 = vpop.f32.mrb[0].mxu0
        %684 = vmatprep.mubr.bf16.mxu0 0
        %685 = vmatmul.mubr.bf16.gmra.mrb[0].mxu0 %v540
        %v686 = vpop.f32.mrb[0].mxu0
        %v687 = vadd.f32 %v391, %v686
        %v688 = vpop.f32.mrb[0].mxu0
        %v689 = vpop.f32.mrb[0].mxu0
        %v690 = vadd.f32 %v391, %v689
        %v691 = vpop.f32.mrb[0].mxu0
        %692 = vmatprep.mubr.bf16.mxu0 0
        %693 = vmatmul.mubr.bf16.gmra.mrb[0].mxu0 %v543
        %v694 = vpop.f32.mrb[0].mxu0
        %v695 = vadd.f32 %v391, %v694
        %v696 = vpop.f32.mrb[0].mxu0
        %v697 = vpop.f32.mrb[0].mxu0
        %v698 = vadd.f32 %v391, %v697
        %v699 = vpop.f32.mrb[0].mxu0
        %700 = vmatprep.mubr.bf16.mxu0 0
        %701 = vmatmul.mubr.bf16.gmra.mrb[0].mxu0 %v546
        %v702 = vpop.f32.mrb[0].mxu0
        %v703 = vadd.f32 %v391, %v702
        %v704 = vpop.f32.mrb[0].mxu0
        %v705 = vpop.f32.mrb[0].mxu0
        %v706 = vadd.f32 %v391, %v705
        %v707 = vpop.f32.mrb[0].mxu0
        %708 = vmatprep.mubr.bf16.mxu0 0
        %709 = vmatmul.mubr.bf16.gmra.mrb[0].mxu0 %v549
        %v710 = vpop.f32.mrb[0].mxu0
        %v711 = vadd.f32 %v391, %v710
        %v712 = vpop.f32.mrb[0].mxu0
        %v713 = vpop.f32.mrb[0].mxu0
        %v714 = vadd.f32 %v391, %v713
        %v715 = vpop.f32.mrb[0].mxu0
        %716 = vmatprep.mubr.bf16.mxu0 0
        %717 = vmatmul.mubr.bf16.gmra.mrb[0].mxu0 %v552
        %v718 = vpop.f32.mrb[0].mxu0
        %v719 = vadd.f32 %v391, %v718
        %v720 = vpop.f32.mrb[0].mxu0
        %v721 = vpop.f32.mrb[0].mxu0
        %v722 = vadd.f32 %v391, %v721
        %v723 = vpop.f32.mrb[0].mxu0
        %724 = vmatprep.mubr.bf16.mxu0 0
        %725 = vmatmul.mubr.bf16.gmra.mrb[0].mxu0 %v555
        %v726 = vpop.f32.mrb[0].mxu0
        %v727 = vadd.f32 %v391, %v726
        %v728 = vpop.f32.mrb[0].mxu0
        %v729 = vpop.f32.mrb[0].mxu0
        %v730 = vadd.f32 %v391, %v729
        %v731 = vpop.f32.mrb[0].mxu0
        %732 = vmatprep.mubr.bf16.mxu0 0
        %733 = vmatmul.mubr.bf16.gmra.mrb[0].mxu0 %v558
        %v734 = vpop.f32.mrb[0].mxu0
        %v735 = vadd.f32 %v391, %v734
        %v736 = vpop.f32.mrb[0].mxu0
        %v737 = vpop.f32.mrb[0].mxu0
        %v738 = vadd.f32 %v391, %v737
        %v739 = vpop.f32.mrb[0].mxu0
        %740 = vmatprep.mubr.bf16.mxu0 0
        %741 = vmatmul.mubr.bf16.gmra.mrb[0].mxu0 %v561
        %v742 = vpop.f32.mrb[0].mxu0
        %v743 = vadd.f32 %v391, %v742
        %v744 = vpop.f32.mrb[0].mxu0
        %v745 = vpop.f32.mrb[0].mxu0
        %v746 = vadd.f32 %v391, %v745
        %v747 = vpop.f32.mrb[0].mxu0
        %748 = vmatprep.mubr.bf16.mxu0 0
        %749 = vmatmul.mubr.bf16.gmra.mrb[0].mxu0 %v564
        %v750 = vpop.f32.mrb[0].mxu0
        %v751 = vadd.f32 %v391, %v750
        %v752 = vpop.f32.mrb[0].mxu0
        %v753 = vpop.f32.mrb[0].mxu0
        %v754 = vadd.f32 %v391, %v753
        %v755 = vpop.f32.mrb[0].mxu0
        %756 = vmatprep.mubr.bf16.mxu0 0
        %757 = vmatmul.mubr.bf16.gmra.mrb[0].mxu0 %v567
        %v758 = vpop.f32.mrb[0].mxu0
        %v759 = vadd.f32 %v391, %v758
        %v760 = vpop.f32.mrb[0].mxu0
        %v761 = vpop.f32.mrb[0].mxu0
        %v762 = vadd.f32 %v391, %v761
        %v763 = vpop.f32.mrb[0].mxu0
        %764 = vmatprep.mubr.bf16.mxu0 0
        %765 = vmatmul.mubr.bf16.gmra.mrb[0].mxu0 %v570
        %v766 = vpop.f32.mrb[0].mxu0
        %v767 = vadd.f32 %v391, %v766
        %v768 = vpop.f32.mrb[0].mxu0
        %v769 = vpop.f32.mrb[0].mxu0
        %v770 = vpop.f32.mrb[0].mxu0
        %771 = vdwg.mxu0
        %v772 = vmax.f32 %v607, 0.0
        %v773 = vmax.f32 %v610, 0.0
        %v774 = vmax.f32 %v615, 0.0
        %v775 = vmax.f32 %v618, 0.0
        %v776 = vmax.f32 %v623, 0.0
        %v777 = vmax.f32 %v626, 0.0
        %v778 = vmax.f32 %v631, 0.0
        %v779 = vmax.f32 %v634, 0.0
        %v780 = vmax.f32 %v639, 0.0
        %v781 = vmax.f32 %v642, 0.0
        %v782 = vmax.f32 %v647, 0.0
        %v783 = vmax.f32 %v650, 0.0
        %v784 = vmax.f32 %v655, 0.0
        %v785 = vmax.f32 %v658, 0.0
        %v786 = vmax.f32 %v663, 0.0
        %v787 = vmax.f32 %v666, 0.0
        %v788 = vmax.f32 %v671, 0.0
        %v789 = vmax.f32 %v674, 0.0
        %v790 = vmax.f32 %v679, 0.0
        %v791 = vmax.f32 %v682, 0.0
        %v792 = vmax.f32 %v687, 0.0
        %v793 = vmax.f32 %v690, 0.0
        %v794 = vmax.f32 %v695, 0.0
        %v795 = vmax.f32 %v698, 0.0
        %v796 = vmax.f32 %v703, 0.0
        %v797 = vmax.f32 %v706, 0.0
        %v798 = vmax.f32 %v711, 0.0
        %v799 = vmax.f32 %v714, 0.0
        %v800 = vmax.f32 %v719, 0.0
        %v801 = vmax.f32 %v722, 0.0
        %v802 = vmax.f32 %v727, 0.0
        %v803 = vmax.f32 %v730, 0.0
        %v804 = vmax.f32 %v735, 0.0
        %v805 = vmax.f32 %v738, 0.0
        %v806 = vmax.f32 %v743, 0.0
        %v807 = vmax.f32 %v746, 0.0
        %v808 = vmax.f32 %v751, 0.0
        %v809 = vmax.f32 %v754, 0.0
        %v810 = vmax.f32 %v759, 0.0
        %v811 = vmax.f32 %v762, 0.0
        %v812 = vmax.f32 %v767, 0.0
        %v813 = vld [vmem:[%s1] sm:$0xff]
        %v814 = vld [vmem:[%s1 + $0x8] sm:$0xff]
        %v815 = vld [vmem:[%s1 + $0x10] sm:$0xff]
        %v816 = vld [vmem:[%s1 + $0x18] sm:$0xff]
        %v817 = vld [vmem:[%s1 + $0x20] sm:$0xff]
        %v818 = vld [vmem:[%s1 + $0x28] sm:$0xff]
        %v819 = vld [vmem:[%s1 + $0x30] sm:$0xff]
        %v820 = vld [vmem:[%s1 + $0x38] sm:$0xff]
        %v821 = vld [vmem:[%s1 + $0x40] sm:$0xff]
        %v822 = vld [vmem:[%s1 + $0x48] sm:$0xff]
        %v823 = vld [vmem:[%s1 + $0x50] sm:$0xff]
        %v824 = vld [vmem:[%s1 + $0x58] sm:$0xff]
        %v825 = vld [vmem:[%s1 + $0x60] sm:$0xff]
        %v826 = vld [vmem:[%s1 + $0x68] sm:$0xff]
        %v827 = vld [vmem:[%s1 + $0x70] sm:$0xff]
        %v828 = vld [vmem:[%s1 + $0x78] sm:$0xff]
        %v829 = vld [vmem:[%s1 + $0x80] sm:$0xff]
        %v830 = vld [vmem:[%s1 + $0x88] sm:$0xff]
        %v831 = vld [vmem:[%s1 + $0x90] sm:$0xff]
        %v832 = vld [vmem:[%s1 + $0x98] sm:$0xff]
        %v833 = vld [vmem:[%s1 + $0xa0] sm:$0xff]
        %v834 = vld [vmem:[%s1 + $0xa8] sm:$0xff]
        %v835 = vld [vmem:[%s1 + $0xb0] sm:$0xff]
        %v836 = vld [vmem:[%s1 + $0xb8] sm:$0xff]
        %v837 = vld [vmem:[%s1 + $0xc0] sm:$0xff]
        %v838 = vld [vmem:[%s1 + $0xc8] sm:$0xff]
        %v839 = vld [vmem:[%s1 + $0xd0] sm:$0xff]
        %v840 = vld [vmem:[%s1 + $0xd8] sm:$0xff]
        %v841 = vld [vmem:[%s1 + $0xe0] sm:$0xff]
        %v842 = vld [vmem:[%s1 + $0xe8] sm:$0xff]
        %v843 = vld [vmem:[%s1 + $0xf0] sm:$0xff]
        %v844 = vld [vmem:[%s1 + $0xf8] sm:$0xff]
        %v845 = vld [vmem:[%s1 + $0x100] sm:$0xff]
        %v846 = vld [vmem:[%s1 + $0x108] sm:$0xff]
        %v847 = vld [vmem:[%s1 + $0x110] sm:$0xff]
        %v848 = vld [vmem:[%s1 + $0x118] sm:$0xff]
        %v849 = vld [vmem:[%s1 + $0x120] sm:$0xff]
        %v850 = vld [vmem:[%s1 + $0x128] sm:$0xff]
        %v851 = vld [vmem:[%s1 + $0x130] sm:$0xff]
        %v852 = vld [vmem:[%s1 + $0x138] sm:$0xff]
        %v853 = vld [vmem:[%s1 + $0x140] sm:$0xff]
        %855 = vset.pattern.permute.xlu0 0
        %856 = vperm.xlu0 %855, %v813
        %v857 = vpop.permute.xlu0 %856
        %860 = vset.pattern.permute.xlu0 0
        %861 = vperm.xlu0 %860, %v814
        %v862 = vpop.permute.xlu0 %861
        %865 = vset.pattern.permute.xlu0 0
        %866 = vperm.xlu0 %865, %v815
        %v867 = vpop.permute.xlu0 %866
        %870 = vset.pattern.permute.xlu0 0
        %871 = vperm.xlu0 %870, %v816
        %v872 = vpop.permute.xlu0 %871
        %875 = vset.pattern.permute.xlu0 0
        %876 = vperm.xlu0 %875, %v817
        %v877 = vpop.permute.xlu0 %876
        %880 = vset.pattern.permute.xlu0 0
        %881 = vperm.xlu0 %880, %v818
        %v882 = vpop.permute.xlu0 %881
        %885 = vset.pattern.permute.xlu0 0
        %886 = vperm.xlu0 %885, %v819
        %v887 = vpop.permute.xlu0 %886
        %890 = vset.pattern.permute.xlu0 0
        %891 = vperm.xlu0 %890, %v820
        %v892 = vpop.permute.xlu0 %891
        %895 = vset.pattern.permute.xlu0 0
        %896 = vperm.xlu0 %895, %v821
        %v897 = vpop.permute.xlu0 %896
        %900 = vset.pattern.permute.xlu0 0
        %901 = vperm.xlu0 %900, %v822
        %v902 = vpop.permute.xlu0 %901
        %905 = vset.pattern.permute.xlu0 0
        %906 = vperm.xlu0 %905, %v823
        %v907 = vpop.permute.xlu0 %906
        %910 = vset.pattern.permute.xlu0 0
        %911 = vperm.xlu0 %910, %v824
        %v912 = vpop.permute.xlu0 %911
        %915 = vset.pattern.permute.xlu0 0
        %916 = vperm.xlu0 %915, %v825
        %v917 = vpop.permute.xlu0 %916
        %920 = vset.pattern.permute.xlu0 0
        %921 = vperm.xlu0 %920, %v826
        %v922 = vpop.permute.xlu0 %921
        %925 = vset.pattern.permute.xlu0 0
        %926 = vperm.xlu0 %925, %v827
        %v927 = vpop.permute.xlu0 %926
        %930 = vset.pattern.permute.xlu0 0
        %931 = vperm.xlu0 %930, %v828
        %v932 = vpop.permute.xlu0 %931
        %935 = vset.pattern.permute.xlu0 0
        %936 = vperm.xlu0 %935, %v829
        %v937 = vpop.permute.xlu0 %936
        %940 = vset.pattern.permute.xlu0 0
        %941 = vperm.xlu0 %940, %v830
        %v942 = vpop.permute.xlu0 %941
        %945 = vset.pattern.permute.xlu0 0
        %946 = vperm.xlu0 %945, %v831
        %v947 = vpop.permute.xlu0 %946
        %950 = vset.pattern.permute.xlu0 0
        %951 = vperm.xlu0 %950, %v832
        %v952 = vpop.permute.xlu0 %951
        %955 = vset.pattern.permute.xlu0 0
        %956 = vperm.xlu0 %955, %v833
        %v957 = vpop.permute.xlu0 %956
        %960 = vset.pattern.permute.xlu0 0
        %961 = vperm.xlu0 %960, %v834
        %v962 = vpop.permute.xlu0 %961
        %965 = vset.pattern.permute.xlu0 0
        %966 = vperm.xlu0 %965, %v835
        %v967 = vpop.permute.xlu0 %966
        %970 = vset.pattern.permute.xlu0 0
        %971 = vperm.xlu0 %970, %v836
        %v972 = vpop.permute.xlu0 %971
        %975 = vset.pattern.permute.xlu0 0
        %976 = vperm.xlu0 %975, %v837
        %v977 = vpop.permute.xlu0 %976
        %980 = vset.pattern.permute.xlu0 0
        %981 = vperm.xlu0 %980, %v838
        %v982 = vpop.permute.xlu0 %981
        %985 = vset.pattern.permute.xlu0 0
        %986 = vperm.xlu0 %985, %v839
        %v987 = vpop.permute.xlu0 %986
        %990 = vset.pattern.permute.xlu0 0
        %991 = vperm.xlu0 %990, %v840
        %v992 = vpop.permute.xlu0 %991
        %995 = vset.pattern.permute.xlu0 0
        %996 = vperm.xlu0 %995, %v841
        %v997 = vpop.permute.xlu0 %996
        %1000 = vset.pattern.permute.xlu0 0
        %1001 = vperm.xlu0 %1000, %v842
        %v1002 = vpop.permute.xlu0 %1001
        %1005 = vset.pattern.permute.xlu0 0
        %1006 = vperm.xlu0 %1005, %v843
        %v1007 = vpop.permute.xlu0 %1006
        %1010 = vset.pattern.permute.xlu0 0
        %1011 = vperm.xlu0 %1010, %v844
        %v1012 = vpop.permute.xlu0 %1011
        %1015 = vset.pattern.permute.xlu0 0
        %1016 = vperm.xlu0 %1015, %v845
        %v1017 = vpop.permute.xlu0 %1016
        %1020 = vset.pattern.permute.xlu0 0
        %1021 = vperm.xlu0 %1020, %v846
        %v1022 = vpop.permute.xlu0 %1021
        %1025 = vset.pattern.permute.xlu0 0
        %1026 = vperm.xlu0 %1025, %v847
        %v1027 = vpop.permute.xlu0 %1026
        %1030 = vset.pattern.permute.xlu0 0
        %1031 = vperm.xlu0 %1030, %v848
        %v1032 = vpop.permute.xlu0 %1031
        %1035 = vset.pattern.permute.xlu0 0
        %1036 = vperm.xlu0 %1035, %v849
        %v1037 = vpop.permute.xlu0 %1036
        %1040 = vset.pattern.permute.xlu0 0
        %1041 = vperm.xlu0 %1040, %v850
        %v1042 = vpop.permute.xlu0 %1041
        %1045 = vset.pattern.permute.xlu0 0
        %1046 = vperm.xlu0 %1045, %v851
        %v1047 = vpop.permute.xlu0 %1046
        %1050 = vset.pattern.permute.xlu0 0
        %1051 = vperm.xlu0 %1050, %v852
        %v1052 = vpop.permute.xlu0 %1051
        %1055 = vset.pattern.permute.xlu0 0
        %1056 = vperm.xlu0 %1055, %v853
        %v1057 = vpop.permute.xlu0 %1056
        %v1059 = vmul.f32 %v772, %v857
        %v1060 = vmul.f32 %v773, %v862
        %v1061 = vmul.f32 %v774, %v867
        %v1062 = vmul.f32 %v775, %v872
        %v1063 = vmul.f32 %v776, %v877
        %v1064 = vmul.f32 %v777, %v882
        %v1065 = vmul.f32 %v778, %v887
        %v1066 = vmul.f32 %v779, %v892
        %v1067 = vmul.f32 %v780, %v897
        %v1068 = vmul.f32 %v781, %v902
        %v1069 = vmul.f32 %v782, %v907
        %v1070 = vmul.f32 %v783, %v912
        %v1071 = vmul.f32 %v784, %v917
        %v1072 = vmul.f32 %v785, %v922
        %v1073 = vmul.f32 %v786, %v927
        %v1074 = vmul.f32 %v787, %v932
        %v1075 = vmul.f32 %v788, %v937
        %v1076 = vmul.f32 %v789, %v942
        %v1077 = vmul.f32 %v790, %v947
        %v1078 = vmul.f32 %v791, %v952
        %v1079 = vmul.f32 %v792, %v957
        %v1080 = vmul.f32 %v793, %v962
        %v1081 = vmul.f32 %v794, %v967
        %v1082 = vmul.f32 %v795, %v972
        %v1083 = vmul.f32 %v796, %v977
        %v1084 = vmul.f32 %v797, %v982
        %v1085 = vmul.f32 %v798, %v987
        %v1086 = vmul.f32 %v799, %v992
        %v1087 = vmul.f32 %v800, %v997
        %v1088 = vmul.f32 %v801, %v1002
        %v1089 = vmul.f32 %v802, %v1007
        %v1090 = vmul.f32 %v803, %v1012
        %v1091 = vmul.f32 %v804, %v1017
        %v1092 = vmul.f32 %v805, %v1022
        %v1093 = vmul.f32 %v806, %v1027
        %v1094 = vmul.f32 %v807, %v1032
        %v1095 = vmul.f32 %v808, %v1037
        %v1096 = vmul.f32 %v809, %v1042
        %v1097 = vmul.f32 %v810, %v1047
        %v1098 = vmul.f32 %v811, %v1052
        %v1099 = vmul.f32 %v812, %v1057
        %v1100 = vpack.c.bf16 %v1060, %v1059
        %v1101 = vpack.c.bf16 %v1062, %v1061
        %v1102 = vpack.c.bf16 %v1064, %v1063
        %v1103 = vpack.c.bf16 %v1066, %v1065
        %v1104 = vpack.c.bf16 %v1068, %v1067
        %v1105 = vpack.c.bf16 %v1070, %v1069
        %v1106 = vpack.c.bf16 %v1072, %v1071
        %v1107 = vpack.c.bf16 %v1074, %v1073
        %v1108 = vpack.c.bf16 %v1076, %v1075
        %v1109 = vpack.c.bf16 %v1078, %v1077
        %v1110 = vpack.c.bf16 %v1080, %v1079
        %v1111 = vpack.c.bf16 %v1082, %v1081
        %v1112 = vpack.c.bf16 %v1084, %v1083
        %v1113 = vpack.c.bf16 %v1086, %v1085
        %v1114 = vpack.c.bf16 %v1088, %v1087
        %v1115 = vpack.c.bf16 %v1090, %v1089
        %v1116 = vpack.c.bf16 %v1092, %v1091
        %v1117 = vpack.c.bf16 %v1094, %v1093
        %v1118 = vpack.c.bf16 %v1096, %v1095
        %v1119 = vpack.c.bf16 %v1098, %v1097
        %v1120 = vpack.c.bf16 %v1099, %v1099
        %vm1121 = vcmask 519168
        %1122 = vst.msk [vmem:[#allocation2] sm:$0xf] %vm1121, 0
        %1123 = vst.msk [vmem:[#allocation2 + $0x4] sm:$0xf] %vm1121, 0
        %1124 = vst.msk [vmem:[#allocation2 + $0x8] sm:$0xf] %vm1121, 0
        %1125 = vst.msk [vmem:[#allocation2 + $0xb0] sm:$0xf] %vm1121, 0
        %1126 = vst.msk [vmem:[#allocation2 + $0xb4] sm:$0xf] %vm1121, 0
        %1127 = vst.msk [vmem:[#allocation2 + $0xb8] sm:$0xf] %vm1121, 0
        %v1149 = vunpack.c.l.b16 %v1100
        %v1150 = vunpack.c.h.b16 %v1100
        %v1151 = vunpack.c.l.b16 %v1101
        %v1152 = vunpack.c.h.b16 %v1101
        %v1153 = vunpack.c.l.b16 %v1102
        %v1154 = vunpack.c.h.b16 %v1102
        %v1155 = vunpack.c.l.b16 %v1103
        %v1156 = vunpack.c.h.b16 %v1103
        %v1157 = vunpack.c.l.b16 %v1104
        %v1158 = vunpack.c.h.b16 %v1104
        %v1159 = vunpack.c.l.b16 %v1105
        %v1160 = vunpack.c.h.b16 %v1105
        %v1161 = vunpack.c.l.b16 %v1106
        %v1162 = vunpack.c.h.b16 %v1106
        %v1163 = vunpack.c.l.b16 %v1107
        %v1164 = vunpack.c.h.b16 %v1107
        %v1165 = vunpack.c.l.b16 %v1108
        %v1166 = vunpack.c.h.b16 %v1108
        %v1167 = vunpack.c.l.b16 %v1109
        %v1168 = vunpack.c.h.b16 %v1109
        %v1169 = vunpack.c.l.b16 %v1110
        %v1170 = vunpack.c.h.b16 %v1110
        %v1171 = vunpack.c.l.b16 %v1111
        %v1172 = vunpack.c.h.b16 %v1111
        %v1173 = vunpack.c.l.b16 %v1112
        %v1174 = vunpack.c.h.b16 %v1112
        %v1175 = vunpack.c.l.b16 %v1113
        %v1176 = vunpack.c.h.b16 %v1113
        %v1177 = vunpack.c.l.b16 %v1114
        %v1178 = vunpack.c.h.b16 %v1114
        %v1179 = vunpack.c.l.b16 %v1115
        %v1180 = vunpack.c.h.b16 %v1115
        %v1181 = vunpack.c.l.b16 %v1116
        %v1182 = vunpack.c.h.b16 %v1116
        %v1183 = vunpack.c.l.b16 %v1117
        %v1184 = vunpack.c.h.b16 %v1117
        %v1185 = vunpack.c.l.b16 %v1118
        %v1186 = vunpack.c.h.b16 %v1118
        %v1187 = vunpack.c.l.b16 %v1119
        %v1188 = vunpack.c.h.b16 %v1119
        %v1189 = vunpack.c.l.b16 %v1120
        %v1190 = vpack.c.b16 %v1149, %v1149
        %v1191 = vpack.c.b16 %v1150, %v1150
        %v1192 = vpack.c.b16 %v1151, %v1151
        %v1193 = vpack.c.b16 %v1152, %v1152
        %v1194 = vpack.c.b16 %v1153, %v1153
        %v1195 = vpack.c.b16 %v1154, %v1154
        %v1196 = vpack.c.b16 %v1155, %v1155
        %v1197 = vpack.c.b16 %v1156, %v1156
        %v1198 = vpack.c.b16 %v1157, %v1157
        %v1199 = vpack.c.b16 %v1158, %v1158
        %v1200 = vpack.c.b16 %v1159, %v1159
        %v1201 = vpack.c.b16 %v1160, %v1160
        %v1202 = vpack.c.b16 %v1161, %v1161
        %v1203 = vpack.c.b16 %v1162, %v1162
        %v1204 = vpack.c.b16 %v1163, %v1163
        %v1205 = vpack.c.b16 %v1164, %v1164
        %v1206 = vpack.c.b16 %v1165, %v1165
        %v1207 = vpack.c.b16 %v1166, %v1166
        %v1208 = vpack.c.b16 %v1167, %v1167
        %v1209 = vpack.c.b16 %v1168, %v1168
        %v1210 = vpack.c.b16 %v1169, %v1169
        %v1211 = vpack.c.b16 %v1170, %v1170
        %v1212 = vpack.c.b16 %v1171, %v1171
        %v1213 = vpack.c.b16 %v1172, %v1172
        %v1214 = vpack.c.b16 %v1173, %v1173
        %v1215 = vpack.c.b16 %v1174, %v1174
        %v1216 = vpack.c.b16 %v1175, %v1175
        %v1217 = vpack.c.b16 %v1176, %v1176
        %v1218 = vpack.c.b16 %v1177, %v1177
        %v1219 = vpack.c.b16 %v1178, %v1178
        %v1220 = vpack.c.b16 %v1179, %v1179
        %v1221 = vpack.c.b16 %v1180, %v1180
        %v1222 = vpack.c.b16 %v1181, %v1181
        %v1223 = vpack.c.b16 %v1182, %v1182
        %v1224 = vpack.c.b16 %v1183, %v1183
        %v1225 = vpack.c.b16 %v1184, %v1184
        %v1226 = vpack.c.b16 %v1185, %v1185
        %v1227 = vpack.c.b16 %v1186, %v1186
        %v1228 = vpack.c.b16 %v1187, %v1187
        %v1229 = vpack.c.b16 %v1188, %v1188
        %v1230 = vpack.c.b16 %v1189, %v1189
        %1272 = vst.msk [vmem:[#allocation2 + $0xc] sm:$0xf] %vm1121, %v1190
        %1273 = vst.msk [vmem:[#allocation2 + $0x10] sm:$0xf] %vm1121, %v1191
        %1274 = vst.msk [vmem:[#allocation2 + $0x14] sm:$0xf] %vm1121, %v1192
        %1275 = vst.msk [vmem:[#allocation2 + $0x18] sm:$0xf] %vm1121, %v1193
        %1276 = vst.msk [vmem:[#allocation2 + $0x1c] sm:$0xf] %vm1121, %v1194
        %1277 = vst.msk [vmem:[#allocation2 + $0x20] sm:$0xf] %vm1121, %v1195
        %1278 = vst.msk [vmem:[#allocation2 + $0x24] sm:$0xf] %vm1121, %v1196
        %1279 = vst.msk [vmem:[#allocation2 + $0x28] sm:$0xf] %vm1121, %v1197
        %1280 = vst.msk [vmem:[#allocation2 + $0x2c] sm:$0xf] %vm1121, %v1198
        %1281 = vst.msk [vmem:[#allocation2 + $0x30] sm:$0xf] %vm1121, %v1199
        %1282 = vst.msk [vmem:[#allocation2 + $0x34] sm:$0xf] %vm1121, %v1200
        %1283 = vst.msk [vmem:[#allocation2 + $0x38] sm:$0xf] %vm1121, %v1201
        %1284 = vst.msk [vmem:[#allocation2 + $0x3c] sm:$0xf] %vm1121, %v1202
        %1285 = vst.msk [vmem:[#allocation2 + $0x40] sm:$0xf] %vm1121, %v1203
        %1286 = vst.msk [vmem:[#allocation2 + $0x44] sm:$0xf] %vm1121, %v1204
        %1287 = vst.msk [vmem:[#allocation2 + $0x48] sm:$0xf] %vm1121, %v1205
        %1288 = vst.msk [vmem:[#allocation2 + $0x4c] sm:$0xf] %vm1121, %v1206
        %1289 = vst.msk [vmem:[#allocation2 + $0x50] sm:$0xf] %vm1121, %v1207
        %1290 = vst.msk [vmem:[#allocation2 + $0x54] sm:$0xf] %vm1121, %v1208
        %1291 = vst.msk [vmem:[#allocation2 + $0x58] sm:$0xf] %vm1121, %v1209
        %1292 = vst.msk [vmem:[#allocation2 + $0x5c] sm:$0xf] %vm1121, %v1210
        %1293 = vst.msk [vmem:[#allocation2 + $0x60] sm:$0xf] %vm1121, %v1211
        %1294 = vst.msk [vmem:[#allocation2 + $0x64] sm:$0xf] %vm1121, %v1212
        %1295 = vst.msk [vmem:[#allocation2 + $0x68] sm:$0xf] %vm1121, %v1213
        %1296 = vst.msk [vmem:[#allocation2 + $0x6c] sm:$0xf] %vm1121, %v1214
        %1297 = vst.msk [vmem:[#allocation2 + $0x70] sm:$0xf] %vm1121, %v1215
        %1298 = vst.msk [vmem:[#allocation2 + $0x74] sm:$0xf] %vm1121, %v1216
        %1299 = vst.msk [vmem:[#allocation2 + $0x78] sm:$0xf] %vm1121, %v1217
        %1300 = vst.msk [vmem:[#allocation2 + $0x7c] sm:$0xf] %vm1121, %v1218
        %1301 = vst.msk [vmem:[#allocation2 + $0x80] sm:$0xf] %vm1121, %v1219
        %1302 = vst.msk [vmem:[#allocation2 + $0x84] sm:$0xf] %vm1121, %v1220
        %1303 = vst.msk [vmem:[#allocation2 + $0x88] sm:$0xf] %vm1121, %v1221
        %1304 = vst.msk [vmem:[#allocation2 + $0x8c] sm:$0xf] %vm1121, %v1222
        %1305 = vst.msk [vmem:[#allocation2 + $0x90] sm:$0xf] %vm1121, %v1223
        %1306 = vst.msk [vmem:[#allocation2 + $0x94] sm:$0xf] %vm1121, %v1224
        %1307 = vst.msk [vmem:[#allocation2 + $0x98] sm:$0xf] %vm1121, %v1225
        %1308 = vst.msk [vmem:[#allocation2 + $0x9c] sm:$0xf] %vm1121, %v1226
        %1309 = vst.msk [vmem:[#allocation2 + $0xa0] sm:$0xf] %vm1121, %v1227
        %1310 = vst.msk [vmem:[#allocation2 + $0xa4] sm:$0xf] %vm1121, %v1228
        %1311 = vst.msk [vmem:[#allocation2 + $0xa8] sm:$0xf] %vm1121, %v1229
        %1312 = vst.msk [vmem:[#allocation2 + $0xac] sm:$0xf] %vm1121, %v1230
        %v1313 = vld [vmem:[#allocation2] sm:$0xc]
        %v1314 = vld [vmem:[#allocation2 + $0x4] sm:$0xf]
        %v1315 = vld [vmem:[#allocation2 + $0x8] sm:$0xf]
        %v1316 = vld [vmem:[#allocation2 + $0xc] sm:$0xf]
        %v1317 = vld [vmem:[#allocation2 + $0x10] sm:$0xf]
        %v1318 = vld [vmem:[#allocation2 + $0x14] sm:$0xf]
        %v1319 = vld [vmem:[#allocation2 + $0x18] sm:$0xf]
        %v1320 = vld [vmem:[#allocation2 + $0x1c] sm:$0xf]
        %v1321 = vld [vmem:[#allocation2 + $0x20] sm:$0xf]
        %v1322 = vld [vmem:[#allocation2 + $0x24] sm:$0xf]
        %v1323 = vld [vmem:[#allocation2 + $0x28] sm:$0xf]
        %v1324 = vld [vmem:[#allocation2 + $0x2c] sm:$0xf]
        %v1325 = vld [vmem:[#allocation2 + $0x30] sm:$0xf]
        %v1326 = vld [vmem:[#allocation2 + $0x34] sm:$0xf]
        %v1327 = vld [vmem:[#allocation2 + $0x38] sm:$0xf]
        %v1328 = vld [vmem:[#allocation2 + $0x3c] sm:$0xf]
        %v1329 = vld [vmem:[#allocation2 + $0x40] sm:$0xf]
        %v1330 = vld [vmem:[#allocation2 + $0x44] sm:$0xf]
        %v1331 = vld [vmem:[#allocation2 + $0x48] sm:$0xf]
        %v1332 = vld [vmem:[#allocation2 + $0x4c] sm:$0xf]
        %v1333 = vld [vmem:[#allocation2 + $0x50] sm:$0xf]
        %v1334 = vld [vmem:[#allocation2 + $0x54] sm:$0xf]
        %v1335 = vld [vmem:[#allocation2 + $0x58] sm:$0xf]
        %v1336 = vld [vmem:[#allocation2 + $0x5c] sm:$0xf]
        %v1337 = vld [vmem:[#allocation2 + $0x60] sm:$0xf]
        %v1338 = vld [vmem:[#allocation2 + $0x64] sm:$0xf]
        %v1339 = vld [vmem:[#allocation2 + $0x68] sm:$0xf]
        %v1340 = vld [vmem:[#allocation2 + $0x6c] sm:$0xf]
        %v1341 = vld [vmem:[#allocation2 + $0x70] sm:$0xf]
        %v1342 = vld [vmem:[#allocation2 + $0x74] sm:$0xf]
        %v1343 = vld [vmem:[#allocation2 + $0x78] sm:$0xf]
        %v1344 = vld [vmem:[#allocation2 + $0x7c] sm:$0xf]
        %v1345 = vld [vmem:[#allocation2 + $0x80] sm:$0xf]
        %v1346 = vld [vmem:[#allocation2 + $0x84] sm:$0xf]
        %v1347 = vld [vmem:[#allocation2 + $0x88] sm:$0xf]
        %v1348 = vld [vmem:[#allocation2 + $0x8c] sm:$0xf]
        %v1349 = vld [vmem:[#allocation2 + $0x90] sm:$0xf]
        %v1350 = vld [vmem:[#allocation2 + $0x94] sm:$0xf]
        %v1351 = vld [vmem:[#allocation2 + $0x98] sm:$0xf]
        %v1352 = vld [vmem:[#allocation2 + $0x9c] sm:$0xf]
        %v1353 = vld [vmem:[#allocation2 + $0xa0] sm:$0xf]
        %v1354 = vld [vmem:[#allocation2 + $0xa4] sm:$0x7]
        %vm1355 = vsmask.f32 1280
        %vm1356 = vsmask.f32 5392
        %vm1357 = vmor %vm1355, %vm1356
        %v1359 = vshrl.u32 %v1313, 16
        %v1361 = vrot.slane %v1359, 6
        %v1362 = vshll.u32 %v1313, 16
        %v1364 = vrot.slane %v1362, 7
        %v1365 = vor.u32 %v1361, %v1364
        %v1366 = vrot.slane %v1365, 4
        %v1368 = vshrl.u32 %v1314, 16
        %v1370 = vrot.slane %v1368, 6
        %v1371 = vshll.u32 %v1314, 16
        %v1373 = vrot.slane %v1371, 7
        %v1374 = vor.u32 %v1370, %v1373
        %v1375 = vsel %vm1357, %v1366, %v1374
        %v1376 = vrot.slane %v1374, 4
        %v1378 = vshrl.u32 %v1315, 16
        %v1380 = vrot.slane %v1378, 6
        %v1381 = vshll.u32 %v1315, 16
        %v1383 = vrot.slane %v1381, 7
        %v1384 = vor.u32 %v1380, %v1383
        %v1385 = vsel %vm1357, %v1376, %v1384
        %v1386 = vrot.slane %v1384, 4
        %v1388 = vshrl.u32 %v1316, 16
        %v1390 = vrot.slane %v1388, 6
        %v1391 = vshll.u32 %v1316, 16
        %v1393 = vrot.slane %v1391, 7
        %v1394 = vor.u32 %v1390, %v1393
        %v1395 = vsel %vm1357, %v1386, %v1394
        %v1396 = vrot.slane %v1394, 4
        %v1398 = vshrl.u32 %v1317, 16
        %v1400 = vrot.slane %v1398, 6
        %v1401 = vshll.u32 %v1317, 16
        %v1403 = vrot.slane %v1401, 7
        %v1404 = vor.u32 %v1400, %v1403
        %v1405 = vsel %vm1357, %v1396, %v1404
        %v1406 = vrot.slane %v1404, 4
        %v1408 = vshrl.u32 %v1318, 16
        %v1410 = vrot.slane %v1408, 6
        %v1411 = vshll.u32 %v1318, 16
        %v1413 = vrot.slane %v1411, 7
        %v1414 = vor.u32 %v1410, %v1413
        %v1415 = vsel %vm1357, %v1406, %v1414
        %v1416 = vrot.slane %v1414, 4
        %v1418 = vshrl.u32 %v1319, 16
        %v1420 = vrot.slane %v1418, 6
        %v1421 = vshll.u32 %v1319, 16
        %v1423 = vrot.slane %v1421, 7
        %v1424 = vor.u32 %v1420, %v1423
        %v1425 = vsel %vm1357, %v1416, %v1424
        %v1426 = vrot.slane %v1424, 4
        %v1428 = vshrl.u32 %v1320, 16
        %v1430 = vrot.slane %v1428, 6
        %v1431 = vshll.u32 %v1320, 16
        %v1433 = vrot.slane %v1431, 7
        %v1434 = vor.u32 %v1430, %v1433
        %v1435 = vsel %vm1357, %v1426, %v1434
        %v1436 = vrot.slane %v1434, 4
        %v1438 = vshrl.u32 %v1321, 16
        %v1440 = vrot.slane %v1438, 6
        %v1441 = vshll.u32 %v1321, 16
        %v1443 = vrot.slane %v1441, 7
        %v1444 = vor.u32 %v1440, %v1443
        %v1445 = vsel %vm1357, %v1436, %v1444
        %v1446 = vrot.slane %v1444, 4
        %v1448 = vshrl.u32 %v1322, 16
        %v1450 = vrot.slane %v1448, 6
        %v1451 = vshll.u32 %v1322, 16
        %v1453 = vrot.slane %v1451, 7
        %v1454 = vor.u32 %v1450, %v1453
        %v1455 = vsel %vm1357, %v1446, %v1454
        %v1456 = vrot.slane %v1454, 4
        %v1458 = vshrl.u32 %v1323, 16
        %v1460 = vrot.slane %v1458, 6
        %v1461 = vshll.u32 %v1323, 16
        %v1463 = vrot.slane %v1461, 7
        %v1464 = vor.u32 %v1460, %v1463
        %v1465 = vsel %vm1357, %v1456, %v1464
        %v1466 = vrot.slane %v1464, 4
        %v1468 = vshrl.u32 %v1324, 16
        %v1470 = vrot.slane %v1468, 6
        %v1471 = vshll.u32 %v1324, 16
        %v1473 = vrot.slane %v1471, 7
        %v1474 = vor.u32 %v1470, %v1473
        %v1475 = vsel %vm1357, %v1466, %v1474
        %v1476 = vrot.slane %v1474, 4
        %v1478 = vshrl.u32 %v1325, 16
        %v1480 = vrot.slane %v1478, 6
        %v1481 = vshll.u32 %v1325, 16
        %v1483 = vrot.slane %v1481, 7
        %v1484 = vor.u32 %v1480, %v1483
        %v1485 = vsel %vm1357, %v1476, %v1484
        %v1486 = vrot.slane %v1484, 4
        %v1488 = vshrl.u32 %v1326, 16
        %v1490 = vrot.slane %v1488, 6
        %v1491 = vshll.u32 %v1326, 16
        %v1493 = vrot.slane %v1491, 7
        %v1494 = vor.u32 %v1490, %v1493
        %v1495 = vsel %vm1357, %v1486, %v1494
        %v1496 = vrot.slane %v1494, 4
        %v1498 = vshrl.u32 %v1327, 16
        %v1500 = vrot.slane %v1498, 6
        %v1501 = vshll.u32 %v1327, 16
        %v1503 = vrot.slane %v1501, 7
        %v1504 = vor.u32 %v1500, %v1503
        %v1505 = vsel %vm1357, %v1496, %v1504
        %v1506 = vrot.slane %v1504, 4
        %v1508 = vshrl.u32 %v1328, 16
        %v1510 = vrot.slane %v1508, 6
        %v1511 = vshll.u32 %v1328, 16
        %v1513 = vrot.slane %v1511, 7
        %v1514 = vor.u32 %v1510, %v1513
        %v1515 = vsel %vm1357, %v1506, %v1514
        %v1516 = vrot.slane %v1514, 4
        %v1518 = vshrl.u32 %v1329, 16
        %v1520 = vrot.slane %v1518, 6
        %v1521 = vshll.u32 %v1329, 16
        %v1523 = vrot.slane %v1521, 7
        %v1524 = vor.u32 %v1520, %v1523
        %v1525 = vsel %vm1357, %v1516, %v1524
        %v1526 = vrot.slane %v1524, 4
        %v1528 = vshrl.u32 %v1330, 16
        %v1530 = vrot.slane %v1528, 6
        %v1531 = vshll.u32 %v1330, 16
        %v1533 = vrot.slane %v1531, 7
        %v1534 = vor.u32 %v1530, %v1533
        %v1535 = vsel %vm1357, %v1526, %v1534
        %v1536 = vrot.slane %v1534, 4
        %v1538 = vshrl.u32 %v1331, 16
        %v1540 = vrot.slane %v1538, 6
        %v1541 = vshll.u32 %v1331, 16
        %v1543 = vrot.slane %v1541, 7
        %v1544 = vor.u32 %v1540, %v1543
        %v1545 = vsel %vm1357, %v1536, %v1544
        %v1546 = vrot.slane %v1544, 4
        %v1548 = vshrl.u32 %v1332, 16
        %v1550 = vrot.slane %v1548, 6
        %v1551 = vshll.u32 %v1332, 16
        %v1553 = vrot.slane %v1551, 7
        %v1554 = vor.u32 %v1550, %v1553
        %v1555 = vsel %vm1357, %v1546, %v1554
        %v1556 = vrot.slane %v1554, 4
        %v1558 = vshrl.u32 %v1333, 16
        %v1560 = vrot.slane %v1558, 6
        %v1561 = vshll.u32 %v1333, 16
        %v1563 = vrot.slane %v1561, 7
        %v1564 = vor.u32 %v1560, %v1563
        %v1565 = vsel %vm1357, %v1556, %v1564
        %v1566 = vrot.slane %v1564, 4
        %v1568 = vshrl.u32 %v1334, 16
        %v1570 = vrot.slane %v1568, 6
        %v1571 = vshll.u32 %v1334, 16
        %v1573 = vrot.slane %v1571, 7
        %v1574 = vor.u32 %v1570, %v1573
        %v1575 = vsel %vm1357, %v1566, %v1574
        %v1576 = vrot.slane %v1574, 4
        %v1578 = vshrl.u32 %v1335, 16
        %v1580 = vrot.slane %v1578, 6
        %v1581 = vshll.u32 %v1335, 16
        %v1583 = vrot.slane %v1581, 7
        %v1584 = vor.u32 %v1580, %v1583
        %v1585 = vsel %vm1357, %v1576, %v1584
        %v1586 = vrot.slane %v1584, 4
        %v1588 = vshrl.u32 %v1336, 16
        %v1590 = vrot.slane %v1588, 6
        %v1591 = vshll.u32 %v1336, 16
        %v1593 = vrot.slane %v1591, 7
        %v1594 = vor.u32 %v1590, %v1593
        %v1595 = vsel %vm1357, %v1586, %v1594
        %v1596 = vrot.slane %v1594, 4
        %v1598 = vshrl.u32 %v1337, 16
        %v1600 = vrot.slane %v1598, 6
        %v1601 = vshll.u32 %v1337, 16
        %v1603 = vrot.slane %v1601, 7
        %v1604 = vor.u32 %v1600, %v1603
        %v1605 = vsel %vm1357, %v1596, %v1604
        %v1606 = vrot.slane %v1604, 4
        %v1608 = vshrl.u32 %v1338, 16
        %v1610 = vrot.slane %v1608, 6
        %v1611 = vshll.u32 %v1338, 16
        %v1613 = vrot.slane %v1611, 7
        %v1614 = vor.u32 %v1610, %v1613
        %v1615 = vsel %vm1357, %v1606, %v1614
        %v1616 = vrot.slane %v1614, 4
        %v1618 = vshrl.u32 %v1339, 16
        %v1620 = vrot.slane %v1618, 6
        %v1621 = vshll.u32 %v1339, 16
        %v1623 = vrot.slane %v1621, 7
        %v1624 = vor.u32 %v1620, %v1623
        %v1625 = vsel %vm1357, %v1616, %v1624
        %v1626 = vrot.slane %v1624, 4
        %v1628 = vshrl.u32 %v1340, 16
        %v1630 = vrot.slane %v1628, 6
        %v1631 = vshll.u32 %v1340, 16
        %v1633 = vrot.slane %v1631, 7
        %v1634 = vor.u32 %v1630, %v1633
        %v1635 = vsel %vm1357, %v1626, %v1634
        %v1636 = vrot.slane %v1634, 4
        %v1638 = vshrl.u32 %v1341, 16
        %v1640 = vrot.slane %v1638, 6
        %v1641 = vshll.u32 %v1341, 16
        %v1643 = vrot.slane %v1641, 7
        %v1644 = vor.u32 %v1640, %v1643
        %v1645 = vsel %vm1357, %v1636, %v1644
        %v1646 = vrot.slane %v1644, 4
        %v1648 = vshrl.u32 %v1342, 16
        %v1650 = vrot.slane %v1648, 6
        %v1651 = vshll.u32 %v1342, 16
        %v1653 = vrot.slane %v1651, 7
        %v1654 = vor.u32 %v1650, %v1653
        %v1655 = vsel %vm1357, %v1646, %v1654
        %v1656 = vrot.slane %v1654, 4
        %v1658 = vshrl.u32 %v1343, 16
        %v1660 = vrot.slane %v1658, 6
        %v1661 = vshll.u32 %v1343, 16
        %v1663 = vrot.slane %v1661, 7
        %v1664 = vor.u32 %v1660, %v1663
        %v1665 = vsel %vm1357, %v1656, %v1664
        %v1666 = vrot.slane %v1664, 4
        %v1668 = vshrl.u32 %v1344, 16
        %v1670 = vrot.slane %v1668, 6
        %v1671 = vshll.u32 %v1344, 16
        %v1673 = vrot.slane %v1671, 7
        %v1674 = vor.u32 %v1670, %v1673
        %v1675 = vsel %vm1357, %v1666, %v1674
        %v1676 = vrot.slane %v1674, 4
        %v1678 = vshrl.u32 %v1345, 16
        %v1680 = vrot.slane %v1678, 6
        %v1681 = vshll.u32 %v1345, 16
        %v1683 = vrot.slane %v1681, 7
        %v1684 = vor.u32 %v1680, %v1683
        %v1685 = vsel %vm1357, %v1676, %v1684
        %v1686 = vrot.slane %v1684, 4
        %v1688 = vshrl.u32 %v1346, 16
        %v1690 = vrot.slane %v1688, 6
        %v1691 = vshll.u32 %v1346, 16
        %v1693 = vrot.slane %v1691, 7
        %v1694 = vor.u32 %v1690, %v1693
        %v1695 = vsel %vm1357, %v1686, %v1694
        %v1696 = vrot.slane %v1694, 4
        %v1698 = vshrl.u32 %v1347, 16
        %v1700 = vrot.slane %v1698, 6
        %v1701 = vshll.u32 %v1347, 16
        %v1703 = vrot.slane %v1701, 7
        %v1704 = vor.u32 %v1700, %v1703
        %v1705 = vsel %vm1357, %v1696, %v1704
        %v1706 = vrot.slane %v1704, 4
        %v1708 = vshrl.u32 %v1348, 16
        %v1710 = vrot.slane %v1708, 6
        %v1711 = vshll.u32 %v1348, 16
        %v1713 = vrot.slane %v1711, 7
        %v1714 = vor.u32 %v1710, %v1713
        %v1715 = vsel %vm1357, %v1706, %v1714
        %v1716 = vrot.slane %v1714, 4
        %v1718 = vshrl.u32 %v1349, 16
        %v1720 = vrot.slane %v1718, 6
        %v1721 = vshll.u32 %v1349, 16
        %v1723 = vrot.slane %v1721, 7
        %v1724 = vor.u32 %v1720, %v1723
        %v1725 = vsel %vm1357, %v1716, %v1724
        %v1726 = vrot.slane %v1724, 4
        %v1728 = vshrl.u32 %v1350, 16
        %v1730 = vrot.slane %v1728, 6
        %v1731 = vshll.u32 %v1350, 16
        %v1733 = vrot.slane %v1731, 7
        %v1734 = vor.u32 %v1730, %v1733
        %v1735 = vsel %vm1357, %v1726, %v1734
        %v1736 = vrot.slane %v1734, 4
        %v1738 = vshrl.u32 %v1351, 16
        %v1740 = vrot.slane %v1738, 6
        %v1741 = vshll.u32 %v1351, 16
        %v1743 = vrot.slane %v1741, 7
        %v1744 = vor.u32 %v1740, %v1743
        %v1745 = vsel %vm1357, %v1736, %v1744
        %v1746 = vrot.slane %v1744, 4
        %v1748 = vshrl.u32 %v1352, 16
        %v1750 = vrot.slane %v1748, 6
        %v1751 = vshll.u32 %v1352, 16
        %v1753 = vrot.slane %v1751, 7
        %v1754 = vor.u32 %v1750, %v1753
        %v1755 = vsel %vm1357, %v1746, %v1754
        %v1756 = vrot.slane %v1754, 4
        %v1758 = vshrl.u32 %v1353, 16
        %v1760 = vrot.slane %v1758, 6
        %v1761 = vshll.u32 %v1353, 16
        %v1763 = vrot.slane %v1761, 7
        %v1764 = vor.u32 %v1760, %v1763
        %v1765 = vsel %vm1357, %v1756, %v1764
        %v1766 = vrot.slane %v1764, 4
        %v1768 = vshrl.u32 %v1354, 16
        %v1770 = vrot.slane %v1768, 6
        %v1771 = vshll.u32 %v1354, 16
        %v1773 = vrot.slane %v1771, 7
        %v1774 = vor.u32 %v1770, %v1773
        %v1775 = vsel %vm1357, %v1766, %v1774
        %1817 = vst.msk [vmem:[#allocation3] sm:$0xf] %vm1121, %v1375
        %1818 = vst.msk [vmem:[#allocation3 + $0x14] sm:$0xf] %vm1121, %v1385
        %1819 = vst.msk [vmem:[#allocation3 + $0x28] sm:$0xf] %vm1121, %v1395
        %1820 = vst.msk [vmem:[#allocation3 + $0x3c] sm:$0xf] %vm1121, %v1405
        %1821 = vst.msk [vmem:[#allocation3 + $0x50] sm:$0xf] %vm1121, %v1415
        %1822 = vst.msk [vmem:[#allocation3 + $0x64] sm:$0xf] %vm1121, %v1425
        %1823 = vst.msk [vmem:[#allocation3 + $0x78] sm:$0xf] %vm1121, %v1435
        %1824 = vst.msk [vmem:[#allocation3 + $0x8c] sm:$0xf] %vm1121, %v1445
        %1825 = vst.msk [vmem:[#allocation3 + $0xa0] sm:$0xf] %vm1121, %v1455
        %1826 = vst.msk [vmem:[#allocation3 + $0xb4] sm:$0xf] %vm1121, %v1465
        %1827 = vst.msk [vmem:[#allocation3 + $0xc8] sm:$0xf] %vm1121, %v1475
        %1828 = vst.msk [vmem:[#allocation3 + $0xdc] sm:$0xf] %vm1121, %v1485
        %1829 = vst.msk [vmem:[#allocation3 + $0xf0] sm:$0xf] %vm1121, %v1495
        %1830 = vst.msk [vmem:[#allocation3 + $0x104] sm:$0xf] %vm1121, %v1505
        %1831 = vst.msk [vmem:[#allocation3 + $0x118] sm:$0xf] %vm1121, %v1515
        %1832 = vst.msk [vmem:[#allocation3 + $0x12c] sm:$0xf] %vm1121, %v1525
        %1833 = vst.msk [vmem:[#allocation3 + $0x140] sm:$0xf] %vm1121, %v1535
        %1834 = vst.msk [vmem:[#allocation3 + $0x154] sm:$0xf] %vm1121, %v1545
        %1835 = vst.msk [vmem:[#allocation3 + $0x168] sm:$0xf] %vm1121, %v1555
        %1836 = vst.msk [vmem:[#allocation3 + $0x17c] sm:$0xf] %vm1121, %v1565
        %1837 = vst.msk [vmem:[#allocation3 + $0x190] sm:$0xf] %vm1121, %v1575
        %1838 = vst.msk [vmem:[#allocation3 + $0x1a4] sm:$0xf] %vm1121, %v1585
        %1839 = vst.msk [vmem:[#allocation3 + $0x1b8] sm:$0xf] %vm1121, %v1595
        %1840 = vst.msk [vmem:[#allocation3 + $0x1cc] sm:$0xf] %vm1121, %v1605
        %1841 = vst.msk [vmem:[#allocation3 + $0x1e0] sm:$0xf] %vm1121, %v1615
        %1842 = vst.msk [vmem:[#allocation3 + $0x1f4] sm:$0xf] %vm1121, %v1625
        %1843 = vst.msk [vmem:[#allocation3 + $0x208] sm:$0xf] %vm1121, %v1635
        %1844 = vst.msk [vmem:[#allocation3 + $0x21c] sm:$0xf] %vm1121, %v1645
        %1845 = vst.msk [vmem:[#allocation3 + $0x230] sm:$0xf] %vm1121, %v1655
        %1846 = vst.msk [vmem:[#allocation3 + $0x244] sm:$0xf] %vm1121, %v1665
        %1847 = vst.msk [vmem:[#allocation3 + $0x258] sm:$0xf] %vm1121, %v1675
        %1848 = vst.msk [vmem:[#allocation3 + $0x26c] sm:$0xf] %vm1121, %v1685
        %1849 = vst.msk [vmem:[#allocation3 + $0x280] sm:$0xf] %vm1121, %v1695
        %1850 = vst.msk [vmem:[#allocation3 + $0x294] sm:$0xf] %vm1121, %v1705
        %1851 = vst.msk [vmem:[#allocation3 + $0x2a8] sm:$0xf] %vm1121, %v1715
        %1852 = vst.msk [vmem:[#allocation3 + $0x2bc] sm:$0xf] %vm1121, %v1725
        %1853 = vst.msk [vmem:[#allocation3 + $0x2d0] sm:$0xf] %vm1121, %v1735
        %1854 = vst.msk [vmem:[#allocation3 + $0x2e4] sm:$0xf] %vm1121, %v1745
        %1855 = vst.msk [vmem:[#allocation3 + $0x2f8] sm:$0xf] %vm1121, %v1755
        %1856 = vst.msk [vmem:[#allocation3 + $0x30c] sm:$0xf] %vm1121, %v1765
        %1857 = vst.msk [vmem:[#allocation3 + $0x320] sm:$0xf] %vm1121, %v1775
        %v1858 = vld [vmem:[#allocation2] sm:$0x8]
        %v1859 = vld [vmem:[#allocation2 + $0x4] sm:$0xf]
        %v1860 = vld [vmem:[#allocation2 + $0x8] sm:$0xf]
        %v1861 = vld [vmem:[#allocation2 + $0xc] sm:$0xf]
        %v1862 = vld [vmem:[#allocation2 + $0x10] sm:$0xf]
        %v1863 = vld [vmem:[#allocation2 + $0x14] sm:$0xf]
        %v1864 = vld [vmem:[#allocation2 + $0x18] sm:$0xf]
        %v1865 = vld [vmem:[#allocation2 + $0x1c] sm:$0xf]
        %v1866 = vld [vmem:[#allocation2 + $0x20] sm:$0xf]
        %v1867 = vld [vmem:[#allocation2 + $0x24] sm:$0xf]
        %v1868 = vld [vmem:[#allocation2 + $0x28] sm:$0xf]
        %v1869 = vld [vmem:[#allocation2 + $0x2c] sm:$0xf]
        %v1870 = vld [vmem:[#allocation2 + $0x30] sm:$0xf]
        %v1871 = vld [vmem:[#allocation2 + $0x34] sm:$0xf]
        %v1872 = vld [vmem:[#allocation2 + $0x38] sm:$0xf]
        %v1873 = vld [vmem:[#allocation2 + $0x3c] sm:$0xf]
        %v1874 = vld [vmem:[#allocation2 + $0x40] sm:$0xf]
        %v1875 = vld [vmem:[#allocation2 + $0x44] sm:$0xf]
        %v1876 = vld [vmem:[#allocation2 + $0x48] sm:$0xf]
        %v1877 = vld [vmem:[#allocation2 + $0x4c] sm:$0xf]
        %v1878 = vld [vmem:[#allocation2 + $0x50] sm:$0xf]
        %v1879 = vld [vmem:[#allocation2 + $0x54] sm:$0xf]
        %v1880 = vld [vmem:[#allocation2 + $0x58] sm:$0xf]
        %v1881 = vld [vmem:[#allocation2 + $0x5c] sm:$0xf]
        %v1882 = vld [vmem:[#allocation2 + $0x60] sm:$0xf]
        %v1883 = vld [vmem:[#allocation2 + $0x64] sm:$0xf]
        %v1884 = vld [vmem:[#allocation2 + $0x68] sm:$0xf]
        %v1885 = vld [vmem:[#allocation2 + $0x6c] sm:$0xf]
        %v1886 = vld [vmem:[#allocation2 + $0x70] sm:$0xf]
        %v1887 = vld [vmem:[#allocation2 + $0x74] sm:$0xf]
        %v1888 = vld [vmem:[#allocation2 + $0x78] sm:$0xf]
        %v1889 = vld [vmem:[#allocation2 + $0x7c] sm:$0xf]
        %v1890 = vld [vmem:[#allocation2 + $0x80] sm:$0xf]
        %v1891 = vld [vmem:[#allocation2 + $0x84] sm:$0xf]
        %v1892 = vld [vmem:[#allocation2 + $0x88] sm:$0xf]
        %v1893 = vld [vmem:[#allocation2 + $0x8c] sm:$0xf]
        %v1894 = vld [vmem:[#allocation2 + $0x90] sm:$0xf]
        %v1895 = vld [vmem:[#allocation2 + $0x94] sm:$0xf]
        %v1896 = vld [vmem:[#allocation2 + $0x98] sm:$0xf]
        %v1897 = vld [vmem:[#allocation2 + $0x9c] sm:$0xf]
        %v1898 = vld [vmem:[#allocation2 + $0xa0] sm:$0xf]
        %v1899 = vld [vmem:[#allocation2 + $0xa4] sm:$0x7]
        %vm1942 = vcmask 1040384
        %vm1943 = vcmask 1044484
        %vm1944 = vmor %vm1942, %vm1943
        %v1945 = vrot.slane %v1858, 7
        %v1946 = vrot.slane %v1945, 4
        %v1947 = vrot.slane %v1859, 7
        %v1948 = vsel %vm1944, %v1946, %v1947
        %v1949 = vrot.slane %v1947, 4
        %v1950 = vrot.slane %v1860, 7
        %v1951 = vsel %vm1944, %v1949, %v1950
        %v1952 = vrot.slane %v1950, 4
        %v1953 = vrot.slane %v1861, 7
        %v1954 = vsel %vm1944, %v1952, %v1953
        %v1955 = vrot.slane %v1953, 4
        %v1956 = vrot.slane %v1862, 7
        %v1957 = vsel %vm1944, %v1955, %v1956
        %v1958 = vrot.slane %v1956, 4
        %v1959 = vrot.slane %v1863, 7
        %v1960 = vsel %vm1944, %v1958, %v1959
        %v1961 = vrot.slane %v1959, 4
        %v1962 = vrot.slane %v1864, 7
        %v1963 = vsel %vm1944, %v1961, %v1962
        %v1964 = vrot.slane %v1962, 4
        %v1965 = vrot.slane %v1865, 7
        %v1966 = vsel %vm1944, %v1964, %v1965
        %v1967 = vrot.slane %v1965, 4
        %v1968 = vrot.slane %v1866, 7
        %v1969 = vsel %vm1944, %v1967, %v1968
        %v1970 = vrot.slane %v1968, 4
        %v1971 = vrot.slane %v1867, 7
        %v1972 = vsel %vm1944, %v1970, %v1971
        %v1973 = vrot.slane %v1971, 4
        %v1974 = vrot.slane %v1868, 7
        %v1975 = vsel %vm1944, %v1973, %v1974
        %v1976 = vrot.slane %v1974, 4
        %v1977 = vrot.slane %v1869, 7
        %v1978 = vsel %vm1944, %v1976, %v1977
        %v1979 = vrot.slane %v1977, 4
        %v1980 = vrot.slane %v1870, 7
        %v1981 = vsel %vm1944, %v1979, %v1980
        %v1982 = vrot.slane %v1980, 4
        %v1983 = vrot.slane %v1871, 7
        %v1984 = vsel %vm1944, %v1982, %v1983
        %v1985 = vrot.slane %v1983, 4
        %v1986 = vrot.slane %v1872, 7
        %v1987 = vsel %vm1944, %v1985, %v1986
        %v1988 = vrot.slane %v1986, 4
        %v1989 = vrot.slane %v1873, 7
        %v1990 = vsel %vm1944, %v1988, %v1989
        %v1991 = vrot.slane %v1989, 4
        %v1992 = vrot.slane %v1874, 7
        %v1993 = vsel %vm1944, %v1991, %v1992
        %v1994 = vrot.slane %v1992, 4
        %v1995 = vrot.slane %v1875, 7
        %v1996 = vsel %vm1944, %v1994, %v1995
        %v1997 = vrot.slane %v1995, 4
        %v1998 = vrot.slane %v1876, 7
        %v1999 = vsel %vm1944, %v1997, %v1998
        %v2000 = vrot.slane %v1998, 4
        %v2001 = vrot.slane %v1877, 7
        %v2002 = vsel %vm1944, %v2000, %v2001
        %v2003 = vrot.slane %v2001, 4
        %v2004 = vrot.slane %v1878, 7
        %v2005 = vsel %vm1944, %v2003, %v2004
        %v2006 = vrot.slane %v2004, 4
        %v2007 = vrot.slane %v1879, 7
        %v2008 = vsel %vm1944, %v2006, %v2007
        %v2009 = vrot.slane %v2007, 4
        %v2010 = vrot.slane %v1880, 7
        %v2011 = vsel %vm1944, %v2009, %v2010
        %v2012 = vrot.slane %v2010, 4
        %v2013 = vrot.slane %v1881, 7
        %v2014 = vsel %vm1944, %v2012, %v2013
        %v2015 = vrot.slane %v2013, 4
        %v2016 = vrot.slane %v1882, 7
        %v2017 = vsel %vm1944, %v2015, %v2016
        %v2018 = vrot.slane %v2016, 4
        %v2019 = vrot.slane %v1883, 7
        %v2020 = vsel %vm1944, %v2018, %v2019
        %v2021 = vrot.slane %v2019, 4
        %v2022 = vrot.slane %v1884, 7
        %v2023 = vsel %vm1944, %v2021, %v2022
        %v2024 = vrot.slane %v2022, 4
        %v2025 = vrot.slane %v1885, 7
        %v2026 = vsel %vm1944, %v2024, %v2025
        %v2027 = vrot.slane %v2025, 4
        %v2028 = vrot.slane %v1886, 7
        %v2029 = vsel %vm1944, %v2027, %v2028
        %v2030 = vrot.slane %v2028, 4
        %v2031 = vrot.slane %v1887, 7
        %v2032 = vsel %vm1944, %v2030, %v2031
        %v2033 = vrot.slane %v2031, 4
        %v2034 = vrot.slane %v1888, 7
        %v2035 = vsel %vm1944, %v2033, %v2034
        %v2036 = vrot.slane %v2034, 4
        %v2037 = vrot.slane %v1889, 7
        %v2038 = vsel %vm1944, %v2036, %v2037
        %v2039 = vrot.slane %v2037, 4
        %v2040 = vrot.slane %v1890, 7
        %v2041 = vsel %vm1944, %v2039, %v2040
        %v2042 = vrot.slane %v2040, 4
        %v2043 = vrot.slane %v1891, 7
        %v2044 = vsel %vm1944, %v2042, %v2043
        %v2045 = vrot.slane %v2043, 4
        %v2046 = vrot.slane %v1892, 7
        %v2047 = vsel %vm1944, %v2045, %v2046
        %v2048 = vrot.slane %v2046, 4
        %v2049 = vrot.slane %v1893, 7
        %v2050 = vsel %vm1944, %v2048, %v2049
        %v2051 = vrot.slane %v2049, 4
        %v2052 = vrot.slane %v1894, 7
        %v2053 = vsel %vm1944, %v2051, %v2052
        %v2054 = vrot.slane %v2052, 4
        %v2055 = vrot.slane %v1895, 7
        %v2056 = vsel %vm1944, %v2054, %v2055
        %v2057 = vrot.slane %v2055, 4
        %v2058 = vrot.slane %v1896, 7
        %v2059 = vsel %vm1944, %v2057, %v2058
        %v2060 = vrot.slane %v2058, 4
        %v2061 = vrot.slane %v1897, 7
        %v2062 = vsel %vm1944, %v2060, %v2061
        %v2063 = vrot.slane %v2061, 4
        %v2064 = vrot.slane %v1898, 7
        %v2065 = vsel %vm1944, %v2063, %v2064
        %v2066 = vrot.slane %v2064, 4
        %v2067 = vrot.slane %v1899, 7
        %v2068 = vsel %vm1944, %v2066, %v2067
        %2069 = vrot.lane.b32.xlu0 %v1948, 64
        %v2070 = vpop.permute.xlu0 %2069
        %2071 = vrot.lane.b32.xlu0 %v1951, 64
        %v2072 = vpop.permute.xlu0 %2071
        %2073 = vrot.lane.b32.xlu0 %v1954, 64
        %v2074 = vpop.permute.xlu0 %2073
        %2075 = vrot.lane.b32.xlu0 %v1957, 64
        %v2076 = vpop.permute.xlu0 %2075
        %2077 = vrot.lane.b32.xlu0 %v1960, 64
        %v2078 = vpop.permute.xlu0 %2077
        %2079 = vrot.lane.b32.xlu0 %v1963, 64
        %v2080 = vpop.permute.xlu0 %2079
        %2081 = vrot.lane.b32.xlu0 %v1966, 64
        %v2082 = vpop.permute.xlu0 %2081
        %2083 = vrot.lane.b32.xlu0 %v1969, 64
        %v2084 = vpop.permute.xlu0 %2083
        %2085 = vrot.lane.b32.xlu0 %v1972, 64
        %v2086 = vpop.permute.xlu0 %2085
        %2087 = vrot.lane.b32.xlu0 %v1975, 64
        %v2088 = vpop.permute.xlu0 %2087
        %2089 = vrot.lane.b32.xlu0 %v1978, 64
        %v2090 = vpop.permute.xlu0 %2089
        %2091 = vrot.lane.b32.xlu0 %v1981, 64
        %v2092 = vpop.permute.xlu0 %2091
        %2093 = vrot.lane.b32.xlu0 %v1984, 64
        %v2094 = vpop.permute.xlu0 %2093
        %2095 = vrot.lane.b32.xlu0 %v1987, 64
        %v2096 = vpop.permute.xlu0 %2095
        %2097 = vrot.lane.b32.xlu0 %v1990, 64
        %v2098 = vpop.permute.xlu0 %2097
        %2099 = vrot.lane.b32.xlu0 %v1993, 64
        %v2100 = vpop.permute.xlu0 %2099
        %2101 = vrot.lane.b32.xlu0 %v1996, 64
        %v2102 = vpop.permute.xlu0 %2101
        %2103 = vrot.lane.b32.xlu0 %v1999, 64
        %v2104 = vpop.permute.xlu0 %2103
        %2105 = vrot.lane.b32.xlu0 %v2002, 64
        %v2106 = vpop.permute.xlu0 %2105
        %2107 = vrot.lane.b32.xlu0 %v2005, 64
        %v2108 = vpop.permute.xlu0 %2107
        %2109 = vrot.lane.b32.xlu0 %v2008, 64
        %v2110 = vpop.permute.xlu0 %2109
        %2111 = vrot.lane.b32.xlu0 %v2011, 64
        %v2112 = vpop.permute.xlu0 %2111
        %2113 = vrot.lane.b32.xlu0 %v2014, 64
        %v2114 = vpop.permute.xlu0 %2113
        %2115 = vrot.lane.b32.xlu0 %v2017, 64
        %v2116 = vpop.permute.xlu0 %2115
        %2117 = vrot.lane.b32.xlu0 %v2020, 64
        %v2118 = vpop.permute.xlu0 %2117
        %2119 = vrot.lane.b32.xlu0 %v2023, 64
        %v2120 = vpop.permute.xlu0 %2119
        %2121 = vrot.lane.b32.xlu0 %v2026, 64
        %v2122 = vpop.permute.xlu0 %2121
        %2123 = vrot.lane.b32.xlu0 %v2029, 64
        %v2124 = vpop.permute.xlu0 %2123
        %2125 = vrot.lane.b32.xlu0 %v2032, 64
        %v2126 = vpop.permute.xlu0 %2125
        %2127 = vrot.lane.b32.xlu0 %v2035, 64
        %v2128 = vpop.permute.xlu0 %2127
        %2129 = vrot.lane.b32.xlu0 %v2038, 64
        %v2130 = vpop.permute.xlu0 %2129
        %2131 = vrot.lane.b32.xlu0 %v2041, 64
        %v2132 = vpop.permute.xlu0 %2131
        %2133 = vrot.lane.b32.xlu0 %v2044, 64
        %v2134 = vpop.permute.xlu0 %2133
        %2135 = vrot.lane.b32.xlu0 %v2047, 64
        %v2136 = vpop.permute.xlu0 %2135
        %2137 = vrot.lane.b32.xlu0 %v2050, 64
        %v2138 = vpop.permute.xlu0 %2137
        %2139 = vrot.lane.b32.xlu0 %v2053, 64
        %v2140 = vpop.permute.xlu0 %2139
        %2141 = vrot.lane.b32.xlu0 %v2056, 64
        %v2142 = vpop.permute.xlu0 %2141
        %2143 = vrot.lane.b32.xlu0 %v2059, 64
        %v2144 = vpop.permute.xlu0 %2143
        %2145 = vrot.lane.b32.xlu0 %v2062, 64
        %v2146 = vpop.permute.xlu0 %2145
        %2147 = vrot.lane.b32.xlu0 %v2065, 64
        %v2148 = vpop.permute.xlu0 %2147
        %2149 = vrot.lane.b32.xlu0 %v2068, 64
        %v2150 = vpop.permute.xlu0 %2149
        %vm2192 = vcmask 1043968
        %2193 = vst.msk [vmem:[#allocation3] sm:$0xf] %vm2192, %v2070
        %2194 = vst.msk [vmem:[#allocation3 + $0x14] sm:$0xf] %vm2192, %v2072
        %2195 = vst.msk [vmem:[#allocation3 + $0x28] sm:$0xf] %vm2192, %v2074
        %2196 = vst.msk [vmem:[#allocation3 + $0x3c] sm:$0xf] %vm2192, %v2076
        %2197 = vst.msk [vmem:[#allocation3 + $0x50] sm:$0xf] %vm2192, %v2078
        %2198 = vst.msk [vmem:[#allocation3 + $0x64] sm:$0xf] %vm2192, %v2080
        %2199 = vst.msk [vmem:[#allocation3 + $0x78] sm:$0xf] %vm2192, %v2082
        %2200 = vst.msk [vmem:[#allocation3 + $0x8c] sm:$0xf] %vm2192, %v2084
        %2201 = vst.msk [vmem:[#allocation3 + $0xa0] sm:$0xf] %vm2192, %v2086
        %2202 = vst.msk [vmem:[#allocation3 + $0xb4] sm:$0xf] %vm2192, %v2088
        %2203 = vst.msk [vmem:[#allocation3 + $0xc8] sm:$0xf] %vm2192, %v2090
        %2204 = vst.msk [vmem:[#allocation3 + $0xdc] sm:$0xf] %vm2192, %v2092
        %2205 = vst.msk [vmem:[#allocation3 + $0xf0] sm:$0xf] %vm2192, %v2094
        %2206 = vst.msk [vmem:[#allocation3 + $0x104] sm:$0xf] %vm2192, %v2096
        %2207 = vst.msk [vmem:[#allocation3 + $0x118] sm:$0xf] %vm2192, %v2098
        %2208 = vst.msk [vmem:[#allocation3 + $0x12c] sm:$0xf] %vm2192, %v2100
        %2209 = vst.msk [vmem:[#allocation3 + $0x140] sm:$0xf] %vm2192, %v2102
        %2210 = vst.msk [vmem:[#allocation3 + $0x154] sm:$0xf] %vm2192, %v2104
        %2211 = vst.msk [vmem:[#allocation3 + $0x168] sm:$0xf] %vm2192, %v2106
        %2212 = vst.msk [vmem:[#allocation3 + $0x17c] sm:$0xf] %vm2192, %v2108
        %2213 = vst.msk [vmem:[#allocation3 + $0x190] sm:$0xf] %vm2192, %v2110
        %2214 = vst.msk [vmem:[#allocation3 + $0x1a4] sm:$0xf] %vm2192, %v2112
        %2215 = vst.msk [vmem:[#allocation3 + $0x1b8] sm:$0xf] %vm2192, %v2114
        %2216 = vst.msk [vmem:[#allocation3 + $0x1cc] sm:$0xf] %vm2192, %v2116
        %2217 = vst.msk [vmem:[#allocation3 + $0x1e0] sm:$0xf] %vm2192, %v2118
        %2218 = vst.msk [vmem:[#allocation3 + $0x1f4] sm:$0xf] %vm2192, %v2120
        %2219 = vst.msk [vmem:[#allocation3 + $0x208] sm:$0xf] %vm2192, %v2122
        %2220 = vst.msk [vmem:[#allocation3 + $0x21c] sm:$0xf] %vm2192, %v2124
        %2221 = vst.msk [vmem:[#allocation3 + $0x230] sm:$0xf] %vm2192, %v2126
        %2222 = vst.msk [vmem:[#allocation3 + $0x244] sm:$0xf] %vm2192, %v2128
        %2223 = vst.msk [vmem:[#allocation3 + $0x258] sm:$0xf] %vm2192, %v2130
        %2224 = vst.msk [vmem:[#allocation3 + $0x26c] sm:$0xf] %vm2192, %v2132
        %2225 = vst.msk [vmem:[#allocation3 + $0x280] sm:$0xf] %vm2192, %v2134
        %2226 = vst.msk [vmem:[#allocation3 + $0x294] sm:$0xf] %vm2192, %v2136
        %2227 = vst.msk [vmem:[#allocation3 + $0x2a8] sm:$0xf] %vm2192, %v2138
        %2228 = vst.msk [vmem:[#allocation3 + $0x2bc] sm:$0xf] %vm2192, %v2140
        %2229 = vst.msk [vmem:[#allocation3 + $0x2d0] sm:$0xf] %vm2192, %v2142
        %2230 = vst.msk [vmem:[#allocation3 + $0x2e4] sm:$0xf] %vm2192, %v2144
        %2231 = vst.msk [vmem:[#allocation3 + $0x2f8] sm:$0xf] %vm2192, %v2146
        %2232 = vst.msk [vmem:[#allocation3 + $0x30c] sm:$0xf] %vm2192, %v2148
        %2233 = vst.msk [vmem:[#allocation3 + $0x320] sm:$0xf] %vm2192, %v2150
        %v2234 = vld [vmem:[#allocation2] sm:$0x8]
        %v2235 = vld [vmem:[#allocation2 + $0x4] sm:$0xf]
        %v2236 = vld [vmem:[#allocation2 + $0x8] sm:$0xf]
        %v2237 = vld [vmem:[#allocation2 + $0xc] sm:$0xf]
        %v2238 = vld [vmem:[#allocation2 + $0x10] sm:$0xf]
        %v2239 = vld [vmem:[#allocation2 + $0x14] sm:$0xf]
        %v2240 = vld [vmem:[#allocation2 + $0x18] sm:$0xf]
        %v2241 = vld [vmem:[#allocation2 + $0x1c] sm:$0xf]
        %v2242 = vld [vmem:[#allocation2 + $0x20] sm:$0xf]
        %v2243 = vld [vmem:[#allocation2 + $0x24] sm:$0xf]
        %v2244 = vld [vmem:[#allocation2 + $0x28] sm:$0xf]
        %v2245 = vld [vmem:[#allocation2 + $0x2c] sm:$0xf]
        %v2246 = vld [vmem:[#allocation2 + $0x30] sm:$0xf]
        %v2247 = vld [vmem:[#allocation2 + $0x34] sm:$0xf]
        %v2248 = vld [vmem:[#allocation2 + $0x38] sm:$0xf]
        %v2249 = vld [vmem:[#allocation2 + $0x3c] sm:$0xf]
        %v2250 = vld [vmem:[#allocation2 + $0x40] sm:$0xf]
        %v2251 = vld [vmem:[#allocation2 + $0x44] sm:$0xf]
        %v2252 = vld [vmem:[#allocation2 + $0x48] sm:$0xf]
        %v2253 = vld [vmem:[#allocation2 + $0x4c] sm:$0xf]
        %v2254 = vld [vmem:[#allocation2 + $0x50] sm:$0xf]
        %v2255 = vld [vmem:[#allocation2 + $0x54] sm:$0xf]
        %v2256 = vld [vmem:[#allocation2 + $0x58] sm:$0xf]
        %v2257 = vld [vmem:[#allocation2 + $0x5c] sm:$0xf]
        %v2258 = vld [vmem:[#allocation2 + $0x60] sm:$0xf]
        %v2259 = vld [vmem:[#allocation2 + $0x64] sm:$0xf]
        %v2260 = vld [vmem:[#allocation2 + $0x68] sm:$0xf]
        %v2261 = vld [vmem:[#allocation2 + $0x6c] sm:$0xf]
        %v2262 = vld [vmem:[#allocation2 + $0x70] sm:$0xf]
        %v2263 = vld [vmem:[#allocation2 + $0x74] sm:$0xf]
        %v2264 = vld [vmem:[#allocation2 + $0x78] sm:$0xf]
        %v2265 = vld [vmem:[#allocation2 + $0x7c] sm:$0xf]
        %v2266 = vld [vmem:[#allocation2 + $0x80] sm:$0xf]
        %v2267 = vld [vmem:[#allocation2 + $0x84] sm:$0xf]
        %v2268 = vld [vmem:[#allocation2 + $0x88] sm:$0xf]
        %v2269 = vld [vmem:[#allocation2 + $0x8c] sm:$0xf]
        %v2270 = vld [vmem:[#allocation2 + $0x90] sm:$0xf]
        %v2271 = vld [vmem:[#allocation2 + $0x94] sm:$0xf]
        %v2272 = vld [vmem:[#allocation2 + $0x98] sm:$0xf]
        %v2273 = vld [vmem:[#allocation2 + $0x9c] sm:$0xf]
        %v2274 = vld [vmem:[#allocation2 + $0xa0] sm:$0xf]
        %v2275 = vld [vmem:[#allocation2 + $0xa4] sm:$0xf]
        %vm2276 = vsmask.f32 256
        %vm2277 = vsmask.f32 4368
        %vm2278 = vmor %vm2276, %vm2277
        %v2280 = vshrl.u32 %v2234, 16
        %v2282 = vrot.slane %v2280, 7
        %v2283 = vrot.slane %v2282, 4
        %v2285 = vshrl.u32 %v2235, 16
        %v2287 = vrot.slane %v2285, 7
        %v2288 = vshll.u32 %v2235, 16
        %v2290 = vor.u32 %v2287, %v2288
        %v2291 = vsel %vm2278, %v2283, %v2290
        %v2292 = vrot.slane %v2287, 4
        %v2294 = vshrl.u32 %v2236, 16
        %v2296 = vrot.slane %v2294, 7
        %v2297 = vshll.u32 %v2236, 16
        %v2299 = vor.u32 %v2296, %v2297
        %v2300 = vsel %vm2278, %v2292, %v2299
        %v2301 = vrot.slane %v2296, 4
        %v2303 = vshrl.u32 %v2237, 16
        %v2305 = vrot.slane %v2303, 7
        %v2306 = vshll.u32 %v2237, 16
        %v2308 = vor.u32 %v2305, %v2306
        %v2309 = vsel %vm2278, %v2301, %v2308
        %v2310 = vrot.slane %v2305, 4
        %v2312 = vshrl.u32 %v2238, 16
        %v2314 = vrot.slane %v2312, 7
        %v2315 = vshll.u32 %v2238, 16
        %v2317 = vor.u32 %v2314, %v2315
        %v2318 = vsel %vm2278, %v2310, %v2317
        %v2319 = vrot.slane %v2314, 4
        %v2321 = vshrl.u32 %v2239, 16
        %v2323 = vrot.slane %v2321, 7
        %v2324 = vshll.u32 %v2239, 16
        %v2326 = vor.u32 %v2323, %v2324
        %v2327 = vsel %vm2278, %v2319, %v2326
        %v2328 = vrot.slane %v2323, 4
        %v2330 = vshrl.u32 %v2240, 16
        %v2332 = vrot.slane %v2330, 7
        %v2333 = vshll.u32 %v2240, 16
        %v2335 = vor.u32 %v2332, %v2333
        %v2336 = vsel %vm2278, %v2328, %v2335
        %v2337 = vrot.slane %v2332, 4
        %v2339 = vshrl.u32 %v2241, 16
        %v2341 = vrot.slane %v2339, 7
        %v2342 = vshll.u32 %v2241, 16
        %v2344 = vor.u32 %v2341, %v2342
        %v2345 = vsel %vm2278, %v2337, %v2344
        %v2346 = vrot.slane %v2341, 4
        %v2348 = vshrl.u32 %v2242, 16
        %v2350 = vrot.slane %v2348, 7
        %v2351 = vshll.u32 %v2242, 16
        %v2353 = vor.u32 %v2350, %v2351
        %v2354 = vsel %vm2278, %v2346, %v2353
        %v2355 = vrot.slane %v2350, 4
        %v2357 = vshrl.u32 %v2243, 16
        %v2359 = vrot.slane %v2357, 7
        %v2360 = vshll.u32 %v2243, 16
        %v2362 = vor.u32 %v2359, %v2360
        %v2363 = vsel %vm2278, %v2355, %v2362
        %v2364 = vrot.slane %v2359, 4
        %v2366 = vshrl.u32 %v2244, 16
        %v2368 = vrot.slane %v2366, 7
        %v2369 = vshll.u32 %v2244, 16
        %v2371 = vor.u32 %v2368, %v2369
        %v2372 = vsel %vm2278, %v2364, %v2371
        %v2373 = vrot.slane %v2368, 4
        %v2375 = vshrl.u32 %v2245, 16
        %v2377 = vrot.slane %v2375, 7
        %v2378 = vshll.u32 %v2245, 16
        %v2380 = vor.u32 %v2377, %v2378
        %v2381 = vsel %vm2278, %v2373, %v2380
        %v2382 = vrot.slane %v2377, 4
        %v2384 = vshrl.u32 %v2246, 16
        %v2386 = vrot.slane %v2384, 7
        %v2387 = vshll.u32 %v2246, 16
        %v2389 = vor.u32 %v2386, %v2387
        %v2390 = vsel %vm2278, %v2382, %v2389
        %v2391 = vrot.slane %v2386, 4
        %v2393 = vshrl.u32 %v2247, 16
        %v2395 = vrot.slane %v2393, 7
        %v2396 = vshll.u32 %v2247, 16
        %v2398 = vor.u32 %v2395, %v2396
        %v2399 = vsel %vm2278, %v2391, %v2398
        %v2400 = vrot.slane %v2395, 4
        %v2402 = vshrl.u32 %v2248, 16
        %v2404 = vrot.slane %v2402, 7
        %v2405 = vshll.u32 %v2248, 16
        %v2407 = vor.u32 %v2404, %v2405
        %v2408 = vsel %vm2278, %v2400, %v2407
        %v2409 = vrot.slane %v2404, 4
        %v2411 = vshrl.u32 %v2249, 16
        %v2413 = vrot.slane %v2411, 7
        %v2414 = vshll.u32 %v2249, 16
        %v2416 = vor.u32 %v2413, %v2414
        %v2417 = vsel %vm2278, %v2409, %v2416
        %v2418 = vrot.slane %v2413, 4
        %v2420 = vshrl.u32 %v2250, 16
        %v2422 = vrot.slane %v2420, 7
        %v2423 = vshll.u32 %v2250, 16
        %v2425 = vor.u32 %v2422, %v2423
        %v2426 = vsel %vm2278, %v2418, %v2425
        %v2427 = vrot.slane %v2422, 4
        %v2429 = vshrl.u32 %v2251, 16
        %v2431 = vrot.slane %v2429, 7
        %v2432 = vshll.u32 %v2251, 16
        %v2434 = vor.u32 %v2431, %v2432
        %v2435 = vsel %vm2278, %v2427, %v2434
        %v2436 = vrot.slane %v2431, 4
        %v2438 = vshrl.u32 %v2252, 16
        %v2440 = vrot.slane %v2438, 7
        %v2441 = vshll.u32 %v2252, 16
        %v2443 = vor.u32 %v2440, %v2441
        %v2444 = vsel %vm2278, %v2436, %v2443
        %v2445 = vrot.slane %v2440, 4
        %v2447 = vshrl.u32 %v2253, 16
        %v2449 = vrot.slane %v2447, 7
        %v2450 = vshll.u32 %v2253, 16
        %v2452 = vor.u32 %v2449, %v2450
        %v2453 = vsel %vm2278, %v2445, %v2452
        %v2454 = vrot.slane %v2449, 4
        %v2456 = vshrl.u32 %v2254, 16
        %v2458 = vrot.slane %v2456, 7
        %v2459 = vshll.u32 %v2254, 16
        %v2461 = vor.u32 %v2458, %v2459
        %v2462 = vsel %vm2278, %v2454, %v2461
        %v2463 = vrot.slane %v2458, 4
        %v2465 = vshrl.u32 %v2255, 16
        %v2467 = vrot.slane %v2465, 7
        %v2468 = vshll.u32 %v2255, 16
        %v2470 = vor.u32 %v2467, %v2468
        %v2471 = vsel %vm2278, %v2463, %v2470
        %v2472 = vrot.slane %v2467, 4
        %v2474 = vshrl.u32 %v2256, 16
        %v2476 = vrot.slane %v2474, 7
        %v2477 = vshll.u32 %v2256, 16
        %v2479 = vor.u32 %v2476, %v2477
        %v2480 = vsel %vm2278, %v2472, %v2479
        %v2481 = vrot.slane %v2476, 4
        %v2483 = vshrl.u32 %v2257, 16
        %v2485 = vrot.slane %v2483, 7
        %v2486 = vshll.u32 %v2257, 16
        %v2488 = vor.u32 %v2485, %v2486
        %v2489 = vsel %vm2278, %v2481, %v2488
        %v2490 = vrot.slane %v2485, 4
        %v2492 = vshrl.u32 %v2258, 16
        %v2494 = vrot.slane %v2492, 7
        %v2495 = vshll.u32 %v2258, 16
        %v2497 = vor.u32 %v2494, %v2495
        %v2498 = vsel %vm2278, %v2490, %v2497
        %v2499 = vrot.slane %v2494, 4
        %v2501 = vshrl.u32 %v2259, 16
        %v2503 = vrot.slane %v2501, 7
        %v2504 = vshll.u32 %v2259, 16
        %v2506 = vor.u32 %v2503, %v2504
        %v2507 = vsel %vm2278, %v2499, %v2506
        %v2508 = vrot.slane %v2503, 4
        %v2510 = vshrl.u32 %v2260, 16
        %v2512 = vrot.slane %v2510, 7
        %v2513 = vshll.u32 %v2260, 16
        %v2515 = vor.u32 %v2512, %v2513
        %v2516 = vsel %vm2278, %v2508, %v2515
        %v2517 = vrot.slane %v2512, 4
        %v2519 = vshrl.u32 %v2261, 16
        %v2521 = vrot.slane %v2519, 7
        %v2522 = vshll.u32 %v2261, 16
        %v2524 = vor.u32 %v2521, %v2522
        %v2525 = vsel %vm2278, %v2517, %v2524
        %v2526 = vrot.slane %v2521, 4
        %v2528 = vshrl.u32 %v2262, 16
        %v2530 = vrot.slane %v2528, 7
        %v2531 = vshll.u32 %v2262, 16
        %v2533 = vor.u32 %v2530, %v2531
        %v2534 = vsel %vm2278, %v2526, %v2533
        %v2535 = vrot.slane %v2530, 4
        %v2537 = vshrl.u32 %v2263, 16
        %v2539 = vrot.slane %v2537, 7
        %v2540 = vshll.u32 %v2263, 16
        %v2542 = vor.u32 %v2539, %v2540
        %v2543 = vsel %vm2278, %v2535, %v2542
        %v2544 = vrot.slane %v2539, 4
        %v2546 = vshrl.u32 %v2264, 16
        %v2548 = vrot.slane %v2546, 7
        %v2549 = vshll.u32 %v2264, 16
        %v2551 = vor.u32 %v2548, %v2549
        %v2552 = vsel %vm2278, %v2544, %v2551
        %v2553 = vrot.slane %v2548, 4
        %v2555 = vshrl.u32 %v2265, 16
        %v2557 = vrot.slane %v2555, 7
        %v2558 = vshll.u32 %v2265, 16
        %v2560 = vor.u32 %v2557, %v2558
        %v2561 = vsel %vm2278, %v2553, %v2560
        %v2562 = vrot.slane %v2557, 4
        %v2564 = vshrl.u32 %v2266, 16
        %v2566 = vrot.slane %v2564, 7
        %v2567 = vshll.u32 %v2266, 16
        %v2569 = vor.u32 %v2566, %v2567
        %v2570 = vsel %vm2278, %v2562, %v2569
        %v2571 = vrot.slane %v2566, 4
        %v2573 = vshrl.u32 %v2267, 16
        %v2575 = vrot.slane %v2573, 7
        %v2576 = vshll.u32 %v2267, 16
        %v2578 = vor.u32 %v2575, %v2576
        %v2579 = vsel %vm2278, %v2571, %v2578
        %v2580 = vrot.slane %v2575, 4
        %v2582 = vshrl.u32 %v2268, 16
        %v2584 = vrot.slane %v2582, 7
        %v2585 = vshll.u32 %v2268, 16
        %v2587 = vor.u32 %v2584, %v2585
        %v2588 = vsel %vm2278, %v2580, %v2587
        %v2589 = vrot.slane %v2584, 4
        %v2591 = vshrl.u32 %v2269, 16
        %v2593 = vrot.slane %v2591, 7
        %v2594 = vshll.u32 %v2269, 16
        %v2596 = vor.u32 %v2593, %v2594
        %v2597 = vsel %vm2278, %v2589, %v2596
        %v2598 = vrot.slane %v2593, 4
        %v2600 = vshrl.u32 %v2270, 16
        %v2602 = vrot.slane %v2600, 7
        %v2603 = vshll.u32 %v2270, 16
        %v2605 = vor.u32 %v2602, %v2603
        %v2606 = vsel %vm2278, %v2598, %v2605
        %v2607 = vrot.slane %v2602, 4
        %v2609 = vshrl.u32 %v2271, 16
        %v2611 = vrot.slane %v2609, 7
        %v2612 = vshll.u32 %v2271, 16
        %v2614 = vor.u32 %v2611, %v2612
        %v2615 = vsel %vm2278, %v2607, %v2614
        %v2616 = vrot.slane %v2611, 4
        %v2618 = vshrl.u32 %v2272, 16
        %v2620 = vrot.slane %v2618, 7
        %v2621 = vshll.u32 %v2272, 16
        %v2623 = vor.u32 %v2620, %v2621
        %v2624 = vsel %vm2278, %v2616, %v2623
        %v2625 = vrot.slane %v2620, 4
        %v2627 = vshrl.u32 %v2273, 16
        %v2629 = vrot.slane %v2627, 7
        %v2630 = vshll.u32 %v2273, 16
        %v2632 = vor.u32 %v2629, %v2630
        %v2633 = vsel %vm2278, %v2625, %v2632
        %v2634 = vrot.slane %v2629, 4
        %v2636 = vshrl.u32 %v2274, 16
        %v2638 = vrot.slane %v2636, 7
        %v2639 = vshll.u32 %v2274, 16
        %v2641 = vor.u32 %v2638, %v2639
        %v2642 = vsel %vm2278, %v2634, %v2641
        %v2643 = vrot.slane %v2638, 4
        %v2645 = vshrl.u32 %v2275, 16
        %v2647 = vrot.slane %v2645, 7
        %v2648 = vshll.u32 %v2275, 16
        %v2650 = vor.u32 %v2647, %v2648
        %v2651 = vsel %vm2278, %v2643, %v2650
        %2693 = vst.msk [vmem:[#allocation3 + $0x4] sm:$0xf] %vm1121, %v2291
        %2694 = vst.msk [vmem:[#allocation3 + $0x18] sm:$0xf] %vm1121, %v2300
        %2695 = vst.msk [vmem:[#allocation3 + $0x2c] sm:$0xf] %vm1121, %v2309
        %2696 = vst.msk [vmem:[#allocation3 + $0x40] sm:$0xf] %vm1121, %v2318
        %2697 = vst.msk [vmem:[#allocation3 + $0x54] sm:$0xf] %vm1121, %v2327
        %2698 = vst.msk [vmem:[#allocation3 + $0x68] sm:$0xf] %vm1121, %v2336
        %2699 = vst.msk [vmem:[#allocation3 + $0x7c] sm:$0xf] %vm1121, %v2345
        %2700 = vst.msk [vmem:[#allocation3 + $0x90] sm:$0xf] %vm1121, %v2354
        %2701 = vst.msk [vmem:[#allocation3 + $0xa4] sm:$0xf] %vm1121, %v2363
        %2702 = vst.msk [vmem:[#allocation3 + $0xb8] sm:$0xf] %vm1121, %v2372
        %2703 = vst.msk [vmem:[#allocation3 + $0xcc] sm:$0xf] %vm1121, %v2381
        %2704 = vst.msk [vmem:[#allocation3 + $0xe0] sm:$0xf] %vm1121, %v2390
        %2705 = vst.msk [vmem:[#allocation3 + $0xf4] sm:$0xf] %vm1121, %v2399
        %2706 = vst.msk [vmem:[#allocation3 + $0x108] sm:$0xf] %vm1121, %v2408
        %2707 = vst.msk [vmem:[#allocation3 + $0x11c] sm:$0xf] %vm1121, %v2417
        %2708 = vst.msk [vmem:[#allocation3 + $0x130] sm:$0xf] %vm1121, %v2426
        %2709 = vst.msk [vmem:[#allocation3 + $0x144] sm:$0xf] %vm1121, %v2435
        %2710 = vst.msk [vmem:[#allocation3 + $0x158] sm:$0xf] %vm1121, %v2444
        %2711 = vst.msk [vmem:[#allocation3 + $0x16c] sm:$0xf] %vm1121, %v2453
        %2712 = vst.msk [vmem:[#allocation3 + $0x180] sm:$0xf] %vm1121, %v2462
        %2713 = vst.msk [vmem:[#allocation3 + $0x194] sm:$0xf] %vm1121, %v2471
        %2714 = vst.msk [vmem:[#allocation3 + $0x1a8] sm:$0xf] %vm1121, %v2480
        %2715 = vst.msk [vmem:[#allocation3 + $0x1bc] sm:$0xf] %vm1121, %v2489
        %2716 = vst.msk [vmem:[#allocation3 + $0x1d0] sm:$0xf] %vm1121, %v2498
        %2717 = vst.msk [vmem:[#allocation3 + $0x1e4] sm:$0xf] %vm1121, %v2507
        %2718 = vst.msk [vmem:[#allocation3 + $0x1f8] sm:$0xf] %vm1121, %v2516
        %2719 = vst.msk [vmem:[#allocation3 + $0x20c] sm:$0xf] %vm1121, %v2525
        %2720 = vst.msk [vmem:[#allocation3 + $0x220] sm:$0xf] %vm1121, %v2534
        %2721 = vst.msk [vmem:[#allocation3 + $0x234] sm:$0xf] %vm1121, %v2543
        %2722 = vst.msk [vmem:[#allocation3 + $0x248] sm:$0xf] %vm1121, %v2552
        %2723 = vst.msk [vmem:[#allocation3 + $0x25c] sm:$0xf] %vm1121, %v2561
        %2724 = vst.msk [vmem:[#allocation3 + $0x270] sm:$0xf] %vm1121, %v2570
        %2725 = vst.msk [vmem:[#allocation3 + $0x284] sm:$0xf] %vm1121, %v2579
        %2726 = vst.msk [vmem:[#allocation3 + $0x298] sm:$0xf] %vm1121, %v2588
        %2727 = vst.msk [vmem:[#allocation3 + $0x2ac] sm:$0xf] %vm1121, %v2597
        %2728 = vst.msk [vmem:[#allocation3 + $0x2c0] sm:$0xf] %vm1121, %v2606
        %2729 = vst.msk [vmem:[#allocation3 + $0x2d4] sm:$0xf] %vm1121, %v2615
        %2730 = vst.msk [vmem:[#allocation3 + $0x2e8] sm:$0xf] %vm1121, %v2624
        %2731 = vst.msk [vmem:[#allocation3 + $0x2fc] sm:$0xf] %vm1121, %v2633
        %2732 = vst.msk [vmem:[#allocation3 + $0x310] sm:$0xf] %vm1121, %v2642
        %2733 = vst.msk [vmem:[#allocation3 + $0x324] sm:$0xf] %vm1121, %v2651
        %v2734 = vld [vmem:[#allocation2 + $0x8] sm:$0x8]
        %v2735 = vld [vmem:[#allocation2 + $0xc] sm:$0xf]
        %v2736 = vld [vmem:[#allocation2 + $0x10] sm:$0xf]
        %v2737 = vld [vmem:[#allocation2 + $0x14] sm:$0xf]
        %v2738 = vld [vmem:[#allocation2 + $0x18] sm:$0xf]
        %v2739 = vld [vmem:[#allocation2 + $0x1c] sm:$0xf]
        %v2740 = vld [vmem:[#allocation2 + $0x20] sm:$0xf]
        %v2741 = vld [vmem:[#allocation2 + $0x24] sm:$0xf]
        %v2742 = vld [vmem:[#allocation2 + $0x28] sm:$0xf]
        %v2743 = vld [vmem:[#allocation2 + $0x2c] sm:$0xf]
        %v2744 = vld [vmem:[#allocation2 + $0x30] sm:$0xf]
        %v2745 = vld [vmem:[#allocation2 + $0x34] sm:$0xf]
        %v2746 = vld [vmem:[#allocation2 + $0x38] sm:$0xf]
        %v2747 = vld [vmem:[#allocation2 + $0x3c] sm:$0xf]
        %v2748 = vld [vmem:[#allocation2 + $0x40] sm:$0xf]
        %v2749 = vld [vmem:[#allocation2 + $0x44] sm:$0xf]
        %v2750 = vld [vmem:[#allocation2 + $0x48] sm:$0xf]
        %v2751 = vld [vmem:[#allocation2 + $0x4c] sm:$0xf]
        %v2752 = vld [vmem:[#allocation2 + $0x50] sm:$0xf]
        %v2753 = vld [vmem:[#allocation2 + $0x54] sm:$0xf]
        %v2754 = vld [vmem:[#allocation2 + $0x58] sm:$0xf]
        %v2755 = vld [vmem:[#allocation2 + $0x5c] sm:$0xf]
        %v2756 = vld [vmem:[#allocation2 + $0x60] sm:$0xf]
        %v2757 = vld [vmem:[#allocation2 + $0x64] sm:$0xf]
        %v2758 = vld [vmem:[#allocation2 + $0x68] sm:$0xf]
        %v2759 = vld [vmem:[#allocation2 + $0x6c] sm:$0xf]
        %v2760 = vld [vmem:[#allocation2 + $0x70] sm:$0xf]
        %v2761 = vld [vmem:[#allocation2 + $0x74] sm:$0xf]
        %v2762 = vld [vmem:[#allocation2 + $0x78] sm:$0xf]
        %v2763 = vld [vmem:[#allocation2 + $0x7c] sm:$0xf]
        %v2764 = vld [vmem:[#allocation2 + $0x80] sm:$0xf]
        %v2765 = vld [vmem:[#allocation2 + $0x84] sm:$0xf]
        %v2766 = vld [vmem:[#allocation2 + $0x88] sm:$0xf]
        %v2767 = vld [vmem:[#allocation2 + $0x8c] sm:$0xf]
        %v2768 = vld [vmem:[#allocation2 + $0x90] sm:$0xf]
        %v2769 = vld [vmem:[#allocation2 + $0x94] sm:$0xf]
        %v2770 = vld [vmem:[#allocation2 + $0x98] sm:$0xf]
        %v2771 = vld [vmem:[#allocation2 + $0x9c] sm:$0xf]
        %v2772 = vld [vmem:[#allocation2 + $0xa0] sm:$0xf]
        %v2773 = vld [vmem:[#allocation2 + $0xa4] sm:$0xf]
        %v2774 = vld [vmem:[#allocation2 + $0xa8] sm:$0xf]
        %v2775 = vld [vmem:[#allocation2 + $0xac] sm:$0xf]
        %v2777 = vshrl.u32 %v2734, 16
        %v2779 = vrot.slane %v2777, 7
        %v2780 = vrot.slane %v2779, 4
        %v2782 = vshrl.u32 %v2735, 16
        %v2784 = vrot.slane %v2782, 7
        %v2785 = vshll.u32 %v2735, 16
        %v2787 = vor.u32 %v2784, %v2785
        %v2788 = vsel %vm2278, %v2780, %v2787
        %v2789 = vrot.slane %v2784, 4
        %v2791 = vshrl.u32 %v2736, 16
        %v2793 = vrot.slane %v2791, 7
        %v2794 = vshll.u32 %v2736, 16
        %v2796 = vor.u32 %v2793, %v2794
        %v2797 = vsel %vm2278, %v2789, %v2796
        %v2798 = vrot.slane %v2793, 4
        %v2800 = vshrl.u32 %v2737, 16
        %v2802 = vrot.slane %v2800, 7
        %v2803 = vshll.u32 %v2737, 16
        %v2805 = vor.u32 %v2802, %v2803
        %v2806 = vsel %vm2278, %v2798, %v2805
        %v2807 = vrot.slane %v2802, 4
        %v2809 = vshrl.u32 %v2738, 16
        %v2811 = vrot.slane %v2809, 7
        %v2812 = vshll.u32 %v2738, 16
        %v2814 = vor.u32 %v2811, %v2812
        %v2815 = vsel %vm2278, %v2807, %v2814
        %v2816 = vrot.slane %v2811, 4
        %v2818 = vshrl.u32 %v2739, 16
        %v2820 = vrot.slane %v2818, 7
        %v2821 = vshll.u32 %v2739, 16
        %v2823 = vor.u32 %v2820, %v2821
        %v2824 = vsel %vm2278, %v2816, %v2823
        %v2825 = vrot.slane %v2820, 4
        %v2827 = vshrl.u32 %v2740, 16
        %v2829 = vrot.slane %v2827, 7
        %v2830 = vshll.u32 %v2740, 16
        %v2832 = vor.u32 %v2829, %v2830
        %v2833 = vsel %vm2278, %v2825, %v2832
        %v2834 = vrot.slane %v2829, 4
        %v2836 = vshrl.u32 %v2741, 16
        %v2838 = vrot.slane %v2836, 7
        %v2839 = vshll.u32 %v2741, 16
        %v2841 = vor.u32 %v2838, %v2839
        %v2842 = vsel %vm2278, %v2834, %v2841
        %v2843 = vrot.slane %v2838, 4
        %v2845 = vshrl.u32 %v2742, 16
        %v2847 = vrot.slane %v2845, 7
        %v2848 = vshll.u32 %v2742, 16
        %v2850 = vor.u32 %v2847, %v2848
        %v2851 = vsel %vm2278, %v2843, %v2850
        %v2852 = vrot.slane %v2847, 4
        %v2854 = vshrl.u32 %v2743, 16
        %v2856 = vrot.slane %v2854, 7
        %v2857 = vshll.u32 %v2743, 16
        %v2859 = vor.u32 %v2856, %v2857
        %v2860 = vsel %vm2278, %v2852, %v2859
        %v2861 = vrot.slane %v2856, 4
        %v2863 = vshrl.u32 %v2744, 16
        %v2865 = vrot.slane %v2863, 7
        %v2866 = vshll.u32 %v2744, 16
        %v2868 = vor.u32 %v2865, %v2866
        %v2869 = vsel %vm2278, %v2861, %v2868
        %v2870 = vrot.slane %v2865, 4
        %v2872 = vshrl.u32 %v2745, 16
        %v2874 = vrot.slane %v2872, 7
        %v2875 = vshll.u32 %v2745, 16
        %v2877 = vor.u32 %v2874, %v2875
        %v2878 = vsel %vm2278, %v2870, %v2877
        %v2879 = vrot.slane %v2874, 4
        %v2881 = vshrl.u32 %v2746, 16
        %v2883 = vrot.slane %v2881, 7
        %v2884 = vshll.u32 %v2746, 16
        %v2886 = vor.u32 %v2883, %v2884
        %v2887 = vsel %vm2278, %v2879, %v2886
        %v2888 = vrot.slane %v2883, 4
        %v2890 = vshrl.u32 %v2747, 16
        %v2892 = vrot.slane %v2890, 7
        %v2893 = vshll.u32 %v2747, 16
        %v2895 = vor.u32 %v2892, %v2893
        %v2896 = vsel %vm2278, %v2888, %v2895
        %v2897 = vrot.slane %v2892, 4
        %v2899 = vshrl.u32 %v2748, 16
        %v2901 = vrot.slane %v2899, 7
        %v2902 = vshll.u32 %v2748, 16
        %v2904 = vor.u32 %v2901, %v2902
        %v2905 = vsel %vm2278, %v2897, %v2904
        %v2906 = vrot.slane %v2901, 4
        %v2908 = vshrl.u32 %v2749, 16
        %v2910 = vrot.slane %v2908, 7
        %v2911 = vshll.u32 %v2749, 16
        %v2913 = vor.u32 %v2910, %v2911
        %v2914 = vsel %vm2278, %v2906, %v2913
        %v2915 = vrot.slane %v2910, 4
        %v2917 = vshrl.u32 %v2750, 16
        %v2919 = vrot.slane %v2917, 7
        %v2920 = vshll.u32 %v2750, 16
        %v2922 = vor.u32 %v2919, %v2920
        %v2923 = vsel %vm2278, %v2915, %v2922
        %v2924 = vrot.slane %v2919, 4
        %v2926 = vshrl.u32 %v2751, 16
        %v2928 = vrot.slane %v2926, 7
        %v2929 = vshll.u32 %v2751, 16
        %v2931 = vor.u32 %v2928, %v2929
        %v2932 = vsel %vm2278, %v2924, %v2931
        %v2933 = vrot.slane %v2928, 4
        %v2935 = vshrl.u32 %v2752, 16
        %v2937 = vrot.slane %v2935, 7
        %v2938 = vshll.u32 %v2752, 16
        %v2940 = vor.u32 %v2937, %v2938
        %v2941 = vsel %vm2278, %v2933, %v2940
        %v2942 = vrot.slane %v2937, 4
        %v2944 = vshrl.u32 %v2753, 16
        %v2946 = vrot.slane %v2944, 7
        %v2947 = vshll.u32 %v2753, 16
        %v2949 = vor.u32 %v2946, %v2947
        %v2950 = vsel %vm2278, %v2942, %v2949
        %v2951 = vrot.slane %v2946, 4
        %v2953 = vshrl.u32 %v2754, 16
        %v2955 = vrot.slane %v2953, 7
        %v2956 = vshll.u32 %v2754, 16
        %v2958 = vor.u32 %v2955, %v2956
        %v2959 = vsel %vm2278, %v2951, %v2958
        %v2960 = vrot.slane %v2955, 4
        %v2962 = vshrl.u32 %v2755, 16
        %v2964 = vrot.slane %v2962, 7
        %v2965 = vshll.u32 %v2755, 16
        %v2967 = vor.u32 %v2964, %v2965
        %v2968 = vsel %vm2278, %v2960, %v2967
        %v2969 = vrot.slane %v2964, 4
        %v2971 = vshrl.u32 %v2756, 16
        %v2973 = vrot.slane %v2971, 7
        %v2974 = vshll.u32 %v2756, 16
        %v2976 = vor.u32 %v2973, %v2974
        %v2977 = vsel %vm2278, %v2969, %v2976
        %v2978 = vrot.slane %v2973, 4
        %v2980 = vshrl.u32 %v2757, 16
        %v2982 = vrot.slane %v2980, 7
        %v2983 = vshll.u32 %v2757, 16
        %v2985 = vor.u32 %v2982, %v2983
        %v2986 = vsel %vm2278, %v2978, %v2985
        %v2987 = vrot.slane %v2982, 4
        %v2989 = vshrl.u32 %v2758, 16
        %v2991 = vrot.slane %v2989, 7
        %v2992 = vshll.u32 %v2758, 16
        %v2994 = vor.u32 %v2991, %v2992
        %v2995 = vsel %vm2278, %v2987, %v2994
        %v2996 = vrot.slane %v2991, 4
        %v2998 = vshrl.u32 %v2759, 16
        %v3000 = vrot.slane %v2998, 7
        %v3001 = vshll.u32 %v2759, 16
        %v3003 = vor.u32 %v3000, %v3001
        %v3004 = vsel %vm2278, %v2996, %v3003
        %v3005 = vrot.slane %v3000, 4
        %v3007 = vshrl.u32 %v2760, 16
        %v3009 = vrot.slane %v3007, 7
        %v3010 = vshll.u32 %v2760, 16
        %v3012 = vor.u32 %v3009, %v3010
        %v3013 = vsel %vm2278, %v3005, %v3012
        %v3014 = vrot.slane %v3009, 4
        %v3016 = vshrl.u32 %v2761, 16
        %v3018 = vrot.slane %v3016, 7
        %v3019 = vshll.u32 %v2761, 16
        %v3021 = vor.u32 %v3018, %v3019
        %v3022 = vsel %vm2278, %v3014, %v3021
        %v3023 = vrot.slane %v3018, 4
        %v3025 = vshrl.u32 %v2762, 16
        %v3027 = vrot.slane %v3025, 7
        %v3028 = vshll.u32 %v2762, 16
        %v3030 = vor.u32 %v3027, %v3028
        %v3031 = vsel %vm2278, %v3023, %v3030
        %v3032 = vrot.slane %v3027, 4
        %v3034 = vshrl.u32 %v2763, 16
        %v3036 = vrot.slane %v3034, 7
        %v3037 = vshll.u32 %v2763, 16
        %v3039 = vor.u32 %v3036, %v3037
        %v3040 = vsel %vm2278, %v3032, %v3039
        %v3041 = vrot.slane %v3036, 4
        %v3043 = vshrl.u32 %v2764, 16
        %v3045 = vrot.slane %v3043, 7
        %v3046 = vshll.u32 %v2764, 16
        %v3048 = vor.u32 %v3045, %v3046
        %v3049 = vsel %vm2278, %v3041, %v3048
        %v3050 = vrot.slane %v3045, 4
        %v3052 = vshrl.u32 %v2765, 16
        %v3054 = vrot.slane %v3052, 7
        %v3055 = vshll.u32 %v2765, 16
        %v3057 = vor.u32 %v3054, %v3055
        %v3058 = vsel %vm2278, %v3050, %v3057
        %v3059 = vrot.slane %v3054, 4
        %v3061 = vshrl.u32 %v2766, 16
        %v3063 = vrot.slane %v3061, 7
        %v3064 = vshll.u32 %v2766, 16
        %v3066 = vor.u32 %v3063, %v3064
        %v3067 = vsel %vm2278, %v3059, %v3066
        %v3068 = vrot.slane %v3063, 4
        %v3070 = vshrl.u32 %v2767, 16
        %v3072 = vrot.slane %v3070, 7
        %v3073 = vshll.u32 %v2767, 16
        %v3075 = vor.u32 %v3072, %v3073
        %v3076 = vsel %vm2278, %v3068, %v3075
        %v3077 = vrot.slane %v3072, 4
        %v3079 = vshrl.u32 %v2768, 16
        %v3081 = vrot.slane %v3079, 7
        %v3082 = vshll.u32 %v2768, 16
        %v3084 = vor.u32 %v3081, %v3082
        %v3085 = vsel %vm2278, %v3077, %v3084
        %v3086 = vrot.slane %v3081, 4
        %v3088 = vshrl.u32 %v2769, 16
        %v3090 = vrot.slane %v3088, 7
        %v3091 = vshll.u32 %v2769, 16
        %v3093 = vor.u32 %v3090, %v3091
        %v3094 = vsel %vm2278, %v3086, %v3093
        %v3095 = vrot.slane %v3090, 4
        %v3097 = vshrl.u32 %v2770, 16
        %v3099 = vrot.slane %v3097, 7
        %v3100 = vshll.u32 %v2770, 16
        %v3102 = vor.u32 %v3099, %v3100
        %v3103 = vsel %vm2278, %v3095, %v3102
        %v3104 = vrot.slane %v3099, 4
        %v3106 = vshrl.u32 %v2771, 16
        %v3108 = vrot.slane %v3106, 7
        %v3109 = vshll.u32 %v2771, 16
        %v3111 = vor.u32 %v3108, %v3109
        %v3112 = vsel %vm2278, %v3104, %v3111
        %v3113 = vrot.slane %v3108, 4
        %v3115 = vshrl.u32 %v2772, 16
        %v3117 = vrot.slane %v3115, 7
        %v3118 = vshll.u32 %v2772, 16
        %v3120 = vor.u32 %v3117, %v3118
        %v3121 = vsel %vm2278, %v3113, %v3120
        %v3122 = vrot.slane %v3117, 4
        %v3124 = vshrl.u32 %v2773, 16
        %v3126 = vrot.slane %v3124, 7
        %v3127 = vshll.u32 %v2773, 16
        %v3129 = vor.u32 %v3126, %v3127
        %v3130 = vsel %vm2278, %v3122, %v3129
        %v3131 = vrot.slane %v3126, 4
        %v3133 = vshrl.u32 %v2774, 16
        %v3135 = vrot.slane %v3133, 7
        %v3136 = vshll.u32 %v2774, 16
        %v3138 = vor.u32 %v3135, %v3136
        %v3139 = vsel %vm2278, %v3131, %v3138
        %v3140 = vrot.slane %v3135, 4
        %v3142 = vshrl.u32 %v2775, 16
        %v3144 = vrot.slane %v3142, 7
        %v3145 = vshll.u32 %v2775, 16
        %v3147 = vor.u32 %v3144, %v3145
        %v3148 = vsel %vm2278, %v3140, %v3147
        %3149 = vrot.lane.b32.xlu0 %v2788, 64
        %v3150 = vpop.permute.xlu0 %3149
        %3151 = vrot.lane.b32.xlu0 %v2797, 64
        %v3152 = vpop.permute.xlu0 %3151
        %3153 = vrot.lane.b32.xlu0 %v2806, 64
        %v3154 = vpop.permute.xlu0 %3153
        %3155 = vrot.lane.b32.xlu0 %v2815, 64
        %v3156 = vpop.permute.xlu0 %3155
        %3157 = vrot.lane.b32.xlu0 %v2824, 64
        %v3158 = vpop.permute.xlu0 %3157
        %3159 = vrot.lane.b32.xlu0 %v2833, 64
        %v3160 = vpop.permute.xlu0 %3159
        %3161 = vrot.lane.b32.xlu0 %v2842, 64
        %v3162 = vpop.permute.xlu0 %3161
        %3163 = vrot.lane.b32.xlu0 %v2851, 64
        %v3164 = vpop.permute.xlu0 %3163
        %3165 = vrot.lane.b32.xlu0 %v2860, 64
        %v3166 = vpop.permute.xlu0 %3165
        %3167 = vrot.lane.b32.xlu0 %v2869, 64
        %v3168 = vpop.permute.xlu0 %3167
        %3169 = vrot.lane.b32.xlu0 %v2878, 64
        %v3170 = vpop.permute.xlu0 %3169
        %3171 = vrot.lane.b32.xlu0 %v2887, 64
        %v3172 = vpop.permute.xlu0 %3171
        %3173 = vrot.lane.b32.xlu0 %v2896, 64
        %v3174 = vpop.permute.xlu0 %3173
        %3175 = vrot.lane.b32.xlu0 %v2905, 64
        %v3176 = vpop.permute.xlu0 %3175
        %3177 = vrot.lane.b32.xlu0 %v2914, 64
        %v3178 = vpop.permute.xlu0 %3177
        %3179 = vrot.lane.b32.xlu0 %v2923, 64
        %v3180 = vpop.permute.xlu0 %3179
        %3181 = vrot.lane.b32.xlu0 %v2932, 64
        %v3182 = vpop.permute.xlu0 %3181
        %3183 = vrot.lane.b32.xlu0 %v2941, 64
        %v3184 = vpop.permute.xlu0 %3183
        %3185 = vrot.lane.b32.xlu0 %v2950, 64
        %v3186 = vpop.permute.xlu0 %3185
        %3187 = vrot.lane.b32.xlu0 %v2959, 64
        %v3188 = vpop.permute.xlu0 %3187
        %3189 = vrot.lane.b32.xlu0 %v2968, 64
        %v3190 = vpop.permute.xlu0 %3189
        %3191 = vrot.lane.b32.xlu0 %v2977, 64
        %v3192 = vpop.permute.xlu0 %3191
        %3193 = vrot.lane.b32.xlu0 %v2986, 64
        %v3194 = vpop.permute.xlu0 %3193
        %3195 = vrot.lane.b32.xlu0 %v2995, 64
        %v3196 = vpop.permute.xlu0 %3195
        %3197 = vrot.lane.b32.xlu0 %v3004, 64
        %v3198 = vpop.permute.xlu0 %3197
        %3199 = vrot.lane.b32.xlu0 %v3013, 64
        %v3200 = vpop.permute.xlu0 %3199
        %3201 = vrot.lane.b32.xlu0 %v3022, 64
        %v3202 = vpop.permute.xlu0 %3201
        %3203 = vrot.lane.b32.xlu0 %v3031, 64
        %v3204 = vpop.permute.xlu0 %3203
        %3205 = vrot.lane.b32.xlu0 %v3040, 64
        %v3206 = vpop.permute.xlu0 %3205
        %3207 = vrot.lane.b32.xlu0 %v3049, 64
        %v3208 = vpop.permute.xlu0 %3207
        %3209 = vrot.lane.b32.xlu0 %v3058, 64
        %v3210 = vpop.permute.xlu0 %3209
        %3211 = vrot.lane.b32.xlu0 %v3067, 64
        %v3212 = vpop.permute.xlu0 %3211
        %3213 = vrot.lane.b32.xlu0 %v3076, 64
        %v3214 = vpop.permute.xlu0 %3213
        %3215 = vrot.lane.b32.xlu0 %v3085, 64
        %v3216 = vpop.permute.xlu0 %3215
        %3217 = vrot.lane.b32.xlu0 %v3094, 64
        %v3218 = vpop.permute.xlu0 %3217
        %3219 = vrot.lane.b32.xlu0 %v3103, 64
        %v3220 = vpop.permute.xlu0 %3219
        %3221 = vrot.lane.b32.xlu0 %v3112, 64
        %v3222 = vpop.permute.xlu0 %3221
        %3223 = vrot.lane.b32.xlu0 %v3121, 64
        %v3224 = vpop.permute.xlu0 %3223
        %3225 = vrot.lane.b32.xlu0 %v3130, 64
        %v3226 = vpop.permute.xlu0 %3225
        %3227 = vrot.lane.b32.xlu0 %v3139, 64
        %v3228 = vpop.permute.xlu0 %3227
        %3229 = vrot.lane.b32.xlu0 %v3148, 64
        %v3230 = vpop.permute.xlu0 %3229
        %3272 = vst.msk [vmem:[#allocation3 + $0x4] sm:$0xf] %vm2192, %v3150
        %3273 = vst.msk [vmem:[#allocation3 + $0x18] sm:$0xf] %vm2192, %v3152
        %3274 = vst.msk [vmem:[#allocation3 + $0x2c] sm:$0xf] %vm2192, %v3154
        %3275 = vst.msk [vmem:[#allocation3 + $0x40] sm:$0xf] %vm2192, %v3156
        %3276 = vst.msk [vmem:[#allocation3 + $0x54] sm:$0xf] %vm2192, %v3158
        %3277 = vst.msk [vmem:[#allocation3 + $0x68] sm:$0xf] %vm2192, %v3160
        %3278 = vst.msk [vmem:[#allocation3 + $0x7c] sm:$0xf] %vm2192, %v3162
        %3279 = vst.msk [vmem:[#allocation3 + $0x90] sm:$0xf] %vm2192, %v3164
        %3280 = vst.msk [vmem:[#allocation3 + $0xa4] sm:$0xf] %vm2192, %v3166
        %3281 = vst.msk [vmem:[#allocation3 + $0xb8] sm:$0xf] %vm2192, %v3168
        %3282 = vst.msk [vmem:[#allocation3 + $0xcc] sm:$0xf] %vm2192, %v3170
        %3283 = vst.msk [vmem:[#allocation3 + $0xe0] sm:$0xf] %vm2192, %v3172
        %3284 = vst.msk [vmem:[#allocation3 + $0xf4] sm:$0xf] %vm2192, %v3174
        %3285 = vst.msk [vmem:[#allocation3 + $0x108] sm:$0xf] %vm2192, %v3176
        %3286 = vst.msk [vmem:[#allocation3 + $0x11c] sm:$0xf] %vm2192, %v3178
        %3287 = vst.msk [vmem:[#allocation3 + $0x130] sm:$0xf] %vm2192, %v3180
        %3288 = vst.msk [vmem:[#allocation3 + $0x144] sm:$0xf] %vm2192, %v3182
        %3289 = vst.msk [vmem:[#allocation3 + $0x158] sm:$0xf] %vm2192, %v3184
        %3290 = vst.msk [vmem:[#allocation3 + $0x16c] sm:$0xf] %vm2192, %v3186
        %3291 = vst.msk [vmem:[#allocation3 + $0x180] sm:$0xf] %vm2192, %v3188
        %3292 = vst.msk [vmem:[#allocation3 + $0x194] sm:$0xf] %vm2192, %v3190
        %3293 = vst.msk [vmem:[#allocation3 + $0x1a8] sm:$0xf] %vm2192, %v3192
        %3294 = vst.msk [vmem:[#allocation3 + $0x1bc] sm:$0xf] %vm2192, %v3194
        %3295 = vst.msk [vmem:[#allocation3 + $0x1d0] sm:$0xf] %vm2192, %v3196
        %3296 = vst.msk [vmem:[#allocation3 + $0x1e4] sm:$0xf] %vm2192, %v3198
        %3297 = vst.msk [vmem:[#allocation3 + $0x1f8] sm:$0xf] %vm2192, %v3200
        %3298 = vst.msk [vmem:[#allocation3 + $0x20c] sm:$0xf] %vm2192, %v3202
        %3299 = vst.msk [vmem:[#allocation3 + $0x220] sm:$0xf] %vm2192, %v3204
        %3300 = vst.msk [vmem:[#allocation3 + $0x234] sm:$0xf] %vm2192, %v3206
        %3301 = vst.msk [vmem:[#allocation3 + $0x248] sm:$0xf] %vm2192, %v3208
        %3302 = vst.msk [vmem:[#allocation3 + $0x25c] sm:$0xf] %vm2192, %v3210
        %3303 = vst.msk [vmem:[#allocation3 + $0x270] sm:$0xf] %vm2192, %v3212
        %3304 = vst.msk [vmem:[#allocation3 + $0x284] sm:$0xf] %vm2192, %v3214
        %3305 = vst.msk [vmem:[#allocation3 + $0x298] sm:$0xf] %vm2192, %v3216
        %3306 = vst.msk [vmem:[#allocation3 + $0x2ac] sm:$0xf] %vm2192, %v3218
        %3307 = vst.msk [vmem:[#allocation3 + $0x2c0] sm:$0xf] %vm2192, %v3220
        %3308 = vst.msk [vmem:[#allocation3 + $0x2d4] sm:$0xf] %vm2192, %v3222
        %3309 = vst.msk [vmem:[#allocation3 + $0x2e8] sm:$0xf] %vm2192, %v3224
        %3310 = vst.msk [vmem:[#allocation3 + $0x2fc] sm:$0xf] %vm2192, %v3226
        %3311 = vst.msk [vmem:[#allocation3 + $0x310] sm:$0xf] %vm2192, %v3228
        %3312 = vst.msk [vmem:[#allocation3 + $0x324] sm:$0xf] %vm2192, %v3230
        %v3313 = vld [vmem:[#allocation2 + $0xc] sm:$0xf]
        %v3314 = vld [vmem:[#allocation2 + $0x10] sm:$0xf]
        %v3315 = vld [vmem:[#allocation2 + $0x14] sm:$0xf]
        %v3316 = vld [vmem:[#allocation2 + $0x18] sm:$0xf]
        %v3317 = vld [vmem:[#allocation2 + $0x1c] sm:$0xf]
        %v3318 = vld [vmem:[#allocation2 + $0x20] sm:$0xf]
        %v3319 = vld [vmem:[#allocation2 + $0x24] sm:$0xf]
        %v3320 = vld [vmem:[#allocation2 + $0x28] sm:$0xf]
        %v3321 = vld [vmem:[#allocation2 + $0x2c] sm:$0xf]
        %v3322 = vld [vmem:[#allocation2 + $0x30] sm:$0xf]
        %v3323 = vld [vmem:[#allocation2 + $0x34] sm:$0xf]
        %v3324 = vld [vmem:[#allocation2 + $0x38] sm:$0xf]
        %v3325 = vld [vmem:[#allocation2 + $0x3c] sm:$0xf]
        %v3326 = vld [vmem:[#allocation2 + $0x40] sm:$0xf]
        %v3327 = vld [vmem:[#allocation2 + $0x44] sm:$0xf]
        %v3328 = vld [vmem:[#allocation2 + $0x48] sm:$0xf]
        %v3329 = vld [vmem:[#allocation2 + $0x4c] sm:$0xf]
        %v3330 = vld [vmem:[#allocation2 + $0x50] sm:$0xf]
        %v3331 = vld [vmem:[#allocation2 + $0x54] sm:$0xf]
        %v3332 = vld [vmem:[#allocation2 + $0x58] sm:$0xf]
        %v3333 = vld [vmem:[#allocation2 + $0x5c] sm:$0xf]
        %v3334 = vld [vmem:[#allocation2 + $0x60] sm:$0xf]
        %v3335 = vld [vmem:[#allocation2 + $0x64] sm:$0xf]
        %v3336 = vld [vmem:[#allocation2 + $0x68] sm:$0xf]
        %v3337 = vld [vmem:[#allocation2 + $0x6c] sm:$0xf]
        %v3338 = vld [vmem:[#allocation2 + $0x70] sm:$0xf]
        %v3339 = vld [vmem:[#allocation2 + $0x74] sm:$0xf]
        %v3340 = vld [vmem:[#allocation2 + $0x78] sm:$0xf]
        %v3341 = vld [vmem:[#allocation2 + $0x7c] sm:$0xf]
        %v3342 = vld [vmem:[#allocation2 + $0x80] sm:$0xf]
        %v3343 = vld [vmem:[#allocation2 + $0x84] sm:$0xf]
        %v3344 = vld [vmem:[#allocation2 + $0x88] sm:$0xf]
        %v3345 = vld [vmem:[#allocation2 + $0x8c] sm:$0xf]
        %v3346 = vld [vmem:[#allocation2 + $0x90] sm:$0xf]
        %v3347 = vld [vmem:[#allocation2 + $0x94] sm:$0xf]
        %v3348 = vld [vmem:[#allocation2 + $0x98] sm:$0xf]
        %v3349 = vld [vmem:[#allocation2 + $0x9c] sm:$0xf]
        %v3350 = vld [vmem:[#allocation2 + $0xa0] sm:$0xf]
        %v3351 = vld [vmem:[#allocation2 + $0xa4] sm:$0xf]
        %v3352 = vld [vmem:[#allocation2 + $0xa8] sm:$0xf]
        %v3353 = vld [vmem:[#allocation2 + $0xac] sm:$0xf]
        %3354 = vst.msk [vmem:[#allocation3 + $0x8] sm:$0xf] %vm1121, %v3313
        %3355 = vst.msk [vmem:[#allocation3 + $0x1c] sm:$0xf] %vm1121, %v3314
        %3356 = vst.msk [vmem:[#allocation3 + $0x30] sm:$0xf] %vm1121, %v3315
        %3357 = vst.msk [vmem:[#allocation3 + $0x44] sm:$0xf] %vm1121, %v3316
        %3358 = vst.msk [vmem:[#allocation3 + $0x58] sm:$0xf] %vm1121, %v3317
        %3359 = vst.msk [vmem:[#allocation3 + $0x6c] sm:$0xf] %vm1121, %v3318
        %3360 = vst.msk [vmem:[#allocation3 + $0x80] sm:$0xf] %vm1121, %v3319
        %3361 = vst.msk [vmem:[#allocation3 + $0x94] sm:$0xf] %vm1121, %v3320
        %3362 = vst.msk [vmem:[#allocation3 + $0xa8] sm:$0xf] %vm1121, %v3321
        %3363 = vst.msk [vmem:[#allocation3 + $0xbc] sm:$0xf] %vm1121, %v3322
        %3364 = vst.msk [vmem:[#allocation3 + $0xd0] sm:$0xf] %vm1121, %v3323
        %3365 = vst.msk [vmem:[#allocation3 + $0xe4] sm:$0xf] %vm1121, %v3324
        %3366 = vst.msk [vmem:[#allocation3 + $0xf8] sm:$0xf] %vm1121, %v3325
        %3367 = vst.msk [vmem:[#allocation3 + $0x10c] sm:$0xf] %vm1121, %v3326
        %3368 = vst.msk [vmem:[#allocation3 + $0x120] sm:$0xf] %vm1121, %v3327
        %3369 = vst.msk [vmem:[#allocation3 + $0x134] sm:$0xf] %vm1121, %v3328
        %3370 = vst.msk [vmem:[#allocation3 + $0x148] sm:$0xf] %vm1121, %v3329
        %3371 = vst.msk [vmem:[#allocation3 + $0x15c] sm:$0xf] %vm1121, %v3330
        %3372 = vst.msk [vmem:[#allocation3 + $0x170] sm:$0xf] %vm1121, %v3331
        %3373 = vst.msk [vmem:[#allocation3 + $0x184] sm:$0xf] %vm1121, %v3332
        %3374 = vst.msk [vmem:[#allocation3 + $0x198] sm:$0xf] %vm1121, %v3333
        %3375 = vst.msk [vmem:[#allocation3 + $0x1ac] sm:$0xf] %vm1121, %v3334
        %3376 = vst.msk [vmem:[#allocation3 + $0x1c0] sm:$0xf] %vm1121, %v3335
        %3377 = vst.msk [vmem:[#allocation3 + $0x1d4] sm:$0xf] %vm1121, %v3336
        %3378 = vst.msk [vmem:[#allocation3 + $0x1e8] sm:$0xf] %vm1121, %v3337
        %3379 = vst.msk [vmem:[#allocation3 + $0x1fc] sm:$0xf] %vm1121, %v3338
        %3380 = vst.msk [vmem:[#allocation3 + $0x210] sm:$0xf] %vm1121, %v3339
        %3381 = vst.msk [vmem:[#allocation3 + $0x224] sm:$0xf] %vm1121, %v3340
        %3382 = vst.msk [vmem:[#allocation3 + $0x238] sm:$0xf] %vm1121, %v3341
        %3383 = vst.msk [vmem:[#allocation3 + $0x24c] sm:$0xf] %vm1121, %v3342
        %3384 = vst.msk [vmem:[#allocation3 + $0x260] sm:$0xf] %vm1121, %v3343
        %3385 = vst.msk [vmem:[#allocation3 + $0x274] sm:$0xf] %vm1121, %v3344
        %3386 = vst.msk [vmem:[#allocation3 + $0x288] sm:$0xf] %vm1121, %v3345
        %3387 = vst.msk [vmem:[#allocation3 + $0x29c] sm:$0xf] %vm1121, %v3346
        %3388 = vst.msk [vmem:[#allocation3 + $0x2b0] sm:$0xf] %vm1121, %v3347
        %3389 = vst.msk [vmem:[#allocation3 + $0x2c4] sm:$0xf] %vm1121, %v3348
        %3390 = vst.msk [vmem:[#allocation3 + $0x2d8] sm:$0xf] %vm1121, %v3349
        %3391 = vst.msk [vmem:[#allocation3 + $0x2ec] sm:$0xf] %vm1121, %v3350
        %3392 = vst.msk [vmem:[#allocation3 + $0x300] sm:$0xf] %vm1121, %v3351
        %3393 = vst.msk [vmem:[#allocation3 + $0x314] sm:$0xf] %vm1121, %v3352
        %3394 = vst.msk [vmem:[#allocation3 + $0x328] sm:$0xf] %vm1121, %v3353
        %v3395 = vld [vmem:[#allocation2 + $0xc] sm:$0xf]
        %v3396 = vld [vmem:[#allocation2 + $0x10] sm:$0xf]
        %v3397 = vld [vmem:[#allocation2 + $0x14] sm:$0xf]
        %v3398 = vld [vmem:[#allocation2 + $0x18] sm:$0xf]
        %v3399 = vld [vmem:[#allocation2 + $0x1c] sm:$0xf]
        %v3400 = vld [vmem:[#allocation2 + $0x20] sm:$0xf]
        %v3401 = vld [vmem:[#allocation2 + $0x24] sm:$0xf]
        %v3402 = vld [vmem:[#allocation2 + $0x28] sm:$0xf]
        %v3403 = vld [vmem:[#allocation2 + $0x2c] sm:$0xf]
        %v3404 = vld [vmem:[#allocation2 + $0x30] sm:$0xf]
        %v3405 = vld [vmem:[#allocation2 + $0x34] sm:$0xf]
        %v3406 = vld [vmem:[#allocation2 + $0x38] sm:$0xf]
        %v3407 = vld [vmem:[#allocation2 + $0x3c] sm:$0xf]
        %v3408 = vld [vmem:[#allocation2 + $0x40] sm:$0xf]
        %v3409 = vld [vmem:[#allocation2 + $0x44] sm:$0xf]
        %v3410 = vld [vmem:[#allocation2 + $0x48] sm:$0xf]
        %v3411 = vld [vmem:[#allocation2 + $0x4c] sm:$0xf]
        %v3412 = vld [vmem:[#allocation2 + $0x50] sm:$0xf]
        %v3413 = vld [vmem:[#allocation2 + $0x54] sm:$0xf]
        %v3414 = vld [vmem:[#allocation2 + $0x58] sm:$0xf]
        %v3415 = vld [vmem:[#allocation2 + $0x5c] sm:$0xf]
        %v3416 = vld [vmem:[#allocation2 + $0x60] sm:$0xf]
        %v3417 = vld [vmem:[#allocation2 + $0x64] sm:$0xf]
        %v3418 = vld [vmem:[#allocation2 + $0x68] sm:$0xf]
        %v3419 = vld [vmem:[#allocation2 + $0x6c] sm:$0xf]
        %v3420 = vld [vmem:[#allocation2 + $0x70] sm:$0xf]
        %v3421 = vld [vmem:[#allocation2 + $0x74] sm:$0xf]
        %v3422 = vld [vmem:[#allocation2 + $0x78] sm:$0xf]
        %v3423 = vld [vmem:[#allocation2 + $0x7c] sm:$0xf]
        %v3424 = vld [vmem:[#allocation2 + $0x80] sm:$0xf]
        %v3425 = vld [vmem:[#allocation2 + $0x84] sm:$0xf]
        %v3426 = vld [vmem:[#allocation2 + $0x88] sm:$0xf]
        %v3427 = vld [vmem:[#allocation2 + $0x8c] sm:$0xf]
        %v3428 = vld [vmem:[#allocation2 + $0x90] sm:$0xf]
        %v3429 = vld [vmem:[#allocation2 + $0x94] sm:$0xf]
        %v3430 = vld [vmem:[#allocation2 + $0x98] sm:$0xf]
        %v3431 = vld [vmem:[#allocation2 + $0x9c] sm:$0xf]
        %v3432 = vld [vmem:[#allocation2 + $0xa0] sm:$0xf]
        %v3433 = vld [vmem:[#allocation2 + $0xa4] sm:$0xf]
        %v3434 = vld [vmem:[#allocation2 + $0xa8] sm:$0xf]
        %v3435 = vld [vmem:[#allocation2 + $0xac] sm:$0xf]
        %v3436 = vld [vmem:[#allocation2 + $0xb0] sm:$0x1]
        %vm3437 = vsmask.f32 3328
        %vm3438 = vsmask.f32 7440
        %vm3439 = vmor %vm3437, %vm3438
        %v3441 = vshrl.u32 %v3395, 16
        %v3443 = vrot.slane %v3441, 4
        %v3444 = vshll.u32 %v3395, 16
        %v3446 = vrot.slane %v3444, 5
        %v3447 = vor.u32 %v3443, %v3446
        %v3448 = vrot.slane %v3447, 4
        %v3450 = vshll.u32 %v3396, 16
        %v3452 = vrot.slane %v3450, 5
        %v3453 = vsel %vm3439, %v3448, %v3452
        %v3454 = vshrl.u32 %v3396, 16
        %v3456 = vrot.slane %v3454, 4
        %v3457 = vor.u32 %v3456, %v3452
        %v3458 = vrot.slane %v3457, 4
        %v3460 = vshll.u32 %v3397, 16
        %v3462 = vrot.slane %v3460, 5
        %v3463 = vsel %vm3439, %v3458, %v3462
        %v3464 = vshrl.u32 %v3397, 16
        %v3466 = vrot.slane %v3464, 4
        %v3467 = vor.u32 %v3466, %v3462
        %v3468 = vrot.slane %v3467, 4
        %v3470 = vshll.u32 %v3398, 16
        %v3472 = vrot.slane %v3470, 5
        %v3473 = vsel %vm3439, %v3468, %v3472
        %v3474 = vshrl.u32 %v3398, 16
        %v3476 = vrot.slane %v3474, 4
        %v3477 = vor.u32 %v3476, %v3472
        %v3478 = vrot.slane %v3477, 4
        %v3480 = vshll.u32 %v3399, 16
        %v3482 = vrot.slane %v3480, 5
        %v3483 = vsel %vm3439, %v3478, %v3482
        %v3484 = vshrl.u32 %v3399, 16
        %v3486 = vrot.slane %v3484, 4
        %v3487 = vor.u32 %v3486, %v3482
        %v3488 = vrot.slane %v3487, 4
        %v3490 = vshll.u32 %v3400, 16
        %v3492 = vrot.slane %v3490, 5
        %v3493 = vsel %vm3439, %v3488, %v3492
        %v3494 = vshrl.u32 %v3400, 16
        %v3496 = vrot.slane %v3494, 4
        %v3497 = vor.u32 %v3496, %v3492
        %v3498 = vrot.slane %v3497, 4
        %v3500 = vshll.u32 %v3401, 16
        %v3502 = vrot.slane %v3500, 5
        %v3503 = vsel %vm3439, %v3498, %v3502
        %v3504 = vshrl.u32 %v3401, 16
        %v3506 = vrot.slane %v3504, 4
        %v3507 = vor.u32 %v3506, %v3502
        %v3508 = vrot.slane %v3507, 4
        %v3510 = vshll.u32 %v3402, 16
        %v3512 = vrot.slane %v3510, 5
        %v3513 = vsel %vm3439, %v3508, %v3512
        %v3514 = vshrl.u32 %v3402, 16
        %v3516 = vrot.slane %v3514, 4
        %v3517 = vor.u32 %v3516, %v3512
        %v3518 = vrot.slane %v3517, 4
        %v3520 = vshll.u32 %v3403, 16
        %v3522 = vrot.slane %v3520, 5
        %v3523 = vsel %vm3439, %v3518, %v3522
        %v3524 = vshrl.u32 %v3403, 16
        %v3526 = vrot.slane %v3524, 4
        %v3527 = vor.u32 %v3526, %v3522
        %v3528 = vrot.slane %v3527, 4
        %v3530 = vshll.u32 %v3404, 16
        %v3532 = vrot.slane %v3530, 5
        %v3533 = vsel %vm3439, %v3528, %v3532
        %v3534 = vshrl.u32 %v3404, 16
        %v3536 = vrot.slane %v3534, 4
        %v3537 = vor.u32 %v3536, %v3532
        %v3538 = vrot.slane %v3537, 4
        %v3540 = vshll.u32 %v3405, 16
        %v3542 = vrot.slane %v3540, 5
        %v3543 = vsel %vm3439, %v3538, %v3542
        %v3544 = vshrl.u32 %v3405, 16
        %v3546 = vrot.slane %v3544, 4
        %v3547 = vor.u32 %v3546, %v3542
        %v3548 = vrot.slane %v3547, 4
        %v3550 = vshll.u32 %v3406, 16
        %v3552 = vrot.slane %v3550, 5
        %v3553 = vsel %vm3439, %v3548, %v3552
        %v3554 = vshrl.u32 %v3406, 16
        %v3556 = vrot.slane %v3554, 4
        %v3557 = vor.u32 %v3556, %v3552
        %v3558 = vrot.slane %v3557, 4
        %v3560 = vshll.u32 %v3407, 16
        %v3562 = vrot.slane %v3560, 5
        %v3563 = vsel %vm3439, %v3558, %v3562
        %v3564 = vshrl.u32 %v3407, 16
        %v3566 = vrot.slane %v3564, 4
        %v3567 = vor.u32 %v3566, %v3562
        %v3568 = vrot.slane %v3567, 4
        %v3570 = vshll.u32 %v3408, 16
        %v3572 = vrot.slane %v3570, 5
        %v3573 = vsel %vm3439, %v3568, %v3572
        %v3574 = vshrl.u32 %v3408, 16
        %v3576 = vrot.slane %v3574, 4
        %v3577 = vor.u32 %v3576, %v3572
        %v3578 = vrot.slane %v3577, 4
        %v3580 = vshll.u32 %v3409, 16
        %v3582 = vrot.slane %v3580, 5
        %v3583 = vsel %vm3439, %v3578, %v3582
        %v3584 = vshrl.u32 %v3409, 16
        %v3586 = vrot.slane %v3584, 4
        %v3587 = vor.u32 %v3586, %v3582
        %v3588 = vrot.slane %v3587, 4
        %v3590 = vshll.u32 %v3410, 16
        %v3592 = vrot.slane %v3590, 5
        %v3593 = vsel %vm3439, %v3588, %v3592
        %v3594 = vshrl.u32 %v3410, 16
        %v3596 = vrot.slane %v3594, 4
        %v3597 = vor.u32 %v3596, %v3592
        %v3598 = vrot.slane %v3597, 4
        %v3600 = vshll.u32 %v3411, 16
        %v3602 = vrot.slane %v3600, 5
        %v3603 = vsel %vm3439, %v3598, %v3602
        %v3604 = vshrl.u32 %v3411, 16
        %v3606 = vrot.slane %v3604, 4
        %v3607 = vor.u32 %v3606, %v3602
        %v3608 = vrot.slane %v3607, 4
        %v3610 = vshll.u32 %v3412, 16
        %v3612 = vrot.slane %v3610, 5
        %v3613 = vsel %vm3439, %v3608, %v3612
        %v3614 = vshrl.u32 %v3412, 16
        %v3616 = vrot.slane %v3614, 4
        %v3617 = vor.u32 %v3616, %v3612
        %v3618 = vrot.slane %v3617, 4
        %v3620 = vshll.u32 %v3413, 16
        %v3622 = vrot.slane %v3620, 5
        %v3623 = vsel %vm3439, %v3618, %v3622
        %v3624 = vshrl.u32 %v3413, 16
        %v3626 = vrot.slane %v3624, 4
        %v3627 = vor.u32 %v3626, %v3622
        %v3628 = vrot.slane %v3627, 4
        %v3630 = vshll.u32 %v3414, 16
        %v3632 = vrot.slane %v3630, 5
        %v3633 = vsel %vm3439, %v3628, %v3632
        %v3634 = vshrl.u32 %v3414, 16
        %v3636 = vrot.slane %v3634, 4
        %v3637 = vor.u32 %v3636, %v3632
        %v3638 = vrot.slane %v3637, 4
        %v3640 = vshll.u32 %v3415, 16
        %v3642 = vrot.slane %v3640, 5
        %v3643 = vsel %vm3439, %v3638, %v3642
        %v3644 = vshrl.u32 %v3415, 16
        %v3646 = vrot.slane %v3644, 4
        %v3647 = vor.u32 %v3646, %v3642
        %v3648 = vrot.slane %v3647, 4
        %v3650 = vshll.u32 %v3416, 16
        %v3652 = vrot.slane %v3650, 5
        %v3653 = vsel %vm3439, %v3648, %v3652
        %v3654 = vshrl.u32 %v3416, 16
        %v3656 = vrot.slane %v3654, 4
        %v3657 = vor.u32 %v3656, %v3652
        %v3658 = vrot.slane %v3657, 4
        %v3660 = vshll.u32 %v3417, 16
        %v3662 = vrot.slane %v3660, 5
        %v3663 = vsel %vm3439, %v3658, %v3662
        %v3664 = vshrl.u32 %v3417, 16
        %v3666 = vrot.slane %v3664, 4
        %v3667 = vor.u32 %v3666, %v3662
        %v3668 = vrot.slane %v3667, 4
        %v3670 = vshll.u32 %v3418, 16
        %v3672 = vrot.slane %v3670, 5
        %v3673 = vsel %vm3439, %v3668, %v3672
        %v3674 = vshrl.u32 %v3418, 16
        %v3676 = vrot.slane %v3674, 4
        %v3677 = vor.u32 %v3676, %v3672
        %v3678 = vrot.slane %v3677, 4
        %v3680 = vshll.u32 %v3419, 16
        %v3682 = vrot.slane %v3680, 5
        %v3683 = vsel %vm3439, %v3678, %v3682
        %v3684 = vshrl.u32 %v3419, 16
        %v3686 = vrot.slane %v3684, 4
        %v3687 = vor.u32 %v3686, %v3682
        %v3688 = vrot.slane %v3687, 4
        %v3690 = vshll.u32 %v3420, 16
        %v3692 = vrot.slane %v3690, 5
        %v3693 = vsel %vm3439, %v3688, %v3692
        %v3694 = vshrl.u32 %v3420, 16
        %v3696 = vrot.slane %v3694, 4
        %v3697 = vor.u32 %v3696, %v3692
        %v3698 = vrot.slane %v3697, 4
        %v3700 = vshll.u32 %v3421, 16
        %v3702 = vrot.slane %v3700, 5
        %v3703 = vsel %vm3439, %v3698, %v3702
        %v3704 = vshrl.u32 %v3421, 16
        %v3706 = vrot.slane %v3704, 4
        %v3707 = vor.u32 %v3706, %v3702
        %v3708 = vrot.slane %v3707, 4
        %v3710 = vshll.u32 %v3422, 16
        %v3712 = vrot.slane %v3710, 5
        %v3713 = vsel %vm3439, %v3708, %v3712
        %v3714 = vshrl.u32 %v3422, 16
        %v3716 = vrot.slane %v3714, 4
        %v3717 = vor.u32 %v3716, %v3712
        %v3718 = vrot.slane %v3717, 4
        %v3720 = vshll.u32 %v3423, 16
        %v3722 = vrot.slane %v3720, 5
        %v3723 = vsel %vm3439, %v3718, %v3722
        %v3724 = vshrl.u32 %v3423, 16
        %v3726 = vrot.slane %v3724, 4
        %v3727 = vor.u32 %v3726, %v3722
        %v3728 = vrot.slane %v3727, 4
        %v3730 = vshll.u32 %v3424, 16
        %v3732 = vrot.slane %v3730, 5
        %v3733 = vsel %vm3439, %v3728, %v3732
        %v3734 = vshrl.u32 %v3424, 16
        %v3736 = vrot.slane %v3734, 4
        %v3737 = vor.u32 %v3736, %v3732
        %v3738 = vrot.slane %v3737, 4
        %v3740 = vshll.u32 %v3425, 16
        %v3742 = vrot.slane %v3740, 5
        %v3743 = vsel %vm3439, %v3738, %v3742
        %v3744 = vshrl.u32 %v3425, 16
        %v3746 = vrot.slane %v3744, 4
        %v3747 = vor.u32 %v3746, %v3742
        %v3748 = vrot.slane %v3747, 4
        %v3750 = vshll.u32 %v3426, 16
        %v3752 = vrot.slane %v3750, 5
        %v3753 = vsel %vm3439, %v3748, %v3752
        %v3754 = vshrl.u32 %v3426, 16
        %v3756 = vrot.slane %v3754, 4
        %v3757 = vor.u32 %v3756, %v3752
        %v3758 = vrot.slane %v3757, 4
        %v3760 = vshll.u32 %v3427, 16
        %v3762 = vrot.slane %v3760, 5
        %v3763 = vsel %vm3439, %v3758, %v3762
        %v3764 = vshrl.u32 %v3427, 16
        %v3766 = vrot.slane %v3764, 4
        %v3767 = vor.u32 %v3766, %v3762
        %v3768 = vrot.slane %v3767, 4
        %v3770 = vshll.u32 %v3428, 16
        %v3772 = vrot.slane %v3770, 5
        %v3773 = vsel %vm3439, %v3768, %v3772
        %v3774 = vshrl.u32 %v3428, 16
        %v3776 = vrot.slane %v3774, 4
        %v3777 = vor.u32 %v3776, %v3772
        %v3778 = vrot.slane %v3777, 4
        %v3780 = vshll.u32 %v3429, 16
        %v3782 = vrot.slane %v3780, 5
        %v3783 = vsel %vm3439, %v3778, %v3782
        %v3784 = vshrl.u32 %v3429, 16
        %v3786 = vrot.slane %v3784, 4
        %v3787 = vor.u32 %v3786, %v3782
        %v3788 = vrot.slane %v3787, 4
        %v3790 = vshll.u32 %v3430, 16
        %v3792 = vrot.slane %v3790, 5
        %v3793 = vsel %vm3439, %v3788, %v3792
        %v3794 = vshrl.u32 %v3430, 16
        %v3796 = vrot.slane %v3794, 4
        %v3797 = vor.u32 %v3796, %v3792
        %v3798 = vrot.slane %v3797, 4
        %v3800 = vshll.u32 %v3431, 16
        %v3802 = vrot.slane %v3800, 5
        %v3803 = vsel %vm3439, %v3798, %v3802
        %v3804 = vshrl.u32 %v3431, 16
        %v3806 = vrot.slane %v3804, 4
        %v3807 = vor.u32 %v3806, %v3802
        %v3808 = vrot.slane %v3807, 4
        %v3810 = vshll.u32 %v3432, 16
        %v3812 = vrot.slane %v3810, 5
        %v3813 = vsel %vm3439, %v3808, %v3812
        %v3814 = vshrl.u32 %v3432, 16
        %v3816 = vrot.slane %v3814, 4
        %v3817 = vor.u32 %v3816, %v3812
        %v3818 = vrot.slane %v3817, 4
        %v3820 = vshll.u32 %v3433, 16
        %v3822 = vrot.slane %v3820, 5
        %v3823 = vsel %vm3439, %v3818, %v3822
        %v3824 = vshrl.u32 %v3433, 16
        %v3826 = vrot.slane %v3824, 4
        %v3827 = vor.u32 %v3826, %v3822
        %v3828 = vrot.slane %v3827, 4
        %v3830 = vshll.u32 %v3434, 16
        %v3832 = vrot.slane %v3830, 5
        %v3833 = vsel %vm3439, %v3828, %v3832
        %v3834 = vshrl.u32 %v3434, 16
        %v3836 = vrot.slane %v3834, 4
        %v3837 = vor.u32 %v3836, %v3832
        %v3838 = vrot.slane %v3837, 4
        %v3840 = vshll.u32 %v3435, 16
        %v3842 = vrot.slane %v3840, 5
        %v3843 = vsel %vm3439, %v3838, %v3842
        %v3844 = vshrl.u32 %v3435, 16
        %v3846 = vrot.slane %v3844, 4
        %v3847 = vor.u32 %v3846, %v3842
        %v3848 = vrot.slane %v3847, 4
        %v3850 = vshll.u32 %v3436, 16
        %v3852 = vrot.slane %v3850, 5
        %v3853 = vsel %vm3439, %v3848, %v3852
        %3854 = vrot.lane.b32.xlu0 %v3453, 64
        %v3855 = vpop.permute.xlu0 %3854
        %3856 = vrot.lane.b32.xlu0 %v3463, 64
        %v3857 = vpop.permute.xlu0 %3856
        %3858 = vrot.lane.b32.xlu0 %v3473, 64
        %v3859 = vpop.permute.xlu0 %3858
        %3860 = vrot.lane.b32.xlu0 %v3483, 64
        %v3861 = vpop.permute.xlu0 %3860
        %3862 = vrot.lane.b32.xlu0 %v3493, 64
        %v3863 = vpop.permute.xlu0 %3862
        %3864 = vrot.lane.b32.xlu0 %v3503, 64
        %v3865 = vpop.permute.xlu0 %3864
        %3866 = vrot.lane.b32.xlu0 %v3513, 64
        %v3867 = vpop.permute.xlu0 %3866
        %3868 = vrot.lane.b32.xlu0 %v3523, 64
        %v3869 = vpop.permute.xlu0 %3868
        %3870 = vrot.lane.b32.xlu0 %v3533, 64
        %v3871 = vpop.permute.xlu0 %3870
        %3872 = vrot.lane.b32.xlu0 %v3543, 64
        %v3873 = vpop.permute.xlu0 %3872
        %3874 = vrot.lane.b32.xlu0 %v3553, 64
        %v3875 = vpop.permute.xlu0 %3874
        %3876 = vrot.lane.b32.xlu0 %v3563, 64
        %v3877 = vpop.permute.xlu0 %3876
        %3878 = vrot.lane.b32.xlu0 %v3573, 64
        %v3879 = vpop.permute.xlu0 %3878
        %3880 = vrot.lane.b32.xlu0 %v3583, 64
        %v3881 = vpop.permute.xlu0 %3880
        %3882 = vrot.lane.b32.xlu0 %v3593, 64
        %v3883 = vpop.permute.xlu0 %3882
        %3884 = vrot.lane.b32.xlu0 %v3603, 64
        %v3885 = vpop.permute.xlu0 %3884
        %3886 = vrot.lane.b32.xlu0 %v3613, 64
        %v3887 = vpop.permute.xlu0 %3886
        %3888 = vrot.lane.b32.xlu0 %v3623, 64
        %v3889 = vpop.permute.xlu0 %3888
        %3890 = vrot.lane.b32.xlu0 %v3633, 64
        %v3891 = vpop.permute.xlu0 %3890
        %3892 = vrot.lane.b32.xlu0 %v3643, 64
        %v3893 = vpop.permute.xlu0 %3892
        %3894 = vrot.lane.b32.xlu0 %v3653, 64
        %v3895 = vpop.permute.xlu0 %3894
        %3896 = vrot.lane.b32.xlu0 %v3663, 64
        %v3897 = vpop.permute.xlu0 %3896
        %3898 = vrot.lane.b32.xlu0 %v3673, 64
        %v3899 = vpop.permute.xlu0 %3898
        %3900 = vrot.lane.b32.xlu0 %v3683, 64
        %v3901 = vpop.permute.xlu0 %3900
        %3902 = vrot.lane.b32.xlu0 %v3693, 64
        %v3903 = vpop.permute.xlu0 %3902
        %3904 = vrot.lane.b32.xlu0 %v3703, 64
        %v3905 = vpop.permute.xlu0 %3904
        %3906 = vrot.lane.b32.xlu0 %v3713, 64
        %v3907 = vpop.permute.xlu0 %3906
        %3908 = vrot.lane.b32.xlu0 %v3723, 64
        %v3909 = vpop.permute.xlu0 %3908
        %3910 = vrot.lane.b32.xlu0 %v3733, 64
        %v3911 = vpop.permute.xlu0 %3910
        %3912 = vrot.lane.b32.xlu0 %v3743, 64
        %v3913 = vpop.permute.xlu0 %3912
        %3914 = vrot.lane.b32.xlu0 %v3753, 64
        %v3915 = vpop.permute.xlu0 %3914
        %3916 = vrot.lane.b32.xlu0 %v3763, 64
        %v3917 = vpop.permute.xlu0 %3916
        %3918 = vrot.lane.b32.xlu0 %v3773, 64
        %v3919 = vpop.permute.xlu0 %3918
        %3920 = vrot.lane.b32.xlu0 %v3783, 64
        %v3921 = vpop.permute.xlu0 %3920
        %3922 = vrot.lane.b32.xlu0 %v3793, 64
        %v3923 = vpop.permute.xlu0 %3922
        %3924 = vrot.lane.b32.xlu0 %v3803, 64
        %v3925 = vpop.permute.xlu0 %3924
        %3926 = vrot.lane.b32.xlu0 %v3813, 64
        %v3927 = vpop.permute.xlu0 %3926
        %3928 = vrot.lane.b32.xlu0 %v3823, 64
        %v3929 = vpop.permute.xlu0 %3928
        %3930 = vrot.lane.b32.xlu0 %v3833, 64
        %v3931 = vpop.permute.xlu0 %3930
        %3932 = vrot.lane.b32.xlu0 %v3843, 64
        %v3933 = vpop.permute.xlu0 %3932
        %3934 = vrot.lane.b32.xlu0 %v3853, 64
        %v3935 = vpop.permute.xlu0 %3934
        %3977 = vst.msk [vmem:[#allocation3 + $0x8] sm:$0xf] %vm2192, %v3855
        %3978 = vst.msk [vmem:[#allocation3 + $0x1c] sm:$0xf] %vm2192, %v3857
        %3979 = vst.msk [vmem:[#allocation3 + $0x30] sm:$0xf] %vm2192, %v3859
        %3980 = vst.msk [vmem:[#allocation3 + $0x44] sm:$0xf] %vm2192, %v3861
        %3981 = vst.msk [vmem:[#allocation3 + $0x58] sm:$0xf] %vm2192, %v3863
        %3982 = vst.msk [vmem:[#allocation3 + $0x6c] sm:$0xf] %vm2192, %v3865
        %3983 = vst.msk [vmem:[#allocation3 + $0x80] sm:$0xf] %vm2192, %v3867
        %3984 = vst.msk [vmem:[#allocation3 + $0x94] sm:$0xf] %vm2192, %v3869
        %3985 = vst.msk [vmem:[#allocation3 + $0xa8] sm:$0xf] %vm2192, %v3871
        %3986 = vst.msk [vmem:[#allocation3 + $0xbc] sm:$0xf] %vm2192, %v3873
        %3987 = vst.msk [vmem:[#allocation3 + $0xd0] sm:$0xf] %vm2192, %v3875
        %3988 = vst.msk [vmem:[#allocation3 + $0xe4] sm:$0xf] %vm2192, %v3877
        %3989 = vst.msk [vmem:[#allocation3 + $0xf8] sm:$0xf] %vm2192, %v3879
        %3990 = vst.msk [vmem:[#allocation3 + $0x10c] sm:$0xf] %vm2192, %v3881
        %3991 = vst.msk [vmem:[#allocation3 + $0x120] sm:$0xf] %vm2192, %v3883
        %3992 = vst.msk [vmem:[#allocation3 + $0x134] sm:$0xf] %vm2192, %v3885
        %3993 = vst.msk [vmem:[#allocation3 + $0x148] sm:$0xf] %vm2192, %v3887
        %3994 = vst.msk [vmem:[#allocation3 + $0x15c] sm:$0xf] %vm2192, %v3889
        %3995 = vst.msk [vmem:[#allocation3 + $0x170] sm:$0xf] %vm2192, %v3891
        %3996 = vst.msk [vmem:[#allocation3 + $0x184] sm:$0xf] %vm2192, %v3893
        %3997 = vst.msk [vmem:[#allocation3 + $0x198] sm:$0xf] %vm2192, %v3895
        %3998 = vst.msk [vmem:[#allocation3 + $0x1ac] sm:$0xf] %vm2192, %v3897
        %3999 = vst.msk [vmem:[#allocation3 + $0x1c0] sm:$0xf] %vm2192, %v3899
        %4000 = vst.msk [vmem:[#allocation3 + $0x1d4] sm:$0xf] %vm2192, %v3901
        %4001 = vst.msk [vmem:[#allocation3 + $0x1e8] sm:$0xf] %vm2192, %v3903
        %4002 = vst.msk [vmem:[#allocation3 + $0x1fc] sm:$0xf] %vm2192, %v3905
        %4003 = vst.msk [vmem:[#allocation3 + $0x210] sm:$0xf] %vm2192, %v3907
        %4004 = vst.msk [vmem:[#allocation3 + $0x224] sm:$0xf] %vm2192, %v3909
        %4005 = vst.msk [vmem:[#allocation3 + $0x238] sm:$0xf] %vm2192, %v3911
        %4006 = vst.msk [vmem:[#allocation3 + $0x24c] sm:$0xf] %vm2192, %v3913
        %4007 = vst.msk [vmem:[#allocation3 + $0x260] sm:$0xf] %vm2192, %v3915
        %4008 = vst.msk [vmem:[#allocation3 + $0x274] sm:$0xf] %vm2192, %v3917
        %4009 = vst.msk [vmem:[#allocation3 + $0x288] sm:$0xf] %vm2192, %v3919
        %4010 = vst.msk [vmem:[#allocation3 + $0x29c] sm:$0xf] %vm2192, %v3921
        %4011 = vst.msk [vmem:[#allocation3 + $0x2b0] sm:$0xf] %vm2192, %v3923
        %4012 = vst.msk [vmem:[#allocation3 + $0x2c4] sm:$0xf] %vm2192, %v3925
        %4013 = vst.msk [vmem:[#allocation3 + $0x2d8] sm:$0xf] %vm2192, %v3927
        %4014 = vst.msk [vmem:[#allocation3 + $0x2ec] sm:$0xf] %vm2192, %v3929
        %4015 = vst.msk [vmem:[#allocation3 + $0x300] sm:$0xf] %vm2192, %v3931
        %4016 = vst.msk [vmem:[#allocation3 + $0x314] sm:$0xf] %vm2192, %v3933
        %4017 = vst.msk [vmem:[#allocation3 + $0x328] sm:$0xf] %vm2192, %v3935
        %v4018 = vld [vmem:[#allocation2 + $0x14] sm:$0xf]
        %v4019 = vld [vmem:[#allocation2 + $0x18] sm:$0xf]
        %v4020 = vld [vmem:[#allocation2 + $0x1c] sm:$0xf]
        %v4021 = vld [vmem:[#allocation2 + $0x20] sm:$0xf]
        %v4022 = vld [vmem:[#allocation2 + $0x24] sm:$0xf]
        %v4023 = vld [vmem:[#allocation2 + $0x28] sm:$0xf]
        %v4024 = vld [vmem:[#allocation2 + $0x2c] sm:$0xf]
        %v4025 = vld [vmem:[#allocation2 + $0x30] sm:$0xf]
        %v4026 = vld [vmem:[#allocation2 + $0x34] sm:$0xf]
        %v4027 = vld [vmem:[#allocation2 + $0x38] sm:$0xf]
        %v4028 = vld [vmem:[#allocation2 + $0x3c] sm:$0xf]
        %v4029 = vld [vmem:[#allocation2 + $0x40] sm:$0xf]
        %v4030 = vld [vmem:[#allocation2 + $0x44] sm:$0xf]
        %v4031 = vld [vmem:[#allocation2 + $0x48] sm:$0xf]
        %v4032 = vld [vmem:[#allocation2 + $0x4c] sm:$0xf]
        %v4033 = vld [vmem:[#allocation2 + $0x50] sm:$0xf]
        %v4034 = vld [vmem:[#allocation2 + $0x54] sm:$0xf]
        %v4035 = vld [vmem:[#allocation2 + $0x58] sm:$0xf]
        %v4036 = vld [vmem:[#allocation2 + $0x5c] sm:$0xf]
        %v4037 = vld [vmem:[#allocation2 + $0x60] sm:$0xf]
        %v4038 = vld [vmem:[#allocation2 + $0x64] sm:$0xf]
        %v4039 = vld [vmem:[#allocation2 + $0x68] sm:$0xf]
        %v4040 = vld [vmem:[#allocation2 + $0x6c] sm:$0xf]
        %v4041 = vld [vmem:[#allocation2 + $0x70] sm:$0xf]
        %v4042 = vld [vmem:[#allocation2 + $0x74] sm:$0xf]
        %v4043 = vld [vmem:[#allocation2 + $0x78] sm:$0xf]
        %v4044 = vld [vmem:[#allocation2 + $0x7c] sm:$0xf]
        %v4045 = vld [vmem:[#allocation2 + $0x80] sm:$0xf]
        %v4046 = vld [vmem:[#allocation2 + $0x84] sm:$0xf]
        %v4047 = vld [vmem:[#allocation2 + $0x88] sm:$0xf]
        %v4048 = vld [vmem:[#allocation2 + $0x8c] sm:$0xf]
        %v4049 = vld [vmem:[#allocation2 + $0x90] sm:$0xf]
        %v4050 = vld [vmem:[#allocation2 + $0x94] sm:$0xf]
        %v4051 = vld [vmem:[#allocation2 + $0x98] sm:$0xf]
        %v4052 = vld [vmem:[#allocation2 + $0x9c] sm:$0xf]
        %v4053 = vld [vmem:[#allocation2 + $0xa0] sm:$0xf]
        %v4054 = vld [vmem:[#allocation2 + $0xa4] sm:$0xf]
        %v4055 = vld [vmem:[#allocation2 + $0xa8] sm:$0xf]
        %v4056 = vld [vmem:[#allocation2 + $0xac] sm:$0xf]
        %v4057 = vld [vmem:[#allocation2 + $0xb0] sm:$0xf]
        %v4058 = vld [vmem:[#allocation2 + $0xb4] sm:$0xf]
        %v4059 = vld [vmem:[#allocation2 + $0xb8] sm:$0x1]
        %v4061 = vshrl.u32 %v4018, 16
        %v4063 = vrot.slane %v4061, 4
        %v4064 = vshll.u32 %v4018, 16
        %v4066 = vrot.slane %v4064, 5
        %v4067 = vor.u32 %v4063, %v4066
        %v4068 = vrot.slane %v4067, 4
        %v4070 = vshll.u32 %v4019, 16
        %v4072 = vrot.slane %v4070, 5
        %v4073 = vsel %vm3439, %v4068, %v4072
        %v4074 = vshrl.u32 %v4019, 16
        %v4076 = vrot.slane %v4074, 4
        %v4077 = vor.u32 %v4076, %v4072
        %v4078 = vrot.slane %v4077, 4
        %v4080 = vshll.u32 %v4020, 16
        %v4082 = vrot.slane %v4080, 5
        %v4083 = vsel %vm3439, %v4078, %v4082
        %v4084 = vshrl.u32 %v4020, 16
        %v4086 = vrot.slane %v4084, 4
        %v4087 = vor.u32 %v4086, %v4082
        %v4088 = vrot.slane %v4087, 4
        %v4090 = vshll.u32 %v4021, 16
        %v4092 = vrot.slane %v4090, 5
        %v4093 = vsel %vm3439, %v4088, %v4092
        %v4094 = vshrl.u32 %v4021, 16
        %v4096 = vrot.slane %v4094, 4
        %v4097 = vor.u32 %v4096, %v4092
        %v4098 = vrot.slane %v4097, 4
        %v4100 = vshll.u32 %v4022, 16
        %v4102 = vrot.slane %v4100, 5
        %v4103 = vsel %vm3439, %v4098, %v4102
        %v4104 = vshrl.u32 %v4022, 16
        %v4106 = vrot.slane %v4104, 4
        %v4107 = vor.u32 %v4106, %v4102
        %v4108 = vrot.slane %v4107, 4
        %v4110 = vshll.u32 %v4023, 16
        %v4112 = vrot.slane %v4110, 5
        %v4113 = vsel %vm3439, %v4108, %v4112
        %v4114 = vshrl.u32 %v4023, 16
        %v4116 = vrot.slane %v4114, 4
        %v4117 = vor.u32 %v4116, %v4112
        %v4118 = vrot.slane %v4117, 4
        %v4120 = vshll.u32 %v4024, 16
        %v4122 = vrot.slane %v4120, 5
        %v4123 = vsel %vm3439, %v4118, %v4122
        %v4124 = vshrl.u32 %v4024, 16
        %v4126 = vrot.slane %v4124, 4
        %v4127 = vor.u32 %v4126, %v4122
        %v4128 = vrot.slane %v4127, 4
        %v4130 = vshll.u32 %v4025, 16
        %v4132 = vrot.slane %v4130, 5
        %v4133 = vsel %vm3439, %v4128, %v4132
        %v4134 = vshrl.u32 %v4025, 16
        %v4136 = vrot.slane %v4134, 4
        %v4137 = vor.u32 %v4136, %v4132
        %v4138 = vrot.slane %v4137, 4
        %v4140 = vshll.u32 %v4026, 16
        %v4142 = vrot.slane %v4140, 5
        %v4143 = vsel %vm3439, %v4138, %v4142
        %v4144 = vshrl.u32 %v4026, 16
        %v4146 = vrot.slane %v4144, 4
        %v4147 = vor.u32 %v4146, %v4142
        %v4148 = vrot.slane %v4147, 4
        %v4150 = vshll.u32 %v4027, 16
        %v4152 = vrot.slane %v4150, 5
        %v4153 = vsel %vm3439, %v4148, %v4152
        %v4154 = vshrl.u32 %v4027, 16
        %v4156 = vrot.slane %v4154, 4
        %v4157 = vor.u32 %v4156, %v4152
        %v4158 = vrot.slane %v4157, 4
        %v4160 = vshll.u32 %v4028, 16
        %v4162 = vrot.slane %v4160, 5
        %v4163 = vsel %vm3439, %v4158, %v4162
        %v4164 = vshrl.u32 %v4028, 16
        %v4166 = vrot.slane %v4164, 4
        %v4167 = vor.u32 %v4166, %v4162
        %v4168 = vrot.slane %v4167, 4
        %v4170 = vshll.u32 %v4029, 16
        %v4172 = vrot.slane %v4170, 5
        %v4173 = vsel %vm3439, %v4168, %v4172
        %v4174 = vshrl.u32 %v4029, 16
        %v4176 = vrot.slane %v4174, 4
        %v4177 = vor.u32 %v4176, %v4172
        %v4178 = vrot.slane %v4177, 4
        %v4180 = vshll.u32 %v4030, 16
        %v4182 = vrot.slane %v4180, 5
        %v4183 = vsel %vm3439, %v4178, %v4182
        %v4184 = vshrl.u32 %v4030, 16
        %v4186 = vrot.slane %v4184, 4
        %v4187 = vor.u32 %v4186, %v4182
        %v4188 = vrot.slane %v4187, 4
        %v4190 = vshll.u32 %v4031, 16
        %v4192 = vrot.slane %v4190, 5
        %v4193 = vsel %vm3439, %v4188, %v4192
        %v4194 = vshrl.u32 %v4031, 16
        %v4196 = vrot.slane %v4194, 4
        %v4197 = vor.u32 %v4196, %v4192
        %v4198 = vrot.slane %v4197, 4
        %v4200 = vshll.u32 %v4032, 16
        %v4202 = vrot.slane %v4200, 5
        %v4203 = vsel %vm3439, %v4198, %v4202
        %v4204 = vshrl.u32 %v4032, 16
        %v4206 = vrot.slane %v4204, 4
        %v4207 = vor.u32 %v4206, %v4202
        %v4208 = vrot.slane %v4207, 4
        %v4210 = vshll.u32 %v4033, 16
        %v4212 = vrot.slane %v4210, 5
        %v4213 = vsel %vm3439, %v4208, %v4212
        %v4214 = vshrl.u32 %v4033, 16
        %v4216 = vrot.slane %v4214, 4
        %v4217 = vor.u32 %v4216, %v4212
        %v4218 = vrot.slane %v4217, 4
        %v4220 = vshll.u32 %v4034, 16
        %v4222 = vrot.slane %v4220, 5
        %v4223 = vsel %vm3439, %v4218, %v4222
        %v4224 = vshrl.u32 %v4034, 16
        %v4226 = vrot.slane %v4224, 4
        %v4227 = vor.u32 %v4226, %v4222
        %v4228 = vrot.slane %v4227, 4
        %v4230 = vshll.u32 %v4035, 16
        %v4232 = vrot.slane %v4230, 5
        %v4233 = vsel %vm3439, %v4228, %v4232
        %v4234 = vshrl.u32 %v4035, 16
        %v4236 = vrot.slane %v4234, 4
        %v4237 = vor.u32 %v4236, %v4232
        %v4238 = vrot.slane %v4237, 4
        %v4240 = vshll.u32 %v4036, 16
        %v4242 = vrot.slane %v4240, 5
        %v4243 = vsel %vm3439, %v4238, %v4242
        %v4244 = vshrl.u32 %v4036, 16
        %v4246 = vrot.slane %v4244, 4
        %v4247 = vor.u32 %v4246, %v4242
        %v4248 = vrot.slane %v4247, 4
        %v4250 = vshll.u32 %v4037, 16
        %v4252 = vrot.slane %v4250, 5
        %v4253 = vsel %vm3439, %v4248, %v4252
        %v4254 = vshrl.u32 %v4037, 16
        %v4256 = vrot.slane %v4254, 4
        %v4257 = vor.u32 %v4256, %v4252
        %v4258 = vrot.slane %v4257, 4
        %v4260 = vshll.u32 %v4038, 16
        %v4262 = vrot.slane %v4260, 5
        %v4263 = vsel %vm3439, %v4258, %v4262
        %v4264 = vshrl.u32 %v4038, 16
        %v4266 = vrot.slane %v4264, 4
        %v4267 = vor.u32 %v4266, %v4262
        %v4268 = vrot.slane %v4267, 4
        %v4270 = vshll.u32 %v4039, 16
        %v4272 = vrot.slane %v4270, 5
        %v4273 = vsel %vm3439, %v4268, %v4272
        %v4274 = vshrl.u32 %v4039, 16
        %v4276 = vrot.slane %v4274, 4
        %v4277 = vor.u32 %v4276, %v4272
        %v4278 = vrot.slane %v4277, 4
        %v4280 = vshll.u32 %v4040, 16
        %v4282 = vrot.slane %v4280, 5
        %v4283 = vsel %vm3439, %v4278, %v4282
        %v4284 = vshrl.u32 %v4040, 16
        %v4286 = vrot.slane %v4284, 4
        %v4287 = vor.u32 %v4286, %v4282
        %v4288 = vrot.slane %v4287, 4
        %v4290 = vshll.u32 %v4041, 16
        %v4292 = vrot.slane %v4290, 5
        %v4293 = vsel %vm3439, %v4288, %v4292
        %v4294 = vshrl.u32 %v4041, 16
        %v4296 = vrot.slane %v4294, 4
        %v4297 = vor.u32 %v4296, %v4292
        %v4298 = vrot.slane %v4297, 4
        %v4300 = vshll.u32 %v4042, 16
        %v4302 = vrot.slane %v4300, 5
        %v4303 = vsel %vm3439, %v4298, %v4302
        %v4304 = vshrl.u32 %v4042, 16
        %v4306 = vrot.slane %v4304, 4
        %v4307 = vor.u32 %v4306, %v4302
        %v4308 = vrot.slane %v4307, 4
        %v4310 = vshll.u32 %v4043, 16
        %v4312 = vrot.slane %v4310, 5
        %v4313 = vsel %vm3439, %v4308, %v4312
        %v4314 = vshrl.u32 %v4043, 16
        %v4316 = vrot.slane %v4314, 4
        %v4317 = vor.u32 %v4316, %v4312
        %v4318 = vrot.slane %v4317, 4
        %v4320 = vshll.u32 %v4044, 16
        %v4322 = vrot.slane %v4320, 5
        %v4323 = vsel %vm3439, %v4318, %v4322
        %v4324 = vshrl.u32 %v4044, 16
        %v4326 = vrot.slane %v4324, 4
        %v4327 = vor.u32 %v4326, %v4322
        %v4328 = vrot.slane %v4327, 4
        %v4330 = vshll.u32 %v4045, 16
        %v4332 = vrot.slane %v4330, 5
        %v4333 = vsel %vm3439, %v4328, %v4332
        %v4334 = vshrl.u32 %v4045, 16
        %v4336 = vrot.slane %v4334, 4
        %v4337 = vor.u32 %v4336, %v4332
        %v4338 = vrot.slane %v4337, 4
        %v4340 = vshll.u32 %v4046, 16
        %v4342 = vrot.slane %v4340, 5
        %v4343 = vsel %vm3439, %v4338, %v4342
        %v4344 = vshrl.u32 %v4046, 16
        %v4346 = vrot.slane %v4344, 4
        %v4347 = vor.u32 %v4346, %v4342
        %v4348 = vrot.slane %v4347, 4
        %v4350 = vshll.u32 %v4047, 16
        %v4352 = vrot.slane %v4350, 5
        %v4353 = vsel %vm3439, %v4348, %v4352
        %v4354 = vshrl.u32 %v4047, 16
        %v4356 = vrot.slane %v4354, 4
        %v4357 = vor.u32 %v4356, %v4352
        %v4358 = vrot.slane %v4357, 4
        %v4360 = vshll.u32 %v4048, 16
        %v4362 = vrot.slane %v4360, 5
        %v4363 = vsel %vm3439, %v4358, %v4362
        %v4364 = vshrl.u32 %v4048, 16
        %v4366 = vrot.slane %v4364, 4
        %v4367 = vor.u32 %v4366, %v4362
        %v4368 = vrot.slane %v4367, 4
        %v4370 = vshll.u32 %v4049, 16
        %v4372 = vrot.slane %v4370, 5
        %v4373 = vsel %vm3439, %v4368, %v4372
        %v4374 = vshrl.u32 %v4049, 16
        %v4376 = vrot.slane %v4374, 4
        %v4377 = vor.u32 %v4376, %v4372
        %v4378 = vrot.slane %v4377, 4
        %v4380 = vshll.u32 %v4050, 16
        %v4382 = vrot.slane %v4380, 5
        %v4383 = vsel %vm3439, %v4378, %v4382
        %v4384 = vshrl.u32 %v4050, 16
        %v4386 = vrot.slane %v4384, 4
        %v4387 = vor.u32 %v4386, %v4382
        %v4388 = vrot.slane %v4387, 4
        %v4390 = vshll.u32 %v4051, 16
        %v4392 = vrot.slane %v4390, 5
        %v4393 = vsel %vm3439, %v4388, %v4392
        %v4394 = vshrl.u32 %v4051, 16
        %v4396 = vrot.slane %v4394, 4
        %v4397 = vor.u32 %v4396, %v4392
        %v4398 = vrot.slane %v4397, 4
        %v4400 = vshll.u32 %v4052, 16
        %v4402 = vrot.slane %v4400, 5
        %v4403 = vsel %vm3439, %v4398, %v4402
        %v4404 = vshrl.u32 %v4052, 16
        %v4406 = vrot.slane %v4404, 4
        %v4407 = vor.u32 %v4406, %v4402
        %v4408 = vrot.slane %v4407, 4
        %v4410 = vshll.u32 %v4053, 16
        %v4412 = vrot.slane %v4410, 5
        %v4413 = vsel %vm3439, %v4408, %v4412
        %v4414 = vshrl.u32 %v4053, 16
        %v4416 = vrot.slane %v4414, 4
        %v4417 = vor.u32 %v4416, %v4412
        %v4418 = vrot.slane %v4417, 4
        %v4420 = vshll.u32 %v4054, 16
        %v4422 = vrot.slane %v4420, 5
        %v4423 = vsel %vm3439, %v4418, %v4422
        %v4424 = vshrl.u32 %v4054, 16
        %v4426 = vrot.slane %v4424, 4
        %v4427 = vor.u32 %v4426, %v4422
        %v4428 = vrot.slane %v4427, 4
        %v4430 = vshll.u32 %v4055, 16
        %v4432 = vrot.slane %v4430, 5
        %v4433 = vsel %vm3439, %v4428, %v4432
        %v4434 = vshrl.u32 %v4055, 16
        %v4436 = vrot.slane %v4434, 4
        %v4437 = vor.u32 %v4436, %v4432
        %v4438 = vrot.slane %v4437, 4
        %v4440 = vshll.u32 %v4056, 16
        %v4442 = vrot.slane %v4440, 5
        %v4443 = vsel %vm3439, %v4438, %v4442
        %v4444 = vshrl.u32 %v4056, 16
        %v4446 = vrot.slane %v4444, 4
        %v4447 = vor.u32 %v4446, %v4442
        %v4448 = vrot.slane %v4447, 4
        %v4450 = vshll.u32 %v4057, 16
        %v4452 = vrot.slane %v4450, 5
        %v4453 = vsel %vm3439, %v4448, %v4452
        %v4454 = vshrl.u32 %v4057, 16
        %v4456 = vrot.slane %v4454, 4
        %v4457 = vor.u32 %v4456, %v4452
        %v4458 = vrot.slane %v4457, 4
        %v4460 = vshll.u32 %v4058, 16
        %v4462 = vrot.slane %v4460, 5
        %v4463 = vsel %vm3439, %v4458, %v4462
        %v4464 = vshrl.u32 %v4058, 16
        %v4466 = vrot.slane %v4464, 4
        %v4467 = vor.u32 %v4466, %v4462
        %v4468 = vrot.slane %v4467, 4
        %v4470 = vshll.u32 %v4059, 16
        %v4472 = vrot.slane %v4470, 5
        %v4473 = vsel %vm3439, %v4468, %v4472
        %4515 = vst.msk [vmem:[#allocation3 + $0xc] sm:$0xf] %vm1121, %v4073
        %4516 = vst.msk [vmem:[#allocation3 + $0x20] sm:$0xf] %vm1121, %v4083
        %4517 = vst.msk [vmem:[#allocation3 + $0x34] sm:$0xf] %vm1121, %v4093
        %4518 = vst.msk [vmem:[#allocation3 + $0x48] sm:$0xf] %vm1121, %v4103
        %4519 = vst.msk [vmem:[#allocation3 + $0x5c] sm:$0xf] %vm1121, %v4113
        %4520 = vst.msk [vmem:[#allocation3 + $0x70] sm:$0xf] %vm1121, %v4123
        %4521 = vst.msk [vmem:[#allocation3 + $0x84] sm:$0xf] %vm1121, %v4133
        %4522 = vst.msk [vmem:[#allocation3 + $0x98] sm:$0xf] %vm1121, %v4143
        %4523 = vst.msk [vmem:[#allocation3 + $0xac] sm:$0xf] %vm1121, %v4153
        %4524 = vst.msk [vmem:[#allocation3 + $0xc0] sm:$0xf] %vm1121, %v4163
        %4525 = vst.msk [vmem:[#allocation3 + $0xd4] sm:$0xf] %vm1121, %v4173
        %4526 = vst.msk [vmem:[#allocation3 + $0xe8] sm:$0xf] %vm1121, %v4183
        %4527 = vst.msk [vmem:[#allocation3 + $0xfc] sm:$0xf] %vm1121, %v4193
        %4528 = vst.msk [vmem:[#allocation3 + $0x110] sm:$0xf] %vm1121, %v4203
        %4529 = vst.msk [vmem:[#allocation3 + $0x124] sm:$0xf] %vm1121, %v4213
        %4530 = vst.msk [vmem:[#allocation3 + $0x138] sm:$0xf] %vm1121, %v4223
        %4531 = vst.msk [vmem:[#allocation3 + $0x14c] sm:$0xf] %vm1121, %v4233
        %4532 = vst.msk [vmem:[#allocation3 + $0x160] sm:$0xf] %vm1121, %v4243
        %4533 = vst.msk [vmem:[#allocation3 + $0x174] sm:$0xf] %vm1121, %v4253
        %4534 = vst.msk [vmem:[#allocation3 + $0x188] sm:$0xf] %vm1121, %v4263
        %4535 = vst.msk [vmem:[#allocation3 + $0x19c] sm:$0xf] %vm1121, %v4273
        %4536 = vst.msk [vmem:[#allocation3 + $0x1b0] sm:$0xf] %vm1121, %v4283
        %4537 = vst.msk [vmem:[#allocation3 + $0x1c4] sm:$0xf] %vm1121, %v4293
        %4538 = vst.msk [vmem:[#allocation3 + $0x1d8] sm:$0xf] %vm1121, %v4303
        %4539 = vst.msk [vmem:[#allocation3 + $0x1ec] sm:$0xf] %vm1121, %v4313
        %4540 = vst.msk [vmem:[#allocation3 + $0x200] sm:$0xf] %vm1121, %v4323
        %4541 = vst.msk [vmem:[#allocation3 + $0x214] sm:$0xf] %vm1121, %v4333
        %4542 = vst.msk [vmem:[#allocation3 + $0x228] sm:$0xf] %vm1121, %v4343
        %4543 = vst.msk [vmem:[#allocation3 + $0x23c] sm:$0xf] %vm1121, %v4353
        %4544 = vst.msk [vmem:[#allocation3 + $0x250] sm:$0xf] %vm1121, %v4363
        %4545 = vst.msk [vmem:[#allocation3 + $0x264] sm:$0xf] %vm1121, %v4373
        %4546 = vst.msk [vmem:[#allocation3 + $0x278] sm:$0xf] %vm1121, %v4383
        %4547 = vst.msk [vmem:[#allocation3 + $0x28c] sm:$0xf] %vm1121, %v4393
        %4548 = vst.msk [vmem:[#allocation3 + $0x2a0] sm:$0xf] %vm1121, %v4403
        %4549 = vst.msk [vmem:[#allocation3 + $0x2b4] sm:$0xf] %vm1121, %v4413
        %4550 = vst.msk [vmem:[#allocation3 + $0x2c8] sm:$0xf] %vm1121, %v4423
        %4551 = vst.msk [vmem:[#allocation3 + $0x2dc] sm:$0xf] %vm1121, %v4433
        %4552 = vst.msk [vmem:[#allocation3 + $0x2f0] sm:$0xf] %vm1121, %v4443
        %4553 = vst.msk [vmem:[#allocation3 + $0x304] sm:$0xf] %vm1121, %v4453
        %4554 = vst.msk [vmem:[#allocation3 + $0x318] sm:$0xf] %vm1121, %v4463
        %4555 = vst.msk [vmem:[#allocation3 + $0x32c] sm:$0xf] %vm1121, %v4473
        %v4556 = vld [vmem:[#allocation2 + $0x14] sm:$0xe]
        %v4557 = vld [vmem:[#allocation2 + $0x18] sm:$0xf]
        %v4558 = vld [vmem:[#allocation2 + $0x1c] sm:$0xf]
        %v4559 = vld [vmem:[#allocation2 + $0x20] sm:$0xf]
        %v4560 = vld [vmem:[#allocation2 + $0x24] sm:$0xf]
        %v4561 = vld [vmem:[#allocation2 + $0x28] sm:$0xf]
        %v4562 = vld [vmem:[#allocation2 + $0x2c] sm:$0xf]
        %v4563 = vld [vmem:[#allocation2 + $0x30] sm:$0xf]
        %v4564 = vld [vmem:[#allocation2 + $0x34] sm:$0xf]
        %v4565 = vld [vmem:[#allocation2 + $0x38] sm:$0xf]
        %v4566 = vld [vmem:[#allocation2 + $0x3c] sm:$0xf]
        %v4567 = vld [vmem:[#allocation2 + $0x40] sm:$0xf]
        %v4568 = vld [vmem:[#allocation2 + $0x44] sm:$0xf]
        %v4569 = vld [vmem:[#allocation2 + $0x48] sm:$0xf]
        %v4570 = vld [vmem:[#allocation2 + $0x4c] sm:$0xf]
        %v4571 = vld [vmem:[#allocation2 + $0x50] sm:$0xf]
        %v4572 = vld [vmem:[#allocation2 + $0x54] sm:$0xf]
        %v4573 = vld [vmem:[#allocation2 + $0x58] sm:$0xf]
        %v4574 = vld [vmem:[#allocation2 + $0x5c] sm:$0xf]
        %v4575 = vld [vmem:[#allocation2 + $0x60] sm:$0xf]
        %v4576 = vld [vmem:[#allocation2 + $0x64] sm:$0xf]
        %v4577 = vld [vmem:[#allocation2 + $0x68] sm:$0xf]
        %v4578 = vld [vmem:[#allocation2 + $0x6c] sm:$0xf]
        %v4579 = vld [vmem:[#allocation2 + $0x70] sm:$0xf]
        %v4580 = vld [vmem:[#allocation2 + $0x74] sm:$0xf]
        %v4581 = vld [vmem:[#allocation2 + $0x78] sm:$0xf]
        %v4582 = vld [vmem:[#allocation2 + $0x7c] sm:$0xf]
        %v4583 = vld [vmem:[#allocation2 + $0x80] sm:$0xf]
        %v4584 = vld [vmem:[#allocation2 + $0x84] sm:$0xf]
        %v4585 = vld [vmem:[#allocation2 + $0x88] sm:$0xf]
        %v4586 = vld [vmem:[#allocation2 + $0x8c] sm:$0xf]
        %v4587 = vld [vmem:[#allocation2 + $0x90] sm:$0xf]
        %v4588 = vld [vmem:[#allocation2 + $0x94] sm:$0xf]
        %v4589 = vld [vmem:[#allocation2 + $0x98] sm:$0xf]
        %v4590 = vld [vmem:[#allocation2 + $0x9c] sm:$0xf]
        %v4591 = vld [vmem:[#allocation2 + $0xa0] sm:$0xf]
        %v4592 = vld [vmem:[#allocation2 + $0xa4] sm:$0xf]
        %v4593 = vld [vmem:[#allocation2 + $0xa8] sm:$0xf]
        %v4594 = vld [vmem:[#allocation2 + $0xac] sm:$0xf]
        %v4595 = vld [vmem:[#allocation2 + $0xb0] sm:$0xf]
        %v4596 = vld [vmem:[#allocation2 + $0xb4] sm:$0xf]
        %v4597 = vld [vmem:[#allocation2 + $0xb8] sm:$0x1]
        %vm4640 = vcmask 1042432
        %vm4641 = vcmask 1046532
        %vm4642 = vmor %vm4640, %vm4641
        %v4643 = vrot.slane %v4556, 5
        %v4644 = vrot.slane %v4643, 4
        %v4645 = vrot.slane %v4557, 5
        %v4646 = vsel %vm4642, %v4644, %v4645
        %v4647 = vrot.slane %v4645, 4
        %v4648 = vrot.slane %v4558, 5
        %v4649 = vsel %vm4642, %v4647, %v4648
        %v4650 = vrot.slane %v4648, 4
        %v4651 = vrot.slane %v4559, 5
        %v4652 = vsel %vm4642, %v4650, %v4651
        %v4653 = vrot.slane %v4651, 4
        %v4654 = vrot.slane %v4560, 5
        %v4655 = vsel %vm4642, %v4653, %v4654
        %v4656 = vrot.slane %v4654, 4
        %v4657 = vrot.slane %v4561, 5
        %v4658 = vsel %vm4642, %v4656, %v4657
        %v4659 = vrot.slane %v4657, 4
        %v4660 = vrot.slane %v4562, 5
        %v4661 = vsel %vm4642, %v4659, %v4660
        %v4662 = vrot.slane %v4660, 4
        %v4663 = vrot.slane %v4563, 5
        %v4664 = vsel %vm4642, %v4662, %v4663
        %v4665 = vrot.slane %v4663, 4
        %v4666 = vrot.slane %v4564, 5
        %v4667 = vsel %vm4642, %v4665, %v4666
        %v4668 = vrot.slane %v4666, 4
        %v4669 = vrot.slane %v4565, 5
        %v4670 = vsel %vm4642, %v4668, %v4669
        %v4671 = vrot.slane %v4669, 4
        %v4672 = vrot.slane %v4566, 5
        %v4673 = vsel %vm4642, %v4671, %v4672
        %v4674 = vrot.slane %v4672, 4
        %v4675 = vrot.slane %v4567, 5
        %v4676 = vsel %vm4642, %v4674, %v4675
        %v4677 = vrot.slane %v4675, 4
        %v4678 = vrot.slane %v4568, 5
        %v4679 = vsel %vm4642, %v4677, %v4678
        %v4680 = vrot.slane %v4678, 4
        %v4681 = vrot.slane %v4569, 5
        %v4682 = vsel %vm4642, %v4680, %v4681
        %v4683 = vrot.slane %v4681, 4
        %v4684 = vrot.slane %v4570, 5
        %v4685 = vsel %vm4642, %v4683, %v4684
        %v4686 = vrot.slane %v4684, 4
        %v4687 = vrot.slane %v4571, 5
        %v4688 = vsel %vm4642, %v4686, %v4687
        %v4689 = vrot.slane %v4687, 4
        %v4690 = vrot.slane %v4572, 5
        %v4691 = vsel %vm4642, %v4689, %v4690
        %v4692 = vrot.slane %v4690, 4
        %v4693 = vrot.slane %v4573, 5
        %v4694 = vsel %vm4642, %v4692, %v4693
        %v4695 = vrot.slane %v4693, 4
        %v4696 = vrot.slane %v4574, 5
        %v4697 = vsel %vm4642, %v4695, %v4696
        %v4698 = vrot.slane %v4696, 4
        %v4699 = vrot.slane %v4575, 5
        %v4700 = vsel %vm4642, %v4698, %v4699
        %v4701 = vrot.slane %v4699, 4
        %v4702 = vrot.slane %v4576, 5
        %v4703 = vsel %vm4642, %v4701, %v4702
        %v4704 = vrot.slane %v4702, 4
        %v4705 = vrot.slane %v4577, 5
        %v4706 = vsel %vm4642, %v4704, %v4705
        %v4707 = vrot.slane %v4705, 4
        %v4708 = vrot.slane %v4578, 5
        %v4709 = vsel %vm4642, %v4707, %v4708
        %v4710 = vrot.slane %v4708, 4
        %v4711 = vrot.slane %v4579, 5
        %v4712 = vsel %vm4642, %v4710, %v4711
        %v4713 = vrot.slane %v4711, 4
        %v4714 = vrot.slane %v4580, 5
        %v4715 = vsel %vm4642, %v4713, %v4714
        %v4716 = vrot.slane %v4714, 4
        %v4717 = vrot.slane %v4581, 5
        %v4718 = vsel %vm4642, %v4716, %v4717
        %v4719 = vrot.slane %v4717, 4
        %v4720 = vrot.slane %v4582, 5
        %v4721 = vsel %vm4642, %v4719, %v4720
        %v4722 = vrot.slane %v4720, 4
        %v4723 = vrot.slane %v4583, 5
        %v4724 = vsel %vm4642, %v4722, %v4723
        %v4725 = vrot.slane %v4723, 4
        %v4726 = vrot.slane %v4584, 5
        %v4727 = vsel %vm4642, %v4725, %v4726
        %v4728 = vrot.slane %v4726, 4
        %v4729 = vrot.slane %v4585, 5
        %v4730 = vsel %vm4642, %v4728, %v4729
        %v4731 = vrot.slane %v4729, 4
        %v4732 = vrot.slane %v4586, 5
        %v4733 = vsel %vm4642, %v4731, %v4732
        %v4734 = vrot.slane %v4732, 4
        %v4735 = vrot.slane %v4587, 5
        %v4736 = vsel %vm4642, %v4734, %v4735
        %v4737 = vrot.slane %v4735, 4
        %v4738 = vrot.slane %v4588, 5
        %v4739 = vsel %vm4642, %v4737, %v4738
        %v4740 = vrot.slane %v4738, 4
        %v4741 = vrot.slane %v4589, 5
        %v4742 = vsel %vm4642, %v4740, %v4741
        %v4743 = vrot.slane %v4741, 4
        %v4744 = vrot.slane %v4590, 5
        %v4745 = vsel %vm4642, %v4743, %v4744
        %v4746 = vrot.slane %v4744, 4
        %v4747 = vrot.slane %v4591, 5
        %v4748 = vsel %vm4642, %v4746, %v4747
        %v4749 = vrot.slane %v4747, 4
        %v4750 = vrot.slane %v4592, 5
        %v4751 = vsel %vm4642, %v4749, %v4750
        %v4752 = vrot.slane %v4750, 4
        %v4753 = vrot.slane %v4593, 5
        %v4754 = vsel %vm4642, %v4752, %v4753
        %v4755 = vrot.slane %v4753, 4
        %v4756 = vrot.slane %v4594, 5
        %v4757 = vsel %vm4642, %v4755, %v4756
        %v4758 = vrot.slane %v4756, 4
        %v4759 = vrot.slane %v4595, 5
        %v4760 = vsel %vm4642, %v4758, %v4759
        %v4761 = vrot.slane %v4759, 4
        %v4762 = vrot.slane %v4596, 5
        %v4763 = vsel %vm4642, %v4761, %v4762
        %v4764 = vrot.slane %v4762, 4
        %v4765 = vrot.slane %v4597, 5
        %v4766 = vsel %vm4642, %v4764, %v4765
        %4767 = vrot.lane.b32.xlu0 %v4646, 64
        %v4768 = vpop.permute.xlu0 %4767
        %4769 = vrot.lane.b32.xlu0 %v4649, 64
        %v4770 = vpop.permute.xlu0 %4769
        %4771 = vrot.lane.b32.xlu0 %v4652, 64
        %v4772 = vpop.permute.xlu0 %4771
        %4773 = vrot.lane.b32.xlu0 %v4655, 64
        %v4774 = vpop.permute.xlu0 %4773
        %4775 = vrot.lane.b32.xlu0 %v4658, 64
        %v4776 = vpop.permute.xlu0 %4775
        %4777 = vrot.lane.b32.xlu0 %v4661, 64
        %v4778 = vpop.permute.xlu0 %4777
        %4779 = vrot.lane.b32.xlu0 %v4664, 64
        %v4780 = vpop.permute.xlu0 %4779
        %4781 = vrot.lane.b32.xlu0 %v4667, 64
        %v4782 = vpop.permute.xlu0 %4781
        %4783 = vrot.lane.b32.xlu0 %v4670, 64
        %v4784 = vpop.permute.xlu0 %4783
        %4785 = vrot.lane.b32.xlu0 %v4673, 64
        %v4786 = vpop.permute.xlu0 %4785
        %4787 = vrot.lane.b32.xlu0 %v4676, 64
        %v4788 = vpop.permute.xlu0 %4787
        %4789 = vrot.lane.b32.xlu0 %v4679, 64
        %v4790 = vpop.permute.xlu0 %4789
        %4791 = vrot.lane.b32.xlu0 %v4682, 64
        %v4792 = vpop.permute.xlu0 %4791
        %4793 = vrot.lane.b32.xlu0 %v4685, 64
        %v4794 = vpop.permute.xlu0 %4793
        %4795 = vrot.lane.b32.xlu0 %v4688, 64
        %v4796 = vpop.permute.xlu0 %4795
        %4797 = vrot.lane.b32.xlu0 %v4691, 64
        %v4798 = vpop.permute.xlu0 %4797
        %4799 = vrot.lane.b32.xlu0 %v4694, 64
        %v4800 = vpop.permute.xlu0 %4799
        %4801 = vrot.lane.b32.xlu0 %v4697, 64
        %v4802 = vpop.permute.xlu0 %4801
        %4803 = vrot.lane.b32.xlu0 %v4700, 64
        %v4804 = vpop.permute.xlu0 %4803
        %4805 = vrot.lane.b32.xlu0 %v4703, 64
        %v4806 = vpop.permute.xlu0 %4805
        %4807 = vrot.lane.b32.xlu0 %v4706, 64
        %v4808 = vpop.permute.xlu0 %4807
        %4809 = vrot.lane.b32.xlu0 %v4709, 64
        %v4810 = vpop.permute.xlu0 %4809
        %4811 = vrot.lane.b32.xlu0 %v4712, 64
        %v4812 = vpop.permute.xlu0 %4811
        %4813 = vrot.lane.b32.xlu0 %v4715, 64
        %v4814 = vpop.permute.xlu0 %4813
        %4815 = vrot.lane.b32.xlu0 %v4718, 64
        %v4816 = vpop.permute.xlu0 %4815
        %4817 = vrot.lane.b32.xlu0 %v4721, 64
        %v4818 = vpop.permute.xlu0 %4817
        %4819 = vrot.lane.b32.xlu0 %v4724, 64
        %v4820 = vpop.permute.xlu0 %4819
        %4821 = vrot.lane.b32.xlu0 %v4727, 64
        %v4822 = vpop.permute.xlu0 %4821
        %4823 = vrot.lane.b32.xlu0 %v4730, 64
        %v4824 = vpop.permute.xlu0 %4823
        %4825 = vrot.lane.b32.xlu0 %v4733, 64
        %v4826 = vpop.permute.xlu0 %4825
        %4827 = vrot.lane.b32.xlu0 %v4736, 64
        %v4828 = vpop.permute.xlu0 %4827
        %4829 = vrot.lane.b32.xlu0 %v4739, 64
        %v4830 = vpop.permute.xlu0 %4829
        %4831 = vrot.lane.b32.xlu0 %v4742, 64
        %v4832 = vpop.permute.xlu0 %4831
        %4833 = vrot.lane.b32.xlu0 %v4745, 64
        %v4834 = vpop.permute.xlu0 %4833
        %4835 = vrot.lane.b32.xlu0 %v4748, 64
        %v4836 = vpop.permute.xlu0 %4835
        %4837 = vrot.lane.b32.xlu0 %v4751, 64
        %v4838 = vpop.permute.xlu0 %4837
        %4839 = vrot.lane.b32.xlu0 %v4754, 64
        %v4840 = vpop.permute.xlu0 %4839
        %4841 = vrot.lane.b32.xlu0 %v4757, 64
        %v4842 = vpop.permute.xlu0 %4841
        %4843 = vrot.lane.b32.xlu0 %v4760, 64
        %v4844 = vpop.permute.xlu0 %4843
        %4845 = vrot.lane.b32.xlu0 %v4763, 64
        %v4846 = vpop.permute.xlu0 %4845
        %4847 = vrot.lane.b32.xlu0 %v4766, 64
        %v4848 = vpop.permute.xlu0 %4847
        %4890 = vst.msk [vmem:[#allocation3 + $0xc] sm:$0xf] %vm2192, %v4768
        %4891 = vst.msk [vmem:[#allocation3 + $0x20] sm:$0xf] %vm2192, %v4770
        %4892 = vst.msk [vmem:[#allocation3 + $0x34] sm:$0xf] %vm2192, %v4772
        %4893 = vst.msk [vmem:[#allocation3 + $0x48] sm:$0xf] %vm2192, %v4774
        %4894 = vst.msk [vmem:[#allocation3 + $0x5c] sm:$0xf] %vm2192, %v4776
        %4895 = vst.msk [vmem:[#allocation3 + $0x70] sm:$0xf] %vm2192, %v4778
        %4896 = vst.msk [vmem:[#allocation3 + $0x84] sm:$0xf] %vm2192, %v4780
        %4897 = vst.msk [vmem:[#allocation3 + $0x98] sm:$0xf] %vm2192, %v4782
        %4898 = vst.msk [vmem:[#allocation3 + $0xac] sm:$0xf] %vm2192, %v4784
        %4899 = vst.msk [vmem:[#allocation3 + $0xc0] sm:$0xf] %vm2192, %v4786
        %4900 = vst.msk [vmem:[#allocation3 + $0xd4] sm:$0xf] %vm2192, %v4788
        %4901 = vst.msk [vmem:[#allocation3 + $0xe8] sm:$0xf] %vm2192, %v4790
        %4902 = vst.msk [vmem:[#allocation3 + $0xfc] sm:$0xf] %vm2192, %v4792
        %4903 = vst.msk [vmem:[#allocation3 + $0x110] sm:$0xf] %vm2192, %v4794
        %4904 = vst.msk [vmem:[#allocation3 + $0x124] sm:$0xf] %vm2192, %v4796
        %4905 = vst.msk [vmem:[#allocation3 + $0x138] sm:$0xf] %vm2192, %v4798
        %4906 = vst.msk [vmem:[#allocation3 + $0x14c] sm:$0xf] %vm2192, %v4800
        %4907 = vst.msk [vmem:[#allocation3 + $0x160] sm:$0xf] %vm2192, %v4802
        %4908 = vst.msk [vmem:[#allocation3 + $0x174] sm:$0xf] %vm2192, %v4804
        %4909 = vst.msk [vmem:[#allocation3 + $0x188] sm:$0xf] %vm2192, %v4806
        %4910 = vst.msk [vmem:[#allocation3 + $0x19c] sm:$0xf] %vm2192, %v4808
        %4911 = vst.msk [vmem:[#allocation3 + $0x1b0] sm:$0xf] %vm2192, %v4810
        %4912 = vst.msk [vmem:[#allocation3 + $0x1c4] sm:$0xf] %vm2192, %v4812
        %4913 = vst.msk [vmem:[#allocation3 + $0x1d8] sm:$0xf] %vm2192, %v4814
        %4914 = vst.msk [vmem:[#allocation3 + $0x1ec] sm:$0xf] %vm2192, %v4816
        %4915 = vst.msk [vmem:[#allocation3 + $0x200] sm:$0xf] %vm2192, %v4818
        %4916 = vst.msk [vmem:[#allocation3 + $0x214] sm:$0xf] %vm2192, %v4820
        %4917 = vst.msk [vmem:[#allocation3 + $0x228] sm:$0xf] %vm2192, %v4822
        %4918 = vst.msk [vmem:[#allocation3 + $0x23c] sm:$0xf] %vm2192, %v4824
        %4919 = vst.msk [vmem:[#allocation3 + $0x250] sm:$0xf] %vm2192, %v4826
        %4920 = vst.msk [vmem:[#allocation3 + $0x264] sm:$0xf] %vm2192, %v4828
        %4921 = vst.msk [vmem:[#allocation3 + $0x278] sm:$0xf] %vm2192, %v4830
        %4922 = vst.msk [vmem:[#allocation3 + $0x28c] sm:$0xf] %vm2192, %v4832
        %4923 = vst.msk [vmem:[#allocation3 + $0x2a0] sm:$0xf] %vm2192, %v4834
        %4924 = vst.msk [vmem:[#allocation3 + $0x2b4] sm:$0xf] %vm2192, %v4836
        %4925 = vst.msk [vmem:[#allocation3 + $0x2c8] sm:$0xf] %vm2192, %v4838
        %4926 = vst.msk [vmem:[#allocation3 + $0x2dc] sm:$0xf] %vm2192, %v4840
        %4927 = vst.msk [vmem:[#allocation3 + $0x2f0] sm:$0xf] %vm2192, %v4842
        %4928 = vst.msk [vmem:[#allocation3 + $0x304] sm:$0xf] %vm2192, %v4844
        %4929 = vst.msk [vmem:[#allocation3 + $0x318] sm:$0xf] %vm2192, %v4846
        %4930 = vst.msk [vmem:[#allocation3 + $0x32c] sm:$0xf] %vm2192, %v4848
        %v4931 = vld [vmem:[#allocation2 + $0x14] sm:$0xe]
        %v4932 = vld [vmem:[#allocation2 + $0x18] sm:$0xf]
        %v4933 = vld [vmem:[#allocation2 + $0x1c] sm:$0xf]
        %v4934 = vld [vmem:[#allocation2 + $0x20] sm:$0xf]
        %v4935 = vld [vmem:[#allocation2 + $0x24] sm:$0xf]
        %v4936 = vld [vmem:[#allocation2 + $0x28] sm:$0xf]
        %v4937 = vld [vmem:[#allocation2 + $0x2c] sm:$0xf]
        %v4938 = vld [vmem:[#allocation2 + $0x30] sm:$0xf]
        %v4939 = vld [vmem:[#allocation2 + $0x34] sm:$0xf]
        %v4940 = vld [vmem:[#allocation2 + $0x38] sm:$0xf]
        %v4941 = vld [vmem:[#allocation2 + $0x3c] sm:$0xf]
        %v4942 = vld [vmem:[#allocation2 + $0x40] sm:$0xf]
        %v4943 = vld [vmem:[#allocation2 + $0x44] sm:$0xf]
        %v4944 = vld [vmem:[#allocation2 + $0x48] sm:$0xf]
        %v4945 = vld [vmem:[#allocation2 + $0x4c] sm:$0xf]
        %v4946 = vld [vmem:[#allocation2 + $0x50] sm:$0xf]
        %v4947 = vld [vmem:[#allocation2 + $0x54] sm:$0xf]
        %v4948 = vld [vmem:[#allocation2 + $0x58] sm:$0xf]
        %v4949 = vld [vmem:[#allocation2 + $0x5c] sm:$0xf]
        %v4950 = vld [vmem:[#allocation2 + $0x60] sm:$0xf]
        %v4951 = vld [vmem:[#allocation2 + $0x64] sm:$0xf]
        %v4952 = vld [vmem:[#allocation2 + $0x68] sm:$0xf]
        %v4953 = vld [vmem:[#allocation2 + $0x6c] sm:$0xf]
        %v4954 = vld [vmem:[#allocation2 + $0x70] sm:$0xf]
        %v4955 = vld [vmem:[#allocation2 + $0x74] sm:$0xf]
        %v4956 = vld [vmem:[#allocation2 + $0x78] sm:$0xf]
        %v4957 = vld [vmem:[#allocation2 + $0x7c] sm:$0xf]
        %v4958 = vld [vmem:[#allocation2 + $0x80] sm:$0xf]
        %v4959 = vld [vmem:[#allocation2 + $0x84] sm:$0xf]
        %v4960 = vld [vmem:[#allocation2 + $0x88] sm:$0xf]
        %v4961 = vld [vmem:[#allocation2 + $0x8c] sm:$0xf]
        %v4962 = vld [vmem:[#allocation2 + $0x90] sm:$0xf]
        %v4963 = vld [vmem:[#allocation2 + $0x94] sm:$0xf]
        %v4964 = vld [vmem:[#allocation2 + $0x98] sm:$0xf]
        %v4965 = vld [vmem:[#allocation2 + $0x9c] sm:$0xf]
        %v4966 = vld [vmem:[#allocation2 + $0xa0] sm:$0xf]
        %v4967 = vld [vmem:[#allocation2 + $0xa4] sm:$0xf]
        %v4968 = vld [vmem:[#allocation2 + $0xa8] sm:$0xf]
        %v4969 = vld [vmem:[#allocation2 + $0xac] sm:$0xf]
        %v4970 = vld [vmem:[#allocation2 + $0xb0] sm:$0xf]
        %v4971 = vld [vmem:[#allocation2 + $0xb4] sm:$0xf]
        %v4972 = vld [vmem:[#allocation2 + $0xb8] sm:$0x3]
        %vm4973 = vsmask.f32 2304
        %vm4974 = vsmask.f32 6416
        %vm4975 = vmor %vm4973, %vm4974
        %v4977 = vshrl.u32 %v4931, 16
        %v4979 = vrot.slane %v4977, 5
        %v4980 = vshll.u32 %v4931, 16
        %v4982 = vrot.slane %v4980, 6
        %v4983 = vor.u32 %v4979, %v4982
        %v4984 = vrot.slane %v4983, 4
        %v4986 = vshrl.u32 %v4932, 16
        %v4988 = vrot.slane %v4986, 5
        %v4989 = vshll.u32 %v4932, 16
        %v4991 = vrot.slane %v4989, 6
        %v4992 = vor.u32 %v4988, %v4991
        %v4993 = vsel %vm4975, %v4984, %v4992
        %v4994 = vrot.slane %v4992, 4
        %v4996 = vshrl.u32 %v4933, 16
        %v4998 = vrot.slane %v4996, 5
        %v4999 = vshll.u32 %v4933, 16
        %v5001 = vrot.slane %v4999, 6
        %v5002 = vor.u32 %v4998, %v5001
        %v5003 = vsel %vm4975, %v4994, %v5002
        %v5004 = vrot.slane %v5002, 4
        %v5006 = vshrl.u32 %v4934, 16
        %v5008 = vrot.slane %v5006, 5
        %v5009 = vshll.u32 %v4934, 16
        %v5011 = vrot.slane %v5009, 6
        %v5012 = vor.u32 %v5008, %v5011
        %v5013 = vsel %vm4975, %v5004, %v5012
        %v5014 = vrot.slane %v5012, 4
        %v5016 = vshrl.u32 %v4935, 16
        %v5018 = vrot.slane %v5016, 5
        %v5019 = vshll.u32 %v4935, 16
        %v5021 = vrot.slane %v5019, 6
        %v5022 = vor.u32 %v5018, %v5021
        %v5023 = vsel %vm4975, %v5014, %v5022
        %v5024 = vrot.slane %v5022, 4
        %v5026 = vshrl.u32 %v4936, 16
        %v5028 = vrot.slane %v5026, 5
        %v5029 = vshll.u32 %v4936, 16
        %v5031 = vrot.slane %v5029, 6
        %v5032 = vor.u32 %v5028, %v5031
        %v5033 = vsel %vm4975, %v5024, %v5032
        %v5034 = vrot.slane %v5032, 4
        %v5036 = vshrl.u32 %v4937, 16
        %v5038 = vrot.slane %v5036, 5
        %v5039 = vshll.u32 %v4937, 16
        %v5041 = vrot.slane %v5039, 6
        %v5042 = vor.u32 %v5038, %v5041
        %v5043 = vsel %vm4975, %v5034, %v5042
        %v5044 = vrot.slane %v5042, 4
        %v5046 = vshrl.u32 %v4938, 16
        %v5048 = vrot.slane %v5046, 5
        %v5049 = vshll.u32 %v4938, 16
        %v5051 = vrot.slane %v5049, 6
        %v5052 = vor.u32 %v5048, %v5051
        %v5053 = vsel %vm4975, %v5044, %v5052
        %v5054 = vrot.slane %v5052, 4
        %v5056 = vshrl.u32 %v4939, 16
        %v5058 = vrot.slane %v5056, 5
        %v5059 = vshll.u32 %v4939, 16
        %v5061 = vrot.slane %v5059, 6
        %v5062 = vor.u32 %v5058, %v5061
        %v5063 = vsel %vm4975, %v5054, %v5062
        %v5064 = vrot.slane %v5062, 4
        %v5066 = vshrl.u32 %v4940, 16
        %v5068 = vrot.slane %v5066, 5
        %v5069 = vshll.u32 %v4940, 16
        %v5071 = vrot.slane %v5069, 6
        %v5072 = vor.u32 %v5068, %v5071
        %v5073 = vsel %vm4975, %v5064, %v5072
        %v5074 = vrot.slane %v5072, 4
        %v5076 = vshrl.u32 %v4941, 16
        %v5078 = vrot.slane %v5076, 5
        %v5079 = vshll.u32 %v4941, 16
        %v5081 = vrot.slane %v5079, 6
        %v5082 = vor.u32 %v5078, %v5081
        %v5083 = vsel %vm4975, %v5074, %v5082
        %v5084 = vrot.slane %v5082, 4
        %v5086 = vshrl.u32 %v4942, 16
        %v5088 = vrot.slane %v5086, 5
        %v5089 = vshll.u32 %v4942, 16
        %v5091 = vrot.slane %v5089, 6
        %v5092 = vor.u32 %v5088, %v5091
        %v5093 = vsel %vm4975, %v5084, %v5092
        %v5094 = vrot.slane %v5092, 4
        %v5096 = vshrl.u32 %v4943, 16
        %v5098 = vrot.slane %v5096, 5
        %v5099 = vshll.u32 %v4943, 16
        %v5101 = vrot.slane %v5099, 6
        %v5102 = vor.u32 %v5098, %v5101
        %v5103 = vsel %vm4975, %v5094, %v5102
        %v5104 = vrot.slane %v5102, 4
        %v5106 = vshrl.u32 %v4944, 16
        %v5108 = vrot.slane %v5106, 5
        %v5109 = vshll.u32 %v4944, 16
        %v5111 = vrot.slane %v5109, 6
        %v5112 = vor.u32 %v5108, %v5111
        %v5113 = vsel %vm4975, %v5104, %v5112
        %v5114 = vrot.slane %v5112, 4
        %v5116 = vshrl.u32 %v4945, 16
        %v5118 = vrot.slane %v5116, 5
        %v5119 = vshll.u32 %v4945, 16
        %v5121 = vrot.slane %v5119, 6
        %v5122 = vor.u32 %v5118, %v5121
        %v5123 = vsel %vm4975, %v5114, %v5122
        %v5124 = vrot.slane %v5122, 4
        %v5126 = vshrl.u32 %v4946, 16
        %v5128 = vrot.slane %v5126, 5
        %v5129 = vshll.u32 %v4946, 16
        %v5131 = vrot.slane %v5129, 6
        %v5132 = vor.u32 %v5128, %v5131
        %v5133 = vsel %vm4975, %v5124, %v5132
        %v5134 = vrot.slane %v5132, 4
        %v5136 = vshrl.u32 %v4947, 16
        %v5138 = vrot.slane %v5136, 5
        %v5139 = vshll.u32 %v4947, 16
        %v5141 = vrot.slane %v5139, 6
        %v5142 = vor.u32 %v5138, %v5141
        %v5143 = vsel %vm4975, %v5134, %v5142
        %v5144 = vrot.slane %v5142, 4
        %v5146 = vshrl.u32 %v4948, 16
        %v5148 = vrot.slane %v5146, 5
        %v5149 = vshll.u32 %v4948, 16
        %v5151 = vrot.slane %v5149, 6
        %v5152 = vor.u32 %v5148, %v5151
        %v5153 = vsel %vm4975, %v5144, %v5152
        %v5154 = vrot.slane %v5152, 4
        %v5156 = vshrl.u32 %v4949, 16
        %v5158 = vrot.slane %v5156, 5
        %v5159 = vshll.u32 %v4949, 16
        %v5161 = vrot.slane %v5159, 6
        %v5162 = vor.u32 %v5158, %v5161
        %v5163 = vsel %vm4975, %v5154, %v5162
        %v5164 = vrot.slane %v5162, 4
        %v5166 = vshrl.u32 %v4950, 16
        %v5168 = vrot.slane %v5166, 5
        %v5169 = vshll.u32 %v4950, 16
        %v5171 = vrot.slane %v5169, 6
        %v5172 = vor.u32 %v5168, %v5171
        %v5173 = vsel %vm4975, %v5164, %v5172
        %v5174 = vrot.slane %v5172, 4
        %v5176 = vshrl.u32 %v4951, 16
        %v5178 = vrot.slane %v5176, 5
        %v5179 = vshll.u32 %v4951, 16
        %v5181 = vrot.slane %v5179, 6
        %v5182 = vor.u32 %v5178, %v5181
        %v5183 = vsel %vm4975, %v5174, %v5182
        %v5184 = vrot.slane %v5182, 4
        %v5186 = vshrl.u32 %v4952, 16
        %v5188 = vrot.slane %v5186, 5
        %v5189 = vshll.u32 %v4952, 16
        %v5191 = vrot.slane %v5189, 6
        %v5192 = vor.u32 %v5188, %v5191
        %v5193 = vsel %vm4975, %v5184, %v5192
        %v5194 = vrot.slane %v5192, 4
        %v5196 = vshrl.u32 %v4953, 16
        %v5198 = vrot.slane %v5196, 5
        %v5199 = vshll.u32 %v4953, 16
        %v5201 = vrot.slane %v5199, 6
        %v5202 = vor.u32 %v5198, %v5201
        %v5203 = vsel %vm4975, %v5194, %v5202
        %v5204 = vrot.slane %v5202, 4
        %v5206 = vshrl.u32 %v4954, 16
        %v5208 = vrot.slane %v5206, 5
        %v5209 = vshll.u32 %v4954, 16
        %v5211 = vrot.slane %v5209, 6
        %v5212 = vor.u32 %v5208, %v5211
        %v5213 = vsel %vm4975, %v5204, %v5212
        %v5214 = vrot.slane %v5212, 4
        %v5216 = vshrl.u32 %v4955, 16
        %v5218 = vrot.slane %v5216, 5
        %v5219 = vshll.u32 %v4955, 16
        %v5221 = vrot.slane %v5219, 6
        %v5222 = vor.u32 %v5218, %v5221
        %v5223 = vsel %vm4975, %v5214, %v5222
        %v5224 = vrot.slane %v5222, 4
        %v5226 = vshrl.u32 %v4956, 16
        %v5228 = vrot.slane %v5226, 5
        %v5229 = vshll.u32 %v4956, 16
        %v5231 = vrot.slane %v5229, 6
        %v5232 = vor.u32 %v5228, %v5231
        %v5233 = vsel %vm4975, %v5224, %v5232
        %v5234 = vrot.slane %v5232, 4
        %v5236 = vshrl.u32 %v4957, 16
        %v5238 = vrot.slane %v5236, 5
        %v5239 = vshll.u32 %v4957, 16
        %v5241 = vrot.slane %v5239, 6
        %v5242 = vor.u32 %v5238, %v5241
        %v5243 = vsel %vm4975, %v5234, %v5242
        %v5244 = vrot.slane %v5242, 4
        %v5246 = vshrl.u32 %v4958, 16
        %v5248 = vrot.slane %v5246, 5
        %v5249 = vshll.u32 %v4958, 16
        %v5251 = vrot.slane %v5249, 6
        %v5252 = vor.u32 %v5248, %v5251
        %v5253 = vsel %vm4975, %v5244, %v5252
        %v5254 = vrot.slane %v5252, 4
        %v5256 = vshrl.u32 %v4959, 16
        %v5258 = vrot.slane %v5256, 5
        %v5259 = vshll.u32 %v4959, 16
        %v5261 = vrot.slane %v5259, 6
        %v5262 = vor.u32 %v5258, %v5261
        %v5263 = vsel %vm4975, %v5254, %v5262
        %v5264 = vrot.slane %v5262, 4
        %v5266 = vshrl.u32 %v4960, 16
        %v5268 = vrot.slane %v5266, 5
        %v5269 = vshll.u32 %v4960, 16
        %v5271 = vrot.slane %v5269, 6
        %v5272 = vor.u32 %v5268, %v5271
        %v5273 = vsel %vm4975, %v5264, %v5272
        %v5274 = vrot.slane %v5272, 4
        %v5276 = vshrl.u32 %v4961, 16
        %v5278 = vrot.slane %v5276, 5
        %v5279 = vshll.u32 %v4961, 16
        %v5281 = vrot.slane %v5279, 6
        %v5282 = vor.u32 %v5278, %v5281
        %v5283 = vsel %vm4975, %v5274, %v5282
        %v5284 = vrot.slane %v5282, 4
        %v5286 = vshrl.u32 %v4962, 16
        %v5288 = vrot.slane %v5286, 5
        %v5289 = vshll.u32 %v4962, 16
        %v5291 = vrot.slane %v5289, 6
        %v5292 = vor.u32 %v5288, %v5291
        %v5293 = vsel %vm4975, %v5284, %v5292
        %v5294 = vrot.slane %v5292, 4
        %v5296 = vshrl.u32 %v4963, 16
        %v5298 = vrot.slane %v5296, 5
        %v5299 = vshll.u32 %v4963, 16
        %v5301 = vrot.slane %v5299, 6
        %v5302 = vor.u32 %v5298, %v5301
        %v5303 = vsel %vm4975, %v5294, %v5302
        %v5304 = vrot.slane %v5302, 4
        %v5306 = vshrl.u32 %v4964, 16
        %v5308 = vrot.slane %v5306, 5
        %v5309 = vshll.u32 %v4964, 16
        %v5311 = vrot.slane %v5309, 6
        %v5312 = vor.u32 %v5308, %v5311
        %v5313 = vsel %vm4975, %v5304, %v5312
        %v5314 = vrot.slane %v5312, 4
        %v5316 = vshrl.u32 %v4965, 16
        %v5318 = vrot.slane %v5316, 5
        %v5319 = vshll.u32 %v4965, 16
        %v5321 = vrot.slane %v5319, 6
        %v5322 = vor.u32 %v5318, %v5321
        %v5323 = vsel %vm4975, %v5314, %v5322
        %v5324 = vrot.slane %v5322, 4
        %v5326 = vshrl.u32 %v4966, 16
        %v5328 = vrot.slane %v5326, 5
        %v5329 = vshll.u32 %v4966, 16
        %v5331 = vrot.slane %v5329, 6
        %v5332 = vor.u32 %v5328, %v5331
        %v5333 = vsel %vm4975, %v5324, %v5332
        %v5334 = vrot.slane %v5332, 4
        %v5336 = vshrl.u32 %v4967, 16
        %v5338 = vrot.slane %v5336, 5
        %v5339 = vshll.u32 %v4967, 16
        %v5341 = vrot.slane %v5339, 6
        %v5342 = vor.u32 %v5338, %v5341
        %v5343 = vsel %vm4975, %v5334, %v5342
        %v5344 = vrot.slane %v5342, 4
        %v5346 = vshrl.u32 %v4968, 16
        %v5348 = vrot.slane %v5346, 5
        %v5349 = vshll.u32 %v4968, 16
        %v5351 = vrot.slane %v5349, 6
        %v5352 = vor.u32 %v5348, %v5351
        %v5353 = vsel %vm4975, %v5344, %v5352
        %v5354 = vrot.slane %v5352, 4
        %v5356 = vshrl.u32 %v4969, 16
        %v5358 = vrot.slane %v5356, 5
        %v5359 = vshll.u32 %v4969, 16
        %v5361 = vrot.slane %v5359, 6
        %v5362 = vor.u32 %v5358, %v5361
        %v5363 = vsel %vm4975, %v5354, %v5362
        %v5364 = vrot.slane %v5362, 4
        %v5366 = vshrl.u32 %v4970, 16
        %v5368 = vrot.slane %v5366, 5
        %v5369 = vshll.u32 %v4970, 16
        %v5371 = vrot.slane %v5369, 6
        %v5372 = vor.u32 %v5368, %v5371
        %v5373 = vsel %vm4975, %v5364, %v5372
        %v5374 = vrot.slane %v5372, 4
        %v5376 = vshrl.u32 %v4971, 16
        %v5378 = vrot.slane %v5376, 5
        %v5379 = vshll.u32 %v4971, 16
        %v5381 = vrot.slane %v5379, 6
        %v5382 = vor.u32 %v5378, %v5381
        %v5383 = vsel %vm4975, %v5374, %v5382
        %v5384 = vrot.slane %v5382, 4
        %v5386 = vshrl.u32 %v4972, 16
        %v5388 = vrot.slane %v5386, 5
        %v5389 = vshll.u32 %v4972, 16
        %v5391 = vrot.slane %v5389, 6
        %v5392 = vor.u32 %v5388, %v5391
        %v5393 = vsel %vm4975, %v5384, %v5392
        %5435 = vst.msk [vmem:[#allocation3 + $0x10] sm:$0xf] %vm1121, %v4993
        %5436 = vst.msk [vmem:[#allocation3 + $0x24] sm:$0xf] %vm1121, %v5003
        %5437 = vst.msk [vmem:[#allocation3 + $0x38] sm:$0xf] %vm1121, %v5013
        %5438 = vst.msk [vmem:[#allocation3 + $0x4c] sm:$0xf] %vm1121, %v5023
        %5439 = vst.msk [vmem:[#allocation3 + $0x60] sm:$0xf] %vm1121, %v5033
        %5440 = vst.msk [vmem:[#allocation3 + $0x74] sm:$0xf] %vm1121, %v5043
        %5441 = vst.msk [vmem:[#allocation3 + $0x88] sm:$0xf] %vm1121, %v5053
        %5442 = vst.msk [vmem:[#allocation3 + $0x9c] sm:$0xf] %vm1121, %v5063
        %5443 = vst.msk [vmem:[#allocation3 + $0xb0] sm:$0xf] %vm1121, %v5073
        %5444 = vst.msk [vmem:[#allocation3 + $0xc4] sm:$0xf] %vm1121, %v5083
        %5445 = vst.msk [vmem:[#allocation3 + $0xd8] sm:$0xf] %vm1121, %v5093
        %5446 = vst.msk [vmem:[#allocation3 + $0xec] sm:$0xf] %vm1121, %v5103
        %5447 = vst.msk [vmem:[#allocation3 + $0x100] sm:$0xf] %vm1121, %v5113
        %5448 = vst.msk [vmem:[#allocation3 + $0x114] sm:$0xf] %vm1121, %v5123
        %5449 = vst.msk [vmem:[#allocation3 + $0x128] sm:$0xf] %vm1121, %v5133
        %5450 = vst.msk [vmem:[#allocation3 + $0x13c] sm:$0xf] %vm1121, %v5143
        %5451 = vst.msk [vmem:[#allocation3 + $0x150] sm:$0xf] %vm1121, %v5153
        %5452 = vst.msk [vmem:[#allocation3 + $0x164] sm:$0xf] %vm1121, %v5163
        %5453 = vst.msk [vmem:[#allocation3 + $0x178] sm:$0xf] %vm1121, %v5173
        %5454 = vst.msk [vmem:[#allocation3 + $0x18c] sm:$0xf] %vm1121, %v5183
        %5455 = vst.msk [vmem:[#allocation3 + $0x1a0] sm:$0xf] %vm1121, %v5193
        %5456 = vst.msk [vmem:[#allocation3 + $0x1b4] sm:$0xf] %vm1121, %v5203
        %5457 = vst.msk [vmem:[#allocation3 + $0x1c8] sm:$0xf] %vm1121, %v5213
        %5458 = vst.msk [vmem:[#allocation3 + $0x1dc] sm:$0xf] %vm1121, %v5223
        %5459 = vst.msk [vmem:[#allocation3 + $0x1f0] sm:$0xf] %vm1121, %v5233
        %5460 = vst.msk [vmem:[#allocation3 + $0x204] sm:$0xf] %vm1121, %v5243
        %5461 = vst.msk [vmem:[#allocation3 + $0x218] sm:$0xf] %vm1121, %v5253
        %5462 = vst.msk [vmem:[#allocation3 + $0x22c] sm:$0xf] %vm1121, %v5263
        %5463 = vst.msk [vmem:[#allocation3 + $0x240] sm:$0xf] %vm1121, %v5273
        %5464 = vst.msk [vmem:[#allocation3 + $0x254] sm:$0xf] %vm1121, %v5283
        %5465 = vst.msk [vmem:[#allocation3 + $0x268] sm:$0xf] %vm1121, %v5293
        %5466 = vst.msk [vmem:[#allocation3 + $0x27c] sm:$0xf] %vm1121, %v5303
        %5467 = vst.msk [vmem:[#allocation3 + $0x290] sm:$0xf] %vm1121, %v5313
        %5468 = vst.msk [vmem:[#allocation3 + $0x2a4] sm:$0xf] %vm1121, %v5323
        %5469 = vst.msk [vmem:[#allocation3 + $0x2b8] sm:$0xf] %vm1121, %v5333
        %5470 = vst.msk [vmem:[#allocation3 + $0x2cc] sm:$0xf] %vm1121, %v5343
        %5471 = vst.msk [vmem:[#allocation3 + $0x2e0] sm:$0xf] %vm1121, %v5353
        %5472 = vst.msk [vmem:[#allocation3 + $0x2f4] sm:$0xf] %vm1121, %v5363
        %5473 = vst.msk [vmem:[#allocation3 + $0x308] sm:$0xf] %vm1121, %v5373
        %5474 = vst.msk [vmem:[#allocation3 + $0x31c] sm:$0xf] %vm1121, %v5383
        %5475 = vst.msk [vmem:[#allocation3 + $0x330] sm:$0xf] %vm1121, %v5393
        %v5476 = vld [vmem:[#allocation3] sm:$0xff]
        %v5477 = vld [vmem:[#allocation3 + $0x8] sm:$0xff]
        %v5478 = vld [vmem:[#allocation3 + $0x10] sm:$0xf]
        %v5479 = vld [vmem:[#allocation3 + $0x14] sm:$0xff]
        %v5480 = vld [vmem:[#allocation3 + $0x1c] sm:$0xff]
        %v5481 = vld [vmem:[#allocation3 + $0x24] sm:$0xf]
        %v5482 = vld [vmem:[#allocation3 + $0x28] sm:$0xff]
        %v5483 = vld [vmem:[#allocation3 + $0x30] sm:$0xff]
        %v5484 = vld [vmem:[#allocation3 + $0x38] sm:$0xf]
        %v5485 = vld [vmem:[#allocation3 + $0x3c] sm:$0xff]
        %v5486 = vld [vmem:[#allocation3 + $0x44] sm:$0xff]
        %v5487 = vld [vmem:[#allocation3 + $0x4c] sm:$0xf]
        %v5488 = vld [vmem:[#allocation3 + $0x50] sm:$0xff]
        %v5489 = vld [vmem:[#allocation3 + $0x58] sm:$0xff]
        %v5490 = vld [vmem:[#allocation3 + $0x60] sm:$0xf]
        %v5491 = vld [vmem:[#allocation3 + $0x64] sm:$0xff]
        %v5492 = vld [vmem:[#allocation3 + $0x6c] sm:$0xff]
        %v5493 = vld [vmem:[#allocation3 + $0x74] sm:$0xf]
        %v5494 = vld [vmem:[#allocation3 + $0x78] sm:$0xff]
        %v5495 = vld [vmem:[#allocation3 + $0x80] sm:$0xff]
        %v5496 = vld [vmem:[#allocation3 + $0x88] sm:$0xf]
        %v5497 = vld [vmem:[#allocation3 + $0x8c] sm:$0xff]
        %v5498 = vld [vmem:[#allocation3 + $0x94] sm:$0xff]
        %v5499 = vld [vmem:[#allocation3 + $0x9c] sm:$0xf]
        %v5500 = vld [vmem:[#allocation3 + $0xa0] sm:$0xff]
        %v5501 = vld [vmem:[#allocation3 + $0xa8] sm:$0xff]
        %v5502 = vld [vmem:[#allocation3 + $0xb0] sm:$0xf]
        %v5503 = vld [vmem:[#allocation3 + $0xb4] sm:$0xff]
        %v5504 = vld [vmem:[#allocation3 + $0xbc] sm:$0xff]
        %v5505 = vld [vmem:[#allocation3 + $0xc4] sm:$0xf]
        %v5506 = vld [vmem:[#allocation3 + $0xc8] sm:$0xff]
        %v5507 = vld [vmem:[#allocation3 + $0xd0] sm:$0xff]
        %v5508 = vld [vmem:[#allocation3 + $0xd8] sm:$0xf]
        %v5509 = vld [vmem:[#allocation3 + $0xdc] sm:$0xff]
        %v5510 = vld [vmem:[#allocation3 + $0xe4] sm:$0xff]
        %v5511 = vld [vmem:[#allocation3 + $0xec] sm:$0xf]
        %v5512 = vld [vmem:[#allocation3 + $0xf0] sm:$0xff]
        %v5513 = vld [vmem:[#allocation3 + $0xf8] sm:$0xff]
        %v5514 = vld [vmem:[#allocation3 + $0x100] sm:$0xf]
        %v5515 = vld [vmem:[#allocation3 + $0x104] sm:$0xff]
        %v5516 = vld [vmem:[#allocation3 + $0x10c] sm:$0xff]
        %v5517 = vld [vmem:[#allocation3 + $0x114] sm:$0xf]
        %v5518 = vld [vmem:[#allocation3 + $0x118] sm:$0xff]
        %v5519 = vld [vmem:[#allocation3 + $0x120] sm:$0xff]
        %v5520 = vld [vmem:[#allocation3 + $0x128] sm:$0xf]
        %v5521 = vld [vmem:[#allocation3 + $0x12c] sm:$0xff]
        %v5522 = vld [vmem:[#allocation3 + $0x134] sm:$0xff]
        %v5523 = vld [vmem:[#allocation3 + $0x13c] sm:$0xf]
        %v5524 = vld [vmem:[#allocation3 + $0x140] sm:$0xff]
        %v5525 = vld [vmem:[#allocation3 + $0x148] sm:$0xff]
        %v5526 = vld [vmem:[#allocation3 + $0x150] sm:$0xf]
        %v5527 = vld [vmem:[#allocation3 + $0x154] sm:$0xff]
        %v5528 = vld [vmem:[#allocation3 + $0x15c] sm:$0xff]
        %v5529 = vld [vmem:[#allocation3 + $0x164] sm:$0xf]
        %v5530 = vld [vmem:[#allocation3 + $0x168] sm:$0xff]
        %v5531 = vld [vmem:[#allocation3 + $0x170] sm:$0xff]
        %v5532 = vld [vmem:[#allocation3 + $0x178] sm:$0xf]
        %v5533 = vld [vmem:[#allocation3 + $0x17c] sm:$0xff]
        %v5534 = vld [vmem:[#allocation3 + $0x184] sm:$0xff]
        %v5535 = vld [vmem:[#allocation3 + $0x18c] sm:$0xf]
        %v5536 = vld [vmem:[#allocation3 + $0x190] sm:$0xff]
        %v5537 = vld [vmem:[#allocation3 + $0x198] sm:$0xff]
        %v5538 = vld [vmem:[#allocation3 + $0x1a0] sm:$0xf]
        %v5539 = vld [vmem:[#allocation3 + $0x1a4] sm:$0xff]
        %v5540 = vld [vmem:[#allocation3 + $0x1ac] sm:$0xff]
        %v5541 = vld [vmem:[#allocation3 + $0x1b4] sm:$0xf]
        %v5542 = vld [vmem:[#allocation3 + $0x1b8] sm:$0xff]
        %v5543 = vld [vmem:[#allocation3 + $0x1c0] sm:$0xff]
        %v5544 = vld [vmem:[#allocation3 + $0x1c8] sm:$0xf]
        %v5545 = vld [vmem:[#allocation3 + $0x1cc] sm:$0xff]
        %v5546 = vld [vmem:[#allocation3 + $0x1d4] sm:$0xff]
        %v5547 = vld [vmem:[#allocation3 + $0x1dc] sm:$0xf]
        %v5548 = vld [vmem:[#allocation3 + $0x1e0] sm:$0xff]
        %v5549 = vld [vmem:[#allocation3 + $0x1e8] sm:$0xff]
        %v5550 = vld [vmem:[#allocation3 + $0x1f0] sm:$0xf]
        %v5551 = vld [vmem:[#allocation3 + $0x1f4] sm:$0xff]
        %v5552 = vld [vmem:[#allocation3 + $0x1fc] sm:$0xff]
        %v5553 = vld [vmem:[#allocation3 + $0x204] sm:$0xf]
        %v5554 = vld [vmem:[#allocation3 + $0x208] sm:$0xff]
        %v5555 = vld [vmem:[#allocation3 + $0x210] sm:$0xff]
        %v5556 = vld [vmem:[#allocation3 + $0x218] sm:$0xf]
        %v5557 = vld [vmem:[#allocation3 + $0x21c] sm:$0xff]
        %v5558 = vld [vmem:[#allocation3 + $0x224] sm:$0xff]
        %v5559 = vld [vmem:[#allocation3 + $0x22c] sm:$0xf]
        %v5560 = vld [vmem:[#allocation3 + $0x230] sm:$0xff]
        %v5561 = vld [vmem:[#allocation3 + $0x238] sm:$0xff]
        %v5562 = vld [vmem:[#allocation3 + $0x240] sm:$0xf]
        %v5563 = vld [vmem:[#allocation3 + $0x244] sm:$0xff]
        %v5564 = vld [vmem:[#allocation3 + $0x24c] sm:$0xff]
        %v5565 = vld [vmem:[#allocation3 + $0x254] sm:$0xf]
        %v5566 = vld [vmem:[#allocation3 + $0x258] sm:$0xff]
        %v5567 = vld [vmem:[#allocation3 + $0x260] sm:$0xff]
        %v5568 = vld [vmem:[#allocation3 + $0x268] sm:$0xf]
        %v5569 = vld [vmem:[#allocation3 + $0x26c] sm:$0xff]
        %v5570 = vld [vmem:[#allocation3 + $0x274] sm:$0xff]
        %v5571 = vld [vmem:[#allocation3 + $0x27c] sm:$0xf]
        %v5572 = vld [vmem:[#allocation3 + $0x280] sm:$0xff]
        %v5573 = vld [vmem:[#allocation3 + $0x288] sm:$0xff]
        %v5574 = vld [vmem:[#allocation3 + $0x290] sm:$0xf]
        %v5575 = vld [vmem:[#allocation3 + $0x294] sm:$0xff]
        %v5576 = vld [vmem:[#allocation3 + $0x29c] sm:$0xff]
        %v5577 = vld [vmem:[#allocation3 + $0x2a4] sm:$0xf]
        %v5578 = vld [vmem:[#allocation3 + $0x2a8] sm:$0xff]
        %v5579 = vld [vmem:[#allocation3 + $0x2b0] sm:$0xff]
        %v5580 = vld [vmem:[#allocation3 + $0x2b8] sm:$0xf]
        %v5581 = vld [vmem:[#allocation3 + $0x2bc] sm:$0xff]
        %v5582 = vld [vmem:[#allocation3 + $0x2c4] sm:$0xff]
        %v5583 = vld [vmem:[#allocation3 + $0x2cc] sm:$0xf]
        %v5584 = vld [vmem:[#allocation3 + $0x2d0] sm:$0xff]
        %v5585 = vld [vmem:[#allocation3 + $0x2d8] sm:$0xff]
        %v5586 = vld [vmem:[#allocation3 + $0x2e0] sm:$0xf]
        %v5587 = vld [vmem:[#allocation3 + $0x2e4] sm:$0xff]
        %v5588 = vld [vmem:[#allocation3 + $0x2ec] sm:$0xff]
        %v5589 = vld [vmem:[#allocation3 + $0x2f4] sm:$0xf]
        %v5590 = vld [vmem:[#allocation3 + $0x2f8] sm:$0xff]
        %v5591 = vld [vmem:[#allocation3 + $0x300] sm:$0xff]
        %v5592 = vld [vmem:[#allocation3 + $0x308] sm:$0xf]
        %v5593 = vld [vmem:[#allocation3 + $0x30c] sm:$0xff]
        %v5594 = vld [vmem:[#allocation3 + $0x314] sm:$0xff]
        %v5595 = vld [vmem:[#allocation3 + $0x31c] sm:$0xf]
        %v5596 = vld [vmem:[#allocation3 + $0x320] sm:$0xff]
        %v5597 = vld [vmem:[#allocation3 + $0x328] sm:$0xff]
        %v5598 = vld [vmem:[#allocation3 + $0x330] sm:$0xf]
        %v5599 = vld [vmem:[%s4] sm:$0xf]
        %v5600 = vld [vmem:[%s4 + $0x4] sm:$0xf]
        %v5601 = vld [vmem:[%s4 + $0x8] sm:$0xf]
        %v5602 = vld [vmem:[%s4 + $0xc] sm:$0xf]
        %v5603 = vld [vmem:[%s4 + $0x10] sm:$0xf]
        %v5604 = vld [vmem:[%s4 + $0x14] sm:$0xf]
        %v5605 = vld [vmem:[%s4 + $0x18] sm:$0xf]
        %v5606 = vld [vmem:[%s4 + $0x1c] sm:$0xf]
        %v5607 = vld [vmem:[%s4 + $0x20] sm:$0xf]
        %v5608 = vld [vmem:[%s4 + $0x24] sm:$0xf]
        %v5609 = vld [vmem:[%s4 + $0x28] sm:$0xf]
        %v5610 = vld [vmem:[%s4 + $0x2c] sm:$0xf]
        %v5611 = vld [vmem:[%s4 + $0x30] sm:$0xf]
        %v5612 = vld [vmem:[%s4 + $0x34] sm:$0xf]
        %v5613 = vld [vmem:[%s4 + $0x38] sm:$0xf]
        %v5614 = vld [vmem:[%s4 + $0x3c] sm:$0xf]
        %v5615 = vld [vmem:[%s4 + $0x40] sm:$0xf]
        %v5616 = vld [vmem:[%s4 + $0x44] sm:$0xf]
        %v5617 = vld [vmem:[%s4 + $0x48] sm:$0xf]
        %v5618 = vld [vmem:[%s4 + $0x4c] sm:$0xf]
        %v5619 = vld [vmem:[%s4 + $0x50] sm:$0xf]
        %v5620 = vld [vmem:[%s4 + $0x54] sm:$0xf]
        %v5621 = vld [vmem:[%s4 + $0x58] sm:$0xf]
        %v5622 = vld [vmem:[%s4 + $0x5c] sm:$0xf]
        %v5623 = vld [vmem:[%s4 + $0x60] sm:$0xf]
        %v5624 = vld [vmem:[%s4 + $0x64] sm:$0xf]
        %v5625 = vld [vmem:[%s4 + $0x68] sm:$0xf]
        %v5626 = vld [vmem:[%s4 + $0x6c] sm:$0xf]
        %v5627 = vld [vmem:[%s4 + $0x70] sm:$0xf]
        %v5628 = vld [vmem:[%s4 + $0x74] sm:$0xf]
        %v5629 = vld [vmem:[%s4 + $0x78] sm:$0xf]
        %v5630 = vld [vmem:[%s4 + $0x7c] sm:$0xf]
        %v5631 = vld [vmem:[%s4 + $0x80] sm:$0xf]
        %v5632 = vld [vmem:[%s4 + $0x84] sm:$0xf]
        %v5633 = vld [vmem:[%s4 + $0x88] sm:$0xf]
        %v5634 = vld [vmem:[%s4 + $0x8c] sm:$0xf]
        %v5635 = vld [vmem:[%s4 + $0x90] sm:$0xf]
        %v5636 = vld [vmem:[%s4 + $0x94] sm:$0xf]
        %v5637 = vld [vmem:[%s4 + $0x98] sm:$0xf]
        %v5638 = vld [vmem:[%s4 + $0x9c] sm:$0xf]
        %v5639 = vld [vmem:[%s4 + $0xa0] sm:$0xf]
        %v5640 = vld [vmem:[%s4 + $0xa4] sm:$0xf]
        %v5641 = vld [vmem:[%s4 + $0xa8] sm:$0xf]
        %v5642 = vld [vmem:[%s4 + $0xac] sm:$0xf]
        %v5643 = vld [vmem:[%s4 + $0xb0] sm:$0xf]
        %v5644 = vld [vmem:[%s4 + $0xb4] sm:$0xf]
        %v5645 = vld [vmem:[%s4 + $0xb8] sm:$0xf]
        %v5646 = vld [vmem:[%s4 + $0xbc] sm:$0xf]
        %v5647 = vld [vmem:[%s4 + $0xc0] sm:$0xf]
        %v5648 = vld [vmem:[%s4 + $0xc4] sm:$0xf]
        %v5649 = vld [vmem:[%s4 + $0xc8] sm:$0xf]
        %v5650 = vld [vmem:[%s4 + $0xcc] sm:$0xf]
        %v5651 = vld [vmem:[%s4 + $0xd0] sm:$0xf]
        %v5652 = vld [vmem:[%s4 + $0xd4] sm:$0xf]
        %v5653 = vld [vmem:[%s4 + $0xd8] sm:$0xf]
        %v5654 = vld [vmem:[%s4 + $0xdc] sm:$0xf]
        %v5655 = vld [vmem:[%s4 + $0xe0] sm:$0xf]
        %v5656 = vld [vmem:[%s4 + $0xe4] sm:$0xf]
        %v5657 = vld [vmem:[%s4 + $0xe8] sm:$0xf]
        %v5658 = vld [vmem:[%s4 + $0xec] sm:$0xf]
        %v5659 = vld [vmem:[%s4 + $0xf0] sm:$0xf]
        %v5660 = vld [vmem:[%s4 + $0xf4] sm:$0xf]
        %v5661 = vld [vmem:[%s4 + $0xf8] sm:$0xf]
        %v5662 = vld [vmem:[%s4 + $0xfc] sm:$0xf]
        %v5663 = vld [vmem:[%s4 + $0x100] sm:$0xf]
        %v5664 = vld [vmem:[%s4 + $0x104] sm:$0xf]
        %v5665 = vld [vmem:[%s4 + $0x108] sm:$0xf]
        %v5666 = vld [vmem:[%s4 + $0x10c] sm:$0xf]
        %v5667 = vld [vmem:[%s4 + $0x110] sm:$0xf]
        %v5668 = vld [vmem:[%s4 + $0x114] sm:$0xf]
        %v5669 = vld [vmem:[%s4 + $0x118] sm:$0xf]
        %v5670 = vld [vmem:[%s4 + $0x11c] sm:$0xf]
        %v5671 = vld [vmem:[%s5] sm:$0x1]
        %v5673 = vlaneseq
        %v5674 = vshrl.u32 %v5673, 7
        %v5675 = vsub.s32 0, %v5674
        %v5676 = vrot.slane %v5671, %v5675
        %v5801 = vunpack.c.l.b16 %v5476
        %v5802 = vunpack.c.h.b16 %v5476
        %v5803 = vunpack.c.l.b16 %v5477
        %v5804 = vunpack.c.h.b16 %v5477
        %v5805 = vunpack.c.l.b16 %v5478
        %v5806 = vunpack.c.l.b16 %v5479
        %v5807 = vunpack.c.h.b16 %v5479
        %v5808 = vunpack.c.l.b16 %v5480
        %v5809 = vunpack.c.h.b16 %v5480
        %v5810 = vunpack.c.l.b16 %v5481
        %v5811 = vunpack.c.l.b16 %v5482
        %v5812 = vunpack.c.h.b16 %v5482
        %v5813 = vunpack.c.l.b16 %v5483
        %v5814 = vunpack.c.h.b16 %v5483
        %v5815 = vunpack.c.l.b16 %v5484
        %v5816 = vunpack.c.l.b16 %v5485
        %v5817 = vunpack.c.h.b16 %v5485
        %v5818 = vunpack.c.l.b16 %v5486
        %v5819 = vunpack.c.h.b16 %v5486
        %v5820 = vunpack.c.l.b16 %v5487
        %v5821 = vunpack.c.l.b16 %v5488
        %v5822 = vunpack.c.h.b16 %v5488
        %v5823 = vunpack.c.l.b16 %v5489
        %v5824 = vunpack.c.h.b16 %v5489
        %v5825 = vunpack.c.l.b16 %v5490
        %v5826 = vunpack.c.l.b16 %v5491
        %v5827 = vunpack.c.h.b16 %v5491
        %v5828 = vunpack.c.l.b16 %v5492
        %v5829 = vunpack.c.h.b16 %v5492
        %v5830 = vunpack.c.l.b16 %v5493
        %v5831 = vunpack.c.l.b16 %v5494
        %v5832 = vunpack.c.h.b16 %v5494
        %v5833 = vunpack.c.l.b16 %v5495
        %v5834 = vunpack.c.h.b16 %v5495
        %v5835 = vunpack.c.l.b16 %v5496
        %v5836 = vunpack.c.l.b16 %v5497
        %v5837 = vunpack.c.h.b16 %v5497
        %v5838 = vunpack.c.l.b16 %v5498
        %v5839 = vunpack.c.h.b16 %v5498
        %v5840 = vunpack.c.l.b16 %v5499
        %v5841 = vunpack.c.l.b16 %v5500
        %v5842 = vunpack.c.h.b16 %v5500
        %v5843 = vunpack.c.l.b16 %v5501
        %v5844 = vunpack.c.h.b16 %v5501
        %v5845 = vunpack.c.l.b16 %v5502
        %v5846 = vunpack.c.l.b16 %v5503
        %v5847 = vunpack.c.h.b16 %v5503
        %v5848 = vunpack.c.l.b16 %v5504
        %v5849 = vunpack.c.h.b16 %v5504
        %v5850 = vunpack.c.l.b16 %v5505
        %v5851 = vunpack.c.l.b16 %v5506
        %v5852 = vunpack.c.h.b16 %v5506
        %v5853 = vunpack.c.l.b16 %v5507
        %v5854 = vunpack.c.h.b16 %v5507
        %v5855 = vunpack.c.l.b16 %v5508
        %v5856 = vunpack.c.l.b16 %v5509
        %v5857 = vunpack.c.h.b16 %v5509
        %v5858 = vunpack.c.l.b16 %v5510
        %v5859 = vunpack.c.h.b16 %v5510
        %v5860 = vunpack.c.l.b16 %v5511
        %v5861 = vunpack.c.l.b16 %v5512
        %v5862 = vunpack.c.h.b16 %v5512
        %v5863 = vunpack.c.l.b16 %v5513
        %v5864 = vunpack.c.h.b16 %v5513
        %v5865 = vunpack.c.l.b16 %v5514
        %v5866 = vunpack.c.l.b16 %v5515
        %v5867 = vunpack.c.h.b16 %v5515
        %v5868 = vunpack.c.l.b16 %v5516
        %v5869 = vunpack.c.h.b16 %v5516
        %v5870 = vunpack.c.l.b16 %v5517
        %v5871 = vunpack.c.l.b16 %v5518
        %v5872 = vunpack.c.h.b16 %v5518
        %v5873 = vunpack.c.l.b16 %v5519
        %v5874 = vunpack.c.h.b16 %v5519
        %v5875 = vunpack.c.l.b16 %v5520
        %v5876 = vunpack.c.l.b16 %v5521
        %v5877 = vunpack.c.h.b16 %v5521
        %v5878 = vunpack.c.l.b16 %v5522
        %v5879 = vunpack.c.h.b16 %v5522
        %v5880 = vunpack.c.l.b16 %v5523
        %v5881 = vunpack.c.l.b16 %v5524
        %v5882 = vunpack.c.h.b16 %v5524
        %v5883 = vunpack.c.l.b16 %v5525
        %v5884 = vunpack.c.h.b16 %v5525
        %v5885 = vunpack.c.l.b16 %v5526
        %v5886 = vunpack.c.l.b16 %v5527
        %v5887 = vunpack.c.h.b16 %v5527
        %v5888 = vunpack.c.l.b16 %v5528
        %v5889 = vunpack.c.h.b16 %v5528
        %v5890 = vunpack.c.l.b16 %v5529
        %v5891 = vunpack.c.l.b16 %v5530
        %v5892 = vunpack.c.h.b16 %v5530
        %v5893 = vunpack.c.l.b16 %v5531
        %v5894 = vunpack.c.h.b16 %v5531
        %v5895 = vunpack.c.l.b16 %v5532
        %v5896 = vunpack.c.l.b16 %v5533
        %v5897 = vunpack.c.h.b16 %v5533
        %v5898 = vunpack.c.l.b16 %v5534
        %v5899 = vunpack.c.h.b16 %v5534
        %v5900 = vunpack.c.l.b16 %v5535
        %v5901 = vunpack.c.l.b16 %v5536
        %v5902 = vunpack.c.h.b16 %v5536
        %v5903 = vunpack.c.l.b16 %v5537
        %v5904 = vunpack.c.h.b16 %v5537
        %v5905 = vunpack.c.l.b16 %v5538
        %v5906 = vunpack.c.l.b16 %v5539
        %v5907 = vunpack.c.h.b16 %v5539
        %v5908 = vunpack.c.l.b16 %v5540
        %v5909 = vunpack.c.h.b16 %v5540
        %v5910 = vunpack.c.l.b16 %v5541
        %v5911 = vunpack.c.l.b16 %v5542
        %v5912 = vunpack.c.h.b16 %v5542
        %v5913 = vunpack.c.l.b16 %v5543
        %v5914 = vunpack.c.h.b16 %v5543
        %v5915 = vunpack.c.l.b16 %v5544
        %v5916 = vunpack.c.l.b16 %v5545
        %v5917 = vunpack.c.h.b16 %v5545
        %v5918 = vunpack.c.l.b16 %v5546
        %v5919 = vunpack.c.h.b16 %v5546
        %v5920 = vunpack.c.l.b16 %v5547
        %v5921 = vunpack.c.l.b16 %v5548
        %v5922 = vunpack.c.h.b16 %v5548
        %v5923 = vunpack.c.l.b16 %v5549
        %v5924 = vunpack.c.h.b16 %v5549
        %v5925 = vunpack.c.l.b16 %v5550
        %v5926 = vunpack.c.l.b16 %v5551
        %v5927 = vunpack.c.h.b16 %v5551
        %v5928 = vunpack.c.l.b16 %v5552
        %v5929 = vunpack.c.h.b16 %v5552
        %v5930 = vunpack.c.l.b16 %v5553
        %v5931 = vunpack.c.l.b16 %v5554
        %v5932 = vunpack.c.h.b16 %v5554
        %v5933 = vunpack.c.l.b16 %v5555
        %v5934 = vunpack.c.h.b16 %v5555
        %v5935 = vunpack.c.l.b16 %v5556
        %v5936 = vunpack.c.l.b16 %v5557
        %v5937 = vunpack.c.h.b16 %v5557
        %v5938 = vunpack.c.l.b16 %v5558
        %v5939 = vunpack.c.h.b16 %v5558
        %v5940 = vunpack.c.l.b16 %v5559
        %v5941 = vunpack.c.l.b16 %v5560
        %v5942 = vunpack.c.h.b16 %v5560
        %v5943 = vunpack.c.l.b16 %v5561
        %v5944 = vunpack.c.h.b16 %v5561
        %v5945 = vunpack.c.l.b16 %v5562
        %v5946 = vunpack.c.l.b16 %v5563
        %v5947 = vunpack.c.h.b16 %v5563
        %v5948 = vunpack.c.l.b16 %v5564
        %v5949 = vunpack.c.h.b16 %v5564
        %v5950 = vunpack.c.l.b16 %v5565
        %v5951 = vunpack.c.l.b16 %v5566
        %v5952 = vunpack.c.h.b16 %v5566
        %v5953 = vunpack.c.l.b16 %v5567
        %v5954 = vunpack.c.h.b16 %v5567
        %v5955 = vunpack.c.l.b16 %v5568
        %v5956 = vunpack.c.l.b16 %v5569
        %v5957 = vunpack.c.h.b16 %v5569
        %v5958 = vunpack.c.l.b16 %v5570
        %v5959 = vunpack.c.h.b16 %v5570
        %v5960 = vunpack.c.l.b16 %v5571
        %v5961 = vunpack.c.l.b16 %v5572
        %v5962 = vunpack.c.h.b16 %v5572
        %v5963 = vunpack.c.l.b16 %v5573
        %v5964 = vunpack.c.h.b16 %v5573
        %v5965 = vunpack.c.l.b16 %v5574
        %v5966 = vunpack.c.l.b16 %v5575
        %v5967 = vunpack.c.h.b16 %v5575
        %v5968 = vunpack.c.l.b16 %v5576
        %v5969 = vunpack.c.h.b16 %v5576
        %v5970 = vunpack.c.l.b16 %v5577
        %v5971 = vunpack.c.l.b16 %v5578
        %v5972 = vunpack.c.h.b16 %v5578
        %v5973 = vunpack.c.l.b16 %v5579
        %v5974 = vunpack.c.h.b16 %v5579
        %v5975 = vunpack.c.l.b16 %v5580
        %v5976 = vunpack.c.l.b16 %v5581
        %v5977 = vunpack.c.h.b16 %v5581
        %v5978 = vunpack.c.l.b16 %v5582
        %v5979 = vunpack.c.h.b16 %v5582
        %v5980 = vunpack.c.l.b16 %v5583
        %v5981 = vunpack.c.l.b16 %v5584
        %v5982 = vunpack.c.h.b16 %v5584
        %v5983 = vunpack.c.l.b16 %v5585
        %v5984 = vunpack.c.h.b16 %v5585
        %v5985 = vunpack.c.l.b16 %v5586
        %v5986 = vunpack.c.l.b16 %v5587
        %v5987 = vunpack.c.h.b16 %v5587
        %v5988 = vunpack.c.l.b16 %v5588
        %v5989 = vunpack.c.h.b16 %v5588
        %v5990 = vunpack.c.l.b16 %v5589
        %v5991 = vunpack.c.l.b16 %v5590
        %v5992 = vunpack.c.h.b16 %v5590
        %v5993 = vunpack.c.l.b16 %v5591
        %v5994 = vunpack.c.h.b16 %v5591
        %v5995 = vunpack.c.l.b16 %v5592
        %v5996 = vunpack.c.l.b16 %v5593
        %v5997 = vunpack.c.h.b16 %v5593
        %v5998 = vunpack.c.l.b16 %v5594
        %v5999 = vunpack.c.h.b16 %v5594
        %v6000 = vunpack.c.l.b16 %v5595
        %v6001 = vunpack.c.l.b16 %v5596
        %v6002 = vunpack.c.h.b16 %v5596
        %v6003 = vunpack.c.l.b16 %v5597
        %v6004 = vunpack.c.h.b16 %v5597
        %v6005 = vunpack.c.l.b16 %v5598
        %v6006 = vpack.c.b16 %v5806, %v5801
        %v6007 = vpack.c.b16 %v5807, %v5802
        %v6008 = vpack.c.b16 %v5808, %v5803
        %v6009 = vpack.c.b16 %v5809, %v5804
        %v6010 = vpack.c.b16 %v5810, %v5805
        %v6011 = vpack.c.b16 %v5816, %v5811
        %v6012 = vpack.c.b16 %v5817, %v5812
        %v6013 = vpack.c.b16 %v5818, %v5813
        %v6014 = vpack.c.b16 %v5819, %v5814
        %v6015 = vpack.c.b16 %v5820, %v5815
        %v6016 = vpack.c.b16 %v5826, %v5821
        %v6017 = vpack.c.b16 %v5827, %v5822
        %v6018 = vpack.c.b16 %v5828, %v5823
        %v6019 = vpack.c.b16 %v5829, %v5824
        %v6020 = vpack.c.b16 %v5830, %v5825
        %v6021 = vpack.c.b16 %v5836, %v5831
        %v6022 = vpack.c.b16 %v5837, %v5832
        %v6023 = vpack.c.b16 %v5838, %v5833
        %v6024 = vpack.c.b16 %v5839, %v5834
        %v6025 = vpack.c.b16 %v5840, %v5835
        %v6026 = vpack.c.b16 %v5846, %v5841
        %v6027 = vpack.c.b16 %v5847, %v5842
        %v6028 = vpack.c.b16 %v5848, %v5843
        %v6029 = vpack.c.b16 %v5849, %v5844
        %v6030 = vpack.c.b16 %v5850, %v5845
        %v6031 = vpack.c.b16 %v5856, %v5851
        %v6032 = vpack.c.b16 %v5857, %v5852
        %v6033 = vpack.c.b16 %v5858, %v5853
        %v6034 = vpack.c.b16 %v5859, %v5854
        %v6035 = vpack.c.b16 %v5860, %v5855
        %v6036 = vpack.c.b16 %v5866, %v5861
        %v6037 = vpack.c.b16 %v5867, %v5862
        %v6038 = vpack.c.b16 %v5868, %v5863
        %v6039 = vpack.c.b16 %v5869, %v5864
        %v6040 = vpack.c.b16 %v5870, %v5865
        %v6041 = vpack.c.b16 %v5876, %v5871
        %v6042 = vpack.c.b16 %v5877, %v5872
        %v6043 = vpack.c.b16 %v5878, %v5873
        %v6044 = vpack.c.b16 %v5879, %v5874
        %v6045 = vpack.c.b16 %v5880, %v5875
        %v6046 = vpack.c.b16 %v5886, %v5881
        %v6047 = vpack.c.b16 %v5887, %v5882
        %v6048 = vpack.c.b16 %v5888, %v5883
        %v6049 = vpack.c.b16 %v5889, %v5884
        %v6050 = vpack.c.b16 %v5890, %v5885
        %v6051 = vpack.c.b16 %v5896, %v5891
        %v6052 = vpack.c.b16 %v5897, %v5892
        %v6053 = vpack.c.b16 %v5898, %v5893
        %v6054 = vpack.c.b16 %v5899, %v5894
        %v6055 = vpack.c.b16 %v5900, %v5895
        %v6056 = vpack.c.b16 %v5906, %v5901
        %v6057 = vpack.c.b16 %v5907, %v5902
        %v6058 = vpack.c.b16 %v5908, %v5903
        %v6059 = vpack.c.b16 %v5909, %v5904
        %v6060 = vpack.c.b16 %v5910, %v5905
        %v6061 = vpack.c.b16 %v5916, %v5911
        %v6062 = vpack.c.b16 %v5917, %v5912
        %v6063 = vpack.c.b16 %v5918, %v5913
        %v6064 = vpack.c.b16 %v5919, %v5914
        %v6065 = vpack.c.b16 %v5920, %v5915
        %v6066 = vpack.c.b16 %v5926, %v5921
        %v6067 = vpack.c.b16 %v5927, %v5922
        %v6068 = vpack.c.b16 %v5928, %v5923
        %v6069 = vpack.c.b16 %v5929, %v5924
        %v6070 = vpack.c.b16 %v5930, %v5925
        %v6071 = vpack.c.b16 %v5936, %v5931
        %v6072 = vpack.c.b16 %v5937, %v5932
        %v6073 = vpack.c.b16 %v5938, %v5933
        %v6074 = vpack.c.b16 %v5939, %v5934
        %v6075 = vpack.c.b16 %v5940, %v5935
        %v6076 = vpack.c.b16 %v5946, %v5941
        %v6077 = vpack.c.b16 %v5947, %v5942
        %v6078 = vpack.c.b16 %v5948, %v5943
        %v6079 = vpack.c.b16 %v5949, %v5944
        %v6080 = vpack.c.b16 %v5950, %v5945
        %v6081 = vpack.c.b16 %v5956, %v5951
        %v6082 = vpack.c.b16 %v5957, %v5952
        %v6083 = vpack.c.b16 %v5958, %v5953
        %v6084 = vpack.c.b16 %v5959, %v5954
        %v6085 = vpack.c.b16 %v5960, %v5955
        %v6086 = vpack.c.b16 %v5966, %v5961
        %v6087 = vpack.c.b16 %v5967, %v5962
        %v6088 = vpack.c.b16 %v5968, %v5963
        %v6089 = vpack.c.b16 %v5969, %v5964
        %v6090 = vpack.c.b16 %v5970, %v5965
        %v6091 = vpack.c.b16 %v5976, %v5971
        %v6092 = vpack.c.b16 %v5977, %v5972
        %v6093 = vpack.c.b16 %v5978, %v5973
        %v6094 = vpack.c.b16 %v5979, %v5974
        %v6095 = vpack.c.b16 %v5980, %v5975
        %v6096 = vpack.c.b16 %v5986, %v5981
        %v6097 = vpack.c.b16 %v5987, %v5982
        %v6098 = vpack.c.b16 %v5988, %v5983
        %v6099 = vpack.c.b16 %v5989, %v5984
        %v6100 = vpack.c.b16 %v5990, %v5985
        %v6101 = vpack.c.b16 %v5996, %v5991
        %v6102 = vpack.c.b16 %v5997, %v5992
        %v6103 = vpack.c.b16 %v5998, %v5993
        %v6104 = vpack.c.b16 %v5999, %v5994
        %v6105 = vpack.c.b16 %v6000, %v5995
        %v6106 = vpack.c.b16 %v6001, %v6001
        %v6107 = vpack.c.b16 %v6002, %v6002
        %v6108 = vpack.c.b16 %v6003, %v6003
        %v6109 = vpack.c.b16 %v6004, %v6004
        %v6110 = vpack.c.b16 %v6005, %v6005
        %v6267 = vunpack.c.l.b16 %v5599
        %v6268 = vunpack.c.l.b16 %v5600
        %v6269 = vunpack.c.l.b16 %v5601
        %v6270 = vunpack.c.l.b16 %v5602
        %v6271 = vunpack.c.l.b16 %v5603
        %v6272 = vunpack.c.l.b16 %v5604
        %v6273 = vunpack.c.l.b16 %v5605
        %v6274 = vunpack.c.l.b16 %v5606
        %v6275 = vunpack.c.l.b16 %v5607
        %v6276 = vunpack.c.l.b16 %v5608
        %v6277 = vunpack.c.l.b16 %v5609
        %v6278 = vunpack.c.l.b16 %v5610
        %v6279 = vunpack.c.l.b16 %v5611
        %v6280 = vunpack.c.l.b16 %v5612
        %v6281 = vunpack.c.l.b16 %v5613
        %v6282 = vunpack.c.l.b16 %v5614
        %v6283 = vunpack.c.l.b16 %v5615
        %v6284 = vunpack.c.l.b16 %v5616
        %v6285 = vunpack.c.l.b16 %v5617
        %v6286 = vunpack.c.l.b16 %v5618
        %v6287 = vunpack.c.l.b16 %v5619
        %v6288 = vunpack.c.l.b16 %v5620
        %v6289 = vunpack.c.l.b16 %v5621
        %v6290 = vunpack.c.l.b16 %v5622
        %v6291 = vunpack.c.l.b16 %v5623
        %v6292 = vunpack.c.l.b16 %v5624
        %v6293 = vunpack.c.l.b16 %v5625
        %v6294 = vunpack.c.l.b16 %v5626
        %v6295 = vunpack.c.l.b16 %v5627
        %v6296 = vunpack.c.l.b16 %v5628
        %v6297 = vunpack.c.l.b16 %v5629
        %v6298 = vunpack.c.l.b16 %v5630
        %v6299 = vunpack.c.l.b16 %v5631
        %v6300 = vunpack.c.l.b16 %v5632
        %v6301 = vunpack.c.l.b16 %v5633
        %v6302 = vunpack.c.l.b16 %v5634
        %v6303 = vunpack.c.l.b16 %v5635
        %v6304 = vunpack.c.l.b16 %v5636
        %v6305 = vunpack.c.l.b16 %v5637
        %v6306 = vunpack.c.l.b16 %v5638
        %v6307 = vunpack.c.l.b16 %v5639
        %v6308 = vunpack.c.l.b16 %v5640
        %v6309 = vunpack.c.l.b16 %v5641
        %v6310 = vunpack.c.l.b16 %v5642
        %v6311 = vunpack.c.l.b16 %v5643
        %v6312 = vunpack.c.l.b16 %v5644
        %v6313 = vunpack.c.l.b16 %v5645
        %v6314 = vunpack.c.l.b16 %v5646
        %v6315 = vunpack.c.l.b16 %v5647
        %v6316 = vunpack.c.l.b16 %v5648
        %v6317 = vunpack.c.l.b16 %v5649
        %v6318 = vunpack.c.l.b16 %v5650
        %v6319 = vunpack.c.l.b16 %v5651
        %v6320 = vunpack.c.l.b16 %v5652
        %v6321 = vunpack.c.l.b16 %v5653
        %v6322 = vunpack.c.l.b16 %v5654
        %v6323 = vunpack.c.l.b16 %v5655
        %v6324 = vunpack.c.l.b16 %v5656
        %v6325 = vunpack.c.l.b16 %v5657
        %v6326 = vunpack.c.l.b16 %v5658
        %v6327 = vunpack.c.l.b16 %v5659
        %v6328 = vunpack.c.l.b16 %v5660
        %v6329 = vunpack.c.l.b16 %v5661
        %v6330 = vunpack.c.l.b16 %v5662
        %v6331 = vunpack.c.l.b16 %v5663
        %v6332 = vunpack.c.l.b16 %v5664
        %v6333 = vunpack.c.l.b16 %v5665
        %v6334 = vunpack.c.l.b16 %v5666
        %v6335 = vunpack.c.l.b16 %v5667
        %v6336 = vunpack.c.l.b16 %v5668
        %v6337 = vunpack.c.l.b16 %v5669
        %v6338 = vunpack.c.l.b16 %v5670
        %v6339 = vpack.c.b16 %v6268, %v6267
        %v6340 = vpack.c.b16 %v6270, %v6269
        %v6341 = vpack.c.b16 %v6272, %v6271
        %v6342 = vpack.c.b16 %v6274, %v6273
        %v6343 = vpack.c.b16 %v6276, %v6275
        %v6344 = vpack.c.b16 %v6278, %v6277
        %v6345 = vpack.c.b16 %v6280, %v6279
        %v6346 = vpack.c.b16 %v6282, %v6281
        %v6347 = vpack.c.b16 %v6284, %v6283
        %v6348 = vpack.c.b16 %v6286, %v6285
        %v6349 = vpack.c.b16 %v6288, %v6287
        %v6350 = vpack.c.b16 %v6290, %v6289
        %v6351 = vpack.c.b16 %v6292, %v6291
        %v6352 = vpack.c.b16 %v6294, %v6293
        %v6353 = vpack.c.b16 %v6296, %v6295
        %v6354 = vpack.c.b16 %v6298, %v6297
        %v6355 = vpack.c.b16 %v6300, %v6299
        %v6356 = vpack.c.b16 %v6302, %v6301
        %v6357 = vpack.c.b16 %v6304, %v6303
        %v6358 = vpack.c.b16 %v6306, %v6305
        %v6359 = vpack.c.b16 %v6308, %v6307
        %v6360 = vpack.c.b16 %v6310, %v6309
        %v6361 = vpack.c.b16 %v6312, %v6311
        %v6362 = vpack.c.b16 %v6314, %v6313
        %v6363 = vpack.c.b16 %v6316, %v6315
        %v6364 = vpack.c.b16 %v6318, %v6317
        %v6365 = vpack.c.b16 %v6320, %v6319
        %v6366 = vpack.c.b16 %v6322, %v6321
        %v6367 = vpack.c.b16 %v6324, %v6323
        %v6368 = vpack.c.b16 %v6326, %v6325
        %v6369 = vpack.c.b16 %v6328, %v6327
        %v6370 = vpack.c.b16 %v6330, %v6329
        %v6371 = vpack.c.b16 %v6332, %v6331
        %v6372 = vpack.c.b16 %v6334, %v6333
        %v6373 = vpack.c.b16 %v6336, %v6335
        %v6374 = vpack.c.b16 %v6338, %v6337
        %vm6411 = vcmask 523264
        %v6413 = vsel %vm6411, %v6010, 0
        %v6416 = vsel %vm6411, %v6015, 0
        %v6419 = vsel %vm6411, %v6020, 0
        %v6422 = vsel %vm6411, %v6025, 0
        %v6425 = vsel %vm6411, %v6030, 0
        %v6428 = vsel %vm6411, %v6035, 0
        %v6431 = vsel %vm6411, %v6040, 0
        %v6434 = vsel %vm6411, %v6045, 0
        %v6437 = vsel %vm6411, %v6050, 0
        %v6440 = vsel %vm6411, %v6055, 0
        %v6443 = vsel %vm6411, %v6060, 0
        %v6446 = vsel %vm6411, %v6065, 0
        %v6449 = vsel %vm6411, %v6070, 0
        %v6452 = vsel %vm6411, %v6075, 0
        %v6455 = vsel %vm6411, %v6080, 0
        %v6458 = vsel %vm6411, %v6085, 0
        %v6461 = vsel %vm6411, %v6090, 0
        %v6464 = vsel %vm6411, %v6095, 0
        %v6467 = vsel %vm6411, %v6100, 0
        %v6470 = vsel %vm6411, %v6105, 0
        %v6473 = vsel %vm6411, %v6110, 0
        %6475 = vmatprep.subr.bf16.mxu0 0
        %6476 = vmatpush1.bf16.msra.mxu0 %v6339
        %6477 = vmatprep.subr.bf16.mxu0 0
        %6478 = vmatpush1.bf16.msra.mxu0 %v6340
        %6479 = vmatprep.subr.bf16.mxu0 0
        %6480 = vmatpush1.bf16.msra.mxu0 %v6341
        %6481 = vmatprep.subr.bf16.mxu0 0
        %6482 = vmatpush1.bf16.msra.mxu0 %v6342
        %6483 = vmatprep.subr.bf16.mxu0 0
        %6484 = vmatpush1.bf16.msra.mxu0 %v6343
        %6485 = vmatprep.subr.bf16.mxu0 0
        %6486 = vmatpush1.bf16.msra.mxu0 %v6344
        %6487 = vmatprep.subr.bf16.mxu0 0
        %6488 = vmatpush1.bf16.msra.mxu0 %v6345
        %6489 = vmatprep.subr.bf16.mxu0 0
        %6490 = vmatpush1.bf16.msra.mxu0 %v6346
        %6491 = vmatprep.subr.bf16.mxu0 0
        %6492 = vmatpush1.bf16.msra.mxu0 %v6347
        %6493 = vmatprep.subr.bf16.mxu0 0
        %6494 = vmatpush1.bf16.msra.mxu0 %v6348
        %6495 = vmatprep.subr.bf16.mxu0 0
        %6496 = vmatpush1.bf16.msra.mxu0 %v6349
        %6497 = vmatprep.subr.bf16.mxu0 0
        %6498 = vmatpush1.bf16.msra.mxu0 %v6350
        %6499 = vmatprep.subr.bf16.mxu0 0
        %6500 = vmatpush1.bf16.msra.mxu0 %v6351
        %6501 = vmatprep.subr.bf16.mxu0 0
        %6502 = vmatpush1.bf16.msra.mxu0 %v6352
        %6503 = vmatprep.subr.bf16.mxu0 0
        %6504 = vmatpush1.bf16.msra.mxu0 %v6353
        %6505 = vmatprep.subr.bf16.mxu0 0
        %6506 = vmatpush1.bf16.msra.mxu0 %v6354
        %6507 = vmatprep.mubr.bf16.mxu0 %v6007
        %6508 = vmatmul.mubr.bf16.gmra.mrb[0].mxu0 %v6006
        %v6509 = vpop.f32.mrb[0].mxu0
        %v6510 = vadd.f32 %v5676, %v6509
        %v6511 = vpop.f32.mrb[0].mxu0
        %v6512 = vpop.f32.mrb[0].mxu0
        %v6513 = vadd.f32 %v5676, %v6512
        %v6514 = vpop.f32.mrb[0].mxu0
        %6515 = vmatprep.mubr.bf16.mxu0 %v6012
        %6516 = vmatmul.mubr.bf16.gmra.mrb[0].mxu0 %v6011
        %v6517 = vpop.f32.mrb[0].mxu0
        %v6518 = vadd.f32 %v5676, %v6517
        %v6519 = vpop.f32.mrb[0].mxu0
        %v6520 = vpop.f32.mrb[0].mxu0
        %v6521 = vadd.f32 %v5676, %v6520
        %v6522 = vpop.f32.mrb[0].mxu0
        %6523 = vmatprep.mubr.bf16.mxu0 %v6017
        %6524 = vmatmul.mubr.bf16.gmra.mrb[0].mxu0 %v6016
        %v6525 = vpop.f32.mrb[0].mxu0
        %v6526 = vadd.f32 %v5676, %v6525
        %v6527 = vpop.f32.mrb[0].mxu0
        %v6528 = vpop.f32.mrb[0].mxu0
        %v6529 = vadd.f32 %v5676, %v6528
        %v6530 = vpop.f32.mrb[0].mxu0
        %6531 = vmatprep.mubr.bf16.mxu0 %v6022
        %6532 = vmatmul.mubr.bf16.gmra.mrb[0].mxu0 %v6021
        %v6533 = vpop.f32.mrb[0].mxu0
        %v6534 = vadd.f32 %v5676, %v6533
        %v6535 = vpop.f32.mrb[0].mxu0
        %v6536 = vpop.f32.mrb[0].mxu0
        %v6537 = vadd.f32 %v5676, %v6536
        %v6538 = vpop.f32.mrb[0].mxu0
        %6539 = vmatprep.mubr.bf16.mxu0 %v6027
        %6540 = vmatmul.mubr.bf16.gmra.mrb[0].mxu0 %v6026
        %v6541 = vpop.f32.mrb[0].mxu0
        %v6542 = vadd.f32 %v5676, %v6541
        %v6543 = vpop.f32.mrb[0].mxu0
        %v6544 = vpop.f32.mrb[0].mxu0
        %v6545 = vadd.f32 %v5676, %v6544
        %v6546 = vpop.f32.mrb[0].mxu0
        %6547 = vmatprep.mubr.bf16.mxu0 %v6032
        %6548 = vmatmul.mubr.bf16.gmra.mrb[0].mxu0 %v6031
        %v6549 = vpop.f32.mrb[0].mxu0
        %v6550 = vadd.f32 %v5676, %v6549
        %v6551 = vpop.f32.mrb[0].mxu0
        %v6552 = vpop.f32.mrb[0].mxu0
        %v6553 = vadd.f32 %v5676, %v6552
        %v6554 = vpop.f32.mrb[0].mxu0
        %6555 = vmatprep.mubr.bf16.mxu0 %v6037
        %6556 = vmatmul.mubr.bf16.gmra.mrb[0].mxu0 %v6036
        %v6557 = vpop.f32.mrb[0].mxu0
        %v6558 = vadd.f32 %v5676, %v6557
        %v6559 = vpop.f32.mrb[0].mxu0
        %v6560 = vpop.f32.mrb[0].mxu0
        %v6561 = vadd.f32 %v5676, %v6560
        %v6562 = vpop.f32.mrb[0].mxu0
        %6563 = vmatprep.mubr.bf16.mxu0 %v6042
        %6564 = vmatmul.mubr.bf16.gmra.mrb[0].mxu0 %v6041
        %v6565 = vpop.f32.mrb[0].mxu0
        %v6566 = vadd.f32 %v5676, %v6565
        %v6567 = vpop.f32.mrb[0].mxu0
        %v6568 = vpop.f32.mrb[0].mxu0
        %v6569 = vadd.f32 %v5676, %v6568
        %v6570 = vpop.f32.mrb[0].mxu0
        %6571 = vmatprep.mubr.bf16.mxu0 %v6047
        %6572 = vmatmul.mubr.bf16.gmra.mrb[0].mxu0 %v6046
        %v6573 = vpop.f32.mrb[0].mxu0
        %v6574 = vadd.f32 %v5676, %v6573
        %v6575 = vpop.f32.mrb[0].mxu0
        %v6576 = vpop.f32.mrb[0].mxu0
        %v6577 = vadd.f32 %v5676, %v6576
        %v6578 = vpop.f32.mrb[0].mxu0
        %6579 = vmatprep.mubr.bf16.mxu0 %v6052
        %6580 = vmatmul.mubr.bf16.gmra.mrb[0].mxu0 %v6051
        %v6581 = vpop.f32.mrb[0].mxu0
        %v6582 = vadd.f32 %v5676, %v6581
        %v6583 = vpop.f32.mrb[0].mxu0
        %v6584 = vpop.f32.mrb[0].mxu0
        %v6585 = vadd.f32 %v5676, %v6584
        %v6586 = vpop.f32.mrb[0].mxu0
        %6587 = vmatprep.mubr.bf16.mxu0 %v6057
        %6588 = vmatmul.mubr.bf16.gmra.mrb[0].mxu0 %v6056
        %v6589 = vpop.f32.mrb[0].mxu0
        %v6590 = vadd.f32 %v5676, %v6589
        %v6591 = vpop.f32.mrb[0].mxu0
        %v6592 = vpop.f32.mrb[0].mxu0
        %v6593 = vadd.f32 %v5676, %v6592
        %v6594 = vpop.f32.mrb[0].mxu0
        %6595 = vmatprep.mubr.bf16.mxu0 %v6062
        %6596 = vmatmul.mubr.bf16.gmra.mrb[0].mxu0 %v6061
        %v6597 = vpop.f32.mrb[0].mxu0
        %v6598 = vadd.f32 %v5676, %v6597
        %v6599 = vpop.f32.mrb[0].mxu0
        %v6600 = vpop.f32.mrb[0].mxu0
        %v6601 = vadd.f32 %v5676, %v6600
        %v6602 = vpop.f32.mrb[0].mxu0
        %6603 = vmatprep.mubr.bf16.mxu0 %v6067
        %6604 = vmatmul.mubr.bf16.gmra.mrb[0].mxu0 %v6066
        %v6605 = vpop.f32.mrb[0].mxu0
        %v6606 = vadd.f32 %v5676, %v6605
        %v6607 = vpop.f32.mrb[0].mxu0
        %v6608 = vpop.f32.mrb[0].mxu0
        %v6609 = vadd.f32 %v5676, %v6608
        %v6610 = vpop.f32.mrb[0].mxu0
        %6611 = vmatprep.mubr.bf16.mxu0 %v6072
        %6612 = vmatmul.mubr.bf16.gmra.mrb[0].mxu0 %v6071
        %v6613 = vpop.f32.mrb[0].mxu0
        %v6614 = vadd.f32 %v5676, %v6613
        %v6615 = vpop.f32.mrb[0].mxu0
        %v6616 = vpop.f32.mrb[0].mxu0
        %v6617 = vadd.f32 %v5676, %v6616
        %v6618 = vpop.f32.mrb[0].mxu0
        %6619 = vmatprep.mubr.bf16.mxu0 %v6077
        %6620 = vmatmul.mubr.bf16.gmra.mrb[0].mxu0 %v6076
        %v6621 = vpop.f32.mrb[0].mxu0
        %v6622 = vadd.f32 %v5676, %v6621
        %v6623 = vpop.f32.mrb[0].mxu0
        %v6624 = vpop.f32.mrb[0].mxu0
        %v6625 = vadd.f32 %v5676, %v6624
        %v6626 = vpop.f32.mrb[0].mxu0
        %6627 = vmatprep.mubr.bf16.mxu0 %v6082
        %6628 = vmatmul.mubr.bf16.gmra.mrb[0].mxu0 %v6081
        %v6629 = vpop.f32.mrb[0].mxu0
        %v6630 = vadd.f32 %v5676, %v6629
        %v6631 = vpop.f32.mrb[0].mxu0
        %v6632 = vpop.f32.mrb[0].mxu0
        %v6633 = vadd.f32 %v5676, %v6632
        %v6634 = vpop.f32.mrb[0].mxu0
        %6635 = vmatprep.mubr.bf16.mxu0 %v6087
        %6636 = vmatmul.mubr.bf16.gmra.mrb[0].mxu0 %v6086
        %v6637 = vpop.f32.mrb[0].mxu0
        %v6638 = vadd.f32 %v5676, %v6637
        %v6639 = vpop.f32.mrb[0].mxu0
        %v6640 = vpop.f32.mrb[0].mxu0
        %v6641 = vadd.f32 %v5676, %v6640
        %v6642 = vpop.f32.mrb[0].mxu0
        %6643 = vmatprep.mubr.bf16.mxu0 %v6092
        %6644 = vmatmul.mubr.bf16.gmra.mrb[0].mxu0 %v6091
        %v6645 = vpop.f32.mrb[0].mxu0
        %v6646 = vadd.f32 %v5676, %v6645
        %v6647 = vpop.f32.mrb[0].mxu0
        %v6648 = vpop.f32.mrb[0].mxu0
        %v6649 = vadd.f32 %v5676, %v6648
        %v6650 = vpop.f32.mrb[0].mxu0
        %6651 = vmatprep.mubr.bf16.mxu0 %v6097
        %6652 = vmatmul.mubr.bf16.gmra.mrb[0].mxu0 %v6096
        %v6653 = vpop.f32.mrb[0].mxu0
        %v6654 = vadd.f32 %v5676, %v6653
        %v6655 = vpop.f32.mrb[0].mxu0
        %v6656 = vpop.f32.mrb[0].mxu0
        %v6657 = vadd.f32 %v5676, %v6656
        %v6658 = vpop.f32.mrb[0].mxu0
        %6659 = vmatprep.mubr.bf16.mxu0 %v6102
        %6660 = vmatmul.mubr.bf16.gmra.mrb[0].mxu0 %v6101
        %v6661 = vpop.f32.mrb[0].mxu0
        %v6662 = vadd.f32 %v5676, %v6661
        %v6663 = vpop.f32.mrb[0].mxu0
        %v6664 = vpop.f32.mrb[0].mxu0
        %v6665 = vadd.f32 %v5676, %v6664
        %v6666 = vpop.f32.mrb[0].mxu0
        %6667 = vmatprep.mubr.bf16.mxu0 %v6107
        %6668 = vmatmul.mubr.bf16.gmra.mrb[0].mxu0 %v6106
        %v6669 = vpop.f32.mrb[0].mxu0
        %v6670 = vadd.f32 %v5676, %v6669
        %v6671 = vpop.f32.mrb[0].mxu0
        %v6672 = vpop.f32.mrb[0].mxu0
        %v6673 = vpop.f32.mrb[0].mxu0
        %6674 = vdwg.mxu0
        %6675 = vmatprep.subr.bf16.mxu0 0
        %6676 = vmatpush1.bf16.msra.mxu0 %v6355
        %6677 = vmatprep.subr.bf16.mxu0 0
        %6678 = vmatpush1.bf16.msra.mxu0 %v6356
        %6679 = vmatprep.subr.bf16.mxu0 0
        %6680 = vmatpush1.bf16.msra.mxu0 %v6357
        %6681 = vmatprep.subr.bf16.mxu0 0
        %6682 = vmatpush1.bf16.msra.mxu0 %v6358
        %6683 = vmatprep.subr.bf16.mxu0 0
        %6684 = vmatpush1.bf16.msra.mxu0 %v6359
        %6685 = vmatprep.subr.bf16.mxu0 0
        %6686 = vmatpush1.bf16.msra.mxu0 %v6360
        %6687 = vmatprep.subr.bf16.mxu0 0
        %6688 = vmatpush1.bf16.msra.mxu0 %v6361
        %6689 = vmatprep.subr.bf16.mxu0 0
        %6690 = vmatpush1.bf16.msra.mxu0 %v6362
        %6691 = vmatprep.subr.bf16.mxu0 0
        %6692 = vmatpush1.bf16.msra.mxu0 %v6363
        %6693 = vmatprep.subr.bf16.mxu0 0
        %6694 = vmatpush1.bf16.msra.mxu0 %v6364
        %6695 = vmatprep.subr.bf16.mxu0 0
        %6696 = vmatpush1.bf16.msra.mxu0 %v6365
        %6697 = vmatprep.subr.bf16.mxu0 0
        %6698 = vmatpush1.bf16.msra.mxu0 %v6366
        %6699 = vmatprep.subr.bf16.mxu0 0
        %6700 = vmatpush1.bf16.msra.mxu0 %v6367
        %6701 = vmatprep.subr.bf16.mxu0 0
        %6702 = vmatpush1.bf16.msra.mxu0 %v6368
        %6703 = vmatprep.subr.bf16.mxu0 0
        %6704 = vmatpush1.bf16.msra.mxu0 %v6369
        %6705 = vmatprep.subr.bf16.mxu0 0
        %6706 = vmatpush1.bf16.msra.mxu0 %v6370
        %6707 = vmatprep.mubr.bf16.mxu0 %v6009
        %6708 = vmatmul.mubr.bf16.gmra.mrb[0].mxu0 %v6008
        %v6709 = vpop.f32.mrb[0].mxu0
        %v6710 = vadd.f32 %v6510, %v6709
        %v6711 = vpop.f32.mrb[0].mxu0
        %v6712 = vpop.f32.mrb[0].mxu0
        %v6713 = vadd.f32 %v6513, %v6712
        %v6714 = vpop.f32.mrb[0].mxu0
        %6715 = vmatprep.mubr.bf16.mxu0 %v6014
        %6716 = vmatmul.mubr.bf16.gmra.mrb[0].mxu0 %v6013
        %v6717 = vpop.f32.mrb[0].mxu0
        %v6718 = vadd.f32 %v6518, %v6717
        %v6719 = vpop.f32.mrb[0].mxu0
        %v6720 = vpop.f32.mrb[0].mxu0
        %v6721 = vadd.f32 %v6521, %v6720
        %v6722 = vpop.f32.mrb[0].mxu0
        %6723 = vmatprep.mubr.bf16.mxu0 %v6019
        %6724 = vmatmul.mubr.bf16.gmra.mrb[0].mxu0 %v6018
        %v6725 = vpop.f32.mrb[0].mxu0
        %v6726 = vadd.f32 %v6526, %v6725
        %v6727 = vpop.f32.mrb[0].mxu0
        %v6728 = vpop.f32.mrb[0].mxu0
        %v6729 = vadd.f32 %v6529, %v6728
        %v6730 = vpop.f32.mrb[0].mxu0
        %6731 = vmatprep.mubr.bf16.mxu0 %v6024
        %6732 = vmatmul.mubr.bf16.gmra.mrb[0].mxu0 %v6023
        %v6733 = vpop.f32.mrb[0].mxu0
        %v6734 = vadd.f32 %v6534, %v6733
        %v6735 = vpop.f32.mrb[0].mxu0
        %v6736 = vpop.f32.mrb[0].mxu0
        %v6737 = vadd.f32 %v6537, %v6736
        %v6738 = vpop.f32.mrb[0].mxu0
        %6739 = vmatprep.mubr.bf16.mxu0 %v6029
        %6740 = vmatmul.mubr.bf16.gmra.mrb[0].mxu0 %v6028
        %v6741 = vpop.f32.mrb[0].mxu0
        %v6742 = vadd.f32 %v6542, %v6741
        %v6743 = vpop.f32.mrb[0].mxu0
        %v6744 = vpop.f32.mrb[0].mxu0
        %v6745 = vadd.f32 %v6545, %v6744
        %v6746 = vpop.f32.mrb[0].mxu0
        %6747 = vmatprep.mubr.bf16.mxu0 %v6034
        %6748 = vmatmul.mubr.bf16.gmra.mrb[0].mxu0 %v6033
        %v6749 = vpop.f32.mrb[0].mxu0
        %v6750 = vadd.f32 %v6550, %v6749
        %v6751 = vpop.f32.mrb[0].mxu0
        %v6752 = vpop.f32.mrb[0].mxu0
        %v6753 = vadd.f32 %v6553, %v6752
        %v6754 = vpop.f32.mrb[0].mxu0
        %6755 = vmatprep.mubr.bf16.mxu0 %v6039
        %6756 = vmatmul.mubr.bf16.gmra.mrb[0].mxu0 %v6038
        %v6757 = vpop.f32.mrb[0].mxu0
        %v6758 = vadd.f32 %v6558, %v6757
        %v6759 = vpop.f32.mrb[0].mxu0
        %v6760 = vpop.f32.mrb[0].mxu0
        %v6761 = vadd.f32 %v6561, %v6760
        %v6762 = vpop.f32.mrb[0].mxu0
        %6763 = vmatprep.mubr.bf16.mxu0 %v6044
        %6764 = vmatmul.mubr.bf16.gmra.mrb[0].mxu0 %v6043
        %v6765 = vpop.f32.mrb[0].mxu0
        %v6766 = vadd.f32 %v6566, %v6765
        %v6767 = vpop.f32.mrb[0].mxu0
        %v6768 = vpop.f32.mrb[0].mxu0
        %v6769 = vadd.f32 %v6569, %v6768
        %v6770 = vpop.f32.mrb[0].mxu0
        %6771 = vmatprep.mubr.bf16.mxu0 %v6049
        %6772 = vmatmul.mubr.bf16.gmra.mrb[0].mxu0 %v6048
        %v6773 = vpop.f32.mrb[0].mxu0
        %v6774 = vadd.f32 %v6574, %v6773
        %v6775 = vpop.f32.mrb[0].mxu0
        %v6776 = vpop.f32.mrb[0].mxu0
        %v6777 = vadd.f32 %v6577, %v6776
        %v6778 = vpop.f32.mrb[0].mxu0
        %6779 = vmatprep.mubr.bf16.mxu0 %v6054
        %6780 = vmatmul.mubr.bf16.gmra.mrb[0].mxu0 %v6053
        %v6781 = vpop.f32.mrb[0].mxu0
        %v6782 = vadd.f32 %v6582, %v6781
        %v6783 = vpop.f32.mrb[0].mxu0
        %v6784 = vpop.f32.mrb[0].mxu0
        %v6785 = vadd.f32 %v6585, %v6784
        %v6786 = vpop.f32.mrb[0].mxu0
        %6787 = vmatprep.mubr.bf16.mxu0 %v6059
        %6788 = vmatmul.mubr.bf16.gmra.mrb[0].mxu0 %v6058
        %v6789 = vpop.f32.mrb[0].mxu0
        %v6790 = vadd.f32 %v6590, %v6789
        %v6791 = vpop.f32.mrb[0].mxu0
        %v6792 = vpop.f32.mrb[0].mxu0
        %v6793 = vadd.f32 %v6593, %v6792
        %v6794 = vpop.f32.mrb[0].mxu0
        %6795 = vmatprep.mubr.bf16.mxu0 %v6064
        %6796 = vmatmul.mubr.bf16.gmra.mrb[0].mxu0 %v6063
        %v6797 = vpop.f32.mrb[0].mxu0
        %v6798 = vadd.f32 %v6598, %v6797
        %v6799 = vpop.f32.mrb[0].mxu0
        %v6800 = vpop.f32.mrb[0].mxu0
        %v6801 = vadd.f32 %v6601, %v6800
        %v6802 = vpop.f32.mrb[0].mxu0
        %6803 = vmatprep.mubr.bf16.mxu0 %v6069
        %6804 = vmatmul.mubr.bf16.gmra.mrb[0].mxu0 %v6068
        %v6805 = vpop.f32.mrb[0].mxu0
        %v6806 = vadd.f32 %v6606, %v6805
        %v6807 = vpop.f32.mrb[0].mxu0
        %v6808 = vpop.f32.mrb[0].mxu0
        %v6809 = vadd.f32 %v6609, %v6808
        %v6810 = vpop.f32.mrb[0].mxu0
        %6811 = vmatprep.mubr.bf16.mxu0 %v6074
        %6812 = vmatmul.mubr.bf16.gmra.mrb[0].mxu0 %v6073
        %v6813 = vpop.f32.mrb[0].mxu0
        %v6814 = vadd.f32 %v6614, %v6813
        %v6815 = vpop.f32.mrb[0].mxu0
        %v6816 = vpop.f32.mrb[0].mxu0
        %v6817 = vadd.f32 %v6617, %v6816
        %v6818 = vpop.f32.mrb[0].mxu0
        %6819 = vmatprep.mubr.bf16.mxu0 %v6079
        %6820 = vmatmul.mubr.bf16.gmra.mrb[0].mxu0 %v6078
        %v6821 = vpop.f32.mrb[0].mxu0
        %v6822 = vadd.f32 %v6622, %v6821
        %v6823 = vpop.f32.mrb[0].mxu0
        %v6824 = vpop.f32.mrb[0].mxu0
        %v6825 = vadd.f32 %v6625, %v6824
        %v6826 = vpop.f32.mrb[0].mxu0
        %6827 = vmatprep.mubr.bf16.mxu0 %v6084
        %6828 = vmatmul.mubr.bf16.gmra.mrb[0].mxu0 %v6083
        %v6829 = vpop.f32.mrb[0].mxu0
        %v6830 = vadd.f32 %v6630, %v6829
        %v6831 = vpop.f32.mrb[0].mxu0
        %v6832 = vpop.f32.mrb[0].mxu0
        %v6833 = vadd.f32 %v6633, %v6832
        %v6834 = vpop.f32.mrb[0].mxu0
        %6835 = vmatprep.mubr.bf16.mxu0 %v6089
        %6836 = vmatmul.mubr.bf16.gmra.mrb[0].mxu0 %v6088
        %v6837 = vpop.f32.mrb[0].mxu0
        %v6838 = vadd.f32 %v6638, %v6837
        %v6839 = vpop.f32.mrb[0].mxu0
        %v6840 = vpop.f32.mrb[0].mxu0
        %v6841 = vadd.f32 %v6641, %v6840
        %v6842 = vpop.f32.mrb[0].mxu0
        %6843 = vmatprep.mubr.bf16.mxu0 %v6094
        %6844 = vmatmul.mubr.bf16.gmra.mrb[0].mxu0 %v6093
        %v6845 = vpop.f32.mrb[0].mxu0
        %v6846 = vadd.f32 %v6646, %v6845
        %v6847 = vpop.f32.mrb[0].mxu0
        %v6848 = vpop.f32.mrb[0].mxu0
        %v6849 = vadd.f32 %v6649, %v6848
        %v6850 = vpop.f32.mrb[0].mxu0
        %6851 = vmatprep.mubr.bf16.mxu0 %v6099
        %6852 = vmatmul.mubr.bf16.gmra.mrb[0].mxu0 %v6098
        %v6853 = vpop.f32.mrb[0].mxu0
        %v6854 = vadd.f32 %v6654, %v6853
        %v6855 = vpop.f32.mrb[0].mxu0
        %v6856 = vpop.f32.mrb[0].mxu0
        %v6857 = vadd.f32 %v6657, %v6856
        %v6858 = vpop.f32.mrb[0].mxu0
        %6859 = vmatprep.mubr.bf16.mxu0 %v6104
        %6860 = vmatmul.mubr.bf16.gmra.mrb[0].mxu0 %v6103
        %v6861 = vpop.f32.mrb[0].mxu0
        %v6862 = vadd.f32 %v6662, %v6861
        %v6863 = vpop.f32.mrb[0].mxu0
        %v6864 = vpop.f32.mrb[0].mxu0
        %v6865 = vadd.f32 %v6665, %v6864
        %v6866 = vpop.f32.mrb[0].mxu0
        %6867 = vmatprep.mubr.bf16.mxu0 %v6109
        %6868 = vmatmul.mubr.bf16.gmra.mrb[0].mxu0 %v6108
        %v6869 = vpop.f32.mrb[0].mxu0
        %v6870 = vadd.f32 %v6670, %v6869
        %v6871 = vpop.f32.mrb[0].mxu0
        %v6872 = vpop.f32.mrb[0].mxu0
        %v6873 = vpop.f32.mrb[0].mxu0
        %6874 = vdwg.mxu0
        %6875 = vmatprep.subr.bf16.mxu0 0
        %6876 = vmatpush1.bf16.msra.mxu0 %v6371
        %6877 = vmatprep.subr.bf16.mxu0 0
        %6878 = vmatpush1.bf16.msra.mxu0 %v6372
        %6879 = vmatprep.subr.bf16.mxu0 0
        %6880 = vmatpush1.bf16.msra.mxu0 %v6373
        %6881 = vmatprep.subr.bf16.mxu0 0
        %6882 = vmatpush1.bf16.msra.mxu0 %v6374
        %6883 = vmatprep.subr.bf16.mxu0 0
        %6884 = vmatpush1.bf16.msra.mxu0 0
        %6885 = vmatprep.subr.bf16.mxu0 0
        %6886 = vmatpush1.bf16.msra.mxu0 0
        %6887 = vmatprep.subr.bf16.mxu0 0
        %6888 = vmatpush1.bf16.msra.mxu0 0
        %6889 = vmatprep.subr.bf16.mxu0 0
        %6890 = vmatpush1.bf16.msra.mxu0 0
        %6891 = vmatprep.subr.bf16.mxu0 0
        %6892 = vmatpush1.bf16.msra.mxu0 0
        %6893 = vmatprep.subr.bf16.mxu0 0
        %6894 = vmatpush1.bf16.msra.mxu0 0
        %6895 = vmatprep.subr.bf16.mxu0 0
        %6896 = vmatpush1.bf16.msra.mxu0 0
        %6897 = vmatprep.subr.bf16.mxu0 0
        %6898 = vmatpush1.bf16.msra.mxu0 0
        %6899 = vmatprep.subr.bf16.mxu0 0
        %6900 = vmatpush1.bf16.msra.mxu0 0
        %6901 = vmatprep.subr.bf16.mxu0 0
        %6902 = vmatpush1.bf16.msra.mxu0 0
        %6903 = vmatprep.subr.bf16.mxu0 0
        %6904 = vmatpush1.bf16.msra.mxu0 0
        %6905 = vmatprep.subr.bf16.mxu0 0
        %6906 = vmatpush1.bf16.msra.mxu0 0
        %6907 = vmatprep.mubr.bf16.mxu0 0
        %6908 = vmatmul.mubr.bf16.gmra.mrb[0].mxu0 %v6413
        %v6909 = vpop.f32.mrb[0].mxu0
        %v6910 = vadd.f32 %v6710, %v6909
        %v6911 = vpop.f32.mrb[0].mxu0
        %v6912 = vpop.f32.mrb[0].mxu0
        %v6913 = vadd.f32 %v6713, %v6912
        %v6914 = vpop.f32.mrb[0].mxu0
        %6915 = vmatprep.mubr.bf16.mxu0 0
        %6916 = vmatmul.mubr.bf16.gmra.mrb[0].mxu0 %v6416
        %v6917 = vpop.f32.mrb[0].mxu0
        %v6918 = vadd.f32 %v6718, %v6917
        %v6919 = vpop.f32.mrb[0].mxu0
        %v6920 = vpop.f32.mrb[0].mxu0
        %v6921 = vadd.f32 %v6721, %v6920
        %v6922 = vpop.f32.mrb[0].mxu0
        %6923 = vmatprep.mubr.bf16.mxu0 0
        %6924 = vmatmul.mubr.bf16.gmra.mrb[0].mxu0 %v6419
        %v6925 = vpop.f32.mrb[0].mxu0
        %v6926 = vadd.f32 %v6726, %v6925
        %v6927 = vpop.f32.mrb[0].mxu0
        %v6928 = vpop.f32.mrb[0].mxu0
        %v6929 = vadd.f32 %v6729, %v6928
        %v6930 = vpop.f32.mrb[0].mxu0
        %6931 = vmatprep.mubr.bf16.mxu0 0
        %6932 = vmatmul.mubr.bf16.gmra.mrb[0].mxu0 %v6422
        %v6933 = vpop.f32.mrb[0].mxu0
        %v6934 = vadd.f32 %v6734, %v6933
        %v6935 = vpop.f32.mrb[0].mxu0
        %v6936 = vpop.f32.mrb[0].mxu0
        %v6937 = vadd.f32 %v6737, %v6936
        %v6938 = vpop.f32.mrb[0].mxu0
        %6939 = vmatprep.mubr.bf16.mxu0 0
        %6940 = vmatmul.mubr.bf16.gmra.mrb[0].mxu0 %v6425
        %v6941 = vpop.f32.mrb[0].mxu0
        %v6942 = vadd.f32 %v6742, %v6941
        %v6943 = vpop.f32.mrb[0].mxu0
        %v6944 = vpop.f32.mrb[0].mxu0
        %v6945 = vadd.f32 %v6745, %v6944
        %v6946 = vpop.f32.mrb[0].mxu0
        %6947 = vmatprep.mubr.bf16.mxu0 0
        %6948 = vmatmul.mubr.bf16.gmra.mrb[0].mxu0 %v6428
        %v6949 = vpop.f32.mrb[0].mxu0
        %v6950 = vadd.f32 %v6750, %v6949
        %v6951 = vpop.f32.mrb[0].mxu0
        %v6952 = vpop.f32.mrb[0].mxu0
        %v6953 = vadd.f32 %v6753, %v6952
        %v6954 = vpop.f32.mrb[0].mxu0
        %6955 = vmatprep.mubr.bf16.mxu0 0
        %6956 = vmatmul.mubr.bf16.gmra.mrb[0].mxu0 %v6431
        %v6957 = vpop.f32.mrb[0].mxu0
        %v6958 = vadd.f32 %v6758, %v6957
        %v6959 = vpop.f32.mrb[0].mxu0
        %v6960 = vpop.f32.mrb[0].mxu0
        %v6961 = vadd.f32 %v6761, %v6960
        %v6962 = vpop.f32.mrb[0].mxu0
        %6963 = vmatprep.mubr.bf16.mxu0 0
        %6964 = vmatmul.mubr.bf16.gmra.mrb[0].mxu0 %v6434
        %v6965 = vpop.f32.mrb[0].mxu0
        %v6966 = vadd.f32 %v6766, %v6965
        %v6967 = vpop.f32.mrb[0].mxu0
        %v6968 = vpop.f32.mrb[0].mxu0
        %v6969 = vadd.f32 %v6769, %v6968
        %v6970 = vpop.f32.mrb[0].mxu0
        %6971 = vmatprep.mubr.bf16.mxu0 0
        %6972 = vmatmul.mubr.bf16.gmra.mrb[0].mxu0 %v6437
        %v6973 = vpop.f32.mrb[0].mxu0
        %v6974 = vadd.f32 %v6774, %v6973
        %v6975 = vpop.f32.mrb[0].mxu0
        %v6976 = vpop.f32.mrb[0].mxu0
        %v6977 = vadd.f32 %v6777, %v6976
        %v6978 = vpop.f32.mrb[0].mxu0
        %6979 = vmatprep.mubr.bf16.mxu0 0
        %6980 = vmatmul.mubr.bf16.gmra.mrb[0].mxu0 %v6440
        %v6981 = vpop.f32.mrb[0].mxu0
        %v6982 = vadd.f32 %v6782, %v6981
        %v6983 = vpop.f32.mrb[0].mxu0
        %v6984 = vpop.f32.mrb[0].mxu0
        %v6985 = vadd.f32 %v6785, %v6984
        %v6986 = vpop.f32.mrb[0].mxu0
        %6987 = vmatprep.mubr.bf16.mxu0 0
        %6988 = vmatmul.mubr.bf16.gmra.mrb[0].mxu0 %v6443
        %v6989 = vpop.f32.mrb[0].mxu0
        %v6990 = vadd.f32 %v6790, %v6989
        %v6991 = vpop.f32.mrb[0].mxu0
        %v6992 = vpop.f32.mrb[0].mxu0
        %v6993 = vadd.f32 %v6793, %v6992
        %v6994 = vpop.f32.mrb[0].mxu0
        %6995 = vmatprep.mubr.bf16.mxu0 0
        %6996 = vmatmul.mubr.bf16.gmra.mrb[0].mxu0 %v6446
        %v6997 = vpop.f32.mrb[0].mxu0
        %v6998 = vadd.f32 %v6798, %v6997
        %v6999 = vpop.f32.mrb[0].mxu0
        %v7000 = vpop.f32.mrb[0].mxu0
        %v7001 = vadd.f32 %v6801, %v7000
        %v7002 = vpop.f32.mrb[0].mxu0
        %7003 = vmatprep.mubr.bf16.mxu0 0
        %7004 = vmatmul.mubr.bf16.gmra.mrb[0].mxu0 %v6449
        %v7005 = vpop.f32.mrb[0].mxu0
        %v7006 = vadd.f32 %v6806, %v7005
        %v7007 = vpop.f32.mrb[0].mxu0
        %v7008 = vpop.f32.mrb[0].mxu0
        %v7009 = vadd.f32 %v6809, %v7008
        %v7010 = vpop.f32.mrb[0].mxu0
        %7011 = vmatprep.mubr.bf16.mxu0 0
        %7012 = vmatmul.mubr.bf16.gmra.mrb[0].mxu0 %v6452
        %v7013 = vpop.f32.mrb[0].mxu0
        %v7014 = vadd.f32 %v6814, %v7013
        %v7015 = vpop.f32.mrb[0].mxu0
        %v7016 = vpop.f32.mrb[0].mxu0
        %v7017 = vadd.f32 %v6817, %v7016
        %v7018 = vpop.f32.mrb[0].mxu0
        %7019 = vmatprep.mubr.bf16.mxu0 0
        %7020 = vmatmul.mubr.bf16.gmra.mrb[0].mxu0 %v6455
        %v7021 = vpop.f32.mrb[0].mxu0
        %v7022 = vadd.f32 %v6822, %v7021
        %v7023 = vpop.f32.mrb[0].mxu0
        %v7024 = vpop.f32.mrb[0].mxu0
        %v7025 = vadd.f32 %v6825, %v7024
        %v7026 = vpop.f32.mrb[0].mxu0
        %7027 = vmatprep.mubr.bf16.mxu0 0
        %7028 = vmatmul.mubr.bf16.gmra.mrb[0].mxu0 %v6458
        %v7029 = vpop.f32.mrb[0].mxu0
        %v7030 = vadd.f32 %v6830, %v7029
        %v7031 = vpop.f32.mrb[0].mxu0
        %v7032 = vpop.f32.mrb[0].mxu0
        %v7033 = vadd.f32 %v6833, %v7032
        %v7034 = vpop.f32.mrb[0].mxu0
        %7035 = vmatprep.mubr.bf16.mxu0 0
        %7036 = vmatmul.mubr.bf16.gmra.mrb[0].mxu0 %v6461
        %v7037 = vpop.f32.mrb[0].mxu0
        %v7038 = vadd.f32 %v6838, %v7037
        %v7039 = vpop.f32.mrb[0].mxu0
        %v7040 = vpop.f32.mrb[0].mxu0
        %v7041 = vadd.f32 %v6841, %v7040
        %v7042 = vpop.f32.mrb[0].mxu0
        %7043 = vmatprep.mubr.bf16.mxu0 0
        %7044 = vmatmul.mubr.bf16.gmra.mrb[0].mxu0 %v6464
        %v7045 = vpop.f32.mrb[0].mxu0
        %v7046 = vadd.f32 %v6846, %v7045
        %v7047 = vpop.f32.mrb[0].mxu0
        %v7048 = vpop.f32.mrb[0].mxu0
        %v7049 = vadd.f32 %v6849, %v7048
        %v7050 = vpop.f32.mrb[0].mxu0
        %7051 = vmatprep.mubr.bf16.mxu0 0
        %7052 = vmatmul.mubr.bf16.gmra.mrb[0].mxu0 %v6467
        %v7053 = vpop.f32.mrb[0].mxu0
        %v7054 = vadd.f32 %v6854, %v7053
        %v7055 = vpop.f32.mrb[0].mxu0
        %v7056 = vpop.f32.mrb[0].mxu0
        %v7057 = vadd.f32 %v6857, %v7056
        %v7058 = vpop.f32.mrb[0].mxu0
        %7059 = vmatprep.mubr.bf16.mxu0 0
        %7060 = vmatmul.mubr.bf16.gmra.mrb[0].mxu0 %v6470
        %v7061 = vpop.f32.mrb[0].mxu0
        %v7062 = vadd.f32 %v6862, %v7061
        %v7063 = vpop.f32.mrb[0].mxu0
        %v7064 = vpop.f32.mrb[0].mxu0
        %v7065 = vadd.f32 %v6865, %v7064
        %v7066 = vpop.f32.mrb[0].mxu0
        %7067 = vmatprep.mubr.bf16.mxu0 0
        %7068 = vmatmul.mubr.bf16.gmra.mrb[0].mxu0 %v6473
        %v7069 = vpop.f32.mrb[0].mxu0
        %v7070 = vadd.f32 %v6870, %v7069
        %v7071 = vpop.f32.mrb[0].mxu0
        %v7072 = vpop.f32.mrb[0].mxu0
        %v7073 = vpop.f32.mrb[0].mxu0
        %7074 = vdwg.mxu0
        %v7075 = vmax.f32 %v6910, 0.0
        %v7076 = vmax.f32 %v6913, 0.0
        %v7077 = vmax.f32 %v6918, 0.0
        %v7078 = vmax.f32 %v6921, 0.0
        %v7079 = vmax.f32 %v6926, 0.0
        %v7080 = vmax.f32 %v6929, 0.0
        %v7081 = vmax.f32 %v6934, 0.0
        %v7082 = vmax.f32 %v6937, 0.0
        %v7083 = vmax.f32 %v6942, 0.0
        %v7084 = vmax.f32 %v6945, 0.0
        %v7085 = vmax.f32 %v6950, 0.0
        %v7086 = vmax.f32 %v6953, 0.0
        %v7087 = vmax.f32 %v6958, 0.0
        %v7088 = vmax.f32 %v6961, 0.0
        %v7089 = vmax.f32 %v6966, 0.0
        %v7090 = vmax.f32 %v6969, 0.0
        %v7091 = vmax.f32 %v6974, 0.0
        %v7092 = vmax.f32 %v6977, 0.0
        %v7093 = vmax.f32 %v6982, 0.0
        %v7094 = vmax.f32 %v6985, 0.0
        %v7095 = vmax.f32 %v6990, 0.0
        %v7096 = vmax.f32 %v6993, 0.0
        %v7097 = vmax.f32 %v6998, 0.0
        %v7098 = vmax.f32 %v7001, 0.0
        %v7099 = vmax.f32 %v7006, 0.0
        %v7100 = vmax.f32 %v7009, 0.0
        %v7101 = vmax.f32 %v7014, 0.0
        %v7102 = vmax.f32 %v7017, 0.0
        %v7103 = vmax.f32 %v7022, 0.0
        %v7104 = vmax.f32 %v7025, 0.0
        %v7105 = vmax.f32 %v7030, 0.0
        %v7106 = vmax.f32 %v7033, 0.0
        %v7107 = vmax.f32 %v7038, 0.0
        %v7108 = vmax.f32 %v7041, 0.0
        %v7109 = vmax.f32 %v7046, 0.0
        %v7110 = vmax.f32 %v7049, 0.0
        %v7111 = vmax.f32 %v7054, 0.0
        %v7112 = vmax.f32 %v7057, 0.0
        %v7113 = vmax.f32 %v7062, 0.0
        %v7114 = vmax.f32 %v7065, 0.0
        %v7115 = vmax.f32 %v7070, 0.0
        %v7116 = vld [vmem:[%s1] sm:$0xff]
        %v7117 = vld [vmem:[%s1 + $0x8] sm:$0xff]
        %v7118 = vld [vmem:[%s1 + $0x10] sm:$0xff]
        %v7119 = vld [vmem:[%s1 + $0x18] sm:$0xff]
        %v7120 = vld [vmem:[%s1 + $0x20] sm:$0xff]
        %v7121 = vld [vmem:[%s1 + $0x28] sm:$0xff]
        %v7122 = vld [vmem:[%s1 + $0x30] sm:$0xff]
        %v7123 = vld [vmem:[%s1 + $0x38] sm:$0xff]
        %v7124 = vld [vmem:[%s1 + $0x40] sm:$0xff]
        %v7125 = vld [vmem:[%s1 + $0x48] sm:$0xff]
        %v7126 = vld [vmem:[%s1 + $0x50] sm:$0xff]
        %v7127 = vld [vmem:[%s1 + $0x58] sm:$0xff]
        %v7128 = vld [vmem:[%s1 + $0x60] sm:$0xff]
        %v7129 = vld [vmem:[%s1 + $0x68] sm:$0xff]
        %v7130 = vld [vmem:[%s1 + $0x70] sm:$0xff]
        %v7131 = vld [vmem:[%s1 + $0x78] sm:$0xff]
        %v7132 = vld [vmem:[%s1 + $0x80] sm:$0xff]
        %v7133 = vld [vmem:[%s1 + $0x88] sm:$0xff]
        %v7134 = vld [vmem:[%s1 + $0x90] sm:$0xff]
        %v7135 = vld [vmem:[%s1 + $0x98] sm:$0xff]
        %v7136 = vld [vmem:[%s1 + $0xa0] sm:$0xff]
        %v7137 = vld [vmem:[%s1 + $0xa8] sm:$0xff]
        %v7138 = vld [vmem:[%s1 + $0xb0] sm:$0xff]
        %v7139 = vld [vmem:[%s1 + $0xb8] sm:$0xff]
        %v7140 = vld [vmem:[%s1 + $0xc0] sm:$0xff]
        %v7141 = vld [vmem:[%s1 + $0xc8] sm:$0xff]
        %v7142 = vld [vmem:[%s1 + $0xd0] sm:$0xff]
        %v7143 = vld [vmem:[%s1 + $0xd8] sm:$0xff]
        %v7144 = vld [vmem:[%s1 + $0xe0] sm:$0xff]
        %v7145 = vld [vmem:[%s1 + $0xe8] sm:$0xff]
        %v7146 = vld [vmem:[%s1 + $0xf0] sm:$0xff]
        %v7147 = vld [vmem:[%s1 + $0xf8] sm:$0xff]
        %v7148 = vld [vmem:[%s1 + $0x100] sm:$0xff]
        %v7149 = vld [vmem:[%s1 + $0x108] sm:$0xff]
        %v7150 = vld [vmem:[%s1 + $0x110] sm:$0xff]
        %v7151 = vld [vmem:[%s1 + $0x118] sm:$0xff]
        %v7152 = vld [vmem:[%s1 + $0x120] sm:$0xff]
        %v7153 = vld [vmem:[%s1 + $0x128] sm:$0xff]
        %v7154 = vld [vmem:[%s1 + $0x130] sm:$0xff]
        %v7155 = vld [vmem:[%s1 + $0x138] sm:$0xff]
        %v7156 = vld [vmem:[%s1 + $0x140] sm:$0xff]
        %7158 = vset.pattern.permute.xlu0 0
        %7159 = vperm.xlu0 %7158, %v7116
        %v7160 = vpop.permute.xlu0 %7159
        %7163 = vset.pattern.permute.xlu0 0
        %7164 = vperm.xlu0 %7163, %v7117
        %v7165 = vpop.permute.xlu0 %7164
        %7168 = vset.pattern.permute.xlu0 0
        %7169 = vperm.xlu0 %7168, %v7118
        %v7170 = vpop.permute.xlu0 %7169
        %7173 = vset.pattern.permute.xlu0 0
        %7174 = vperm.xlu0 %7173, %v7119
        %v7175 = vpop.permute.xlu0 %7174
        %7178 = vset.pattern.permute.xlu0 0
        %7179 = vperm.xlu0 %7178, %v7120
        %v7180 = vpop.permute.xlu0 %7179
        %7183 = vset.pattern.permute.xlu0 0
        %7184 = vperm.xlu0 %7183, %v7121
        %v7185 = vpop.permute.xlu0 %7184
        %7188 = vset.pattern.permute.xlu0 0
        %7189 = vperm.xlu0 %7188, %v7122
        %v7190 = vpop.permute.xlu0 %7189
        %7193 = vset.pattern.permute.xlu0 0
        %7194 = vperm.xlu0 %7193, %v7123
        %v7195 = vpop.permute.xlu0 %7194
        %7198 = vset.pattern.permute.xlu0 0
        %7199 = vperm.xlu0 %7198, %v7124
        %v7200 = vpop.permute.xlu0 %7199
        %7203 = vset.pattern.permute.xlu0 0
        %7204 = vperm.xlu0 %7203, %v7125
        %v7205 = vpop.permute.xlu0 %7204
        %7208 = vset.pattern.permute.xlu0 0
        %7209 = vperm.xlu0 %7208, %v7126
        %v7210 = vpop.permute.xlu0 %7209
        %7213 = vset.pattern.permute.xlu0 0
        %7214 = vperm.xlu0 %7213, %v7127
        %v7215 = vpop.permute.xlu0 %7214
        %7218 = vset.pattern.permute.xlu0 0
        %7219 = vperm.xlu0 %7218, %v7128
        %v7220 = vpop.permute.xlu0 %7219
        %7223 = vset.pattern.permute.xlu0 0
        %7224 = vperm.xlu0 %7223, %v7129
        %v7225 = vpop.permute.xlu0 %7224
        %7228 = vset.pattern.permute.xlu0 0
        %7229 = vperm.xlu0 %7228, %v7130
        %v7230 = vpop.permute.xlu0 %7229
        %7233 = vset.pattern.permute.xlu0 0
        %7234 = vperm.xlu0 %7233, %v7131
        %v7235 = vpop.permute.xlu0 %7234
        %7238 = vset.pattern.permute.xlu0 0
        %7239 = vperm.xlu0 %7238, %v7132
        %v7240 = vpop.permute.xlu0 %7239
        %7243 = vset.pattern.permute.xlu0 0
        %7244 = vperm.xlu0 %7243, %v7133
        %v7245 = vpop.permute.xlu0 %7244
        %7248 = vset.pattern.permute.xlu0 0
        %7249 = vperm.xlu0 %7248, %v7134
        %v7250 = vpop.permute.xlu0 %7249
        %7253 = vset.pattern.permute.xlu0 0
        %7254 = vperm.xlu0 %7253, %v7135
        %v7255 = vpop.permute.xlu0 %7254
        %7258 = vset.pattern.permute.xlu0 0
        %7259 = vperm.xlu0 %7258, %v7136
        %v7260 = vpop.permute.xlu0 %7259
        %7263 = vset.pattern.permute.xlu0 0
        %7264 = vperm.xlu0 %7263, %v7137
        %v7265 = vpop.permute.xlu0 %7264
        %7268 = vset.pattern.permute.xlu0 0
        %7269 = vperm.xlu0 %7268, %v7138
        %v7270 = vpop.permute.xlu0 %7269
        %7273 = vset.pattern.permute.xlu0 0
        %7274 = vperm.xlu0 %7273, %v7139
        %v7275 = vpop.permute.xlu0 %7274
        %7278 = vset.pattern.permute.xlu0 0
        %7279 = vperm.xlu0 %7278, %v7140
        %v7280 = vpop.permute.xlu0 %7279
        %7283 = vset.pattern.permute.xlu0 0
        %7284 = vperm.xlu0 %7283, %v7141
        %v7285 = vpop.permute.xlu0 %7284
        %7288 = vset.pattern.permute.xlu0 0
        %7289 = vperm.xlu0 %7288, %v7142
        %v7290 = vpop.permute.xlu0 %7289
        %7293 = vset.pattern.permute.xlu0 0
        %7294 = vperm.xlu0 %7293, %v7143
        %v7295 = vpop.permute.xlu0 %7294
        %7298 = vset.pattern.permute.xlu0 0
        %7299 = vperm.xlu0 %7298, %v7144
        %v7300 = vpop.permute.xlu0 %7299
        %7303 = vset.pattern.permute.xlu0 0
        %7304 = vperm.xlu0 %7303, %v7145
        %v7305 = vpop.permute.xlu0 %7304
        %7308 = vset.pattern.permute.xlu0 0
        %7309 = vperm.xlu0 %7308, %v7146
        %v7310 = vpop.permute.xlu0 %7309
        %7313 = vset.pattern.permute.xlu0 0
        %7314 = vperm.xlu0 %7313, %v7147
        %v7315 = vpop.permute.xlu0 %7314
        %7318 = vset.pattern.permute.xlu0 0
        %7319 = vperm.xlu0 %7318, %v7148
        %v7320 = vpop.permute.xlu0 %7319
        %7323 = vset.pattern.permute.xlu0 0
        %7324 = vperm.xlu0 %7323, %v7149
        %v7325 = vpop.permute.xlu0 %7324
        %7328 = vset.pattern.permute.xlu0 0
        %7329 = vperm.xlu0 %7328, %v7150
        %v7330 = vpop.permute.xlu0 %7329
        %7333 = vset.pattern.permute.xlu0 0
        %7334 = vperm.xlu0 %7333, %v7151
        %v7335 = vpop.permute.xlu0 %7334
        %7338 = vset.pattern.permute.xlu0 0
        %7339 = vperm.xlu0 %7338, %v7152
        %v7340 = vpop.permute.xlu0 %7339
        %7343 = vset.pattern.permute.xlu0 0
        %7344 = vperm.xlu0 %7343, %v7153
        %v7345 = vpop.permute.xlu0 %7344
        %7348 = vset.pattern.permute.xlu0 0
        %7349 = vperm.xlu0 %7348, %v7154
        %v7350 = vpop.permute.xlu0 %7349
        %7353 = vset.pattern.permute.xlu0 0
        %7354 = vperm.xlu0 %7353, %v7155
        %v7355 = vpop.permute.xlu0 %7354
        %7358 = vset.pattern.permute.xlu0 0
        %7359 = vperm.xlu0 %7358, %v7156
        %v7360 = vpop.permute.xlu0 %7359
        %v7362 = vmul.f32 %v7075, %v7160
        %v7363 = vmul.f32 %v7076, %v7165
        %v7364 = vmul.f32 %v7077, %v7170
        %v7365 = vmul.f32 %v7078, %v7175
        %v7366 = vmul.f32 %v7079, %v7180
        %v7367 = vmul.f32 %v7080, %v7185
        %v7368 = vmul.f32 %v7081, %v7190
        %v7369 = vmul.f32 %v7082, %v7195
        %v7370 = vmul.f32 %v7083, %v7200
        %v7371 = vmul.f32 %v7084, %v7205
        %v7372 = vmul.f32 %v7085, %v7210
        %v7373 = vmul.f32 %v7086, %v7215
        %v7374 = vmul.f32 %v7087, %v7220
        %v7375 = vmul.f32 %v7088, %v7225
        %v7376 = vmul.f32 %v7089, %v7230
        %v7377 = vmul.f32 %v7090, %v7235
        %v7378 = vmul.f32 %v7091, %v7240
        %v7379 = vmul.f32 %v7092, %v7245
        %v7380 = vmul.f32 %v7093, %v7250
        %v7381 = vmul.f32 %v7094, %v7255
        %v7382 = vmul.f32 %v7095, %v7260
        %v7383 = vmul.f32 %v7096, %v7265
        %v7384 = vmul.f32 %v7097, %v7270
        %v7385 = vmul.f32 %v7098, %v7275
        %v7386 = vmul.f32 %v7099, %v7280
        %v7387 = vmul.f32 %v7100, %v7285
        %v7388 = vmul.f32 %v7101, %v7290
        %v7389 = vmul.f32 %v7102, %v7295
        %v7390 = vmul.f32 %v7103, %v7300
        %v7391 = vmul.f32 %v7104, %v7305
        %v7392 = vmul.f32 %v7105, %v7310
        %v7393 = vmul.f32 %v7106, %v7315
        %v7394 = vmul.f32 %v7107, %v7320
        %v7395 = vmul.f32 %v7108, %v7325
        %v7396 = vmul.f32 %v7109, %v7330
        %v7397 = vmul.f32 %v7110, %v7335
        %v7398 = vmul.f32 %v7111, %v7340
        %v7399 = vmul.f32 %v7112, %v7345
        %v7400 = vmul.f32 %v7113, %v7350
        %v7401 = vmul.f32 %v7114, %v7355
        %v7402 = vmul.f32 %v7115, %v7360
        %v7403 = vadd.f32 %v7362, %v7363
        %v7404 = vadd.f32 %v7403, %v7364
        %v7405 = vadd.f32 %v7404, %v7365
        %v7406 = vadd.f32 %v7405, %v7366
        %v7407 = vadd.f32 %v7406, %v7367
        %v7408 = vadd.f32 %v7407, %v7368
        %v7409 = vadd.f32 %v7408, %v7369
        %v7410 = vadd.f32 %v7409, %v7370
        %v7411 = vadd.f32 %v7410, %v7371
        %v7412 = vadd.f32 %v7411, %v7372
        %v7413 = vadd.f32 %v7412, %v7373
        %v7414 = vadd.f32 %v7413, %v7374
        %v7415 = vadd.f32 %v7414, %v7375
        %v7416 = vadd.f32 %v7415, %v7376
        %v7417 = vadd.f32 %v7416, %v7377
        %v7418 = vadd.f32 %v7417, %v7378
        %v7419 = vadd.f32 %v7418, %v7379
        %v7420 = vadd.f32 %v7419, %v7380
        %v7421 = vadd.f32 %v7420, %v7381
        %v7422 = vadd.f32 %v7421, %v7382
        %v7423 = vadd.f32 %v7422, %v7383
        %v7424 = vadd.f32 %v7423, %v7384
        %v7425 = vadd.f32 %v7424, %v7385
        %v7426 = vadd.f32 %v7425, %v7386
        %v7427 = vadd.f32 %v7426, %v7387
        %v7428 = vadd.f32 %v7427, %v7388
        %v7429 = vadd.f32 %v7428, %v7389
        %v7430 = vadd.f32 %v7429, %v7390
        %v7431 = vadd.f32 %v7430, %v7391
        %v7432 = vadd.f32 %v7431, %v7392
        %v7433 = vadd.f32 %v7432, %v7393
        %v7434 = vadd.f32 %v7433, %v7394
        %v7435 = vadd.f32 %v7434, %v7395
        %v7436 = vadd.f32 %v7435, %v7396
        %v7437 = vadd.f32 %v7436, %v7397
        %v7438 = vadd.f32 %v7437, %v7398
        %v7439 = vadd.f32 %v7438, %v7399
        %v7440 = vadd.f32 %v7439, %v7400
        %v7441 = vadd.f32 %v7440, %v7401
        %v7442 = vadd.f32 %v7441, %v7402
        %v7443 = vrot.slane %v7442, 4
        %v7444 = vadd.f32 %v7442, %v7443
        %v7445 = vrot.slane %v7444, 2
        %v7446 = vadd.f32 %v7444, %v7445
        %v7447 = vrot.slane %v7446, 1
        %v7448 = vadd.f32 %v7446, %v7447
        %v7449 = vmul.f32 %v7448, 0.00390625
        %7450 = vst [vmem:[%s328] sm:$0x1] %v7449
        %v7451 = vld [vmem:[%s6] sm:$0xff]
        %v7452 = vld [vmem:[%s6 + $0x8] sm:$0xff]
        %v7453 = vld [vmem:[%s6 + $0x10] sm:$0xff]
        %v7454 = vld [vmem:[%s6 + $0x18] sm:$0xff]
        %v7455 = vld [vmem:[%s6 + $0x20] sm:$0xff]
        %v7456 = vld [vmem:[%s6 + $0x28] sm:$0xff]
        %v7457 = vld [vmem:[%s6 + $0x30] sm:$0xff]
        %v7458 = vld [vmem:[%s6 + $0x38] sm:$0xff]
        %v7459 = vld [vmem:[%s6 + $0x40] sm:$0xff]
        %v7460 = vld [vmem:[%s6 + $0x48] sm:$0xff]
        %v7461 = vld [vmem:[%s6 + $0x50] sm:$0xff]
        %v7462 = vld [vmem:[%s6 + $0x58] sm:$0xff]
        %v7463 = vld [vmem:[%s6 + $0x60] sm:$0xff]
        %v7464 = vld [vmem:[%s6 + $0x68] sm:$0xff]
        %v7465 = vld [vmem:[%s6 + $0x70] sm:$0xff]
        %v7466 = vld [vmem:[%s6 + $0x78] sm:$0xff]
        %v7467 = vld [vmem:[%s7] sm:$0x1]
        %7468 = vmatprep.subr.mxu0 0.0
        %7469 = vmatpush1.msra.mxu0 %v7451
        %7470 = vmatprep.subr.mxu0 0.0
        %7471 = vmatpush1.msra.mxu0 %v7452
        %7472 = vmatprep.subr.mxu0 0.0
        %7473 = vmatpush1.msra.mxu0 %v7453
        %7474 = vmatprep.subr.mxu0 0.0
        %7475 = vmatpush1.msra.mxu0 %v7454
        %7476 = vmatprep.subr.mxu0 0.0
        %7477 = vmatpush1.msra.mxu0 %v7455
        %7478 = vmatprep.subr.mxu0 0.0
        %7479 = vmatpush1.msra.mxu0 %v7456
        %7480 = vmatprep.subr.mxu0 0.0
        %7481 = vmatpush1.msra.mxu0 %v7457
        %7482 = vmatprep.subr.mxu0 0.0
        %7483 = vmatpush1.msra.mxu0 %v7458
        %7484 = vmatprep.subr.mxu0 0.0
        %7485 = vmatpush1.msra.mxu0 %v7459
        %7486 = vmatprep.subr.mxu0 0.0
        %7487 = vmatpush1.msra.mxu0 %v7460
        %7488 = vmatprep.subr.mxu0 0.0
        %7489 = vmatpush1.msra.mxu0 %v7461
        %7490 = vmatprep.subr.mxu0 0.0
        %7491 = vmatpush1.msra.mxu0 %v7462
        %7492 = vmatprep.subr.mxu0 0.0
        %7493 = vmatpush1.msra.mxu0 %v7463
        %7494 = vmatprep.subr.mxu0 0.0
        %7495 = vmatpush1.msra.mxu0 %v7464
        %7496 = vmatprep.subr.mxu0 0.0
        %7497 = vmatpush1.msra.mxu0 %v7465
        %7498 = vmatprep.subr.mxu0 0.0
        %7499 = vmatpush1.msra.mxu0 %v7466
        %7500 = vmatprep.subr.mxu0 0.0
        %7501 = vmatpush1.msra.mxu0 0.0
        %7502 = vmatprep.subr.mxu0 0.0
        %7503 = vmatpush1.msra.mxu0 0.0
        %7504 = vmatprep.subr.mxu0 0.0
        %7505 = vmatpush1.msra.mxu0 0.0
        %7506 = vmatprep.subr.mxu0 0.0
        %7507 = vmatpush1.msra.mxu0 0.0
        %7508 = vmatprep.subr.mxu0 0.0
        %7509 = vmatpush1.msra.mxu0 0.0
        %7510 = vmatprep.subr.mxu0 0.0
        %7511 = vmatpush1.msra.mxu0 0.0
        %7512 = vmatprep.subr.mxu0 0.0
        %7513 = vmatpush1.msra.mxu0 0.0
        %7514 = vmatprep.subr.mxu0 0.0
        %7515 = vmatpush1.msra.mxu0 0.0
        %7516 = vmatprep.subr.mxu0 0.0
        %7517 = vmatpush1.msra.mxu0 0.0
        %7518 = vmatprep.subr.mxu0 0.0
        %7519 = vmatpush1.msra.mxu0 0.0
        %7520 = vmatprep.subr.mxu0 0.0
        %7521 = vmatpush1.msra.mxu0 0.0
        %7522 = vmatprep.subr.mxu0 0.0
        %7523 = vmatpush1.msra.mxu0 0.0
        %7524 = vmatprep.subr.mxu0 0.0
        %7525 = vmatpush1.msra.mxu0 0.0
        %7526 = vmatprep.subr.mxu0 0.0
        %7527 = vmatpush1.msra.mxu0 0.0
        %7528 = vmatprep.subr.mxu0 0.0
        %7529 = vmatpush1.msra.mxu0 0.0
        %7530 = vmatprep.subr.mxu0 0.0
        %7531 = vmatpush1.msra.mxu0 0.0
        %7532 = vmatprep.mubr.f32.mxu0 0.0
        %7533 = vmatmul.mubr.f32.gmra.mrb[0].mxu0 %v7449
        %v7534 = vpop.f32.mrb[0].mxu0
        %v7535 = vadd.f32 %v7467, %v7534
        %v7536 = vpop.f32.mrb[0].mxu0
        %7537 = vdwg.mxu0
        %vm7538 = vcmask 122880
        %7539 = vst.msk [vmem:[%s334] sm:$0x1] %vm7538, %v7535
        %s7540 = sand.u32 %s208, 1
        %s7541 = scalar_lea.sflag [#allocation5], %s7540
        %s7542 = sand.u32 %s208, 1
        %s7543 = scalar_lea.vmem [#allocation4], %s7542
        %s7544 = sand.u32 %s234, 1
        %s7545 = scalar_lea.sflag [#allocation7], %s7544
        %s7546 = sand.u32 %s234, 1
        %s7547 = scalar_lea.vmem [#allocation6], %s7546
        // Predicated region
        $region53: #{tpu_custom_call.1} parent=51 // pred_check
          %p7548 = pneg %p218
        $region54: #{tpu_custom_call.1} parent=51 // pred_check_branch
          %7550 = sbr.rel (%p7548) target = $region56
        $region55: #{tpu_custom_call.1} parent=51 // pred_region
          %s7552 = ssub.s32 16, 16
          %7553 = vsyncadd %s7541, %s7552
          %s7554 = smul.addr %s27, 16
          %s7555 = scalar_lea.hbm %s8, %s7554
          %s7557 = sshll.u32 %s7543, 4
          %s7558 = int_to_ptr.vmem [resolvable:$true] %s7557
          %7560 = dma.vmem_to_hbm [thread:$0]  %s7558, 16, %s7555, %s7541
        $region56: #{tpu_custom_call.1} parent=51 // pred_fallthru
          _
        // Predicated region
        $region57: #{tpu_custom_call.1} parent=51 // pred_check
          %p7561 = pneg %p244
        $region58: #{tpu_custom_call.1} parent=51 // pred_check_branch
          %7563 = sbr.rel (%p7561) target = $region60
        $region59: #{tpu_custom_call.1} parent=51 // pred_region
          %s7565 = ssub.s32 16, 16
          %7566 = vsyncadd %s7545, %s7565
          %s7567 = smul.addr %s27, 16
          %s7568 = scalar_lea.hbm %s9, %s7567
          %s7570 = sshll.u32 %s7547, 4
          %s7571 = int_to_ptr.vmem [resolvable:$true] %s7570
          %7573 = dma.vmem_to_hbm [thread:$0]  %s7571, 16, %s7568, %s7545
        $region60: #{tpu_custom_call.1} parent=51 // pred_fallthru
          _
      $region52: #{tpu_custom_call.1} parent=5 // pred_fallthru
        _
      %p7574 = scmp.le.s32.totalorder 2, %s22
      // Predicated region
      $region61: #{tpu_custom_call.1} parent=5 // pred_check
        %p7575 = pneg %p7574
      $region62: #{tpu_custom_call.1} parent=5 // pred_check_branch
        %7577 = sbr.rel (%p7575) target = $region64
      $region63: #{tpu_custom_call.1} parent=5 // pred_region
        %s7578 = ssub.s32 %s22, 2
        // Predicated region
        $region65: #{tpu_custom_call.1} parent=63 // pred_check
          %p7579 = pneg %p224
        $region66: #{tpu_custom_call.1} parent=63 // pred_check_branch
          %7581 = sbr.rel (%p7579) target = $region68
        $region67: #{tpu_custom_call.1} parent=63 // pred_region
          %s7582 = sand.u32 %s209, 1
          %s7583 = scalar_lea.sflag [#allocation5], %s7582
          %s7584 = sand.u32 %s209, 1
          %s7585 = scalar_lea.vmem [#allocation4], %s7584
          %7586 = dma.done %s7583, 16
        $region68: #{tpu_custom_call.1} parent=63 // pred_fallthru
          _
        // Predicated region
        $region69: #{tpu_custom_call.1} parent=63 // pred_check
          %p7587 = pneg %p250
        $region70: #{tpu_custom_call.1} parent=63 // pred_check_branch
          %7589 = sbr.rel (%p7587) target = $region72
        $region71: #{tpu_custom_call.1} parent=63 // pred_region
          %s7590 = sand.u32 %s235, 1
          %s7591 = scalar_lea.sflag [#allocation7], %s7590
          %s7592 = sand.u32 %s235, 1
          %s7593 = scalar_lea.vmem [#allocation6], %s7592
          %7594 = dma.done %s7591, 16
        $region72: #{tpu_custom_call.1} parent=63 // pred_fallthru
          _
      $region64: #{tpu_custom_call.1} parent=5 // pred_fallthru
        _
    $region6: #{tpu_custom_call.1} parent=1 // loop_footer
      %s26 = sadd.s32 1, %s22
    $region7: #{tpu_custom_call.1} parent=1 // loop_footer_branch
      %21 = sbr.rel target = $region3
    $region8: #{tpu_custom_call.1} parent=1 // loop_exit
      _
    %7595 = vsyncpa [#allocation5], 1
    %s7596 = scalar_lea.sflag [#allocation5], 1
    %7597 = vsyncpa %s7596, 1
    %7598 = vsyncpa [#allocation7], 1
    %s7599 = scalar_lea.sflag [#allocation7], 1
    %7600 = vsyncpa %s7599, 1

</llo_original>
